<compile_context>
chip_gen: v7x
topology: tpu7x:2x2x1
jax: 0.10.0
libtpu: 0.0.40
codegen_flags: <defaults>
</compile_context>

<pallas_src>
import functools

import jax
import jax.numpy as jnp
from jax.experimental import pallas as pl
from jax.experimental.pallas import tpu as pltpu


def _round_up(x, m):
    return (x + m - 1) // m * m


def _double_conv_kernel(x_ref, w1_ref, w2_ref, s1_ref, b1_ref, s2_ref, b2_ref,
                        o_ref, xpad_ref, mid_ref, p1_ref, p2_ref):
    """One batch element, both conv->BN->ReLU stages fused.

    x_ref:   (1, H, W, Cp)       bf16 input (channels zero-padded to Cp)
    w1_ref:  (9*Cp, Mp)          bf16 conv1 weights, im2col layout
    w2_ref:  (9*Mp, Op)          bf16 conv2 weights, im2col layout
    s*_ref:  (1, Mp)/(1, Op)     f32 folded BN scale
    b*_ref:  (1, Mp)/(1, Op)     f32 folded BN bias
    o_ref:   (1, H, W, Op)       f32 output (channels padded to Op)
    xpad_ref:(H+2, W+2, Cp)      bf16 VMEM scratch (zero-padded input)
    mid_ref: (H+2, W+2, Mp)      bf16 VMEM scratch (zero-padded intermediate)
    p1_ref:  (H*W, 9*Cp)         bf16 VMEM im2col scratch (conv1)
    p2_ref:  (H*W, 9*Mp)         bf16 VMEM im2col scratch (conv2)
    """
    H, W = o_ref.shape[1], o_ref.shape[2]

    def im2col_conv_bn_relu(src_ref, patch_ref, w_ref, s_ref, b_ref):
        C = src_ref.shape[2]
        # Build (H*W, 9*C) patch matrix: one lane-aligned 128-multiple column
        # block per tap.
        for kh in range(3):
            for kw in range(3):
                t = kh * 3 + kw
                patch_ref[:, t * C:(t + 1) * C] = (
                    src_ref[kh:kh + H, kw:kw + W, :].reshape(H * W, C))
        # Single MXU matmul, f32 accumulation.
        y = jnp.dot(patch_ref[...], w_ref[...],
                    preferred_element_type=jnp.float32)
        # Folded BatchNorm (inference affine) + ReLU, on the f32 accumulator.
        return jnp.maximum(y * s_ref[...] + b_ref[...], 0.0)

    # ---- conv1: zero-padded halo built in VMEM (no wrapper-side jnp.pad) ----
    xpad_ref[...] = jnp.zeros_like(xpad_ref)
    xpad_ref[1:H + 1, 1:W + 1, :] = x_ref[0]
    y1 = im2col_conv_bn_relu(xpad_ref, p1_ref, w1_ref, s1_ref, b1_ref)

    # ---- conv2: intermediate stays in VMEM (fused, no HBM round trip) ------
    Mp = mid_ref.shape[2]
    mid_ref[...] = jnp.zeros_like(mid_ref)
    mid_ref[1:H + 1, 1:W + 1, :] = y1.reshape(H, W, Mp).astype(mid_ref.dtype)
    y2 = im2col_conv_bn_relu(mid_ref, p2_ref, w2_ref, s2_ref, b2_ref)

    o_ref[0] = y2.reshape(H, W, o_ref.shape[3]).astype(o_ref.dtype)


def fold_bn(gamma, beta, running_mean, running_var, eps=1e-5):
    scale = gamma / jnp.sqrt(running_var + eps)
    bias = beta - running_mean * scale
    return scale, bias


def double_conv(x_nchw, params):
    """Forward of DoubleConv. Input NCHW (PyTorch convention), output NCHW."""
    N, Cin, H, W = x_nchw.shape
    Cmid = params["w1"].shape[-1]
    Cout = params["w2"].shape[-1]
    # Pad channels to lane-dense multiples of 128.
    Cp = _round_up(Cin, 128)
    Mp = _round_up(Cmid, 128)
    Op = _round_up(Cout, 128)

    # NCHW -> NHWC, pad channels, cast to bf16 (f32 accumulation in-kernel).
    x = jnp.transpose(x_nchw, (0, 2, 3, 1))
    x = jnp.pad(x, ((0, 0), (0, 0), (0, 0), (0, Cp - Cin))).astype(jnp.bfloat16)

    # Weights: pad channels, flatten HWIO -> (9*Cin_pad, Cout_pad) im2col layout.
    w1 = jnp.pad(params["w1"], ((0, 0), (0, 0), (0, Cp - Cin), (0, Mp - Cmid)))
    w2 = jnp.pad(params["w2"], ((0, 0), (0, 0), (0, Mp - Cmid), (0, Op - Cout)))
    w1 = w1.reshape(9 * Cp, Mp).astype(jnp.bfloat16)
    w2 = w2.reshape(9 * Mp, Op).astype(jnp.bfloat16)

    s1, b1 = fold_bn(params["bn1_gamma"], params["bn1_beta"],
                     params["bn1_mean"], params["bn1_var"])
    s2, b2 = fold_bn(params["bn2_gamma"], params["bn2_beta"],
                     params["bn2_mean"], params["bn2_var"])
    s1 = jnp.pad(s1, (0, Mp - Cmid)).reshape(1, Mp).astype(jnp.float32)
    b1 = jnp.pad(b1, (0, Mp - Cmid)).reshape(1, Mp).astype(jnp.float32)
    s2 = jnp.pad(s2, (0, Op - Cout)).reshape(1, Op).astype(jnp.float32)
    b2 = jnp.pad(b2, (0, Op - Cout)).reshape(1, Op).astype(jnp.float32)

    out = pl.pallas_call(
        _double_conv_kernel,
        out_shape=jax.ShapeDtypeStruct((N, H, W, Op), jnp.float32),
        grid_spec=pltpu.PrefetchScalarGridSpec(
            num_scalar_prefetch=0,
            grid=(N,),
            in_specs=[
                pl.BlockSpec((1, H, W, Cp), lambda n: (n, 0, 0, 0)),
                pl.BlockSpec((9 * Cp, Mp), lambda n: (0, 0)),
                pl.BlockSpec((9 * Mp, Op), lambda n: (0, 0)),
                pl.BlockSpec((1, Mp), lambda n: (0, 0)),
                pl.BlockSpec((1, Mp), lambda n: (0, 0)),
                pl.BlockSpec((1, Op), lambda n: (0, 0)),
                pl.BlockSpec((1, Op), lambda n: (0, 0)),
            ],
            out_specs=pl.BlockSpec((1, H, W, Op), lambda n: (n, 0, 0, 0)),
            scratch_shapes=[
                pltpu.VMEM((H + 2, W + 2, Cp), jnp.bfloat16),
                pltpu.VMEM((H + 2, W + 2, Mp), jnp.bfloat16),
                pltpu.VMEM((H * W, 9 * Cp), jnp.bfloat16),
                pltpu.VMEM((H * W, 9 * Mp), jnp.bfloat16),
            ],
        ),
        compiler_params=pltpu.CompilerParams(
            dimension_semantics=("parallel",),   # megacore sharding on v7x
            vmem_limit_bytes=48 * 1024 * 1024,
        ),
    )(x, w1, w2, s1, b1, s2, b2)

    out = out[..., :Cout]                          # drop channel padding
    return jnp.transpose(out, (0, 3, 1, 2))        # NHWC -> NCHW


def init_params(key, in_channels, out_channels, mid_channels=None):
    if not mid_channels:
        mid_channels = out_channels
    k1, k2, k3, k4 = jax.random.split(key, 4)
    w1 = jax.random.normal(k1, (3, 3, in_channels, mid_channels),
                           dtype=jnp.float32) * 0.1
    w2 = jax.random.normal(k2, (3, 3, mid_channels, out_channels),
                           dtype=jnp.float32) * 0.1
    return {
        "w1": w1,
        "w2": w2,
        # BatchNorm (inference mode: running stats mean=0, var=1).
        "bn1_gamma": 1.0 + 0.1 * jax.random.normal(k3, (mid_channels,),
                                                   dtype=jnp.float32),
        "bn1_beta": jnp.linspace(-0.1, 0.1, mid_channels, dtype=jnp.float32),
        "bn1_mean": jnp.zeros((mid_channels,), jnp.float32),
        "bn1_var": jnp.ones((mid_channels,), jnp.float32),
        "bn2_gamma": 1.0 + 0.1 * jax.random.normal(k4, (out_channels,),
                                                   dtype=jnp.float32),
        "bn2_beta": jnp.linspace(-0.1, 0.1, out_channels, dtype=jnp.float32),
        "bn2_mean": jnp.zeros((out_channels,), jnp.float32),
        "bn2_var": jnp.ones((out_channels,), jnp.float32),
    }


def _reference_double_conv(x_nchw, params):
    """Pure-JAX reference mirroring the kernel's bf16-input / f32-acc numerics."""
    def rnd(a):  # bf16 rounding of inputs, matching the in-kernel dtype
        return a.astype(jnp.bfloat16).astype(jnp.float32)

    def conv_bn_relu(x, w, scale, bias):
        y = jax.lax.conv_general_dilated(
            rnd(x), rnd(w), window_strides=(1, 1), padding="SAME",
            dimension_numbers=("NCHW", "HWIO", "NCHW"),
            preferred_element_type=jnp.float32)
        y = y * scale[None, :, None, None] + bias[None, :, None, None]
        return jnp.maximum(y, 0.0)

    s1, b1 = fold_bn(params["bn1_gamma"], params["bn1_beta"],
                     params["bn1_mean"], params["bn1_var"])
    s2, b2 = fold_bn(params["bn2_gamma"], params["bn2_beta"],
                     params["bn2_mean"], params["bn2_var"])
    y = conv_bn_relu(x_nchw, params["w1"], s1, b1)
    return conv_bn_relu(y, params["w2"], s2, b2)


if __name__ == "__main__":
    key = jax.random.PRNGKey(0)
    k_x, k_p = jax.random.split(key)

    N, Cin, H, W = 2, 4, 16, 16
    Cout = 8
    x = jax.random.normal(k_x, (N, Cin, H, W), dtype=jnp.float32)
    params = init_params(k_p, Cin, Cout)

    out = jax.jit(functools.partial(double_conv, params=params))(x)
    out = jax.block_until_ready(out)

    ref = _reference_double_conv(x, params)
    assert out.shape == (N, Cout, H, W)
    assert jnp.allclose(out, ref, rtol=1e-3, atol=1e-3), "mismatch vs reference"

    print("KERNEL_OK")
</pallas_src>

<mosaic_0001>
module attributes {stable_mosaic.version = 11 : i64} {
  func.func @_double_conv_kernel(%arg0: i32, %arg1: memref<1x16x16x128xbf16, #tpu.memory_space<vmem>>, %arg2: memref<1152x128xbf16, #tpu.memory_space<vmem>>, %arg3: memref<1152x128xbf16, #tpu.memory_space<vmem>>, %arg4: memref<1x128xf32, #tpu.memory_space<vmem>>, %arg5: memref<1x128xf32, #tpu.memory_space<vmem>>, %arg6: memref<1x128xf32, #tpu.memory_space<vmem>>, %arg7: memref<1x128xf32, #tpu.memory_space<vmem>>, %arg8: memref<1x16x16x128xf32, #tpu.memory_space<vmem>>, %arg9: memref<18x18x128xbf16, #tpu.memory_space<vmem>>, %arg10: memref<18x18x128xbf16, #tpu.memory_space<vmem>>, %arg11: memref<256x1152xbf16, #tpu.memory_space<vmem>>, %arg12: memref<256x1152xbf16, #tpu.memory_space<vmem>>) attributes {dimension_semantics = [#tpu.dimension_semantics<parallel>], iteration_bounds = array<i64: 2>, scalar_prefetch = 0 : i64, scratch_operands = 4 : i64, tpu.core_type = #tpu.core_type<tc>, window_params = [{transform_indices = @transform_0, window_bounds = array<i64: 1, 16, 16, 128>}, {pipeline_mode = #tpu.pipeline_mode<synchronous>, transform_indices = @transform_1, window_bounds = array<i64: 1152, 128>}, {pipeline_mode = #tpu.pipeline_mode<synchronous>, transform_indices = @transform_2, window_bounds = array<i64: 1152, 128>}, {pipeline_mode = #tpu.pipeline_mode<synchronous>, transform_indices = @transform_3, window_bounds = array<i64: 1, 128>}, {pipeline_mode = #tpu.pipeline_mode<synchronous>, transform_indices = @transform_4, window_bounds = array<i64: 1, 128>}, {pipeline_mode = #tpu.pipeline_mode<synchronous>, transform_indices = @transform_5, window_bounds = array<i64: 1, 128>}, {pipeline_mode = #tpu.pipeline_mode<synchronous>, transform_indices = @transform_6, window_bounds = array<i64: 1, 128>}, {transform_indices = @transform_7, window_bounds = array<i64: 1, 16, 16, 128>}]} {
    %cst = arith.constant 0.000000e+00 : bf16
    %0 = vector.broadcast %cst : bf16 to vector<18x18x128xbf16>
    %c0 = arith.constant 0 : index
    %c0_0 = arith.constant 0 : index
    %c0_1 = arith.constant 0 : index
    %1 = vector.load %arg9[%c0, %c0_0, %c0_1] : memref<18x18x128xbf16, #tpu.memory_space<vmem>>, vector<18x18x128xbf16>
    tpu.vector_store %arg9[%c0, %c0_0, %c0_1], %0 {strides = array<i32>} : memref<18x18x128xbf16, #tpu.memory_space<vmem>>, vector<18x18x128xbf16>,
    %c0_2 = arith.constant 0 : index
    %c0_3 = arith.constant 0 : index
    %c0_4 = arith.constant 0 : index
    %c0_5 = arith.constant 0 : index
    %2 = vector.load %arg1[%c0_2, %c0_3, %c0_4, %c0_5] : memref<1x16x16x128xbf16, #tpu.memory_space<vmem>>, vector<1x16x16x128xbf16>
    %3 = vector.shape_cast %2 : vector<1x16x16x128xbf16> to vector<16x16x128xbf16>
    %c1 = arith.constant 1 : index
    %c1_6 = arith.constant 1 : index
    %c0_7 = arith.constant 0 : index
    %4 = vector.load %arg9[%c1, %c1_6, %c0_7] : memref<18x18x128xbf16, #tpu.memory_space<vmem>>, vector<16x16x128xbf16>
    tpu.vector_store %arg9[%c1, %c1_6, %c0_7], %3 {strides = array<i32>} : memref<18x18x128xbf16, #tpu.memory_space<vmem>>, vector<16x16x128xbf16>,
    %c0_8 = arith.constant 0 : index
    %c0_9 = arith.constant 0 : index
    %c0_10 = arith.constant 0 : index
    %5 = vector.load %arg9[%c0_8, %c0_9, %c0_10] : memref<18x18x128xbf16, #tpu.memory_space<vmem>>, vector<16x16x128xbf16>
    %6 = vector.shape_cast %5 : vector<16x16x128xbf16> to vector<256x128xbf16>
    %c0_11 = arith.constant 0 : index
    %c0_12 = arith.constant 0 : index
    %7 = vector.load %arg11[%c0_11, %c0_12] : memref<256x1152xbf16, #tpu.memory_space<vmem>>, vector<256x128xbf16>
    tpu.vector_store %arg11[%c0_11, %c0_12], %6 {strides = array<i32>} : memref<256x1152xbf16, #tpu.memory_space<vmem>>, vector<256x128xbf16>,
    %c0_13 = arith.constant 0 : index
    %c1_14 = arith.constant 1 : index
    %c0_15 = arith.constant 0 : index
    %8 = vector.load %arg9[%c0_13, %c1_14, %c0_15] : memref<18x18x128xbf16, #tpu.memory_space<vmem>>, vector<16x16x128xbf16>
    %9 = vector.shape_cast %8 : vector<16x16x128xbf16> to vector<256x128xbf16>
    %c0_16 = arith.constant 0 : index
    %c128 = arith.constant 128 : index
    %10 = vector.load %arg11[%c0_16, %c128] : memref<256x1152xbf16, #tpu.memory_space<vmem>>, vector<256x128xbf16>
    tpu.vector_store %arg11[%c0_16, %c128], %9 {strides = array<i32>} : memref<256x1152xbf16, #tpu.memory_space<vmem>>, vector<256x128xbf16>,
    %c0_17 = arith.constant 0 : index
    %c2 = arith.constant 2 : index
    %c0_18 = arith.constant 0 : index
    %11 = vector.load %arg9[%c0_17, %c2, %c0_18] : memref<18x18x128xbf16, #tpu.memory_space<vmem>>, vector<16x16x128xbf16>
    %12 = vector.shape_cast %11 : vector<16x16x128xbf16> to vector<256x128xbf16>
    %c0_19 = arith.constant 0 : index
    %c256 = arith.constant 256 : index
    %13 = vector.load %arg11[%c0_19, %c256] : memref<256x1152xbf16, #tpu.memory_space<vmem>>, vector<256x128xbf16>
    tpu.vector_store %arg11[%c0_19, %c256], %12 {strides = array<i32>} : memref<256x1152xbf16, #tpu.memory_space<vmem>>, vector<256x128xbf16>,
    %c1_20 = arith.constant 1 : index
    %c0_21 = arith.constant 0 : index
    %c0_22 = arith.constant 0 : index
    %14 = vector.load %arg9[%c1_20, %c0_21, %c0_22] : memref<18x18x128xbf16, #tpu.memory_space<vmem>>, vector<16x16x128xbf16>
    %15 = vector.shape_cast %14 : vector<16x16x128xbf16> to vector<256x128xbf16>
    %c0_23 = arith.constant 0 : index
    %c384 = arith.constant 384 : index
    %16 = vector.load %arg11[%c0_23, %c384] : memref<256x1152xbf16, #tpu.memory_space<vmem>>, vector<256x128xbf16>
    tpu.vector_store %arg11[%c0_23, %c384], %15 {strides = array<i32>} : memref<256x1152xbf16, #tpu.memory_space<vmem>>, vector<256x128xbf16>,
    %c1_24 = arith.constant 1 : index
    %c1_25 = arith.constant 1 : index
    %c0_26 = arith.constant 0 : index
    %17 = vector.load %arg9[%c1_24, %c1_25, %c0_26] : memref<18x18x128xbf16, #tpu.memory_space<vmem>>, vector<16x16x128xbf16>
    %18 = vector.shape_cast %17 : vector<16x16x128xbf16> to vector<256x128xbf16>
    %c0_27 = arith.constant 0 : index
    %c512 = arith.constant 512 : index
    %19 = vector.load %arg11[%c0_27, %c512] : memref<256x1152xbf16, #tpu.memory_space<vmem>>, vector<256x128xbf16>
    tpu.vector_store %arg11[%c0_27, %c512], %18 {strides = array<i32>} : memref<256x1152xbf16, #tpu.memory_space<vmem>>, vector<256x128xbf16>,
    %c1_28 = arith.constant 1 : index
    %c2_29 = arith.constant 2 : index
    %c0_30 = arith.constant 0 : index
    %20 = vector.load %arg9[%c1_28, %c2_29, %c0_30] : memref<18x18x128xbf16, #tpu.memory_space<vmem>>, vector<16x16x128xbf16>
    %21 = vector.shape_cast %20 : vector<16x16x128xbf16> to vector<256x128xbf16>
    %c0_31 = arith.constant 0 : index
    %c640 = arith.constant 640 : index
    %22 = vector.load %arg11[%c0_31, %c640] : memref<256x1152xbf16, #tpu.memory_space<vmem>>, vector<256x128xbf16>
    tpu.vector_store %arg11[%c0_31, %c640], %21 {strides = array<i32>} : memref<256x1152xbf16, #tpu.memory_space<vmem>>, vector<256x128xbf16>,
    %c2_32 = arith.constant 2 : index
    %c0_33 = arith.constant 0 : index
    %c0_34 = arith.constant 0 : index
    %23 = vector.load %arg9[%c2_32, %c0_33, %c0_34] : memref<18x18x128xbf16, #tpu.memory_space<vmem>>, vector<16x16x128xbf16>
    %24 = vector.shape_cast %23 : vector<16x16x128xbf16> to vector<256x128xbf16>
    %c0_35 = arith.constant 0 : index
    %c768 = arith.constant 768 : index
    %25 = vector.load %arg11[%c0_35, %c768] : memref<256x1152xbf16, #tpu.memory_space<vmem>>, vector<256x128xbf16>
    tpu.vector_store %arg11[%c0_35, %c768], %24 {strides = array<i32>} : memref<256x1152xbf16, #tpu.memory_space<vmem>>, vector<256x128xbf16>,
    %c2_36 = arith.constant 2 : index
    %c1_37 = arith.constant 1 : index
    %c0_38 = arith.constant 0 : index
    %26 = vector.load %arg9[%c2_36, %c1_37, %c0_38] : memref<18x18x128xbf16, #tpu.memory_space<vmem>>, vector<16x16x128xbf16>
    %27 = vector.shape_cast %26 : vector<16x16x128xbf16> to vector<256x128xbf16>
    %c0_39 = arith.constant 0 : index
    %c896 = arith.constant 896 : index
    %28 = vector.load %arg11[%c0_39, %c896] : memref<256x1152xbf16, #tpu.memory_space<vmem>>, vector<256x128xbf16>
    tpu.vector_store %arg11[%c0_39, %c896], %27 {strides = array<i32>} : memref<256x1152xbf16, #tpu.memory_space<vmem>>, vector<256x128xbf16>,
    %c2_40 = arith.constant 2 : index
    %c2_41 = arith.constant 2 : index
    %c0_42 = arith.constant 0 : index
    %29 = vector.load %arg9[%c2_40, %c2_41, %c0_42] : memref<18x18x128xbf16, #tpu.memory_space<vmem>>, vector<16x16x128xbf16>
    %30 = vector.shape_cast %29 : vector<16x16x128xbf16> to vector<256x128xbf16>
    %c0_43 = arith.constant 0 : index
    %c1024 = arith.constant 1024 : index
    %31 = vector.load %arg11[%c0_43, %c1024] : memref<256x1152xbf16, #tpu.memory_space<vmem>>, vector<256x128xbf16>
    tpu.vector_store %arg11[%c0_43, %c1024], %30 {strides = array<i32>} : memref<256x1152xbf16, #tpu.memory_space<vmem>>, vector<256x128xbf16>,
    %c0_44 = arith.constant 0 : index
    %c0_45 = arith.constant 0 : index
    %32 = vector.load %arg11[%c0_44, %c0_45] : memref<256x1152xbf16, #tpu.memory_space<vmem>>, vector<256x1152xbf16>
    %c0_46 = arith.constant 0 : index
    %c0_47 = arith.constant 0 : index
    %33 = vector.load %arg2[%c0_46, %c0_47] : memref<1152x128xbf16, #tpu.memory_space<vmem>>, vector<1152x128xbf16>
    %cst_48 = arith.constant dense<0.000000e+00> : vector<256x128xf32>
    %34 = tpu.matmul %32, %33, %cst_48 {dimension_numbers = #tpu.dot_dimension_numbers<[1], [0], [0], [1], [0, 0, 1, 1], [], []>} : vector<256x1152xbf16>, vector<1152x128xbf16>, vector<256x128xf32> -> vector<256x128xf32>
    %c0_49 = arith.constant 0 : index
    %c0_50 = arith.constant 0 : index
    %35 = vector.load %arg4[%c0_49, %c0_50] : memref<1x128xf32, #tpu.memory_space<vmem>>, vector<1x128xf32>
    %36 = vector.broadcast %35 : vector<1x128xf32> to vector<256x128xf32>
    %37 = arith.mulf %34, %36 : vector<256x128xf32>
    %c0_51 = arith.constant 0 : index
    %c0_52 = arith.constant 0 : index
    %38 = vector.load %arg5[%c0_51, %c0_52] : memref<1x128xf32, #tpu.memory_space<vmem>>, vector<1x128xf32>
    %39 = vector.broadcast %38 : vector<1x128xf32> to vector<256x128xf32>
    %40 = arith.addf %37, %39 : vector<256x128xf32>
    %cst_53 = arith.constant 0.000000e+00 : f32
    %41 = vector.broadcast %cst_53 : f32 to vector<256x128xf32>
    %42 = arith.maximumf %40, %41 : vector<256x128xf32>
    %cst_54 = arith.constant 0.000000e+00 : bf16
    %43 = vector.broadcast %cst_54 : bf16 to vector<18x18x128xbf16>
    %c0_55 = arith.constant 0 : index
    %c0_56 = arith.constant 0 : index
    %c0_57 = arith.constant 0 : index
    %44 = vector.load %arg10[%c0_55, %c0_56, %c0_57] : memref<18x18x128xbf16, #tpu.memory_space<vmem>>, vector<18x18x128xbf16>
    tpu.vector_store %arg10[%c0_55, %c0_56, %c0_57], %43 {strides = array<i32>} : memref<18x18x128xbf16, #tpu.memory_space<vmem>>, vector<18x18x128xbf16>,
    %45 = vector.shape_cast %42 : vector<256x128xf32> to vector<16x16x128xf32>
    %46 = arith.truncf %45 : vector<16x16x128xf32> to vector<16x16x128xbf16>
    %c1_58 = arith.constant 1 : index
    %c1_59 = arith.constant 1 : index
    %c0_60 = arith.constant 0 : index
    %47 = vector.load %arg10[%c1_58, %c1_59, %c0_60] : memref<18x18x128xbf16, #tpu.memory_space<vmem>>, vector<16x16x128xbf16>
    tpu.vector_store %arg10[%c1_58, %c1_59, %c0_60], %46 {strides = array<i32>} : memref<18x18x128xbf16, #tpu.memory_space<vmem>>, vector<16x16x128xbf16>,
    %c0_61 = arith.constant 0 : index
    %c0_62 = arith.constant 0 : index
    %c0_63 = arith.constant 0 : index
    %48 = vector.load %arg10[%c0_61, %c0_62, %c0_63] : memref<18x18x128xbf16, #tpu.memory_space<vmem>>, vector<16x16x128xbf16>
    %49 = vector.shape_cast %48 : vector<16x16x128xbf16> to vector<256x128xbf16>
    %c0_64 = arith.constant 0 : index
    %c0_65 = arith.constant 0 : index
    %50 = vector.load %arg12[%c0_64, %c0_65] : memref<256x1152xbf16, #tpu.memory_space<vmem>>, vector<256x128xbf16>
    tpu.vector_store %arg12[%c0_64, %c0_65], %49 {strides = array<i32>} : memref<256x1152xbf16, #tpu.memory_space<vmem>>, vector<256x128xbf16>,
    %c0_66 = arith.constant 0 : index
    %c1_67 = arith.constant 1 : index
    %c0_68 = arith.constant 0 : index
    %51 = vector.load %arg10[%c0_66, %c1_67, %c0_68] : memref<18x18x128xbf16, #tpu.memory_space<vmem>>, vector<16x16x128xbf16>
    %52 = vector.shape_cast %51 : vector<16x16x128xbf16> to vector<256x128xbf16>
    %c0_69 = arith.constant 0 : index
    %c128_70 = arith.constant 128 : index
    %53 = vector.load %arg12[%c0_69, %c128_70] : memref<256x1152xbf16, #tpu.memory_space<vmem>>, vector<256x128xbf16>
    tpu.vector_store %arg12[%c0_69, %c128_70], %52 {strides = array<i32>} : memref<256x1152xbf16, #tpu.memory_space<vmem>>, vector<256x128xbf16>,
    %c0_71 = arith.constant 0 : index
    %c2_72 = arith.constant 2 : index
    %c0_73 = arith.constant 0 : index
    %54 = vector.load %arg10[%c0_71, %c2_72, %c0_73] : memref<18x18x128xbf16, #tpu.memory_space<vmem>>, vector<16x16x128xbf16>
    %55 = vector.shape_cast %54 : vector<16x16x128xbf16> to vector<256x128xbf16>
    %c0_74 = arith.constant 0 : index
    %c256_75 = arith.constant 256 : index
    %56 = vector.load %arg12[%c0_74, %c256_75] : memref<256x1152xbf16, #tpu.memory_space<vmem>>, vector<256x128xbf16>
    tpu.vector_store %arg12[%c0_74, %c256_75], %55 {strides = array<i32>} : memref<256x1152xbf16, #tpu.memory_space<vmem>>, vector<256x128xbf16>,
    %c1_76 = arith.constant 1 : index
    %c0_77 = arith.constant 0 : index
    %c0_78 = arith.constant 0 : index
    %57 = vector.load %arg10[%c1_76, %c0_77, %c0_78] : memref<18x18x128xbf16, #tpu.memory_space<vmem>>, vector<16x16x128xbf16>
    %58 = vector.shape_cast %57 : vector<16x16x128xbf16> to vector<256x128xbf16>
    %c0_79 = arith.constant 0 : index
    %c384_80 = arith.constant 384 : index
    %59 = vector.load %arg12[%c0_79, %c384_80] : memref<256x1152xbf16, #tpu.memory_space<vmem>>, vector<256x128xbf16>
    tpu.vector_store %arg12[%c0_79, %c384_80], %58 {strides = array<i32>} : memref<256x1152xbf16, #tpu.memory_space<vmem>>, vector<256x128xbf16>,
    %c1_81 = arith.constant 1 : index
    %c1_82 = arith.constant 1 : index
    %c0_83 = arith.constant 0 : index
    %60 = vector.load %arg10[%c1_81, %c1_82, %c0_83] : memref<18x18x128xbf16, #tpu.memory_space<vmem>>, vector<16x16x128xbf16>
    %61 = vector.shape_cast %60 : vector<16x16x128xbf16> to vector<256x128xbf16>
    %c0_84 = arith.constant 0 : index
    %c512_85 = arith.constant 512 : index
    %62 = vector.load %arg12[%c0_84, %c512_85] : memref<256x1152xbf16, #tpu.memory_space<vmem>>, vector<256x128xbf16>
    tpu.vector_store %arg12[%c0_84, %c512_85], %61 {strides = array<i32>} : memref<256x1152xbf16, #tpu.memory_space<vmem>>, vector<256x128xbf16>,
    %c1_86 = arith.constant 1 : index
    %c2_87 = arith.constant 2 : index
    %c0_88 = arith.constant 0 : index
    %63 = vector.load %arg10[%c1_86, %c2_87, %c0_88] : memref<18x18x128xbf16, #tpu.memory_space<vmem>>, vector<16x16x128xbf16>
    %64 = vector.shape_cast %63 : vector<16x16x128xbf16> to vector<256x128xbf16>
    %c0_89 = arith.constant 0 : index
    %c640_90 = arith.constant 640 : index
    %65 = vector.load %arg12[%c0_89, %c640_90] : memref<256x1152xbf16, #tpu.memory_space<vmem>>, vector<256x128xbf16>
    tpu.vector_store %arg12[%c0_89, %c640_90], %64 {strides = array<i32>} : memref<256x1152xbf16, #tpu.memory_space<vmem>>, vector<256x128xbf16>,
    %c2_91 = arith.constant 2 : index
    %c0_92 = arith.constant 0 : index
    %c0_93 = arith.constant 0 : index
    %66 = vector.load %arg10[%c2_91, %c0_92, %c0_93] : memref<18x18x128xbf16, #tpu.memory_space<vmem>>, vector<16x16x128xbf16>
    %67 = vector.shape_cast %66 : vector<16x16x128xbf16> to vector<256x128xbf16>
    %c0_94 = arith.constant 0 : index
    %c768_95 = arith.constant 768 : index
    %68 = vector.load %arg12[%c0_94, %c768_95] : memref<256x1152xbf16, #tpu.memory_space<vmem>>, vector<256x128xbf16>
    tpu.vector_store %arg12[%c0_94, %c768_95], %67 {strides = array<i32>} : memref<256x1152xbf16, #tpu.memory_space<vmem>>, vector<256x128xbf16>,
    %c2_96 = arith.constant 2 : index
    %c1_97 = arith.constant 1 : index
    %c0_98 = arith.constant 0 : index
    %69 = vector.load %arg10[%c2_96, %c1_97, %c0_98] : memref<18x18x128xbf16, #tpu.memory_space<vmem>>, vector<16x16x128xbf16>
    %70 = vector.shape_cast %69 : vector<16x16x128xbf16> to vector<256x128xbf16>
    %c0_99 = arith.constant 0 : index
    %c896_100 = arith.constant 896 : index
    %71 = vector.load %arg12[%c0_99, %c896_100] : memref<256x1152xbf16, #tpu.memory_space<vmem>>, vector<256x128xbf16>
    tpu.vector_store %arg12[%c0_99, %c896_100], %70 {strides = array<i32>} : memref<256x1152xbf16, #tpu.memory_space<vmem>>, vector<256x128xbf16>,
    %c2_101 = arith.constant 2 : index
    %c2_102 = arith.constant 2 : index
    %c0_103 = arith.constant 0 : index
    %72 = vector.load %arg10[%c2_101, %c2_102, %c0_103] : memref<18x18x128xbf16, #tpu.memory_space<vmem>>, vector<16x16x128xbf16>
    %73 = vector.shape_cast %72 : vector<16x16x128xbf16> to vector<256x128xbf16>
    %c0_104 = arith.constant 0 : index
    %c1024_105 = arith.constant 1024 : index
    %74 = vector.load %arg12[%c0_104, %c1024_105] : memref<256x1152xbf16, #tpu.memory_space<vmem>>, vector<256x128xbf16>
    tpu.vector_store %arg12[%c0_104, %c1024_105], %73 {strides = array<i32>} : memref<256x1152xbf16, #tpu.memory_space<vmem>>, vector<256x128xbf16>,
    %c0_106 = arith.constant 0 : index
    %c0_107 = arith.constant 0 : index
    %75 = vector.load %arg12[%c0_106, %c0_107] : memref<256x1152xbf16, #tpu.memory_space<vmem>>, vector<256x1152xbf16>
    %c0_108 = arith.constant 0 : index
    %c0_109 = arith.constant 0 : index
    %76 = vector.load %arg3[%c0_108, %c0_109] : memref<1152x128xbf16, #tpu.memory_space<vmem>>, vector<1152x128xbf16>
    %cst_110 = arith.constant dense<0.000000e+00> : vector<256x128xf32>
    %77 = tpu.matmul %75, %76, %cst_110 {dimension_numbers = #tpu.dot_dimension_numbers<[1], [0], [0], [1], [0, 0, 1, 1], [], []>} : vector<256x1152xbf16>, vector<1152x128xbf16>, vector<256x128xf32> -> vector<256x128xf32>
    %c0_111 = arith.constant 0 : index
    %c0_112 = arith.constant 0 : index
    %78 = vector.load %arg6[%c0_111, %c0_112] : memref<1x128xf32, #tpu.memory_space<vmem>>, vector<1x128xf32>
    %79 = vector.broadcast %78 : vector<1x128xf32> to vector<256x128xf32>
    %80 = arith.mulf %77, %79 : vector<256x128xf32>
    %c0_113 = arith.constant 0 : index
    %c0_114 = arith.constant 0 : index
    %81 = vector.load %arg7[%c0_113, %c0_114] : memref<1x128xf32, #tpu.memory_space<vmem>>, vector<1x128xf32>
    %82 = vector.broadcast %81 : vector<1x128xf32> to vector<256x128xf32>
    %83 = arith.addf %80, %82 : vector<256x128xf32>
    %cst_115 = arith.constant 0.000000e+00 : f32
    %84 = vector.broadcast %cst_115 : f32 to vector<256x128xf32>
    %85 = arith.maximumf %83, %84 : vector<256x128xf32>
    %86 = vector.shape_cast %85 : vector<256x128xf32> to vector<16x16x128xf32>
    %c0_116 = arith.constant 0 : index
    %c0_117 = arith.constant 0 : index
    %c0_118 = arith.constant 0 : index
    %c0_119 = arith.constant 0 : index
    %87 = vector.load %arg8[%c0_116, %c0_117, %c0_118, %c0_119] : memref<1x16x16x128xf32, #tpu.memory_space<vmem>>, vector<1x16x16x128xf32>
    %88 = vector.shape_cast %87 : vector<1x16x16x128xf32> to vector<16x16x128xf32>
    %89 = vector.shape_cast %86 : vector<16x16x128xf32> to vector<1x16x16x128xf32>
    tpu.vector_store %arg8[%c0_116, %c0_117, %c0_118, %c0_119], %89 {strides = array<i32>} : memref<1x16x16x128xf32, #tpu.memory_space<vmem>>, vector<1x16x16x128xf32>,
    return
  }
  func.func @transform_0(%arg0: i32) -> (i32, i32, i32, i32) {
    %c0_i32 = arith.constant 0 : i32
    %c0_i32_0 = arith.constant 0 : i32
    %c0_i32_1 = arith.constant 0 : i32
    %c0_i32_2 = arith.constant 0 : i32
    return %arg0, %c0_i32, %c0_i32_0, %c0_i32_1 : i32, i32, i32, i32
  }
  func.func @transform_1(%arg0: i32) -> (i32, i32) {
    %c0_i32 = arith.constant 0 : i32
    %c0_i32_0 = arith.constant 0 : i32
    %c0_i32_1 = arith.constant 0 : i32
    return %c0_i32, %c0_i32_0 : i32, i32
  }
  func.func @transform_2(%arg0: i32) -> (i32, i32) {
    %c0_i32 = arith.constant 0 : i32
    %c0_i32_0 = arith.constant 0 : i32
    %c0_i32_1 = arith.constant 0 : i32
    return %c0_i32, %c0_i32_0 : i32, i32
  }
  func.func @transform_3(%arg0: i32) -> (i32, i32) {
    %c0_i32 = arith.constant 0 : i32
    %c0_i32_0 = arith.constant 0 : i32
    %c0_i32_1 = arith.constant 0 : i32
    return %c0_i32, %c0_i32_0 : i32, i32
  }
  func.func @transform_4(%arg0: i32) -> (i32, i32) {
    %c0_i32 = arith.constant 0 : i32
    %c0_i32_0 = arith.constant 0 : i32
    %c0_i32_1 = arith.constant 0 : i32
    return %c0_i32, %c0_i32_0 : i32, i32
  }
  func.func @transform_5(%arg0: i32) -> (i32, i32) {
    %c0_i32 = arith.constant 0 : i32
    %c0_i32_0 = arith.constant 0 : i32
    %c0_i32_1 = arith.constant 0 : i32
    return %c0_i32, %c0_i32_0 : i32, i32
  }
  func.func @transform_6(%arg0: i32) -> (i32, i32) {
    %c0_i32 = arith.constant 0 : i32
    %c0_i32_0 = arith.constant 0 : i32
    %c0_i32_1 = arith.constant 0 : i32
    return %c0_i32, %c0_i32_0 : i32, i32
  }
  func.func @transform_7(%arg0: i32) -> (i32, i32, i32, i32) {
    %c0_i32 = arith.constant 0 : i32
    %c0_i32_0 = arith.constant 0 : i32
    %c0_i32_1 = arith.constant 0 : i32
    %c0_i32_2 = arith.constant 0 : i32
    return %arg0, %c0_i32, %c0_i32_0, %c0_i32_1 : i32, i32, i32, i32
  }
}

</mosaic_0001>

<llo_original>
// kernel: double_conv.1
$region0: #{double_conv.1}
  #allocation0 [shape = 'u32[]', space=smem, size = 0x4, offset = 0x4, fixed_abs, tag = 'smem constant byte address 0x4 - core index']
  #allocation1 [shape = 'u32[144,128]{1,0:T(1,128)}', space=vmem, size = 0x12000, scoped, tag = 'internal scratch']
  #allocation2 [shape = 'bf16[18,18,128]{2,1,0:T(8,128)(2,1)}', space=vmem, size = 0x1b000, scoped, tag = 'scratch operand']
  #allocation3 [shape = 'bf16[18,18,128]{2,1,0:T(8,128)(2,1)}', space=vmem, size = 0x1b000, scoped, tag = 'scratch operand']
  #allocation4 [shape = 'bf16[256,1152]{1,0:T(16,128)(2,1)}', space=vmem, size = 0x90000, scoped, tag = 'scratch operand']
  #allocation5 [shape = 'bf16[256,1152]{1,0:T(16,128)(2,1)}', space=vmem, size = 0x90000, scoped, tag = 'scratch operand']
  %s0 = inlined_call_operand.vmem [shape: bf16[2,16,16,128], index: 0, kind: input, shape index: {}]
  %s1 = inlined_call_operand.hbm [shape: bf16[1152,128], index: 1, kind: input, shape index: {}]
  %s2 = inlined_call_operand.vmem [shape: bf16[1152,128], index: 2, kind: input, shape index: {}]
  %s3 = inlined_call_operand.vmem [shape: f32[1,128], index: 3, kind: input, shape index: {}]
  %s4 = inlined_call_operand.vmem [shape: f32[1,128], index: 4, kind: input, shape index: {}, may-alias: {4,6}]
  %s5 = inlined_call_operand.vmem [shape: f32[1,128], index: 5, kind: input, shape index: {}]
  %s6 = inlined_call_operand.vmem [shape: f32[1,128], index: 6, kind: input, shape index: {}, may-alias: {4,6}]
  %s7 = inlined_call_operand.vmem [shape: f32[2,16,16,128], index: 7, kind: output, shape index: {}]
  %s8 = sld [smem:[#allocation0]]
  $region65: #{double_conv.1} parent=0
    _
  %s10 = ssub.s32 1, %s8
  %s11 = scalar_select 0, %s10, %s8
  $region1: #{double_conv.1} parent=0
    #allocation6 [shape = 'u8[294912]{0}', space=vmem, size = 0x48000, scoped, tag = 'input window, operand 1, single buffered']
    #allocation7 [shape = 's32[2]{0}', space=sflag, size = 0x8, scoped, tag = 'scoped memory for double_conv.1']
    %12 = vsyncpa [#allocation7], 0
    loop: start=0, step=1, limit=4
    $region2: #{double_conv.1} parent=1 // loop_pre_header
      _
    $region3: #{double_conv.1} parent=1 // loop_header
      %s14 = sphi 0, %s18
      %p15 = scmp.ge.s32.totalorder %s14, 4
      %s24 = sphi 0, %s26
      %s27 = sphi 0, %s24
      %s28 = sphi 0, %s27
      %s44 = sphi 0, %s28
      %s48 = sphi 0, %s48
      %s50 = sphi 0, %s48
      %s51 = sphi 0, %s50
      %s65 = sphi 0, %s51
      %s69 = sphi 0, %s69
      %s71 = sphi 0, %s69
      %s72 = sphi 0, %s71
      %s86 = sphi 0, %s72
      %s90 = sphi 0, %s90
      %s92 = sphi 0, %s90
      %s93 = sphi 0, %s92
      %s107 = sphi 0, %s93
      %s111 = sphi 0, %s111
      %s113 = sphi 0, %s111
      %s114 = sphi 0, %s113
      %s128 = sphi 0, %s114
      %s132 = sphi 0, %s132
      %s134 = sphi 0, %s132
      %s135 = sphi 0, %s134
      %s149 = sphi 0, %s135
      %s153 = sphi 0, %s153
      %s155 = sphi 0, %s153
      %s156 = sphi 0, %s155
      %s170 = sphi 0, %s156
      %s176 = sphi 0, %s178
      %s179 = sphi 0, %s176
      %s180 = sphi 0, %s179
      %s196 = sphi 0, %s180
    $region4: #{double_conv.1} parent=1 // loop_header_branch
      %17 = sbr.rel (%p15) target = $region8
    $region5: #{double_conv.1} parent=1 // loop_body
      %s19 = ssub.s32 %s14, 1
      %s20 = ssub.s32 %s14, 2
      %s21 = sadd.s32 %s14, 1
      %s22 = ssub.s32 %s14, %s21
      %p23 = scmp.eq.s32.totalorder %s22, 0
      %s25 = sadd.s32 %s24, 1
      %s26 = scalar_select %p23, %s24, %s25
      %p29 = pneg %p23
      %p30 = scmp.eq.s32.totalorder %s14, 1
      %p31 = por %p29, %p30
      %p32 = scmp.ne.s32.totalorder %s24, %s27
      %p33 = scmp.eq.s32.totalorder %s14, 0
      %p34 = por %p32, %p33
      %p35 = scmp.ne.s32.totalorder %s24, %s27
      %p36 = scmp.eq.s32.totalorder %s19, 1
      %p37 = por %p35, %p36
      %p38 = scmp.ne.s32.totalorder %s27, %s28
      %p39 = scmp.eq.s32.totalorder %s19, 0
      %p40 = por %p38, %p39
      %p41 = scmp.ne.s32.totalorder %s27, %s28
      %p42 = scmp.eq.s32.totalorder %s20, 1
      %p43 = por %p41, %p42
      %p45 = scmp.ne.s32.totalorder %s28, %s44
      %p46 = scmp.eq.s32.totalorder %s20, 0
      %p47 = por %p45, %p46
      %s49 = sadd.s32 %s48, 1
      %p52 = scmp.eq.s32.totalorder %s14, 1
      %p53 = scmp.ne.s32.totalorder %s48, %s50
      %p54 = scmp.eq.s32.totalorder %s14, 0
      %p55 = por %p53, %p54
      %p56 = scmp.ne.s32.totalorder %s48, %s50
      %p57 = scmp.eq.s32.totalorder %s19, 1
      %p58 = por %p56, %p57
      %p59 = scmp.ne.s32.totalorder %s50, %s51
      %p60 = scmp.eq.s32.totalorder %s19, 0
      %p61 = por %p59, %p60
      %p62 = scmp.ne.s32.totalorder %s50, %s51
      %p63 = scmp.eq.s32.totalorder %s20, 1
      %p64 = por %p62, %p63
      %p66 = scmp.ne.s32.totalorder %s51, %s65
      %p67 = scmp.eq.s32.totalorder %s20, 0
      %p68 = por %p66, %p67
      %s70 = sadd.s32 %s69, 1
      %p73 = scmp.eq.s32.totalorder %s14, 1
      %p74 = scmp.ne.s32.totalorder %s69, %s71
      %p75 = scmp.eq.s32.totalorder %s14, 0
      %p76 = por %p74, %p75
      %p77 = scmp.ne.s32.totalorder %s69, %s71
      %p78 = scmp.eq.s32.totalorder %s19, 1
      %p79 = por %p77, %p78
      %p80 = scmp.ne.s32.totalorder %s71, %s72
      %p81 = scmp.eq.s32.totalorder %s19, 0
      %p82 = por %p80, %p81
      %p83 = scmp.ne.s32.totalorder %s71, %s72
      %p84 = scmp.eq.s32.totalorder %s20, 1
      %p85 = por %p83, %p84
      %p87 = scmp.ne.s32.totalorder %s72, %s86
      %p88 = scmp.eq.s32.totalorder %s20, 0
      %p89 = por %p87, %p88
      %s91 = sadd.s32 %s90, 1
      %p94 = scmp.eq.s32.totalorder %s14, 1
      %p95 = scmp.ne.s32.totalorder %s90, %s92
      %p96 = scmp.eq.s32.totalorder %s14, 0
      %p97 = por %p95, %p96
      %p98 = scmp.ne.s32.totalorder %s90, %s92
      %p99 = scmp.eq.s32.totalorder %s19, 1
      %p100 = por %p98, %p99
      %p101 = scmp.ne.s32.totalorder %s92, %s93
      %p102 = scmp.eq.s32.totalorder %s19, 0
      %p103 = por %p101, %p102
      %p104 = scmp.ne.s32.totalorder %s92, %s93
      %p105 = scmp.eq.s32.totalorder %s20, 1
      %p106 = por %p104, %p105
      %p108 = scmp.ne.s32.totalorder %s93, %s107
      %p109 = scmp.eq.s32.totalorder %s20, 0
      %p110 = por %p108, %p109
      %s112 = sadd.s32 %s111, 1
      %p115 = scmp.eq.s32.totalorder %s14, 1
      %p116 = scmp.ne.s32.totalorder %s111, %s113
      %p117 = scmp.eq.s32.totalorder %s14, 0
      %p118 = por %p116, %p117
      %p119 = scmp.ne.s32.totalorder %s111, %s113
      %p120 = scmp.eq.s32.totalorder %s19, 1
      %p121 = por %p119, %p120
      %p122 = scmp.ne.s32.totalorder %s113, %s114
      %p123 = scmp.eq.s32.totalorder %s19, 0
      %p124 = por %p122, %p123
      %p125 = scmp.ne.s32.totalorder %s113, %s114
      %p126 = scmp.eq.s32.totalorder %s20, 1
      %p127 = por %p125, %p126
      %p129 = scmp.ne.s32.totalorder %s114, %s128
      %p130 = scmp.eq.s32.totalorder %s20, 0
      %p131 = por %p129, %p130
      %s133 = sadd.s32 %s132, 1
      %p136 = scmp.eq.s32.totalorder %s14, 1
      %p137 = scmp.ne.s32.totalorder %s132, %s134
      %p138 = scmp.eq.s32.totalorder %s14, 0
      %p139 = por %p137, %p138
      %p140 = scmp.ne.s32.totalorder %s132, %s134
      %p141 = scmp.eq.s32.totalorder %s19, 1
      %p142 = por %p140, %p141
      %p143 = scmp.ne.s32.totalorder %s134, %s135
      %p144 = scmp.eq.s32.totalorder %s19, 0
      %p145 = por %p143, %p144
      %p146 = scmp.ne.s32.totalorder %s134, %s135
      %p147 = scmp.eq.s32.totalorder %s20, 1
      %p148 = por %p146, %p147
      %p150 = scmp.ne.s32.totalorder %s135, %s149
      %p151 = scmp.eq.s32.totalorder %s20, 0
      %p152 = por %p150, %p151
      %s154 = sadd.s32 %s153, 1
      %p157 = scmp.eq.s32.totalorder %s14, 1
      %p158 = scmp.ne.s32.totalorder %s153, %s155
      %p159 = scmp.eq.s32.totalorder %s14, 0
      %p160 = por %p158, %p159
      %p161 = scmp.ne.s32.totalorder %s153, %s155
      %p162 = scmp.eq.s32.totalorder %s19, 1
      %p163 = por %p161, %p162
      %p164 = scmp.ne.s32.totalorder %s155, %s156
      %p165 = scmp.eq.s32.totalorder %s19, 0
      %p166 = por %p164, %p165
      %p167 = scmp.ne.s32.totalorder %s155, %s156
      %p168 = scmp.eq.s32.totalorder %s20, 1
      %p169 = por %p167, %p168
      %p171 = scmp.ne.s32.totalorder %s156, %s170
      %p172 = scmp.eq.s32.totalorder %s20, 0
      %p173 = por %p171, %p172
      %s174 = ssub.s32 %s14, %s21
      %p175 = scmp.eq.s32.totalorder %s174, 0
      %s177 = sadd.s32 %s176, 1
      %s178 = scalar_select %p175, %s176, %s177
      %p181 = pneg %p175
      %p182 = scmp.eq.s32.totalorder %s14, 1
      %p183 = por %p181, %p182
      %p184 = scmp.ne.s32.totalorder %s176, %s179
      %p185 = scmp.eq.s32.totalorder %s14, 0
      %p186 = por %p184, %p185
      %p187 = scmp.ne.s32.totalorder %s176, %s179
      %p188 = scmp.eq.s32.totalorder %s19, 1
      %p189 = por %p187, %p188
      %p190 = scmp.ne.s32.totalorder %s179, %s180
      %p191 = scmp.eq.s32.totalorder %s19, 0
      %p192 = por %p190, %p191
      %p193 = scmp.ne.s32.totalorder %s179, %s180
      %p194 = scmp.eq.s32.totalorder %s20, 1
      %p195 = por %p193, %p194
      %p197 = scmp.ne.s32.totalorder %s180, %s196
      %p198 = scmp.eq.s32.totalorder %s20, 0
      %p199 = por %p197, %p198
      %p200 = scmp.le.s32.totalorder 1, %s14
      %p201 = scmp.lt.s32.totalorder %s14, 3
      %p202 = pnand %p200, %p201
      %p203 = pneg %p202
      // Predicated region
      $region9: #{double_conv.1} parent=5 // pred_check
        _
      $region10: #{double_conv.1} parent=5 // pred_check_branch
        %205 = sbr.rel (%p202) target = $region12
      $region11: #{double_conv.1} parent=5 // pred_region
        %s206 = ssub.s32 %s14, 1
        // Predicated region
        $region13: #{double_conv.1} parent=11 // pred_check
          %p207 = pneg %p61
        $region14: #{double_conv.1} parent=11 // pred_check_branch
          %209 = sbr.rel (%p207) target = $region16
        $region15: #{double_conv.1} parent=11 // pred_region
          %s211 = ssub.s32 9216, 9216
          %212 = vsyncadd [#allocation7], %s211
          %s213 = sshll.u32 [#allocation6], 4
          %s214 = int_to_ptr.vmem [resolvable:$true] %s213
          %219 = dma.hbm_to_vmem [thread:$0]  %s1, 9216, %s214, [#allocation7], 64, 64, 4
        $region16: #{double_conv.1} parent=11 // pred_fallthru
          _
        // Predicated region
        $region17: #{double_conv.1} parent=11 // pred_check
          %p220 = pneg %p82
        $region18: #{double_conv.1} parent=11 // pred_check_branch
          %222 = sbr.rel (%p220) target = $region20
        $region19: #{double_conv.1} parent=11 // pred_region
          _
        $region20: #{double_conv.1} parent=11 // pred_fallthru
          _
        // Predicated region
        $region21: #{double_conv.1} parent=11 // pred_check
          %p223 = pneg %p103
        $region22: #{double_conv.1} parent=11 // pred_check_branch
          %225 = sbr.rel (%p223) target = $region24
        $region23: #{double_conv.1} parent=11 // pred_region
          _
        $region24: #{double_conv.1} parent=11 // pred_fallthru
          _
        // Predicated region
        $region25: #{double_conv.1} parent=11 // pred_check
          %p226 = pneg %p124
        $region26: #{double_conv.1} parent=11 // pred_check_branch
          %228 = sbr.rel (%p226) target = $region28
        $region27: #{double_conv.1} parent=11 // pred_region
          _
        $region28: #{double_conv.1} parent=11 // pred_fallthru
          _
        // Predicated region
        $region29: #{double_conv.1} parent=11 // pred_check
          %p229 = pneg %p145
        $region30: #{double_conv.1} parent=11 // pred_check_branch
          %231 = sbr.rel (%p229) target = $region32
        $region31: #{double_conv.1} parent=11 // pred_region
          _
        $region32: #{double_conv.1} parent=11 // pred_fallthru
          _
        // Predicated region
        $region33: #{double_conv.1} parent=11 // pred_check
          %p232 = pneg %p166
        $region34: #{double_conv.1} parent=11 // pred_check_branch
          %234 = sbr.rel (%p232) target = $region36
        $region35: #{double_conv.1} parent=11 // pred_region
          _
        $region36: #{double_conv.1} parent=11 // pred_fallthru
          _
      $region12: #{double_conv.1} parent=5 // pred_fallthru
        _
      %p235 = scmp.lt.s32.totalorder %s14, 2
      // Predicated region
      $region37: #{double_conv.1} parent=5 // pred_check
        %p236 = pneg %p235
      $region38: #{double_conv.1} parent=5 // pred_check_branch
        %238 = sbr.rel (%p236) target = $region40
      $region39: #{double_conv.1} parent=5 // pred_region
        // Predicated region
        $region41: #{double_conv.1} parent=39 // pred_check
          %p239 = pneg %p34
        $region42: #{double_conv.1} parent=39 // pred_check_branch
          %241 = sbr.rel (%p239) target = $region44
        $region43: #{double_conv.1} parent=39 // pred_region
          %p242 = scmp.lt.s32.totalorder %s14, 1
          %s243 = scalar_select %p242, %s14, 1
          %s244 = smul.addr %s243, 32
          %s245 = smul.addr %s244, 4
          %s246 = scalar_lea.vmem %s0, %s245
        $region44: #{double_conv.1} parent=39 // pred_fallthru
          _
      $region40: #{double_conv.1} parent=5 // pred_fallthru
        _
      %p247 = scmp.le.s32.totalorder 1, %s14
      %p248 = scmp.lt.s32.totalorder %s14, 3
      %p249 = pnand %p247, %p248
      %p250 = pneg %p249
      // Predicated region
      $region45: #{double_conv.1} parent=5 // pred_check
        _
      $region46: #{double_conv.1} parent=5 // pred_check_branch
        %252 = sbr.rel (%p249) target = $region48
      $region47: #{double_conv.1} parent=5 // pred_region
        %s253 = ssub.s32 %s14, 1
        // Predicated region
        $region49: #{double_conv.1} parent=47 // pred_check
          %p254 = pneg %p61
        $region50: #{double_conv.1} parent=47 // pred_check_branch
          %256 = sbr.rel (%p254) target = $region52
        $region51: #{double_conv.1} parent=47 // pred_region
          %257 = dma.done [#allocation7], 9216
        $region52: #{double_conv.1} parent=47 // pred_fallthru
          _
        %p258 = scmp.lt.s32.totalorder %s19, 1
        %s259 = scalar_select %p258, %s19, 1
        %s260 = smul.addr %s259, 32
        %s261 = smul.addr %s260, 4
        %s262 = scalar_lea.vmem %s0, %s261
        %p263 = pneg %p40
        %p264 = pneg %p37
        %p265 = pneg %p61
        %p266 = pneg %p58
        %p267 = pneg %p82
        %p268 = pneg %p79
        %p269 = pneg %p103
        %p270 = pneg %p100
        %p271 = pneg %p124
        %p272 = pneg %p121
        %p273 = pneg %p145
        %p274 = pneg %p142
        %p275 = pneg %p166
        %p276 = pneg %p163
        %p277 = pneg %p192
        %p278 = pneg %p189
        %p279 = scmp.lt.s32.totalorder %s19, 1
        %s280 = scalar_select %p279, %s19, 1
        %s281 = smul.addr %s280, 32
        %s282 = smul.addr %s281, 8
        %s283 = scalar_lea.vmem %s7, %s282
        %p284 = scmp.lt.s32.totalorder %s19, 1
        %s285 = scalar_select %p284, %s19, 1
        %s286 = smul.addr %s285, 32
        %s287 = smul.addr %s286, 4
        %s288 = scalar_lea.vmem %s0, %s287
        %p289 = scmp.lt.s32.totalorder %s19, 1
        %s290 = scalar_select %p289, %s19, 1
        %s291 = smul.addr %s290, 32
        %s292 = smul.addr %s291, 8
        %s293 = scalar_lea.vmem %s7, %s292
        %295 = vst [vmem:[#allocation2] sm:$0xf] 0
        %296 = vst [vmem:[#allocation2 + $0x4] sm:$0xf] 0
        %297 = vst [vmem:[#allocation2 + $0x8] sm:$0x1] 0
        %298 = vst [vmem:[#allocation2 + $0xc] sm:$0xf] 0
        %299 = vst [vmem:[#allocation2 + $0x10] sm:$0xf] 0
        %300 = vst [vmem:[#allocation2 + $0x14] sm:$0x1] 0
        %301 = vst [vmem:[#allocation2 + $0x18] sm:$0xf] 0
        %302 = vst [vmem:[#allocation2 + $0x1c] sm:$0xf] 0
        %303 = vst [vmem:[#allocation2 + $0x20] sm:$0x1] 0
        %304 = vst [vmem:[#allocation2 + $0x24] sm:$0xf] 0
        %305 = vst [vmem:[#allocation2 + $0x28] sm:$0xf] 0
        %306 = vst [vmem:[#allocation2 + $0x2c] sm:$0x1] 0
        %307 = vst [vmem:[#allocation2 + $0x30] sm:$0xf] 0
        %308 = vst [vmem:[#allocation2 + $0x34] sm:$0xf] 0
        %309 = vst [vmem:[#allocation2 + $0x38] sm:$0x1] 0
        %310 = vst [vmem:[#allocation2 + $0x3c] sm:$0xf] 0
        %311 = vst [vmem:[#allocation2 + $0x40] sm:$0xf] 0
        %312 = vst [vmem:[#allocation2 + $0x44] sm:$0x1] 0
        %313 = vst [vmem:[#allocation2 + $0x48] sm:$0xf] 0
        %314 = vst [vmem:[#allocation2 + $0x4c] sm:$0xf] 0
        %315 = vst [vmem:[#allocation2 + $0x50] sm:$0x1] 0
        %316 = vst [vmem:[#allocation2 + $0x54] sm:$0xf] 0
        %317 = vst [vmem:[#allocation2 + $0x58] sm:$0xf] 0
        %318 = vst [vmem:[#allocation2 + $0x5c] sm:$0x1] 0
        %319 = vst [vmem:[#allocation2 + $0x60] sm:$0xf] 0
        %320 = vst [vmem:[#allocation2 + $0x64] sm:$0xf] 0
        %321 = vst [vmem:[#allocation2 + $0x68] sm:$0x1] 0
        %322 = vst [vmem:[#allocation2 + $0x6c] sm:$0xf] 0
        %323 = vst [vmem:[#allocation2 + $0x70] sm:$0xf] 0
        %324 = vst [vmem:[#allocation2 + $0x74] sm:$0x1] 0
        %325 = vst [vmem:[#allocation2 + $0x78] sm:$0xf] 0
        %326 = vst [vmem:[#allocation2 + $0x7c] sm:$0xf] 0
        %327 = vst [vmem:[#allocation2 + $0x80] sm:$0x1] 0
        %328 = vst [vmem:[#allocation2 + $0x84] sm:$0xf] 0
        %329 = vst [vmem:[#allocation2 + $0x88] sm:$0xf] 0
        %330 = vst [vmem:[#allocation2 + $0x8c] sm:$0x1] 0
        %331 = vst [vmem:[#allocation2 + $0x90] sm:$0xf] 0
        %332 = vst [vmem:[#allocation2 + $0x94] sm:$0xf] 0
        %333 = vst [vmem:[#allocation2 + $0x98] sm:$0x1] 0
        %334 = vst [vmem:[#allocation2 + $0x9c] sm:$0xf] 0
        %335 = vst [vmem:[#allocation2 + $0xa0] sm:$0xf] 0
        %336 = vst [vmem:[#allocation2 + $0xa4] sm:$0x1] 0
        %337 = vst [vmem:[#allocation2 + $0xa8] sm:$0xf] 0
        %338 = vst [vmem:[#allocation2 + $0xac] sm:$0xf] 0
        %339 = vst [vmem:[#allocation2 + $0xb0] sm:$0x1] 0
        %340 = vst [vmem:[#allocation2 + $0xb4] sm:$0xf] 0
        %341 = vst [vmem:[#allocation2 + $0xb8] sm:$0xf] 0
        %342 = vst [vmem:[#allocation2 + $0xbc] sm:$0x1] 0
        %343 = vst [vmem:[#allocation2 + $0xc0] sm:$0xf] 0
        %344 = vst [vmem:[#allocation2 + $0xc4] sm:$0xf] 0
        %345 = vst [vmem:[#allocation2 + $0xc8] sm:$0x1] 0
        %346 = vst [vmem:[#allocation2 + $0xcc] sm:$0xf] 0
        %347 = vst [vmem:[#allocation2 + $0xd0] sm:$0xf] 0
        %348 = vst [vmem:[#allocation2 + $0xd4] sm:$0x1] 0
        %v349 = vld [vmem:[%s288] sm:$0xf]
        %v350 = vld [vmem:[%s288 + $0x4] sm:$0xf]
        %v351 = vld [vmem:[%s288 + $0x8] sm:$0xf]
        %v352 = vld [vmem:[%s288 + $0xc] sm:$0xf]
        %v353 = vld [vmem:[%s288 + $0x10] sm:$0xf]
        %v354 = vld [vmem:[%s288 + $0x14] sm:$0xf]
        %v355 = vld [vmem:[%s288 + $0x18] sm:$0xf]
        %v356 = vld [vmem:[%s288 + $0x1c] sm:$0xf]
        %v357 = vld [vmem:[%s288 + $0x20] sm:$0xf]
        %v358 = vld [vmem:[%s288 + $0x24] sm:$0xf]
        %v359 = vld [vmem:[%s288 + $0x28] sm:$0xf]
        %v360 = vld [vmem:[%s288 + $0x2c] sm:$0xf]
        %v361 = vld [vmem:[%s288 + $0x30] sm:$0xf]
        %v362 = vld [vmem:[%s288 + $0x34] sm:$0xf]
        %v363 = vld [vmem:[%s288 + $0x38] sm:$0xf]
        %v364 = vld [vmem:[%s288 + $0x3c] sm:$0xf]
        %v365 = vld [vmem:[%s288 + $0x40] sm:$0xf]
        %v366 = vld [vmem:[%s288 + $0x44] sm:$0xf]
        %v367 = vld [vmem:[%s288 + $0x48] sm:$0xf]
        %v368 = vld [vmem:[%s288 + $0x4c] sm:$0xf]
        %v369 = vld [vmem:[%s288 + $0x50] sm:$0xf]
        %v370 = vld [vmem:[%s288 + $0x54] sm:$0xf]
        %v371 = vld [vmem:[%s288 + $0x58] sm:$0xf]
        %v372 = vld [vmem:[%s288 + $0x5c] sm:$0xf]
        %v373 = vld [vmem:[%s288 + $0x60] sm:$0xf]
        %v374 = vld [vmem:[%s288 + $0x64] sm:$0xf]
        %v375 = vld [vmem:[%s288 + $0x68] sm:$0xf]
        %v376 = vld [vmem:[%s288 + $0x6c] sm:$0xf]
        %v377 = vld [vmem:[%s288 + $0x70] sm:$0xf]
        %v378 = vld [vmem:[%s288 + $0x74] sm:$0xf]
        %v379 = vld [vmem:[%s288 + $0x78] sm:$0xf]
        %v380 = vld [vmem:[%s288 + $0x7c] sm:$0xf]
        %vm381 = vsmask.f32 256
        %vm382 = vsmask.f32 4368
        %vm383 = vmor %vm381, %vm382
        %v385 = vshrl.u32 %v349, 16
        %v387 = vrot.slane %v385, 7
        %v388 = vshll.u32 %v349, 16
        %v390 = vor.u32 %v387, %v388
        %v391 = vrot.slane %v387, 4
        %v393 = vshrl.u32 %v350, 16
        %v395 = vrot.slane %v393, 7
        %v396 = vshll.u32 %v350, 16
        %v398 = vor.u32 %v395, %v396
        %v399 = vsel %vm383, %v391, %v398
        %v400 = vrot.slane %v395, 4
        %v402 = vshrl.u32 %v351, 16
        %v404 = vrot.slane %v402, 7
        %v405 = vshll.u32 %v351, 16
        %v407 = vor.u32 %v404, %v405
        %v408 = vrot.slane %v404, 4
        %v410 = vshrl.u32 %v352, 16
        %v412 = vrot.slane %v410, 7
        %v413 = vshll.u32 %v352, 16
        %v415 = vor.u32 %v412, %v413
        %v416 = vsel %vm383, %v408, %v415
        %v417 = vrot.slane %v412, 4
        %v419 = vshrl.u32 %v353, 16
        %v421 = vrot.slane %v419, 7
        %v422 = vshll.u32 %v353, 16
        %v424 = vor.u32 %v421, %v422
        %v425 = vrot.slane %v421, 4
        %v427 = vshrl.u32 %v354, 16
        %v429 = vrot.slane %v427, 7
        %v430 = vshll.u32 %v354, 16
        %v432 = vor.u32 %v429, %v430
        %v433 = vsel %vm383, %v425, %v432
        %v434 = vrot.slane %v429, 4
        %v436 = vshrl.u32 %v355, 16
        %v438 = vrot.slane %v436, 7
        %v439 = vshll.u32 %v355, 16
        %v441 = vor.u32 %v438, %v439
        %v442 = vrot.slane %v438, 4
        %v444 = vshrl.u32 %v356, 16
        %v446 = vrot.slane %v444, 7
        %v447 = vshll.u32 %v356, 16
        %v449 = vor.u32 %v446, %v447
        %v450 = vsel %vm383, %v442, %v449
        %v451 = vrot.slane %v446, 4
        %v453 = vshrl.u32 %v357, 16
        %v455 = vrot.slane %v453, 7
        %v456 = vshll.u32 %v357, 16
        %v458 = vor.u32 %v455, %v456
        %v459 = vrot.slane %v455, 4
        %v461 = vshrl.u32 %v358, 16
        %v463 = vrot.slane %v461, 7
        %v464 = vshll.u32 %v358, 16
        %v466 = vor.u32 %v463, %v464
        %v467 = vsel %vm383, %v459, %v466
        %v468 = vrot.slane %v463, 4
        %v470 = vshrl.u32 %v359, 16
        %v472 = vrot.slane %v470, 7
        %v473 = vshll.u32 %v359, 16
        %v475 = vor.u32 %v472, %v473
        %v476 = vrot.slane %v472, 4
        %v478 = vshrl.u32 %v360, 16
        %v480 = vrot.slane %v478, 7
        %v481 = vshll.u32 %v360, 16
        %v483 = vor.u32 %v480, %v481
        %v484 = vsel %vm383, %v476, %v483
        %v485 = vrot.slane %v480, 4
        %v487 = vshrl.u32 %v361, 16
        %v489 = vrot.slane %v487, 7
        %v490 = vshll.u32 %v361, 16
        %v492 = vor.u32 %v489, %v490
        %v493 = vrot.slane %v489, 4
        %v495 = vshrl.u32 %v362, 16
        %v497 = vrot.slane %v495, 7
        %v498 = vshll.u32 %v362, 16
        %v500 = vor.u32 %v497, %v498
        %v501 = vsel %vm383, %v493, %v500
        %v502 = vrot.slane %v497, 4
        %v504 = vshrl.u32 %v363, 16
        %v506 = vrot.slane %v504, 7
        %v507 = vshll.u32 %v363, 16
        %v509 = vor.u32 %v506, %v507
        %v510 = vrot.slane %v506, 4
        %v512 = vshrl.u32 %v364, 16
        %v514 = vrot.slane %v512, 7
        %v515 = vshll.u32 %v364, 16
        %v517 = vor.u32 %v514, %v515
        %v518 = vsel %vm383, %v510, %v517
        %v519 = vrot.slane %v514, 4
        %v521 = vshrl.u32 %v365, 16
        %v523 = vrot.slane %v521, 7
        %v524 = vshll.u32 %v365, 16
        %v526 = vor.u32 %v523, %v524
        %v527 = vrot.slane %v523, 4
        %v529 = vshrl.u32 %v366, 16
        %v531 = vrot.slane %v529, 7
        %v532 = vshll.u32 %v366, 16
        %v534 = vor.u32 %v531, %v532
        %v535 = vsel %vm383, %v527, %v534
        %v536 = vrot.slane %v531, 4
        %v538 = vshrl.u32 %v367, 16
        %v540 = vrot.slane %v538, 7
        %v541 = vshll.u32 %v367, 16
        %v543 = vor.u32 %v540, %v541
        %v544 = vrot.slane %v540, 4
        %v546 = vshrl.u32 %v368, 16
        %v548 = vrot.slane %v546, 7
        %v549 = vshll.u32 %v368, 16
        %v551 = vor.u32 %v548, %v549
        %v552 = vsel %vm383, %v544, %v551
        %v553 = vrot.slane %v548, 4
        %v555 = vshrl.u32 %v369, 16
        %v557 = vrot.slane %v555, 7
        %v558 = vshll.u32 %v369, 16
        %v560 = vor.u32 %v557, %v558
        %v561 = vrot.slane %v557, 4
        %v563 = vshrl.u32 %v370, 16
        %v565 = vrot.slane %v563, 7
        %v566 = vshll.u32 %v370, 16
        %v568 = vor.u32 %v565, %v566
        %v569 = vsel %vm383, %v561, %v568
        %v570 = vrot.slane %v565, 4
        %v572 = vshrl.u32 %v371, 16
        %v574 = vrot.slane %v572, 7
        %v575 = vshll.u32 %v371, 16
        %v577 = vor.u32 %v574, %v575
        %v578 = vrot.slane %v574, 4
        %v580 = vshrl.u32 %v372, 16
        %v582 = vrot.slane %v580, 7
        %v583 = vshll.u32 %v372, 16
        %v585 = vor.u32 %v582, %v583
        %v586 = vsel %vm383, %v578, %v585
        %v587 = vrot.slane %v582, 4
        %v589 = vshrl.u32 %v373, 16
        %v591 = vrot.slane %v589, 7
        %v592 = vshll.u32 %v373, 16
        %v594 = vor.u32 %v591, %v592
        %v595 = vrot.slane %v591, 4
        %v597 = vshrl.u32 %v374, 16
        %v599 = vrot.slane %v597, 7
        %v600 = vshll.u32 %v374, 16
        %v602 = vor.u32 %v599, %v600
        %v603 = vsel %vm383, %v595, %v602
        %v604 = vrot.slane %v599, 4
        %v606 = vshrl.u32 %v375, 16
        %v608 = vrot.slane %v606, 7
        %v609 = vshll.u32 %v375, 16
        %v611 = vor.u32 %v608, %v609
        %v612 = vrot.slane %v608, 4
        %v614 = vshrl.u32 %v376, 16
        %v616 = vrot.slane %v614, 7
        %v617 = vshll.u32 %v376, 16
        %v619 = vor.u32 %v616, %v617
        %v620 = vsel %vm383, %v612, %v619
        %v621 = vrot.slane %v616, 4
        %v623 = vshrl.u32 %v377, 16
        %v625 = vrot.slane %v623, 7
        %v626 = vshll.u32 %v377, 16
        %v628 = vor.u32 %v625, %v626
        %v629 = vrot.slane %v625, 4
        %v631 = vshrl.u32 %v378, 16
        %v633 = vrot.slane %v631, 7
        %v634 = vshll.u32 %v378, 16
        %v636 = vor.u32 %v633, %v634
        %v637 = vsel %vm383, %v629, %v636
        %v638 = vrot.slane %v633, 4
        %v640 = vshrl.u32 %v379, 16
        %v642 = vrot.slane %v640, 7
        %v643 = vshll.u32 %v379, 16
        %v645 = vor.u32 %v642, %v643
        %v646 = vrot.slane %v642, 4
        %v648 = vshrl.u32 %v380, 16
        %v650 = vrot.slane %v648, 7
        %v651 = vshll.u32 %v380, 16
        %v653 = vor.u32 %v650, %v651
        %v654 = vsel %vm383, %v646, %v653
        %v655 = vrot.slane %v650, 4
        %s704 = scalar_lea.vmem [#allocation2], 12
        %vm705 = vcmask 1043456
        %vm706 = vsmask.f32 7938
        %vm707 = vmand %vm705, %vm706
        %v708 = vld [vmem:[%s704] sm:$0xf]
        %v709 = vsel %vm707, %v390, %v708
        %710 = vst [vmem:[%s704] sm:$0xf] %v709
        %711 = vst [vmem:[%s704 + $0x4] sm:$0xf] %v399
        %vm712 = vcmask 1040384
        %vm713 = vmand %vm712, %vm381
        %v714 = vld [vmem:[%s704 + $0x8] sm:$0x1]
        %v715 = vsel %vm713, %v400, %v714
        %716 = vst [vmem:[%s704 + $0x8] sm:$0x1] %v715
        %v717 = vld [vmem:[%s704 + $0xc] sm:$0xf]
        %v718 = vsel %vm707, %v407, %v717
        %719 = vst [vmem:[%s704 + $0xc] sm:$0xf] %v718
        %720 = vst [vmem:[%s704 + $0x10] sm:$0xf] %v416
        %v721 = vld [vmem:[%s704 + $0x14] sm:$0x1]
        %v722 = vsel %vm713, %v417, %v721
        %723 = vst [vmem:[%s704 + $0x14] sm:$0x1] %v722
        %v724 = vld [vmem:[%s704 + $0x18] sm:$0xf]
        %v725 = vsel %vm707, %v424, %v724
        %726 = vst [vmem:[%s704 + $0x18] sm:$0xf] %v725
        %727 = vst [vmem:[%s704 + $0x1c] sm:$0xf] %v433
        %v728 = vld [vmem:[%s704 + $0x20] sm:$0x1]
        %v729 = vsel %vm713, %v434, %v728
        %730 = vst [vmem:[%s704 + $0x20] sm:$0x1] %v729
        %v731 = vld [vmem:[%s704 + $0x24] sm:$0xf]
        %v732 = vsel %vm707, %v441, %v731
        %733 = vst [vmem:[%s704 + $0x24] sm:$0xf] %v732
        %734 = vst [vmem:[%s704 + $0x28] sm:$0xf] %v450
        %v735 = vld [vmem:[%s704 + $0x2c] sm:$0x1]
        %v736 = vsel %vm713, %v451, %v735
        %737 = vst [vmem:[%s704 + $0x2c] sm:$0x1] %v736
        %v738 = vld [vmem:[%s704 + $0x30] sm:$0xf]
        %v739 = vsel %vm707, %v458, %v738
        %740 = vst [vmem:[%s704 + $0x30] sm:$0xf] %v739
        %741 = vst [vmem:[%s704 + $0x34] sm:$0xf] %v467
        %v742 = vld [vmem:[%s704 + $0x38] sm:$0x1]
        %v743 = vsel %vm713, %v468, %v742
        %744 = vst [vmem:[%s704 + $0x38] sm:$0x1] %v743
        %v745 = vld [vmem:[%s704 + $0x3c] sm:$0xf]
        %v746 = vsel %vm707, %v475, %v745
        %747 = vst [vmem:[%s704 + $0x3c] sm:$0xf] %v746
        %748 = vst [vmem:[%s704 + $0x40] sm:$0xf] %v484
        %v749 = vld [vmem:[%s704 + $0x44] sm:$0x1]
        %v750 = vsel %vm713, %v485, %v749
        %751 = vst [vmem:[%s704 + $0x44] sm:$0x1] %v750
        %v752 = vld [vmem:[%s704 + $0x48] sm:$0xf]
        %v753 = vsel %vm707, %v492, %v752
        %754 = vst [vmem:[%s704 + $0x48] sm:$0xf] %v753
        %755 = vst [vmem:[%s704 + $0x4c] sm:$0xf] %v501
        %v756 = vld [vmem:[%s704 + $0x50] sm:$0x1]
        %v757 = vsel %vm713, %v502, %v756
        %758 = vst [vmem:[%s704 + $0x50] sm:$0x1] %v757
        %v759 = vld [vmem:[%s704 + $0x54] sm:$0xf]
        %v760 = vsel %vm707, %v509, %v759
        %761 = vst [vmem:[%s704 + $0x54] sm:$0xf] %v760
        %762 = vst [vmem:[%s704 + $0x58] sm:$0xf] %v518
        %v763 = vld [vmem:[%s704 + $0x5c] sm:$0x1]
        %v764 = vsel %vm713, %v519, %v763
        %765 = vst [vmem:[%s704 + $0x5c] sm:$0x1] %v764
        %v766 = vld [vmem:[%s704 + $0x60] sm:$0xf]
        %v767 = vsel %vm707, %v526, %v766
        %768 = vst [vmem:[%s704 + $0x60] sm:$0xf] %v767
        %769 = vst [vmem:[%s704 + $0x64] sm:$0xf] %v535
        %v770 = vld [vmem:[%s704 + $0x68] sm:$0x1]
        %v771 = vsel %vm713, %v536, %v770
        %772 = vst [vmem:[%s704 + $0x68] sm:$0x1] %v771
        %v773 = vld [vmem:[%s704 + $0x6c] sm:$0xf]
        %v774 = vsel %vm707, %v543, %v773
        %775 = vst [vmem:[%s704 + $0x6c] sm:$0xf] %v774
        %776 = vst [vmem:[%s704 + $0x70] sm:$0xf] %v552
        %v777 = vld [vmem:[%s704 + $0x74] sm:$0x1]
        %v778 = vsel %vm713, %v553, %v777
        %779 = vst [vmem:[%s704 + $0x74] sm:$0x1] %v778
        %v780 = vld [vmem:[%s704 + $0x78] sm:$0xf]
        %v781 = vsel %vm707, %v560, %v780
        %782 = vst [vmem:[%s704 + $0x78] sm:$0xf] %v781
        %783 = vst [vmem:[%s704 + $0x7c] sm:$0xf] %v569
        %v784 = vld [vmem:[%s704 + $0x80] sm:$0x1]
        %v785 = vsel %vm713, %v570, %v784
        %786 = vst [vmem:[%s704 + $0x80] sm:$0x1] %v785
        %v787 = vld [vmem:[%s704 + $0x84] sm:$0xf]
        %v788 = vsel %vm707, %v577, %v787
        %789 = vst [vmem:[%s704 + $0x84] sm:$0xf] %v788
        %790 = vst [vmem:[%s704 + $0x88] sm:$0xf] %v586
        %v791 = vld [vmem:[%s704 + $0x8c] sm:$0x1]
        %v792 = vsel %vm713, %v587, %v791
        %793 = vst [vmem:[%s704 + $0x8c] sm:$0x1] %v792
        %v794 = vld [vmem:[%s704 + $0x90] sm:$0xf]
        %v795 = vsel %vm707, %v594, %v794
        %796 = vst [vmem:[%s704 + $0x90] sm:$0xf] %v795
        %797 = vst [vmem:[%s704 + $0x94] sm:$0xf] %v603
        %v798 = vld [vmem:[%s704 + $0x98] sm:$0x1]
        %v799 = vsel %vm713, %v604, %v798
        %800 = vst [vmem:[%s704 + $0x98] sm:$0x1] %v799
        %v801 = vld [vmem:[%s704 + $0x9c] sm:$0xf]
        %v802 = vsel %vm707, %v611, %v801
        %803 = vst [vmem:[%s704 + $0x9c] sm:$0xf] %v802
        %804 = vst [vmem:[%s704 + $0xa0] sm:$0xf] %v620
        %v805 = vld [vmem:[%s704 + $0xa4] sm:$0x1]
        %v806 = vsel %vm713, %v621, %v805
        %807 = vst [vmem:[%s704 + $0xa4] sm:$0x1] %v806
        %v808 = vld [vmem:[%s704 + $0xa8] sm:$0xf]
        %v809 = vsel %vm707, %v628, %v808
        %810 = vst [vmem:[%s704 + $0xa8] sm:$0xf] %v809
        %811 = vst [vmem:[%s704 + $0xac] sm:$0xf] %v637
        %v812 = vld [vmem:[%s704 + $0xb0] sm:$0x1]
        %v813 = vsel %vm713, %v638, %v812
        %814 = vst [vmem:[%s704 + $0xb0] sm:$0x1] %v813
        %v815 = vld [vmem:[%s704 + $0xb4] sm:$0xf]
        %v816 = vsel %vm707, %v645, %v815
        %817 = vst [vmem:[%s704 + $0xb4] sm:$0xf] %v816
        %818 = vst [vmem:[%s704 + $0xb8] sm:$0xf] %v654
        %v819 = vld [vmem:[%s704 + $0xbc] sm:$0x1]
        %v820 = vsel %vm713, %v655, %v819
        %821 = vst [vmem:[%s704 + $0xbc] sm:$0x1] %v820
        %v822 = vld [vmem:[#allocation2] sm:$0xf]
        %v823 = vld [vmem:[#allocation2 + $0x4] sm:$0xf]
        %v824 = vld [vmem:[#allocation2 + $0xc] sm:$0xf]
        %v825 = vld [vmem:[#allocation2 + $0x10] sm:$0xf]
        %v826 = vld [vmem:[#allocation2 + $0x18] sm:$0xf]
        %v827 = vld [vmem:[#allocation2 + $0x1c] sm:$0xf]
        %v828 = vld [vmem:[#allocation2 + $0x24] sm:$0xf]
        %v829 = vld [vmem:[#allocation2 + $0x28] sm:$0xf]
        %v830 = vld [vmem:[#allocation2 + $0x30] sm:$0xf]
        %v831 = vld [vmem:[#allocation2 + $0x34] sm:$0xf]
        %v832 = vld [vmem:[#allocation2 + $0x3c] sm:$0xf]
        %v833 = vld [vmem:[#allocation2 + $0x40] sm:$0xf]
        %v834 = vld [vmem:[#allocation2 + $0x48] sm:$0xf]
        %v835 = vld [vmem:[#allocation2 + $0x4c] sm:$0xf]
        %v836 = vld [vmem:[#allocation2 + $0x54] sm:$0xf]
        %v837 = vld [vmem:[#allocation2 + $0x58] sm:$0xf]
        %v838 = vld [vmem:[#allocation2 + $0x60] sm:$0xf]
        %v839 = vld [vmem:[#allocation2 + $0x64] sm:$0xf]
        %v840 = vld [vmem:[#allocation2 + $0x6c] sm:$0xf]
        %v841 = vld [vmem:[#allocation2 + $0x70] sm:$0xf]
        %v842 = vld [vmem:[#allocation2 + $0x78] sm:$0xf]
        %v843 = vld [vmem:[#allocation2 + $0x7c] sm:$0xf]
        %v844 = vld [vmem:[#allocation2 + $0x84] sm:$0xf]
        %v845 = vld [vmem:[#allocation2 + $0x88] sm:$0xf]
        %v846 = vld [vmem:[#allocation2 + $0x90] sm:$0xf]
        %v847 = vld [vmem:[#allocation2 + $0x94] sm:$0xf]
        %v848 = vld [vmem:[#allocation2 + $0x9c] sm:$0xf]
        %v849 = vld [vmem:[#allocation2 + $0xa0] sm:$0xf]
        %v850 = vld [vmem:[#allocation2 + $0xa8] sm:$0xf]
        %v851 = vld [vmem:[#allocation2 + $0xac] sm:$0xf]
        %v852 = vld [vmem:[#allocation2 + $0xb4] sm:$0xf]
        %v853 = vld [vmem:[#allocation2 + $0xb8] sm:$0xf]
        %v886 = vunpack.c.l.b16 %v822
        %v887 = vunpack.c.l.b16 %v823
        %v888 = vunpack.c.l.b16 %v824
        %v889 = vunpack.c.l.b16 %v825
        %v890 = vunpack.c.l.b16 %v826
        %v891 = vunpack.c.l.b16 %v827
        %v892 = vunpack.c.l.b16 %v828
        %v893 = vunpack.c.l.b16 %v829
        %v894 = vunpack.c.l.b16 %v830
        %v895 = vunpack.c.l.b16 %v831
        %v896 = vunpack.c.l.b16 %v832
        %v897 = vunpack.c.l.b16 %v833
        %v898 = vunpack.c.l.b16 %v834
        %v899 = vunpack.c.l.b16 %v835
        %v900 = vunpack.c.l.b16 %v836
        %v901 = vunpack.c.l.b16 %v837
        %v902 = vunpack.c.l.b16 %v838
        %v903 = vunpack.c.l.b16 %v839
        %v904 = vunpack.c.l.b16 %v840
        %v905 = vunpack.c.l.b16 %v841
        %v906 = vunpack.c.l.b16 %v842
        %v907 = vunpack.c.l.b16 %v843
        %v908 = vunpack.c.l.b16 %v844
        %v909 = vunpack.c.l.b16 %v845
        %v910 = vunpack.c.l.b16 %v846
        %v911 = vunpack.c.l.b16 %v847
        %v912 = vunpack.c.l.b16 %v848
        %v913 = vunpack.c.l.b16 %v849
        %v914 = vunpack.c.l.b16 %v850
        %v915 = vunpack.c.l.b16 %v851
        %v916 = vunpack.c.l.b16 %v852
        %v917 = vunpack.c.l.b16 %v853
        %v918 = vpack.c.b16 %v887, %v886
        %v919 = vpack.c.b16 %v889, %v888
        %v920 = vpack.c.b16 %v891, %v890
        %v921 = vpack.c.b16 %v893, %v892
        %v922 = vpack.c.b16 %v895, %v894
        %v923 = vpack.c.b16 %v897, %v896
        %v924 = vpack.c.b16 %v899, %v898
        %v925 = vpack.c.b16 %v901, %v900
        %v926 = vpack.c.b16 %v903, %v902
        %v927 = vpack.c.b16 %v905, %v904
        %v928 = vpack.c.b16 %v907, %v906
        %v929 = vpack.c.b16 %v909, %v908
        %v930 = vpack.c.b16 %v911, %v910
        %v931 = vpack.c.b16 %v913, %v912
        %v932 = vpack.c.b16 %v915, %v914
        %v933 = vpack.c.b16 %v917, %v916
        %950 = vst [vmem:[#allocation4] sm:$0xff] %v918
        %951 = vst [vmem:[#allocation4 + $0x48] sm:$0xff] %v919
        %952 = vst [vmem:[#allocation4 + $0x90] sm:$0xff] %v920
        %953 = vst [vmem:[#allocation4 + $0xd8] sm:$0xff] %v921
        %954 = vst [vmem:[#allocation4 + $0x120] sm:$0xff] %v922
        %955 = vst [vmem:[#allocation4 + $0x168] sm:$0xff] %v923
        %956 = vst [vmem:[#allocation4 + $0x1b0] sm:$0xff] %v924
        %957 = vst [vmem:[#allocation4 + $0x1f8] sm:$0xff] %v925
        %958 = vst [vmem:[#allocation4 + $0x240] sm:$0xff] %v926
        %959 = vst [vmem:[#allocation4 + $0x288] sm:$0xff] %v927
        %960 = vst [vmem:[#allocation4 + $0x2d0] sm:$0xff] %v928
        %961 = vst [vmem:[#allocation4 + $0x318] sm:$0xff] %v929
        %962 = vst [vmem:[#allocation4 + $0x360] sm:$0xff] %v930
        %963 = vst [vmem:[#allocation4 + $0x3a8] sm:$0xff] %v931
        %964 = vst [vmem:[#allocation4 + $0x3f0] sm:$0xff] %v932
        %965 = vst [vmem:[#allocation4 + $0x438] sm:$0xff] %v933
        %v966 = vld [vmem:[#allocation2] sm:$0xf]
        %v967 = vld [vmem:[#allocation2 + $0x4] sm:$0xf]
        %v968 = vld [vmem:[#allocation2 + $0x8] sm:$0x1]
        %v969 = vld [vmem:[#allocation2 + $0xc] sm:$0xf]
        %v970 = vld [vmem:[#allocation2 + $0x10] sm:$0xf]
        %v971 = vld [vmem:[#allocation2 + $0x14] sm:$0x1]
        %v972 = vld [vmem:[#allocation2 + $0x18] sm:$0xf]
        %v973 = vld [vmem:[#allocation2 + $0x1c] sm:$0xf]
        %v974 = vld [vmem:[#allocation2 + $0x20] sm:$0x1]
        %v975 = vld [vmem:[#allocation2 + $0x24] sm:$0xf]
        %v976 = vld [vmem:[#allocation2 + $0x28] sm:$0xf]
        %v977 = vld [vmem:[#allocation2 + $0x2c] sm:$0x1]
        %v978 = vld [vmem:[#allocation2 + $0x30] sm:$0xf]
        %v979 = vld [vmem:[#allocation2 + $0x34] sm:$0xf]
        %v980 = vld [vmem:[#allocation2 + $0x38] sm:$0x1]
        %v981 = vld [vmem:[#allocation2 + $0x3c] sm:$0xf]
        %v982 = vld [vmem:[#allocation2 + $0x40] sm:$0xf]
        %v983 = vld [vmem:[#allocation2 + $0x44] sm:$0x1]
        %v984 = vld [vmem:[#allocation2 + $0x48] sm:$0xf]
        %v985 = vld [vmem:[#allocation2 + $0x4c] sm:$0xf]
        %v986 = vld [vmem:[#allocation2 + $0x50] sm:$0x1]
        %v987 = vld [vmem:[#allocation2 + $0x54] sm:$0xf]
        %v988 = vld [vmem:[#allocation2 + $0x58] sm:$0xf]
        %v989 = vld [vmem:[#allocation2 + $0x5c] sm:$0x1]
        %v990 = vld [vmem:[#allocation2 + $0x60] sm:$0xf]
        %v991 = vld [vmem:[#allocation2 + $0x64] sm:$0xf]
        %v992 = vld [vmem:[#allocation2 + $0x68] sm:$0x1]
        %v993 = vld [vmem:[#allocation2 + $0x6c] sm:$0xf]
        %v994 = vld [vmem:[#allocation2 + $0x70] sm:$0xf]
        %v995 = vld [vmem:[#allocation2 + $0x74] sm:$0x1]
        %v996 = vld [vmem:[#allocation2 + $0x78] sm:$0xf]
        %v997 = vld [vmem:[#allocation2 + $0x7c] sm:$0xf]
        %v998 = vld [vmem:[#allocation2 + $0x80] sm:$0x1]
        %v999 = vld [vmem:[#allocation2 + $0x84] sm:$0xf]
        %v1000 = vld [vmem:[#allocation2 + $0x88] sm:$0xf]
        %v1001 = vld [vmem:[#allocation2 + $0x8c] sm:$0x1]
        %v1002 = vld [vmem:[#allocation2 + $0x90] sm:$0xf]
        %v1003 = vld [vmem:[#allocation2 + $0x94] sm:$0xf]
        %v1004 = vld [vmem:[#allocation2 + $0x98] sm:$0x1]
        %v1005 = vld [vmem:[#allocation2 + $0x9c] sm:$0xf]
        %v1006 = vld [vmem:[#allocation2 + $0xa0] sm:$0xf]
        %v1007 = vld [vmem:[#allocation2 + $0xa4] sm:$0x1]
        %v1008 = vld [vmem:[#allocation2 + $0xa8] sm:$0xf]
        %v1009 = vld [vmem:[#allocation2 + $0xac] sm:$0xf]
        %v1010 = vld [vmem:[#allocation2 + $0xb0] sm:$0x1]
        %v1011 = vld [vmem:[#allocation2 + $0xb4] sm:$0xf]
        %v1012 = vld [vmem:[#allocation2 + $0xb8] sm:$0xf]
        %v1013 = vld [vmem:[#allocation2 + $0xbc] sm:$0x1]
        %vm1014 = vsmask.f32 3328
        %vm1015 = vsmask.f32 7440
        %vm1016 = vmor %vm1014, %vm1015
        %v1018 = vshrl.u32 %v966, 16
        %v1020 = vrot.slane %v1018, 4
        %v1021 = vshll.u32 %v966, 16
        %v1023 = vrot.slane %v1021, 5
        %v1024 = vor.u32 %v1020, %v1023
        %v1025 = vrot.slane %v1024, 4
        %v1027 = vshll.u32 %v967, 16
        %v1029 = vrot.slane %v1027, 5
        %v1030 = vsel %vm1016, %v1025, %v1029
        %v1031 = vshrl.u32 %v967, 16
        %v1033 = vrot.slane %v1031, 4
        %v1034 = vor.u32 %v1033, %v1029
        %v1035 = vrot.slane %v1034, 4
        %v1037 = vshll.u32 %v968, 16
        %v1039 = vrot.slane %v1037, 5
        %v1040 = vsel %vm1016, %v1035, %v1039
        %v1042 = vshrl.u32 %v969, 16
        %v1044 = vrot.slane %v1042, 4
        %v1045 = vshll.u32 %v969, 16
        %v1047 = vrot.slane %v1045, 5
        %v1048 = vor.u32 %v1044, %v1047
        %v1049 = vrot.slane %v1048, 4
        %v1051 = vshll.u32 %v970, 16
        %v1053 = vrot.slane %v1051, 5
        %v1054 = vsel %vm1016, %v1049, %v1053
        %v1055 = vshrl.u32 %v970, 16
        %v1057 = vrot.slane %v1055, 4
        %v1058 = vor.u32 %v1057, %v1053
        %v1059 = vrot.slane %v1058, 4
        %v1061 = vshll.u32 %v971, 16
        %v1063 = vrot.slane %v1061, 5
        %v1064 = vsel %vm1016, %v1059, %v1063
        %v1066 = vshrl.u32 %v972, 16
        %v1068 = vrot.slane %v1066, 4
        %v1069 = vshll.u32 %v972, 16
        %v1071 = vrot.slane %v1069, 5
        %v1072 = vor.u32 %v1068, %v1071
        %v1073 = vrot.slane %v1072, 4
        %v1075 = vshll.u32 %v973, 16
        %v1077 = vrot.slane %v1075, 5
        %v1078 = vsel %vm1016, %v1073, %v1077
        %v1079 = vshrl.u32 %v973, 16
        %v1081 = vrot.slane %v1079, 4
        %v1082 = vor.u32 %v1081, %v1077
        %v1083 = vrot.slane %v1082, 4
        %v1085 = vshll.u32 %v974, 16
        %v1087 = vrot.slane %v1085, 5
        %v1088 = vsel %vm1016, %v1083, %v1087
        %v1090 = vshrl.u32 %v975, 16
        %v1092 = vrot.slane %v1090, 4
        %v1093 = vshll.u32 %v975, 16
        %v1095 = vrot.slane %v1093, 5
        %v1096 = vor.u32 %v1092, %v1095
        %v1097 = vrot.slane %v1096, 4
        %v1099 = vshll.u32 %v976, 16
        %v1101 = vrot.slane %v1099, 5
        %v1102 = vsel %vm1016, %v1097, %v1101
        %v1103 = vshrl.u32 %v976, 16
        %v1105 = vrot.slane %v1103, 4
        %v1106 = vor.u32 %v1105, %v1101
        %v1107 = vrot.slane %v1106, 4
        %v1109 = vshll.u32 %v977, 16
        %v1111 = vrot.slane %v1109, 5
        %v1112 = vsel %vm1016, %v1107, %v1111
        %v1114 = vshrl.u32 %v978, 16
        %v1116 = vrot.slane %v1114, 4
        %v1117 = vshll.u32 %v978, 16
        %v1119 = vrot.slane %v1117, 5
        %v1120 = vor.u32 %v1116, %v1119
        %v1121 = vrot.slane %v1120, 4
        %v1123 = vshll.u32 %v979, 16
        %v1125 = vrot.slane %v1123, 5
        %v1126 = vsel %vm1016, %v1121, %v1125
        %v1127 = vshrl.u32 %v979, 16
        %v1129 = vrot.slane %v1127, 4
        %v1130 = vor.u32 %v1129, %v1125
        %v1131 = vrot.slane %v1130, 4
        %v1133 = vshll.u32 %v980, 16
        %v1135 = vrot.slane %v1133, 5
        %v1136 = vsel %vm1016, %v1131, %v1135
        %v1138 = vshrl.u32 %v981, 16
        %v1140 = vrot.slane %v1138, 4
        %v1141 = vshll.u32 %v981, 16
        %v1143 = vrot.slane %v1141, 5
        %v1144 = vor.u32 %v1140, %v1143
        %v1145 = vrot.slane %v1144, 4
        %v1147 = vshll.u32 %v982, 16
        %v1149 = vrot.slane %v1147, 5
        %v1150 = vsel %vm1016, %v1145, %v1149
        %v1151 = vshrl.u32 %v982, 16
        %v1153 = vrot.slane %v1151, 4
        %v1154 = vor.u32 %v1153, %v1149
        %v1155 = vrot.slane %v1154, 4
        %v1157 = vshll.u32 %v983, 16
        %v1159 = vrot.slane %v1157, 5
        %v1160 = vsel %vm1016, %v1155, %v1159
        %v1162 = vshrl.u32 %v984, 16
        %v1164 = vrot.slane %v1162, 4
        %v1165 = vshll.u32 %v984, 16
        %v1167 = vrot.slane %v1165, 5
        %v1168 = vor.u32 %v1164, %v1167
        %v1169 = vrot.slane %v1168, 4
        %v1171 = vshll.u32 %v985, 16
        %v1173 = vrot.slane %v1171, 5
        %v1174 = vsel %vm1016, %v1169, %v1173
        %v1175 = vshrl.u32 %v985, 16
        %v1177 = vrot.slane %v1175, 4
        %v1178 = vor.u32 %v1177, %v1173
        %v1179 = vrot.slane %v1178, 4
        %v1181 = vshll.u32 %v986, 16
        %v1183 = vrot.slane %v1181, 5
        %v1184 = vsel %vm1016, %v1179, %v1183
        %v1186 = vshrl.u32 %v987, 16
        %v1188 = vrot.slane %v1186, 4
        %v1189 = vshll.u32 %v987, 16
        %v1191 = vrot.slane %v1189, 5
        %v1192 = vor.u32 %v1188, %v1191
        %v1193 = vrot.slane %v1192, 4
        %v1195 = vshll.u32 %v988, 16
        %v1197 = vrot.slane %v1195, 5
        %v1198 = vsel %vm1016, %v1193, %v1197
        %v1199 = vshrl.u32 %v988, 16
        %v1201 = vrot.slane %v1199, 4
        %v1202 = vor.u32 %v1201, %v1197
        %v1203 = vrot.slane %v1202, 4
        %v1205 = vshll.u32 %v989, 16
        %v1207 = vrot.slane %v1205, 5
        %v1208 = vsel %vm1016, %v1203, %v1207
        %v1210 = vshrl.u32 %v990, 16
        %v1212 = vrot.slane %v1210, 4
        %v1213 = vshll.u32 %v990, 16
        %v1215 = vrot.slane %v1213, 5
        %v1216 = vor.u32 %v1212, %v1215
        %v1217 = vrot.slane %v1216, 4
        %v1219 = vshll.u32 %v991, 16
        %v1221 = vrot.slane %v1219, 5
        %v1222 = vsel %vm1016, %v1217, %v1221
        %v1223 = vshrl.u32 %v991, 16
        %v1225 = vrot.slane %v1223, 4
        %v1226 = vor.u32 %v1225, %v1221
        %v1227 = vrot.slane %v1226, 4
        %v1229 = vshll.u32 %v992, 16
        %v1231 = vrot.slane %v1229, 5
        %v1232 = vsel %vm1016, %v1227, %v1231
        %v1234 = vshrl.u32 %v993, 16
        %v1236 = vrot.slane %v1234, 4
        %v1237 = vshll.u32 %v993, 16
        %v1239 = vrot.slane %v1237, 5
        %v1240 = vor.u32 %v1236, %v1239
        %v1241 = vrot.slane %v1240, 4
        %v1243 = vshll.u32 %v994, 16
        %v1245 = vrot.slane %v1243, 5
        %v1246 = vsel %vm1016, %v1241, %v1245
        %v1247 = vshrl.u32 %v994, 16
        %v1249 = vrot.slane %v1247, 4
        %v1250 = vor.u32 %v1249, %v1245
        %v1251 = vrot.slane %v1250, 4
        %v1253 = vshll.u32 %v995, 16
        %v1255 = vrot.slane %v1253, 5
        %v1256 = vsel %vm1016, %v1251, %v1255
        %v1258 = vshrl.u32 %v996, 16
        %v1260 = vrot.slane %v1258, 4
        %v1261 = vshll.u32 %v996, 16
        %v1263 = vrot.slane %v1261, 5
        %v1264 = vor.u32 %v1260, %v1263
        %v1265 = vrot.slane %v1264, 4
        %v1267 = vshll.u32 %v997, 16
        %v1269 = vrot.slane %v1267, 5
        %v1270 = vsel %vm1016, %v1265, %v1269
        %v1271 = vshrl.u32 %v997, 16
        %v1273 = vrot.slane %v1271, 4
        %v1274 = vor.u32 %v1273, %v1269
        %v1275 = vrot.slane %v1274, 4
        %v1277 = vshll.u32 %v998, 16
        %v1279 = vrot.slane %v1277, 5
        %v1280 = vsel %vm1016, %v1275, %v1279
        %v1282 = vshrl.u32 %v999, 16
        %v1284 = vrot.slane %v1282, 4
        %v1285 = vshll.u32 %v999, 16
        %v1287 = vrot.slane %v1285, 5
        %v1288 = vor.u32 %v1284, %v1287
        %v1289 = vrot.slane %v1288, 4
        %v1291 = vshll.u32 %v1000, 16
        %v1293 = vrot.slane %v1291, 5
        %v1294 = vsel %vm1016, %v1289, %v1293
        %v1295 = vshrl.u32 %v1000, 16
        %v1297 = vrot.slane %v1295, 4
        %v1298 = vor.u32 %v1297, %v1293
        %v1299 = vrot.slane %v1298, 4
        %v1301 = vshll.u32 %v1001, 16
        %v1303 = vrot.slane %v1301, 5
        %v1304 = vsel %vm1016, %v1299, %v1303
        %v1306 = vshrl.u32 %v1002, 16
        %v1308 = vrot.slane %v1306, 4
        %v1309 = vshll.u32 %v1002, 16
        %v1311 = vrot.slane %v1309, 5
        %v1312 = vor.u32 %v1308, %v1311
        %v1313 = vrot.slane %v1312, 4
        %v1315 = vshll.u32 %v1003, 16
        %v1317 = vrot.slane %v1315, 5
        %v1318 = vsel %vm1016, %v1313, %v1317
        %v1319 = vshrl.u32 %v1003, 16
        %v1321 = vrot.slane %v1319, 4
        %v1322 = vor.u32 %v1321, %v1317
        %v1323 = vrot.slane %v1322, 4
        %v1325 = vshll.u32 %v1004, 16
        %v1327 = vrot.slane %v1325, 5
        %v1328 = vsel %vm1016, %v1323, %v1327
        %v1330 = vshrl.u32 %v1005, 16
        %v1332 = vrot.slane %v1330, 4
        %v1333 = vshll.u32 %v1005, 16
        %v1335 = vrot.slane %v1333, 5
        %v1336 = vor.u32 %v1332, %v1335
        %v1337 = vrot.slane %v1336, 4
        %v1339 = vshll.u32 %v1006, 16
        %v1341 = vrot.slane %v1339, 5
        %v1342 = vsel %vm1016, %v1337, %v1341
        %v1343 = vshrl.u32 %v1006, 16
        %v1345 = vrot.slane %v1343, 4
        %v1346 = vor.u32 %v1345, %v1341
        %v1347 = vrot.slane %v1346, 4
        %v1349 = vshll.u32 %v1007, 16
        %v1351 = vrot.slane %v1349, 5
        %v1352 = vsel %vm1016, %v1347, %v1351
        %v1354 = vshrl.u32 %v1008, 16
        %v1356 = vrot.slane %v1354, 4
        %v1357 = vshll.u32 %v1008, 16
        %v1359 = vrot.slane %v1357, 5
        %v1360 = vor.u32 %v1356, %v1359
        %v1361 = vrot.slane %v1360, 4
        %v1363 = vshll.u32 %v1009, 16
        %v1365 = vrot.slane %v1363, 5
        %v1366 = vsel %vm1016, %v1361, %v1365
        %v1367 = vshrl.u32 %v1009, 16
        %v1369 = vrot.slane %v1367, 4
        %v1370 = vor.u32 %v1369, %v1365
        %v1371 = vrot.slane %v1370, 4
        %v1373 = vshll.u32 %v1010, 16
        %v1375 = vrot.slane %v1373, 5
        %v1376 = vsel %vm1016, %v1371, %v1375
        %v1378 = vshrl.u32 %v1011, 16
        %v1380 = vrot.slane %v1378, 4
        %v1381 = vshll.u32 %v1011, 16
        %v1383 = vrot.slane %v1381, 5
        %v1384 = vor.u32 %v1380, %v1383
        %v1385 = vrot.slane %v1384, 4
        %v1387 = vshll.u32 %v1012, 16
        %v1389 = vrot.slane %v1387, 5
        %v1390 = vsel %vm1016, %v1385, %v1389
        %v1391 = vshrl.u32 %v1012, 16
        %v1393 = vrot.slane %v1391, 4
        %v1394 = vor.u32 %v1393, %v1389
        %v1395 = vrot.slane %v1394, 4
        %v1397 = vshll.u32 %v1013, 16
        %v1399 = vrot.slane %v1397, 5
        %v1400 = vsel %vm1016, %v1395, %v1399
        %v1401 = vunpack.c.l.b16 %v1030
        %v1402 = vunpack.c.l.b16 %v1040
        %v1403 = vunpack.c.l.b16 %v1054
        %v1404 = vunpack.c.l.b16 %v1064
        %v1405 = vunpack.c.l.b16 %v1078
        %v1406 = vunpack.c.l.b16 %v1088
        %v1407 = vunpack.c.l.b16 %v1102
        %v1408 = vunpack.c.l.b16 %v1112
        %v1409 = vunpack.c.l.b16 %v1126
        %v1410 = vunpack.c.l.b16 %v1136
        %v1411 = vunpack.c.l.b16 %v1150
        %v1412 = vunpack.c.l.b16 %v1160
        %v1413 = vunpack.c.l.b16 %v1174
        %v1414 = vunpack.c.l.b16 %v1184
        %v1415 = vunpack.c.l.b16 %v1198
        %v1416 = vunpack.c.l.b16 %v1208
        %v1417 = vunpack.c.l.b16 %v1222
        %v1418 = vunpack.c.l.b16 %v1232
        %v1419 = vunpack.c.l.b16 %v1246
        %v1420 = vunpack.c.l.b16 %v1256
        %v1421 = vunpack.c.l.b16 %v1270
        %v1422 = vunpack.c.l.b16 %v1280
        %v1423 = vunpack.c.l.b16 %v1294
        %v1424 = vunpack.c.l.b16 %v1304
        %v1425 = vunpack.c.l.b16 %v1318
        %v1426 = vunpack.c.l.b16 %v1328
        %v1427 = vunpack.c.l.b16 %v1342
        %v1428 = vunpack.c.l.b16 %v1352
        %v1429 = vunpack.c.l.b16 %v1366
        %v1430 = vunpack.c.l.b16 %v1376
        %v1431 = vunpack.c.l.b16 %v1390
        %v1432 = vunpack.c.l.b16 %v1400
        %v1433 = vpack.c.b16 %v1402, %v1401
        %v1434 = vpack.c.b16 %v1404, %v1403
        %v1435 = vpack.c.b16 %v1406, %v1405
        %v1436 = vpack.c.b16 %v1408, %v1407
        %v1437 = vpack.c.b16 %v1410, %v1409
        %v1438 = vpack.c.b16 %v1412, %v1411
        %v1439 = vpack.c.b16 %v1414, %v1413
        %v1440 = vpack.c.b16 %v1416, %v1415
        %v1441 = vpack.c.b16 %v1418, %v1417
        %v1442 = vpack.c.b16 %v1420, %v1419
        %v1443 = vpack.c.b16 %v1422, %v1421
        %v1444 = vpack.c.b16 %v1424, %v1423
        %v1445 = vpack.c.b16 %v1426, %v1425
        %v1446 = vpack.c.b16 %v1428, %v1427
        %v1447 = vpack.c.b16 %v1430, %v1429
        %v1448 = vpack.c.b16 %v1432, %v1431
        %1465 = vst [vmem:[#allocation4 + $0x8] sm:$0xff] %v1433
        %1466 = vst [vmem:[#allocation4 + $0x50] sm:$0xff] %v1434
        %1467 = vst [vmem:[#allocation4 + $0x98] sm:$0xff] %v1435
        %1468 = vst [vmem:[#allocation4 + $0xe0] sm:$0xff] %v1436
        %1469 = vst [vmem:[#allocation4 + $0x128] sm:$0xff] %v1437
        %1470 = vst [vmem:[#allocation4 + $0x170] sm:$0xff] %v1438
        %1471 = vst [vmem:[#allocation4 + $0x1b8] sm:$0xff] %v1439
        %1472 = vst [vmem:[#allocation4 + $0x200] sm:$0xff] %v1440
        %1473 = vst [vmem:[#allocation4 + $0x248] sm:$0xff] %v1441
        %1474 = vst [vmem:[#allocation4 + $0x290] sm:$0xff] %v1442
        %1475 = vst [vmem:[#allocation4 + $0x2d8] sm:$0xff] %v1443
        %1476 = vst [vmem:[#allocation4 + $0x320] sm:$0xff] %v1444
        %1477 = vst [vmem:[#allocation4 + $0x368] sm:$0xff] %v1445
        %1478 = vst [vmem:[#allocation4 + $0x3b0] sm:$0xff] %v1446
        %1479 = vst [vmem:[#allocation4 + $0x3f8] sm:$0xff] %v1447
        %1480 = vst [vmem:[#allocation4 + $0x440] sm:$0xff] %v1448
        %v1481 = vld [vmem:[#allocation2] sm:$0xe]
        %v1482 = vld [vmem:[#allocation2 + $0x4] sm:$0xf]
        %v1483 = vld [vmem:[#allocation2 + $0x8] sm:$0x1]
        %v1484 = vld [vmem:[#allocation2 + $0xc] sm:$0xe]
        %v1485 = vld [vmem:[#allocation2 + $0x10] sm:$0xf]
        %v1486 = vld [vmem:[#allocation2 + $0x14] sm:$0x1]
        %v1487 = vld [vmem:[#allocation2 + $0x18] sm:$0xe]
        %v1488 = vld [vmem:[#allocation2 + $0x1c] sm:$0xf]
        %v1489 = vld [vmem:[#allocation2 + $0x20] sm:$0x1]
        %v1490 = vld [vmem:[#allocation2 + $0x24] sm:$0xe]
        %v1491 = vld [vmem:[#allocation2 + $0x28] sm:$0xf]
        %v1492 = vld [vmem:[#allocation2 + $0x2c] sm:$0x1]
        %v1493 = vld [vmem:[#allocation2 + $0x30] sm:$0xe]
        %v1494 = vld [vmem:[#allocation2 + $0x34] sm:$0xf]
        %v1495 = vld [vmem:[#allocation2 + $0x38] sm:$0x1]
        %v1496 = vld [vmem:[#allocation2 + $0x3c] sm:$0xe]
        %v1497 = vld [vmem:[#allocation2 + $0x40] sm:$0xf]
        %v1498 = vld [vmem:[#allocation2 + $0x44] sm:$0x1]
        %v1499 = vld [vmem:[#allocation2 + $0x48] sm:$0xe]
        %v1500 = vld [vmem:[#allocation2 + $0x4c] sm:$0xf]
        %v1501 = vld [vmem:[#allocation2 + $0x50] sm:$0x1]
        %v1502 = vld [vmem:[#allocation2 + $0x54] sm:$0xe]
        %v1503 = vld [vmem:[#allocation2 + $0x58] sm:$0xf]
        %v1504 = vld [vmem:[#allocation2 + $0x5c] sm:$0x1]
        %v1505 = vld [vmem:[#allocation2 + $0x60] sm:$0xe]
        %v1506 = vld [vmem:[#allocation2 + $0x64] sm:$0xf]
        %v1507 = vld [vmem:[#allocation2 + $0x68] sm:$0x1]
        %v1508 = vld [vmem:[#allocation2 + $0x6c] sm:$0xe]
        %v1509 = vld [vmem:[#allocation2 + $0x70] sm:$0xf]
        %v1510 = vld [vmem:[#allocation2 + $0x74] sm:$0x1]
        %v1511 = vld [vmem:[#allocation2 + $0x78] sm:$0xe]
        %v1512 = vld [vmem:[#allocation2 + $0x7c] sm:$0xf]
        %v1513 = vld [vmem:[#allocation2 + $0x80] sm:$0x1]
        %v1514 = vld [vmem:[#allocation2 + $0x84] sm:$0xe]
        %v1515 = vld [vmem:[#allocation2 + $0x88] sm:$0xf]
        %v1516 = vld [vmem:[#allocation2 + $0x8c] sm:$0x1]
        %v1517 = vld [vmem:[#allocation2 + $0x90] sm:$0xe]
        %v1518 = vld [vmem:[#allocation2 + $0x94] sm:$0xf]
        %v1519 = vld [vmem:[#allocation2 + $0x98] sm:$0x1]
        %v1520 = vld [vmem:[#allocation2 + $0x9c] sm:$0xe]
        %v1521 = vld [vmem:[#allocation2 + $0xa0] sm:$0xf]
        %v1522 = vld [vmem:[#allocation2 + $0xa4] sm:$0x1]
        %v1523 = vld [vmem:[#allocation2 + $0xa8] sm:$0xe]
        %v1524 = vld [vmem:[#allocation2 + $0xac] sm:$0xf]
        %v1525 = vld [vmem:[#allocation2 + $0xb0] sm:$0x1]
        %v1526 = vld [vmem:[#allocation2 + $0xb4] sm:$0xe]
        %v1527 = vld [vmem:[#allocation2 + $0xb8] sm:$0xf]
        %v1528 = vld [vmem:[#allocation2 + $0xbc] sm:$0x1]
        %vm1577 = vcmask 1042432
        %vm1578 = vcmask 1046532
        %vm1579 = vmor %vm1577, %vm1578
        %v1580 = vrot.slane %v1481, 5
        %v1581 = vrot.slane %v1580, 4
        %v1582 = vrot.slane %v1482, 5
        %v1583 = vsel %vm1579, %v1581, %v1582
        %v1584 = vrot.slane %v1582, 4
        %v1585 = vrot.slane %v1483, 5
        %v1586 = vsel %vm1579, %v1584, %v1585
        %v1587 = vrot.slane %v1484, 5
        %v1588 = vrot.slane %v1587, 4
        %v1589 = vrot.slane %v1485, 5
        %v1590 = vsel %vm1579, %v1588, %v1589
        %v1591 = vrot.slane %v1589, 4
        %v1592 = vrot.slane %v1486, 5
        %v1593 = vsel %vm1579, %v1591, %v1592
        %v1594 = vrot.slane %v1487, 5
        %v1595 = vrot.slane %v1594, 4
        %v1596 = vrot.slane %v1488, 5
        %v1597 = vsel %vm1579, %v1595, %v1596
        %v1598 = vrot.slane %v1596, 4
        %v1599 = vrot.slane %v1489, 5
        %v1600 = vsel %vm1579, %v1598, %v1599
        %v1601 = vrot.slane %v1490, 5
        %v1602 = vrot.slane %v1601, 4
        %v1603 = vrot.slane %v1491, 5
        %v1604 = vsel %vm1579, %v1602, %v1603
        %v1605 = vrot.slane %v1603, 4
        %v1606 = vrot.slane %v1492, 5
        %v1607 = vsel %vm1579, %v1605, %v1606
        %v1608 = vrot.slane %v1493, 5
        %v1609 = vrot.slane %v1608, 4
        %v1610 = vrot.slane %v1494, 5
        %v1611 = vsel %vm1579, %v1609, %v1610
        %v1612 = vrot.slane %v1610, 4
        %v1613 = vrot.slane %v1495, 5
        %v1614 = vsel %vm1579, %v1612, %v1613
        %v1615 = vrot.slane %v1496, 5
        %v1616 = vrot.slane %v1615, 4
        %v1617 = vrot.slane %v1497, 5
        %v1618 = vsel %vm1579, %v1616, %v1617
        %v1619 = vrot.slane %v1617, 4
        %v1620 = vrot.slane %v1498, 5
        %v1621 = vsel %vm1579, %v1619, %v1620
        %v1622 = vrot.slane %v1499, 5
        %v1623 = vrot.slane %v1622, 4
        %v1624 = vrot.slane %v1500, 5
        %v1625 = vsel %vm1579, %v1623, %v1624
        %v1626 = vrot.slane %v1624, 4
        %v1627 = vrot.slane %v1501, 5
        %v1628 = vsel %vm1579, %v1626, %v1627
        %v1629 = vrot.slane %v1502, 5
        %v1630 = vrot.slane %v1629, 4
        %v1631 = vrot.slane %v1503, 5
        %v1632 = vsel %vm1579, %v1630, %v1631
        %v1633 = vrot.slane %v1631, 4
        %v1634 = vrot.slane %v1504, 5
        %v1635 = vsel %vm1579, %v1633, %v1634
        %v1636 = vrot.slane %v1505, 5
        %v1637 = vrot.slane %v1636, 4
        %v1638 = vrot.slane %v1506, 5
        %v1639 = vsel %vm1579, %v1637, %v1638
        %v1640 = vrot.slane %v1638, 4
        %v1641 = vrot.slane %v1507, 5
        %v1642 = vsel %vm1579, %v1640, %v1641
        %v1643 = vrot.slane %v1508, 5
        %v1644 = vrot.slane %v1643, 4
        %v1645 = vrot.slane %v1509, 5
        %v1646 = vsel %vm1579, %v1644, %v1645
        %v1647 = vrot.slane %v1645, 4
        %v1648 = vrot.slane %v1510, 5
        %v1649 = vsel %vm1579, %v1647, %v1648
        %v1650 = vrot.slane %v1511, 5
        %v1651 = vrot.slane %v1650, 4
        %v1652 = vrot.slane %v1512, 5
        %v1653 = vsel %vm1579, %v1651, %v1652
        %v1654 = vrot.slane %v1652, 4
        %v1655 = vrot.slane %v1513, 5
        %v1656 = vsel %vm1579, %v1654, %v1655
        %v1657 = vrot.slane %v1514, 5
        %v1658 = vrot.slane %v1657, 4
        %v1659 = vrot.slane %v1515, 5
        %v1660 = vsel %vm1579, %v1658, %v1659
        %v1661 = vrot.slane %v1659, 4
        %v1662 = vrot.slane %v1516, 5
        %v1663 = vsel %vm1579, %v1661, %v1662
        %v1664 = vrot.slane %v1517, 5
        %v1665 = vrot.slane %v1664, 4
        %v1666 = vrot.slane %v1518, 5
        %v1667 = vsel %vm1579, %v1665, %v1666
        %v1668 = vrot.slane %v1666, 4
        %v1669 = vrot.slane %v1519, 5
        %v1670 = vsel %vm1579, %v1668, %v1669
        %v1671 = vrot.slane %v1520, 5
        %v1672 = vrot.slane %v1671, 4
        %v1673 = vrot.slane %v1521, 5
        %v1674 = vsel %vm1579, %v1672, %v1673
        %v1675 = vrot.slane %v1673, 4
        %v1676 = vrot.slane %v1522, 5
        %v1677 = vsel %vm1579, %v1675, %v1676
        %v1678 = vrot.slane %v1523, 5
        %v1679 = vrot.slane %v1678, 4
        %v1680 = vrot.slane %v1524, 5
        %v1681 = vsel %vm1579, %v1679, %v1680
        %v1682 = vrot.slane %v1680, 4
        %v1683 = vrot.slane %v1525, 5
        %v1684 = vsel %vm1579, %v1682, %v1683
        %v1685 = vrot.slane %v1526, 5
        %v1686 = vrot.slane %v1685, 4
        %v1687 = vrot.slane %v1527, 5
        %v1688 = vsel %vm1579, %v1686, %v1687
        %v1689 = vrot.slane %v1687, 4
        %v1690 = vrot.slane %v1528, 5
        %v1691 = vsel %vm1579, %v1689, %v1690
        %v1692 = vunpack.c.l.b16 %v1583
        %v1693 = vunpack.c.l.b16 %v1586
        %v1694 = vunpack.c.l.b16 %v1590
        %v1695 = vunpack.c.l.b16 %v1593
        %v1696 = vunpack.c.l.b16 %v1597
        %v1697 = vunpack.c.l.b16 %v1600
        %v1698 = vunpack.c.l.b16 %v1604
        %v1699 = vunpack.c.l.b16 %v1607
        %v1700 = vunpack.c.l.b16 %v1611
        %v1701 = vunpack.c.l.b16 %v1614
        %v1702 = vunpack.c.l.b16 %v1618
        %v1703 = vunpack.c.l.b16 %v1621
        %v1704 = vunpack.c.l.b16 %v1625
        %v1705 = vunpack.c.l.b16 %v1628
        %v1706 = vunpack.c.l.b16 %v1632
        %v1707 = vunpack.c.l.b16 %v1635
        %v1708 = vunpack.c.l.b16 %v1639
        %v1709 = vunpack.c.l.b16 %v1642
        %v1710 = vunpack.c.l.b16 %v1646
        %v1711 = vunpack.c.l.b16 %v1649
        %v1712 = vunpack.c.l.b16 %v1653
        %v1713 = vunpack.c.l.b16 %v1656
        %v1714 = vunpack.c.l.b16 %v1660
        %v1715 = vunpack.c.l.b16 %v1663
        %v1716 = vunpack.c.l.b16 %v1667
        %v1717 = vunpack.c.l.b16 %v1670
        %v1718 = vunpack.c.l.b16 %v1674
        %v1719 = vunpack.c.l.b16 %v1677
        %v1720 = vunpack.c.l.b16 %v1681
        %v1721 = vunpack.c.l.b16 %v1684
        %v1722 = vunpack.c.l.b16 %v1688
        %v1723 = vunpack.c.l.b16 %v1691
        %v1724 = vpack.c.b16 %v1693, %v1692
        %v1725 = vpack.c.b16 %v1695, %v1694
        %v1726 = vpack.c.b16 %v1697, %v1696
        %v1727 = vpack.c.b16 %v1699, %v1698
        %v1728 = vpack.c.b16 %v1701, %v1700
        %v1729 = vpack.c.b16 %v1703, %v1702
        %v1730 = vpack.c.b16 %v1705, %v1704
        %v1731 = vpack.c.b16 %v1707, %v1706
        %v1732 = vpack.c.b16 %v1709, %v1708
        %v1733 = vpack.c.b16 %v1711, %v1710
        %v1734 = vpack.c.b16 %v1713, %v1712
        %v1735 = vpack.c.b16 %v1715, %v1714
        %v1736 = vpack.c.b16 %v1717, %v1716
        %v1737 = vpack.c.b16 %v1719, %v1718
        %v1738 = vpack.c.b16 %v1721, %v1720
        %v1739 = vpack.c.b16 %v1723, %v1722
        %1756 = vst [vmem:[#allocation4 + $0x10] sm:$0xff] %v1724
        %1757 = vst [vmem:[#allocation4 + $0x58] sm:$0xff] %v1725
        %1758 = vst [vmem:[#allocation4 + $0xa0] sm:$0xff] %v1726
        %1759 = vst [vmem:[#allocation4 + $0xe8] sm:$0xff] %v1727
        %1760 = vst [vmem:[#allocation4 + $0x130] sm:$0xff] %v1728
        %1761 = vst [vmem:[#allocation4 + $0x178] sm:$0xff] %v1729
        %1762 = vst [vmem:[#allocation4 + $0x1c0] sm:$0xff] %v1730
        %1763 = vst [vmem:[#allocation4 + $0x208] sm:$0xff] %v1731
        %1764 = vst [vmem:[#allocation4 + $0x250] sm:$0xff] %v1732
        %1765 = vst [vmem:[#allocation4 + $0x298] sm:$0xff] %v1733
        %1766 = vst [vmem:[#allocation4 + $0x2e0] sm:$0xff] %v1734
        %1767 = vst [vmem:[#allocation4 + $0x328] sm:$0xff] %v1735
        %1768 = vst [vmem:[#allocation4 + $0x370] sm:$0xff] %v1736
        %1769 = vst [vmem:[#allocation4 + $0x3b8] sm:$0xff] %v1737
        %1770 = vst [vmem:[#allocation4 + $0x400] sm:$0xff] %v1738
        %1771 = vst [vmem:[#allocation4 + $0x448] sm:$0xff] %v1739
        %v1772 = vld [vmem:[%s704] sm:$0xf]
        %v1773 = vld [vmem:[%s704 + $0x4] sm:$0xf]
        %v1774 = vld [vmem:[%s704 + $0xc] sm:$0xf]
        %v1775 = vld [vmem:[%s704 + $0x10] sm:$0xf]
        %v1776 = vld [vmem:[%s704 + $0x18] sm:$0xf]
        %v1777 = vld [vmem:[%s704 + $0x1c] sm:$0xf]
        %v1778 = vld [vmem:[%s704 + $0x24] sm:$0xf]
        %v1779 = vld [vmem:[%s704 + $0x28] sm:$0xf]
        %v1780 = vld [vmem:[%s704 + $0x30] sm:$0xf]
        %v1781 = vld [vmem:[%s704 + $0x34] sm:$0xf]
        %v1782 = vld [vmem:[%s704 + $0x3c] sm:$0xf]
        %v1783 = vld [vmem:[%s704 + $0x40] sm:$0xf]
        %v1784 = vld [vmem:[%s704 + $0x48] sm:$0xf]
        %v1785 = vld [vmem:[%s704 + $0x4c] sm:$0xf]
        %v1786 = vld [vmem:[%s704 + $0x54] sm:$0xf]
        %v1787 = vld [vmem:[%s704 + $0x58] sm:$0xf]
        %v1788 = vld [vmem:[%s704 + $0x60] sm:$0xf]
        %v1789 = vld [vmem:[%s704 + $0x64] sm:$0xf]
        %v1790 = vld [vmem:[%s704 + $0x6c] sm:$0xf]
        %v1791 = vld [vmem:[%s704 + $0x70] sm:$0xf]
        %v1792 = vld [vmem:[%s704 + $0x78] sm:$0xf]
        %v1793 = vld [vmem:[%s704 + $0x7c] sm:$0xf]
        %v1794 = vld [vmem:[%s704 + $0x84] sm:$0xf]
        %v1795 = vld [vmem:[%s704 + $0x88] sm:$0xf]
        %v1796 = vld [vmem:[%s704 + $0x90] sm:$0xf]
        %v1797 = vld [vmem:[%s704 + $0x94] sm:$0xf]
        %v1798 = vld [vmem:[%s704 + $0x9c] sm:$0xf]
        %v1799 = vld [vmem:[%s704 + $0xa0] sm:$0xf]
        %v1800 = vld [vmem:[%s704 + $0xa8] sm:$0xf]
        %v1801 = vld [vmem:[%s704 + $0xac] sm:$0xf]
        %v1802 = vld [vmem:[%s704 + $0xb4] sm:$0xf]
        %v1803 = vld [vmem:[%s704 + $0xb8] sm:$0xf]
        %v1836 = vunpack.c.l.b16 %v1772
        %v1837 = vunpack.c.l.b16 %v1773
        %v1838 = vunpack.c.l.b16 %v1774
        %v1839 = vunpack.c.l.b16 %v1775
        %v1840 = vunpack.c.l.b16 %v1776
        %v1841 = vunpack.c.l.b16 %v1777
        %v1842 = vunpack.c.l.b16 %v1778
        %v1843 = vunpack.c.l.b16 %v1779
        %v1844 = vunpack.c.l.b16 %v1780
        %v1845 = vunpack.c.l.b16 %v1781
        %v1846 = vunpack.c.l.b16 %v1782
        %v1847 = vunpack.c.l.b16 %v1783
        %v1848 = vunpack.c.l.b16 %v1784
        %v1849 = vunpack.c.l.b16 %v1785
        %v1850 = vunpack.c.l.b16 %v1786
        %v1851 = vunpack.c.l.b16 %v1787
        %v1852 = vunpack.c.l.b16 %v1788
        %v1853 = vunpack.c.l.b16 %v1789
        %v1854 = vunpack.c.l.b16 %v1790
        %v1855 = vunpack.c.l.b16 %v1791
        %v1856 = vunpack.c.l.b16 %v1792
        %v1857 = vunpack.c.l.b16 %v1793
        %v1858 = vunpack.c.l.b16 %v1794
        %v1859 = vunpack.c.l.b16 %v1795
        %v1860 = vunpack.c.l.b16 %v1796
        %v1861 = vunpack.c.l.b16 %v1797
        %v1862 = vunpack.c.l.b16 %v1798
        %v1863 = vunpack.c.l.b16 %v1799
        %v1864 = vunpack.c.l.b16 %v1800
        %v1865 = vunpack.c.l.b16 %v1801
        %v1866 = vunpack.c.l.b16 %v1802
        %v1867 = vunpack.c.l.b16 %v1803
        %v1868 = vpack.c.b16 %v1837, %v1836
        %v1869 = vpack.c.b16 %v1839, %v1838
        %v1870 = vpack.c.b16 %v1841, %v1840
        %v1871 = vpack.c.b16 %v1843, %v1842
        %v1872 = vpack.c.b16 %v1845, %v1844
        %v1873 = vpack.c.b16 %v1847, %v1846
        %v1874 = vpack.c.b16 %v1849, %v1848
        %v1875 = vpack.c.b16 %v1851, %v1850
        %v1876 = vpack.c.b16 %v1853, %v1852
        %v1877 = vpack.c.b16 %v1855, %v1854
        %v1878 = vpack.c.b16 %v1857, %v1856
        %v1879 = vpack.c.b16 %v1859, %v1858
        %v1880 = vpack.c.b16 %v1861, %v1860
        %v1881 = vpack.c.b16 %v1863, %v1862
        %v1882 = vpack.c.b16 %v1865, %v1864
        %v1883 = vpack.c.b16 %v1867, %v1866
        %1900 = vst [vmem:[#allocation4 + $0x18] sm:$0xff] %v1868
        %1901 = vst [vmem:[#allocation4 + $0x60] sm:$0xff] %v1869
        %1902 = vst [vmem:[#allocation4 + $0xa8] sm:$0xff] %v1870
        %1903 = vst [vmem:[#allocation4 + $0xf0] sm:$0xff] %v1871
        %1904 = vst [vmem:[#allocation4 + $0x138] sm:$0xff] %v1872
        %1905 = vst [vmem:[#allocation4 + $0x180] sm:$0xff] %v1873
        %1906 = vst [vmem:[#allocation4 + $0x1c8] sm:$0xff] %v1874
        %1907 = vst [vmem:[#allocation4 + $0x210] sm:$0xff] %v1875
        %1908 = vst [vmem:[#allocation4 + $0x258] sm:$0xff] %v1876
        %1909 = vst [vmem:[#allocation4 + $0x2a0] sm:$0xff] %v1877
        %1910 = vst [vmem:[#allocation4 + $0x2e8] sm:$0xff] %v1878
        %1911 = vst [vmem:[#allocation4 + $0x330] sm:$0xff] %v1879
        %1912 = vst [vmem:[#allocation4 + $0x378] sm:$0xff] %v1880
        %1913 = vst [vmem:[#allocation4 + $0x3c0] sm:$0xff] %v1881
        %1914 = vst [vmem:[#allocation4 + $0x408] sm:$0xff] %v1882
        %1915 = vst [vmem:[#allocation4 + $0x450] sm:$0xff] %v1883
        %v1916 = vld [vmem:[%s704] sm:$0xf]
        %v1917 = vld [vmem:[%s704 + $0x4] sm:$0xf]
        %v1918 = vld [vmem:[%s704 + $0x8] sm:$0x1]
        %v1919 = vld [vmem:[%s704 + $0xc] sm:$0xf]
        %v1920 = vld [vmem:[%s704 + $0x10] sm:$0xf]
        %v1921 = vld [vmem:[%s704 + $0x14] sm:$0x1]
        %v1922 = vld [vmem:[%s704 + $0x18] sm:$0xf]
        %v1923 = vld [vmem:[%s704 + $0x1c] sm:$0xf]
        %v1924 = vld [vmem:[%s704 + $0x20] sm:$0x1]
        %v1925 = vld [vmem:[%s704 + $0x24] sm:$0xf]
        %v1926 = vld [vmem:[%s704 + $0x28] sm:$0xf]
        %v1927 = vld [vmem:[%s704 + $0x2c] sm:$0x1]
        %v1928 = vld [vmem:[%s704 + $0x30] sm:$0xf]
        %v1929 = vld [vmem:[%s704 + $0x34] sm:$0xf]
        %v1930 = vld [vmem:[%s704 + $0x38] sm:$0x1]
        %v1931 = vld [vmem:[%s704 + $0x3c] sm:$0xf]
        %v1932 = vld [vmem:[%s704 + $0x40] sm:$0xf]
        %v1933 = vld [vmem:[%s704 + $0x44] sm:$0x1]
        %v1934 = vld [vmem:[%s704 + $0x48] sm:$0xf]
        %v1935 = vld [vmem:[%s704 + $0x4c] sm:$0xf]
        %v1936 = vld [vmem:[%s704 + $0x50] sm:$0x1]
        %v1937 = vld [vmem:[%s704 + $0x54] sm:$0xf]
        %v1938 = vld [vmem:[%s704 + $0x58] sm:$0xf]
        %v1939 = vld [vmem:[%s704 + $0x5c] sm:$0x1]
        %v1940 = vld [vmem:[%s704 + $0x60] sm:$0xf]
        %v1941 = vld [vmem:[%s704 + $0x64] sm:$0xf]
        %v1942 = vld [vmem:[%s704 + $0x68] sm:$0x1]
        %v1943 = vld [vmem:[%s704 + $0x6c] sm:$0xf]
        %v1944 = vld [vmem:[%s704 + $0x70] sm:$0xf]
        %v1945 = vld [vmem:[%s704 + $0x74] sm:$0x1]
        %v1946 = vld [vmem:[%s704 + $0x78] sm:$0xf]
        %v1947 = vld [vmem:[%s704 + $0x7c] sm:$0xf]
        %v1948 = vld [vmem:[%s704 + $0x80] sm:$0x1]
        %v1949 = vld [vmem:[%s704 + $0x84] sm:$0xf]
        %v1950 = vld [vmem:[%s704 + $0x88] sm:$0xf]
        %v1951 = vld [vmem:[%s704 + $0x8c] sm:$0x1]
        %v1952 = vld [vmem:[%s704 + $0x90] sm:$0xf]
        %v1953 = vld [vmem:[%s704 + $0x94] sm:$0xf]
        %v1954 = vld [vmem:[%s704 + $0x98] sm:$0x1]
        %v1955 = vld [vmem:[%s704 + $0x9c] sm:$0xf]
        %v1956 = vld [vmem:[%s704 + $0xa0] sm:$0xf]
        %v1957 = vld [vmem:[%s704 + $0xa4] sm:$0x1]
        %v1958 = vld [vmem:[%s704 + $0xa8] sm:$0xf]
        %v1959 = vld [vmem:[%s704 + $0xac] sm:$0xf]
        %v1960 = vld [vmem:[%s704 + $0xb0] sm:$0x1]
        %v1961 = vld [vmem:[%s704 + $0xb4] sm:$0xf]
        %v1962 = vld [vmem:[%s704 + $0xb8] sm:$0xf]
        %v1963 = vld [vmem:[%s704 + $0xbc] sm:$0x1]
        %v1965 = vshrl.u32 %v1916, 16
        %v1967 = vrot.slane %v1965, 4
        %v1968 = vshll.u32 %v1916, 16
        %v1970 = vrot.slane %v1968, 5
        %v1971 = vor.u32 %v1967, %v1970
        %v1972 = vrot.slane %v1971, 4
        %v1974 = vshll.u32 %v1917, 16
        %v1976 = vrot.slane %v1974, 5
        %v1977 = vsel %vm1016, %v1972, %v1976
        %v1978 = vshrl.u32 %v1917, 16
        %v1980 = vrot.slane %v1978, 4
        %v1981 = vor.u32 %v1980, %v1976
        %v1982 = vrot.slane %v1981, 4
        %v1984 = vshll.u32 %v1918, 16
        %v1986 = vrot.slane %v1984, 5
        %v1987 = vsel %vm1016, %v1982, %v1986
        %v1989 = vshrl.u32 %v1919, 16
        %v1991 = vrot.slane %v1989, 4
        %v1992 = vshll.u32 %v1919, 16
        %v1994 = vrot.slane %v1992, 5
        %v1995 = vor.u32 %v1991, %v1994
        %v1996 = vrot.slane %v1995, 4
        %v1998 = vshll.u32 %v1920, 16
        %v2000 = vrot.slane %v1998, 5
        %v2001 = vsel %vm1016, %v1996, %v2000
        %v2002 = vshrl.u32 %v1920, 16
        %v2004 = vrot.slane %v2002, 4
        %v2005 = vor.u32 %v2004, %v2000
        %v2006 = vrot.slane %v2005, 4
        %v2008 = vshll.u32 %v1921, 16
        %v2010 = vrot.slane %v2008, 5
        %v2011 = vsel %vm1016, %v2006, %v2010
        %v2013 = vshrl.u32 %v1922, 16
        %v2015 = vrot.slane %v2013, 4
        %v2016 = vshll.u32 %v1922, 16
        %v2018 = vrot.slane %v2016, 5
        %v2019 = vor.u32 %v2015, %v2018
        %v2020 = vrot.slane %v2019, 4
        %v2022 = vshll.u32 %v1923, 16
        %v2024 = vrot.slane %v2022, 5
        %v2025 = vsel %vm1016, %v2020, %v2024
        %v2026 = vshrl.u32 %v1923, 16
        %v2028 = vrot.slane %v2026, 4
        %v2029 = vor.u32 %v2028, %v2024
        %v2030 = vrot.slane %v2029, 4
        %v2032 = vshll.u32 %v1924, 16
        %v2034 = vrot.slane %v2032, 5
        %v2035 = vsel %vm1016, %v2030, %v2034
        %v2037 = vshrl.u32 %v1925, 16
        %v2039 = vrot.slane %v2037, 4
        %v2040 = vshll.u32 %v1925, 16
        %v2042 = vrot.slane %v2040, 5
        %v2043 = vor.u32 %v2039, %v2042
        %v2044 = vrot.slane %v2043, 4
        %v2046 = vshll.u32 %v1926, 16
        %v2048 = vrot.slane %v2046, 5
        %v2049 = vsel %vm1016, %v2044, %v2048
        %v2050 = vshrl.u32 %v1926, 16
        %v2052 = vrot.slane %v2050, 4
        %v2053 = vor.u32 %v2052, %v2048
        %v2054 = vrot.slane %v2053, 4
        %v2056 = vshll.u32 %v1927, 16
        %v2058 = vrot.slane %v2056, 5
        %v2059 = vsel %vm1016, %v2054, %v2058
        %v2061 = vshrl.u32 %v1928, 16
        %v2063 = vrot.slane %v2061, 4
        %v2064 = vshll.u32 %v1928, 16
        %v2066 = vrot.slane %v2064, 5
        %v2067 = vor.u32 %v2063, %v2066
        %v2068 = vrot.slane %v2067, 4
        %v2070 = vshll.u32 %v1929, 16
        %v2072 = vrot.slane %v2070, 5
        %v2073 = vsel %vm1016, %v2068, %v2072
        %v2074 = vshrl.u32 %v1929, 16
        %v2076 = vrot.slane %v2074, 4
        %v2077 = vor.u32 %v2076, %v2072
        %v2078 = vrot.slane %v2077, 4
        %v2080 = vshll.u32 %v1930, 16
        %v2082 = vrot.slane %v2080, 5
        %v2083 = vsel %vm1016, %v2078, %v2082
        %v2085 = vshrl.u32 %v1931, 16
        %v2087 = vrot.slane %v2085, 4
        %v2088 = vshll.u32 %v1931, 16
        %v2090 = vrot.slane %v2088, 5
        %v2091 = vor.u32 %v2087, %v2090
        %v2092 = vrot.slane %v2091, 4
        %v2094 = vshll.u32 %v1932, 16
        %v2096 = vrot.slane %v2094, 5
        %v2097 = vsel %vm1016, %v2092, %v2096
        %v2098 = vshrl.u32 %v1932, 16
        %v2100 = vrot.slane %v2098, 4
        %v2101 = vor.u32 %v2100, %v2096
        %v2102 = vrot.slane %v2101, 4
        %v2104 = vshll.u32 %v1933, 16
        %v2106 = vrot.slane %v2104, 5
        %v2107 = vsel %vm1016, %v2102, %v2106
        %v2109 = vshrl.u32 %v1934, 16
        %v2111 = vrot.slane %v2109, 4
        %v2112 = vshll.u32 %v1934, 16
        %v2114 = vrot.slane %v2112, 5
        %v2115 = vor.u32 %v2111, %v2114
        %v2116 = vrot.slane %v2115, 4
        %v2118 = vshll.u32 %v1935, 16
        %v2120 = vrot.slane %v2118, 5
        %v2121 = vsel %vm1016, %v2116, %v2120
        %v2122 = vshrl.u32 %v1935, 16
        %v2124 = vrot.slane %v2122, 4
        %v2125 = vor.u32 %v2124, %v2120
        %v2126 = vrot.slane %v2125, 4
        %v2128 = vshll.u32 %v1936, 16
        %v2130 = vrot.slane %v2128, 5
        %v2131 = vsel %vm1016, %v2126, %v2130
        %v2133 = vshrl.u32 %v1937, 16
        %v2135 = vrot.slane %v2133, 4
        %v2136 = vshll.u32 %v1937, 16
        %v2138 = vrot.slane %v2136, 5
        %v2139 = vor.u32 %v2135, %v2138
        %v2140 = vrot.slane %v2139, 4
        %v2142 = vshll.u32 %v1938, 16
        %v2144 = vrot.slane %v2142, 5
        %v2145 = vsel %vm1016, %v2140, %v2144
        %v2146 = vshrl.u32 %v1938, 16
        %v2148 = vrot.slane %v2146, 4
        %v2149 = vor.u32 %v2148, %v2144
        %v2150 = vrot.slane %v2149, 4
        %v2152 = vshll.u32 %v1939, 16
        %v2154 = vrot.slane %v2152, 5
        %v2155 = vsel %vm1016, %v2150, %v2154
        %v2157 = vshrl.u32 %v1940, 16
        %v2159 = vrot.slane %v2157, 4
        %v2160 = vshll.u32 %v1940, 16
        %v2162 = vrot.slane %v2160, 5
        %v2163 = vor.u32 %v2159, %v2162
        %v2164 = vrot.slane %v2163, 4
        %v2166 = vshll.u32 %v1941, 16
        %v2168 = vrot.slane %v2166, 5
        %v2169 = vsel %vm1016, %v2164, %v2168
        %v2170 = vshrl.u32 %v1941, 16
        %v2172 = vrot.slane %v2170, 4
        %v2173 = vor.u32 %v2172, %v2168
        %v2174 = vrot.slane %v2173, 4
        %v2176 = vshll.u32 %v1942, 16
        %v2178 = vrot.slane %v2176, 5
        %v2179 = vsel %vm1016, %v2174, %v2178
        %v2181 = vshrl.u32 %v1943, 16
        %v2183 = vrot.slane %v2181, 4
        %v2184 = vshll.u32 %v1943, 16
        %v2186 = vrot.slane %v2184, 5
        %v2187 = vor.u32 %v2183, %v2186
        %v2188 = vrot.slane %v2187, 4
        %v2190 = vshll.u32 %v1944, 16
        %v2192 = vrot.slane %v2190, 5
        %v2193 = vsel %vm1016, %v2188, %v2192
        %v2194 = vshrl.u32 %v1944, 16
        %v2196 = vrot.slane %v2194, 4
        %v2197 = vor.u32 %v2196, %v2192
        %v2198 = vrot.slane %v2197, 4
        %v2200 = vshll.u32 %v1945, 16
        %v2202 = vrot.slane %v2200, 5
        %v2203 = vsel %vm1016, %v2198, %v2202
        %v2205 = vshrl.u32 %v1946, 16
        %v2207 = vrot.slane %v2205, 4
        %v2208 = vshll.u32 %v1946, 16
        %v2210 = vrot.slane %v2208, 5
        %v2211 = vor.u32 %v2207, %v2210
        %v2212 = vrot.slane %v2211, 4
        %v2214 = vshll.u32 %v1947, 16
        %v2216 = vrot.slane %v2214, 5
        %v2217 = vsel %vm1016, %v2212, %v2216
        %v2218 = vshrl.u32 %v1947, 16
        %v2220 = vrot.slane %v2218, 4
        %v2221 = vor.u32 %v2220, %v2216
        %v2222 = vrot.slane %v2221, 4
        %v2224 = vshll.u32 %v1948, 16
        %v2226 = vrot.slane %v2224, 5
        %v2227 = vsel %vm1016, %v2222, %v2226
        %v2229 = vshrl.u32 %v1949, 16
        %v2231 = vrot.slane %v2229, 4
        %v2232 = vshll.u32 %v1949, 16
        %v2234 = vrot.slane %v2232, 5
        %v2235 = vor.u32 %v2231, %v2234
        %v2236 = vrot.slane %v2235, 4
        %v2238 = vshll.u32 %v1950, 16
        %v2240 = vrot.slane %v2238, 5
        %v2241 = vsel %vm1016, %v2236, %v2240
        %v2242 = vshrl.u32 %v1950, 16
        %v2244 = vrot.slane %v2242, 4
        %v2245 = vor.u32 %v2244, %v2240
        %v2246 = vrot.slane %v2245, 4
        %v2248 = vshll.u32 %v1951, 16
        %v2250 = vrot.slane %v2248, 5
        %v2251 = vsel %vm1016, %v2246, %v2250
        %v2253 = vshrl.u32 %v1952, 16
        %v2255 = vrot.slane %v2253, 4
        %v2256 = vshll.u32 %v1952, 16
        %v2258 = vrot.slane %v2256, 5
        %v2259 = vor.u32 %v2255, %v2258
        %v2260 = vrot.slane %v2259, 4
        %v2262 = vshll.u32 %v1953, 16
        %v2264 = vrot.slane %v2262, 5
        %v2265 = vsel %vm1016, %v2260, %v2264
        %v2266 = vshrl.u32 %v1953, 16
        %v2268 = vrot.slane %v2266, 4
        %v2269 = vor.u32 %v2268, %v2264
        %v2270 = vrot.slane %v2269, 4
        %v2272 = vshll.u32 %v1954, 16
        %v2274 = vrot.slane %v2272, 5
        %v2275 = vsel %vm1016, %v2270, %v2274
        %v2277 = vshrl.u32 %v1955, 16
        %v2279 = vrot.slane %v2277, 4
        %v2280 = vshll.u32 %v1955, 16
        %v2282 = vrot.slane %v2280, 5
        %v2283 = vor.u32 %v2279, %v2282
        %v2284 = vrot.slane %v2283, 4
        %v2286 = vshll.u32 %v1956, 16
        %v2288 = vrot.slane %v2286, 5
        %v2289 = vsel %vm1016, %v2284, %v2288
        %v2290 = vshrl.u32 %v1956, 16
        %v2292 = vrot.slane %v2290, 4
        %v2293 = vor.u32 %v2292, %v2288
        %v2294 = vrot.slane %v2293, 4
        %v2296 = vshll.u32 %v1957, 16
        %v2298 = vrot.slane %v2296, 5
        %v2299 = vsel %vm1016, %v2294, %v2298
        %v2301 = vshrl.u32 %v1958, 16
        %v2303 = vrot.slane %v2301, 4
        %v2304 = vshll.u32 %v1958, 16
        %v2306 = vrot.slane %v2304, 5
        %v2307 = vor.u32 %v2303, %v2306
        %v2308 = vrot.slane %v2307, 4
        %v2310 = vshll.u32 %v1959, 16
        %v2312 = vrot.slane %v2310, 5
        %v2313 = vsel %vm1016, %v2308, %v2312
        %v2314 = vshrl.u32 %v1959, 16
        %v2316 = vrot.slane %v2314, 4
        %v2317 = vor.u32 %v2316, %v2312
        %v2318 = vrot.slane %v2317, 4
        %v2320 = vshll.u32 %v1960, 16
        %v2322 = vrot.slane %v2320, 5
        %v2323 = vsel %vm1016, %v2318, %v2322
        %v2325 = vshrl.u32 %v1961, 16
        %v2327 = vrot.slane %v2325, 4
        %v2328 = vshll.u32 %v1961, 16
        %v2330 = vrot.slane %v2328, 5
        %v2331 = vor.u32 %v2327, %v2330
        %v2332 = vrot.slane %v2331, 4
        %v2334 = vshll.u32 %v1962, 16
        %v2336 = vrot.slane %v2334, 5
        %v2337 = vsel %vm1016, %v2332, %v2336
        %v2338 = vshrl.u32 %v1962, 16
        %v2340 = vrot.slane %v2338, 4
        %v2341 = vor.u32 %v2340, %v2336
        %v2342 = vrot.slane %v2341, 4
        %v2344 = vshll.u32 %v1963, 16
        %v2346 = vrot.slane %v2344, 5
        %v2347 = vsel %vm1016, %v2342, %v2346
        %v2348 = vunpack.c.l.b16 %v1977
        %v2349 = vunpack.c.l.b16 %v1987
        %v2350 = vunpack.c.l.b16 %v2001
        %v2351 = vunpack.c.l.b16 %v2011
        %v2352 = vunpack.c.l.b16 %v2025
        %v2353 = vunpack.c.l.b16 %v2035
        %v2354 = vunpack.c.l.b16 %v2049
        %v2355 = vunpack.c.l.b16 %v2059
        %v2356 = vunpack.c.l.b16 %v2073
        %v2357 = vunpack.c.l.b16 %v2083
        %v2358 = vunpack.c.l.b16 %v2097
        %v2359 = vunpack.c.l.b16 %v2107
        %v2360 = vunpack.c.l.b16 %v2121
        %v2361 = vunpack.c.l.b16 %v2131
        %v2362 = vunpack.c.l.b16 %v2145
        %v2363 = vunpack.c.l.b16 %v2155
        %v2364 = vunpack.c.l.b16 %v2169
        %v2365 = vunpack.c.l.b16 %v2179
        %v2366 = vunpack.c.l.b16 %v2193
        %v2367 = vunpack.c.l.b16 %v2203
        %v2368 = vunpack.c.l.b16 %v2217
        %v2369 = vunpack.c.l.b16 %v2227
        %v2370 = vunpack.c.l.b16 %v2241
        %v2371 = vunpack.c.l.b16 %v2251
        %v2372 = vunpack.c.l.b16 %v2265
        %v2373 = vunpack.c.l.b16 %v2275
        %v2374 = vunpack.c.l.b16 %v2289
        %v2375 = vunpack.c.l.b16 %v2299
        %v2376 = vunpack.c.l.b16 %v2313
        %v2377 = vunpack.c.l.b16 %v2323
        %v2378 = vunpack.c.l.b16 %v2337
        %v2379 = vunpack.c.l.b16 %v2347
        %v2380 = vpack.c.b16 %v2349, %v2348
        %v2381 = vpack.c.b16 %v2351, %v2350
        %v2382 = vpack.c.b16 %v2353, %v2352
        %v2383 = vpack.c.b16 %v2355, %v2354
        %v2384 = vpack.c.b16 %v2357, %v2356
        %v2385 = vpack.c.b16 %v2359, %v2358
        %v2386 = vpack.c.b16 %v2361, %v2360
        %v2387 = vpack.c.b16 %v2363, %v2362
        %v2388 = vpack.c.b16 %v2365, %v2364
        %v2389 = vpack.c.b16 %v2367, %v2366
        %v2390 = vpack.c.b16 %v2369, %v2368
        %v2391 = vpack.c.b16 %v2371, %v2370
        %v2392 = vpack.c.b16 %v2373, %v2372
        %v2393 = vpack.c.b16 %v2375, %v2374
        %v2394 = vpack.c.b16 %v2377, %v2376
        %v2395 = vpack.c.b16 %v2379, %v2378
        %2412 = vst [vmem:[#allocation4 + $0x20] sm:$0xff] %v2380
        %2413 = vst [vmem:[#allocation4 + $0x68] sm:$0xff] %v2381
        %2414 = vst [vmem:[#allocation4 + $0xb0] sm:$0xff] %v2382
        %2415 = vst [vmem:[#allocation4 + $0xf8] sm:$0xff] %v2383
        %2416 = vst [vmem:[#allocation4 + $0x140] sm:$0xff] %v2384
        %2417 = vst [vmem:[#allocation4 + $0x188] sm:$0xff] %v2385
        %2418 = vst [vmem:[#allocation4 + $0x1d0] sm:$0xff] %v2386
        %2419 = vst [vmem:[#allocation4 + $0x218] sm:$0xff] %v2387
        %2420 = vst [vmem:[#allocation4 + $0x260] sm:$0xff] %v2388
        %2421 = vst [vmem:[#allocation4 + $0x2a8] sm:$0xff] %v2389
        %2422 = vst [vmem:[#allocation4 + $0x2f0] sm:$0xff] %v2390
        %2423 = vst [vmem:[#allocation4 + $0x338] sm:$0xff] %v2391
        %2424 = vst [vmem:[#allocation4 + $0x380] sm:$0xff] %v2392
        %2425 = vst [vmem:[#allocation4 + $0x3c8] sm:$0xff] %v2393
        %2426 = vst [vmem:[#allocation4 + $0x410] sm:$0xff] %v2394
        %2427 = vst [vmem:[#allocation4 + $0x458] sm:$0xff] %v2395
        %v2428 = vld [vmem:[%s704] sm:$0xe]
        %v2429 = vld [vmem:[%s704 + $0x4] sm:$0xf]
        %v2430 = vld [vmem:[%s704 + $0x8] sm:$0x1]
        %v2431 = vld [vmem:[%s704 + $0xc] sm:$0xe]
        %v2432 = vld [vmem:[%s704 + $0x10] sm:$0xf]
        %v2433 = vld [vmem:[%s704 + $0x14] sm:$0x1]
        %v2434 = vld [vmem:[%s704 + $0x18] sm:$0xe]
        %v2435 = vld [vmem:[%s704 + $0x1c] sm:$0xf]
        %v2436 = vld [vmem:[%s704 + $0x20] sm:$0x1]
        %v2437 = vld [vmem:[%s704 + $0x24] sm:$0xe]
        %v2438 = vld [vmem:[%s704 + $0x28] sm:$0xf]
        %v2439 = vld [vmem:[%s704 + $0x2c] sm:$0x1]
        %v2440 = vld [vmem:[%s704 + $0x30] sm:$0xe]
        %v2441 = vld [vmem:[%s704 + $0x34] sm:$0xf]
        %v2442 = vld [vmem:[%s704 + $0x38] sm:$0x1]
        %v2443 = vld [vmem:[%s704 + $0x3c] sm:$0xe]
        %v2444 = vld [vmem:[%s704 + $0x40] sm:$0xf]
        %v2445 = vld [vmem:[%s704 + $0x44] sm:$0x1]
        %v2446 = vld [vmem:[%s704 + $0x48] sm:$0xe]
        %v2447 = vld [vmem:[%s704 + $0x4c] sm:$0xf]
        %v2448 = vld [vmem:[%s704 + $0x50] sm:$0x1]
        %v2449 = vld [vmem:[%s704 + $0x54] sm:$0xe]
        %v2450 = vld [vmem:[%s704 + $0x58] sm:$0xf]
        %v2451 = vld [vmem:[%s704 + $0x5c] sm:$0x1]
        %v2452 = vld [vmem:[%s704 + $0x60] sm:$0xe]
        %v2453 = vld [vmem:[%s704 + $0x64] sm:$0xf]
        %v2454 = vld [vmem:[%s704 + $0x68] sm:$0x1]
        %v2455 = vld [vmem:[%s704 + $0x6c] sm:$0xe]
        %v2456 = vld [vmem:[%s704 + $0x70] sm:$0xf]
        %v2457 = vld [vmem:[%s704 + $0x74] sm:$0x1]
        %v2458 = vld [vmem:[%s704 + $0x78] sm:$0xe]
        %v2459 = vld [vmem:[%s704 + $0x7c] sm:$0xf]
        %v2460 = vld [vmem:[%s704 + $0x80] sm:$0x1]
        %v2461 = vld [vmem:[%s704 + $0x84] sm:$0xe]
        %v2462 = vld [vmem:[%s704 + $0x88] sm:$0xf]
        %v2463 = vld [vmem:[%s704 + $0x8c] sm:$0x1]
        %v2464 = vld [vmem:[%s704 + $0x90] sm:$0xe]
        %v2465 = vld [vmem:[%s704 + $0x94] sm:$0xf]
        %v2466 = vld [vmem:[%s704 + $0x98] sm:$0x1]
        %v2467 = vld [vmem:[%s704 + $0x9c] sm:$0xe]
        %v2468 = vld [vmem:[%s704 + $0xa0] sm:$0xf]
        %v2469 = vld [vmem:[%s704 + $0xa4] sm:$0x1]
        %v2470 = vld [vmem:[%s704 + $0xa8] sm:$0xe]
        %v2471 = vld [vmem:[%s704 + $0xac] sm:$0xf]
        %v2472 = vld [vmem:[%s704 + $0xb0] sm:$0x1]
        %v2473 = vld [vmem:[%s704 + $0xb4] sm:$0xe]
        %v2474 = vld [vmem:[%s704 + $0xb8] sm:$0xf]
        %v2475 = vld [vmem:[%s704 + $0xbc] sm:$0x1]
        %v2524 = vrot.slane %v2428, 5
        %v2525 = vrot.slane %v2524, 4
        %v2526 = vrot.slane %v2429, 5
        %v2527 = vsel %vm1579, %v2525, %v2526
        %v2528 = vrot.slane %v2526, 4
        %v2529 = vrot.slane %v2430, 5
        %v2530 = vsel %vm1579, %v2528, %v2529
        %v2531 = vrot.slane %v2431, 5
        %v2532 = vrot.slane %v2531, 4
        %v2533 = vrot.slane %v2432, 5
        %v2534 = vsel %vm1579, %v2532, %v2533
        %v2535 = vrot.slane %v2533, 4
        %v2536 = vrot.slane %v2433, 5
        %v2537 = vsel %vm1579, %v2535, %v2536
        %v2538 = vrot.slane %v2434, 5
        %v2539 = vrot.slane %v2538, 4
        %v2540 = vrot.slane %v2435, 5
        %v2541 = vsel %vm1579, %v2539, %v2540
        %v2542 = vrot.slane %v2540, 4
        %v2543 = vrot.slane %v2436, 5
        %v2544 = vsel %vm1579, %v2542, %v2543
        %v2545 = vrot.slane %v2437, 5
        %v2546 = vrot.slane %v2545, 4
        %v2547 = vrot.slane %v2438, 5
        %v2548 = vsel %vm1579, %v2546, %v2547
        %v2549 = vrot.slane %v2547, 4
        %v2550 = vrot.slane %v2439, 5
        %v2551 = vsel %vm1579, %v2549, %v2550
        %v2552 = vrot.slane %v2440, 5
        %v2553 = vrot.slane %v2552, 4
        %v2554 = vrot.slane %v2441, 5
        %v2555 = vsel %vm1579, %v2553, %v2554
        %v2556 = vrot.slane %v2554, 4
        %v2557 = vrot.slane %v2442, 5
        %v2558 = vsel %vm1579, %v2556, %v2557
        %v2559 = vrot.slane %v2443, 5
        %v2560 = vrot.slane %v2559, 4
        %v2561 = vrot.slane %v2444, 5
        %v2562 = vsel %vm1579, %v2560, %v2561
        %v2563 = vrot.slane %v2561, 4
        %v2564 = vrot.slane %v2445, 5
        %v2565 = vsel %vm1579, %v2563, %v2564
        %v2566 = vrot.slane %v2446, 5
        %v2567 = vrot.slane %v2566, 4
        %v2568 = vrot.slane %v2447, 5
        %v2569 = vsel %vm1579, %v2567, %v2568
        %v2570 = vrot.slane %v2568, 4
        %v2571 = vrot.slane %v2448, 5
        %v2572 = vsel %vm1579, %v2570, %v2571
        %v2573 = vrot.slane %v2449, 5
        %v2574 = vrot.slane %v2573, 4
        %v2575 = vrot.slane %v2450, 5
        %v2576 = vsel %vm1579, %v2574, %v2575
        %v2577 = vrot.slane %v2575, 4
        %v2578 = vrot.slane %v2451, 5
        %v2579 = vsel %vm1579, %v2577, %v2578
        %v2580 = vrot.slane %v2452, 5
        %v2581 = vrot.slane %v2580, 4
        %v2582 = vrot.slane %v2453, 5
        %v2583 = vsel %vm1579, %v2581, %v2582
        %v2584 = vrot.slane %v2582, 4
        %v2585 = vrot.slane %v2454, 5
        %v2586 = vsel %vm1579, %v2584, %v2585
        %v2587 = vrot.slane %v2455, 5
        %v2588 = vrot.slane %v2587, 4
        %v2589 = vrot.slane %v2456, 5
        %v2590 = vsel %vm1579, %v2588, %v2589
        %v2591 = vrot.slane %v2589, 4
        %v2592 = vrot.slane %v2457, 5
        %v2593 = vsel %vm1579, %v2591, %v2592
        %v2594 = vrot.slane %v2458, 5
        %v2595 = vrot.slane %v2594, 4
        %v2596 = vrot.slane %v2459, 5
        %v2597 = vsel %vm1579, %v2595, %v2596
        %v2598 = vrot.slane %v2596, 4
        %v2599 = vrot.slane %v2460, 5
        %v2600 = vsel %vm1579, %v2598, %v2599
        %v2601 = vrot.slane %v2461, 5
        %v2602 = vrot.slane %v2601, 4
        %v2603 = vrot.slane %v2462, 5
        %v2604 = vsel %vm1579, %v2602, %v2603
        %v2605 = vrot.slane %v2603, 4
        %v2606 = vrot.slane %v2463, 5
        %v2607 = vsel %vm1579, %v2605, %v2606
        %v2608 = vrot.slane %v2464, 5
        %v2609 = vrot.slane %v2608, 4
        %v2610 = vrot.slane %v2465, 5
        %v2611 = vsel %vm1579, %v2609, %v2610
        %v2612 = vrot.slane %v2610, 4
        %v2613 = vrot.slane %v2466, 5
        %v2614 = vsel %vm1579, %v2612, %v2613
        %v2615 = vrot.slane %v2467, 5
        %v2616 = vrot.slane %v2615, 4
        %v2617 = vrot.slane %v2468, 5
        %v2618 = vsel %vm1579, %v2616, %v2617
        %v2619 = vrot.slane %v2617, 4
        %v2620 = vrot.slane %v2469, 5
        %v2621 = vsel %vm1579, %v2619, %v2620
        %v2622 = vrot.slane %v2470, 5
        %v2623 = vrot.slane %v2622, 4
        %v2624 = vrot.slane %v2471, 5
        %v2625 = vsel %vm1579, %v2623, %v2624
        %v2626 = vrot.slane %v2624, 4
        %v2627 = vrot.slane %v2472, 5
        %v2628 = vsel %vm1579, %v2626, %v2627
        %v2629 = vrot.slane %v2473, 5
        %v2630 = vrot.slane %v2629, 4
        %v2631 = vrot.slane %v2474, 5
        %v2632 = vsel %vm1579, %v2630, %v2631
        %v2633 = vrot.slane %v2631, 4
        %v2634 = vrot.slane %v2475, 5
        %v2635 = vsel %vm1579, %v2633, %v2634
        %v2636 = vunpack.c.l.b16 %v2527
        %v2637 = vunpack.c.l.b16 %v2530
        %v2638 = vunpack.c.l.b16 %v2534
        %v2639 = vunpack.c.l.b16 %v2537
        %v2640 = vunpack.c.l.b16 %v2541
        %v2641 = vunpack.c.l.b16 %v2544
        %v2642 = vunpack.c.l.b16 %v2548
        %v2643 = vunpack.c.l.b16 %v2551
        %v2644 = vunpack.c.l.b16 %v2555
        %v2645 = vunpack.c.l.b16 %v2558
        %v2646 = vunpack.c.l.b16 %v2562
        %v2647 = vunpack.c.l.b16 %v2565
        %v2648 = vunpack.c.l.b16 %v2569
        %v2649 = vunpack.c.l.b16 %v2572
        %v2650 = vunpack.c.l.b16 %v2576
        %v2651 = vunpack.c.l.b16 %v2579
        %v2652 = vunpack.c.l.b16 %v2583
        %v2653 = vunpack.c.l.b16 %v2586
        %v2654 = vunpack.c.l.b16 %v2590
        %v2655 = vunpack.c.l.b16 %v2593
        %v2656 = vunpack.c.l.b16 %v2597
        %v2657 = vunpack.c.l.b16 %v2600
        %v2658 = vunpack.c.l.b16 %v2604
        %v2659 = vunpack.c.l.b16 %v2607
        %v2660 = vunpack.c.l.b16 %v2611
        %v2661 = vunpack.c.l.b16 %v2614
        %v2662 = vunpack.c.l.b16 %v2618
        %v2663 = vunpack.c.l.b16 %v2621
        %v2664 = vunpack.c.l.b16 %v2625
        %v2665 = vunpack.c.l.b16 %v2628
        %v2666 = vunpack.c.l.b16 %v2632
        %v2667 = vunpack.c.l.b16 %v2635
        %v2668 = vpack.c.b16 %v2637, %v2636
        %v2669 = vpack.c.b16 %v2639, %v2638
        %v2670 = vpack.c.b16 %v2641, %v2640
        %v2671 = vpack.c.b16 %v2643, %v2642
        %v2672 = vpack.c.b16 %v2645, %v2644
        %v2673 = vpack.c.b16 %v2647, %v2646
        %v2674 = vpack.c.b16 %v2649, %v2648
        %v2675 = vpack.c.b16 %v2651, %v2650
        %v2676 = vpack.c.b16 %v2653, %v2652
        %v2677 = vpack.c.b16 %v2655, %v2654
        %v2678 = vpack.c.b16 %v2657, %v2656
        %v2679 = vpack.c.b16 %v2659, %v2658
        %v2680 = vpack.c.b16 %v2661, %v2660
        %v2681 = vpack.c.b16 %v2663, %v2662
        %v2682 = vpack.c.b16 %v2665, %v2664
        %v2683 = vpack.c.b16 %v2667, %v2666
        %2700 = vst [vmem:[#allocation4 + $0x28] sm:$0xff] %v2668
        %2701 = vst [vmem:[#allocation4 + $0x70] sm:$0xff] %v2669
        %2702 = vst [vmem:[#allocation4 + $0xb8] sm:$0xff] %v2670
        %2703 = vst [vmem:[#allocation4 + $0x100] sm:$0xff] %v2671
        %2704 = vst [vmem:[#allocation4 + $0x148] sm:$0xff] %v2672
        %2705 = vst [vmem:[#allocation4 + $0x190] sm:$0xff] %v2673
        %2706 = vst [vmem:[#allocation4 + $0x1d8] sm:$0xff] %v2674
        %2707 = vst [vmem:[#allocation4 + $0x220] sm:$0xff] %v2675
        %2708 = vst [vmem:[#allocation4 + $0x268] sm:$0xff] %v2676
        %2709 = vst [vmem:[#allocation4 + $0x2b0] sm:$0xff] %v2677
        %2710 = vst [vmem:[#allocation4 + $0x2f8] sm:$0xff] %v2678
        %2711 = vst [vmem:[#allocation4 + $0x340] sm:$0xff] %v2679
        %2712 = vst [vmem:[#allocation4 + $0x388] sm:$0xff] %v2680
        %2713 = vst [vmem:[#allocation4 + $0x3d0] sm:$0xff] %v2681
        %2714 = vst [vmem:[#allocation4 + $0x418] sm:$0xff] %v2682
        %2715 = vst [vmem:[#allocation4 + $0x460] sm:$0xff] %v2683
        %s2716 = scalar_lea.vmem [#allocation2], 24
        %v2717 = vld [vmem:[%s2716] sm:$0xf]
        %v2718 = vld [vmem:[%s2716 + $0x4] sm:$0xf]
        %v2719 = vld [vmem:[%s2716 + $0xc] sm:$0xf]
        %v2720 = vld [vmem:[%s2716 + $0x10] sm:$0xf]
        %v2721 = vld [vmem:[%s2716 + $0x18] sm:$0xf]
        %v2722 = vld [vmem:[%s2716 + $0x1c] sm:$0xf]
        %v2723 = vld [vmem:[%s2716 + $0x24] sm:$0xf]
        %v2724 = vld [vmem:[%s2716 + $0x28] sm:$0xf]
        %v2725 = vld [vmem:[%s2716 + $0x30] sm:$0xf]
        %v2726 = vld [vmem:[%s2716 + $0x34] sm:$0xf]
        %v2727 = vld [vmem:[%s2716 + $0x3c] sm:$0xf]
        %v2728 = vld [vmem:[%s2716 + $0x40] sm:$0xf]
        %v2729 = vld [vmem:[%s2716 + $0x48] sm:$0xf]
        %v2730 = vld [vmem:[%s2716 + $0x4c] sm:$0xf]
        %v2731 = vld [vmem:[%s2716 + $0x54] sm:$0xf]
        %v2732 = vld [vmem:[%s2716 + $0x58] sm:$0xf]
        %v2733 = vld [vmem:[%s2716 + $0x60] sm:$0xf]
        %v2734 = vld [vmem:[%s2716 + $0x64] sm:$0xf]
        %v2735 = vld [vmem:[%s2716 + $0x6c] sm:$0xf]
        %v2736 = vld [vmem:[%s2716 + $0x70] sm:$0xf]
        %v2737 = vld [vmem:[%s2716 + $0x78] sm:$0xf]
        %v2738 = vld [vmem:[%s2716 + $0x7c] sm:$0xf]
        %v2739 = vld [vmem:[%s2716 + $0x84] sm:$0xf]
        %v2740 = vld [vmem:[%s2716 + $0x88] sm:$0xf]
        %v2741 = vld [vmem:[%s2716 + $0x90] sm:$0xf]
        %v2742 = vld [vmem:[%s2716 + $0x94] sm:$0xf]
        %v2743 = vld [vmem:[%s2716 + $0x9c] sm:$0xf]
        %v2744 = vld [vmem:[%s2716 + $0xa0] sm:$0xf]
        %v2745 = vld [vmem:[%s2716 + $0xa8] sm:$0xf]
        %v2746 = vld [vmem:[%s2716 + $0xac] sm:$0xf]
        %v2747 = vld [vmem:[%s2716 + $0xb4] sm:$0xf]
        %v2748 = vld [vmem:[%s2716 + $0xb8] sm:$0xf]
        %v2781 = vunpack.c.l.b16 %v2717
        %v2782 = vunpack.c.l.b16 %v2718
        %v2783 = vunpack.c.l.b16 %v2719
        %v2784 = vunpack.c.l.b16 %v2720
        %v2785 = vunpack.c.l.b16 %v2721
        %v2786 = vunpack.c.l.b16 %v2722
        %v2787 = vunpack.c.l.b16 %v2723
        %v2788 = vunpack.c.l.b16 %v2724
        %v2789 = vunpack.c.l.b16 %v2725
        %v2790 = vunpack.c.l.b16 %v2726
        %v2791 = vunpack.c.l.b16 %v2727
        %v2792 = vunpack.c.l.b16 %v2728
        %v2793 = vunpack.c.l.b16 %v2729
        %v2794 = vunpack.c.l.b16 %v2730
        %v2795 = vunpack.c.l.b16 %v2731
        %v2796 = vunpack.c.l.b16 %v2732
        %v2797 = vunpack.c.l.b16 %v2733
        %v2798 = vunpack.c.l.b16 %v2734
        %v2799 = vunpack.c.l.b16 %v2735
        %v2800 = vunpack.c.l.b16 %v2736
        %v2801 = vunpack.c.l.b16 %v2737
        %v2802 = vunpack.c.l.b16 %v2738
        %v2803 = vunpack.c.l.b16 %v2739
        %v2804 = vunpack.c.l.b16 %v2740
        %v2805 = vunpack.c.l.b16 %v2741
        %v2806 = vunpack.c.l.b16 %v2742
        %v2807 = vunpack.c.l.b16 %v2743
        %v2808 = vunpack.c.l.b16 %v2744
        %v2809 = vunpack.c.l.b16 %v2745
        %v2810 = vunpack.c.l.b16 %v2746
        %v2811 = vunpack.c.l.b16 %v2747
        %v2812 = vunpack.c.l.b16 %v2748
        %v2813 = vpack.c.b16 %v2782, %v2781
        %v2814 = vpack.c.b16 %v2784, %v2783
        %v2815 = vpack.c.b16 %v2786, %v2785
        %v2816 = vpack.c.b16 %v2788, %v2787
        %v2817 = vpack.c.b16 %v2790, %v2789
        %v2818 = vpack.c.b16 %v2792, %v2791
        %v2819 = vpack.c.b16 %v2794, %v2793
        %v2820 = vpack.c.b16 %v2796, %v2795
        %v2821 = vpack.c.b16 %v2798, %v2797
        %v2822 = vpack.c.b16 %v2800, %v2799
        %v2823 = vpack.c.b16 %v2802, %v2801
        %v2824 = vpack.c.b16 %v2804, %v2803
        %v2825 = vpack.c.b16 %v2806, %v2805
        %v2826 = vpack.c.b16 %v2808, %v2807
        %v2827 = vpack.c.b16 %v2810, %v2809
        %v2828 = vpack.c.b16 %v2812, %v2811
        %2845 = vst [vmem:[#allocation4 + $0x30] sm:$0xff] %v2813
        %2846 = vst [vmem:[#allocation4 + $0x78] sm:$0xff] %v2814
        %2847 = vst [vmem:[#allocation4 + $0xc0] sm:$0xff] %v2815
        %2848 = vst [vmem:[#allocation4 + $0x108] sm:$0xff] %v2816
        %2849 = vst [vmem:[#allocation4 + $0x150] sm:$0xff] %v2817
        %2850 = vst [vmem:[#allocation4 + $0x198] sm:$0xff] %v2818
        %2851 = vst [vmem:[#allocation4 + $0x1e0] sm:$0xff] %v2819
        %2852 = vst [vmem:[#allocation4 + $0x228] sm:$0xff] %v2820
        %2853 = vst [vmem:[#allocation4 + $0x270] sm:$0xff] %v2821
        %2854 = vst [vmem:[#allocation4 + $0x2b8] sm:$0xff] %v2822
        %2855 = vst [vmem:[#allocation4 + $0x300] sm:$0xff] %v2823
        %2856 = vst [vmem:[#allocation4 + $0x348] sm:$0xff] %v2824
        %2857 = vst [vmem:[#allocation4 + $0x390] sm:$0xff] %v2825
        %2858 = vst [vmem:[#allocation4 + $0x3d8] sm:$0xff] %v2826
        %2859 = vst [vmem:[#allocation4 + $0x420] sm:$0xff] %v2827
        %2860 = vst [vmem:[#allocation4 + $0x468] sm:$0xff] %v2828
        %v2861 = vld [vmem:[%s2716] sm:$0xf]
        %v2862 = vld [vmem:[%s2716 + $0x4] sm:$0xf]
        %v2863 = vld [vmem:[%s2716 + $0x8] sm:$0x1]
        %v2864 = vld [vmem:[%s2716 + $0xc] sm:$0xf]
        %v2865 = vld [vmem:[%s2716 + $0x10] sm:$0xf]
        %v2866 = vld [vmem:[%s2716 + $0x14] sm:$0x1]
        %v2867 = vld [vmem:[%s2716 + $0x18] sm:$0xf]
        %v2868 = vld [vmem:[%s2716 + $0x1c] sm:$0xf]
        %v2869 = vld [vmem:[%s2716 + $0x20] sm:$0x1]
        %v2870 = vld [vmem:[%s2716 + $0x24] sm:$0xf]
        %v2871 = vld [vmem:[%s2716 + $0x28] sm:$0xf]
        %v2872 = vld [vmem:[%s2716 + $0x2c] sm:$0x1]
        %v2873 = vld [vmem:[%s2716 + $0x30] sm:$0xf]
        %v2874 = vld [vmem:[%s2716 + $0x34] sm:$0xf]
        %v2875 = vld [vmem:[%s2716 + $0x38] sm:$0x1]
        %v2876 = vld [vmem:[%s2716 + $0x3c] sm:$0xf]
        %v2877 = vld [vmem:[%s2716 + $0x40] sm:$0xf]
        %v2878 = vld [vmem:[%s2716 + $0x44] sm:$0x1]
        %v2879 = vld [vmem:[%s2716 + $0x48] sm:$0xf]
        %v2880 = vld [vmem:[%s2716 + $0x4c] sm:$0xf]
        %v2881 = vld [vmem:[%s2716 + $0x50] sm:$0x1]
        %v2882 = vld [vmem:[%s2716 + $0x54] sm:$0xf]
        %v2883 = vld [vmem:[%s2716 + $0x58] sm:$0xf]
        %v2884 = vld [vmem:[%s2716 + $0x5c] sm:$0x1]
        %v2885 = vld [vmem:[%s2716 + $0x60] sm:$0xf]
        %v2886 = vld [vmem:[%s2716 + $0x64] sm:$0xf]
        %v2887 = vld [vmem:[%s2716 + $0x68] sm:$0x1]
        %v2888 = vld [vmem:[%s2716 + $0x6c] sm:$0xf]
        %v2889 = vld [vmem:[%s2716 + $0x70] sm:$0xf]
        %v2890 = vld [vmem:[%s2716 + $0x74] sm:$0x1]
        %v2891 = vld [vmem:[%s2716 + $0x78] sm:$0xf]
        %v2892 = vld [vmem:[%s2716 + $0x7c] sm:$0xf]
        %v2893 = vld [vmem:[%s2716 + $0x80] sm:$0x1]
        %v2894 = vld [vmem:[%s2716 + $0x84] sm:$0xf]
        %v2895 = vld [vmem:[%s2716 + $0x88] sm:$0xf]
        %v2896 = vld [vmem:[%s2716 + $0x8c] sm:$0x1]
        %v2897 = vld [vmem:[%s2716 + $0x90] sm:$0xf]
        %v2898 = vld [vmem:[%s2716 + $0x94] sm:$0xf]
        %v2899 = vld [vmem:[%s2716 + $0x98] sm:$0x1]
        %v2900 = vld [vmem:[%s2716 + $0x9c] sm:$0xf]
        %v2901 = vld [vmem:[%s2716 + $0xa0] sm:$0xf]
        %v2902 = vld [vmem:[%s2716 + $0xa4] sm:$0x1]
        %v2903 = vld [vmem:[%s2716 + $0xa8] sm:$0xf]
        %v2904 = vld [vmem:[%s2716 + $0xac] sm:$0xf]
        %v2905 = vld [vmem:[%s2716 + $0xb0] sm:$0x1]
        %v2906 = vld [vmem:[%s2716 + $0xb4] sm:$0xf]
        %v2907 = vld [vmem:[%s2716 + $0xb8] sm:$0xf]
        %v2908 = vld [vmem:[%s2716 + $0xbc] sm:$0x1]
        %v2910 = vshrl.u32 %v2861, 16
        %v2912 = vrot.slane %v2910, 4
        %v2913 = vshll.u32 %v2861, 16
        %v2915 = vrot.slane %v2913, 5
        %v2916 = vor.u32 %v2912, %v2915
        %v2917 = vrot.slane %v2916, 4
        %v2919 = vshll.u32 %v2862, 16
        %v2921 = vrot.slane %v2919, 5
        %v2922 = vsel %vm1016, %v2917, %v2921
        %v2923 = vshrl.u32 %v2862, 16
        %v2925 = vrot.slane %v2923, 4
        %v2926 = vor.u32 %v2925, %v2921
        %v2927 = vrot.slane %v2926, 4
        %v2929 = vshll.u32 %v2863, 16
        %v2931 = vrot.slane %v2929, 5
        %v2932 = vsel %vm1016, %v2927, %v2931
        %v2934 = vshrl.u32 %v2864, 16
        %v2936 = vrot.slane %v2934, 4
        %v2937 = vshll.u32 %v2864, 16
        %v2939 = vrot.slane %v2937, 5
        %v2940 = vor.u32 %v2936, %v2939
        %v2941 = vrot.slane %v2940, 4
        %v2943 = vshll.u32 %v2865, 16
        %v2945 = vrot.slane %v2943, 5
        %v2946 = vsel %vm1016, %v2941, %v2945
        %v2947 = vshrl.u32 %v2865, 16
        %v2949 = vrot.slane %v2947, 4
        %v2950 = vor.u32 %v2949, %v2945
        %v2951 = vrot.slane %v2950, 4
        %v2953 = vshll.u32 %v2866, 16
        %v2955 = vrot.slane %v2953, 5
        %v2956 = vsel %vm1016, %v2951, %v2955
        %v2958 = vshrl.u32 %v2867, 16
        %v2960 = vrot.slane %v2958, 4
        %v2961 = vshll.u32 %v2867, 16
        %v2963 = vrot.slane %v2961, 5
        %v2964 = vor.u32 %v2960, %v2963
        %v2965 = vrot.slane %v2964, 4
        %v2967 = vshll.u32 %v2868, 16
        %v2969 = vrot.slane %v2967, 5
        %v2970 = vsel %vm1016, %v2965, %v2969
        %v2971 = vshrl.u32 %v2868, 16
        %v2973 = vrot.slane %v2971, 4
        %v2974 = vor.u32 %v2973, %v2969
        %v2975 = vrot.slane %v2974, 4
        %v2977 = vshll.u32 %v2869, 16
        %v2979 = vrot.slane %v2977, 5
        %v2980 = vsel %vm1016, %v2975, %v2979
        %v2982 = vshrl.u32 %v2870, 16
        %v2984 = vrot.slane %v2982, 4
        %v2985 = vshll.u32 %v2870, 16
        %v2987 = vrot.slane %v2985, 5
        %v2988 = vor.u32 %v2984, %v2987
        %v2989 = vrot.slane %v2988, 4
        %v2991 = vshll.u32 %v2871, 16
        %v2993 = vrot.slane %v2991, 5
        %v2994 = vsel %vm1016, %v2989, %v2993
        %v2995 = vshrl.u32 %v2871, 16
        %v2997 = vrot.slane %v2995, 4
        %v2998 = vor.u32 %v2997, %v2993
        %v2999 = vrot.slane %v2998, 4
        %v3001 = vshll.u32 %v2872, 16
        %v3003 = vrot.slane %v3001, 5
        %v3004 = vsel %vm1016, %v2999, %v3003
        %v3006 = vshrl.u32 %v2873, 16
        %v3008 = vrot.slane %v3006, 4
        %v3009 = vshll.u32 %v2873, 16
        %v3011 = vrot.slane %v3009, 5
        %v3012 = vor.u32 %v3008, %v3011
        %v3013 = vrot.slane %v3012, 4
        %v3015 = vshll.u32 %v2874, 16
        %v3017 = vrot.slane %v3015, 5
        %v3018 = vsel %vm1016, %v3013, %v3017
        %v3019 = vshrl.u32 %v2874, 16
        %v3021 = vrot.slane %v3019, 4
        %v3022 = vor.u32 %v3021, %v3017
        %v3023 = vrot.slane %v3022, 4
        %v3025 = vshll.u32 %v2875, 16
        %v3027 = vrot.slane %v3025, 5
        %v3028 = vsel %vm1016, %v3023, %v3027
        %v3030 = vshrl.u32 %v2876, 16
        %v3032 = vrot.slane %v3030, 4
        %v3033 = vshll.u32 %v2876, 16
        %v3035 = vrot.slane %v3033, 5
        %v3036 = vor.u32 %v3032, %v3035
        %v3037 = vrot.slane %v3036, 4
        %v3039 = vshll.u32 %v2877, 16
        %v3041 = vrot.slane %v3039, 5
        %v3042 = vsel %vm1016, %v3037, %v3041
        %v3043 = vshrl.u32 %v2877, 16
        %v3045 = vrot.slane %v3043, 4
        %v3046 = vor.u32 %v3045, %v3041
        %v3047 = vrot.slane %v3046, 4
        %v3049 = vshll.u32 %v2878, 16
        %v3051 = vrot.slane %v3049, 5
        %v3052 = vsel %vm1016, %v3047, %v3051
        %v3054 = vshrl.u32 %v2879, 16
        %v3056 = vrot.slane %v3054, 4
        %v3057 = vshll.u32 %v2879, 16
        %v3059 = vrot.slane %v3057, 5
        %v3060 = vor.u32 %v3056, %v3059
        %v3061 = vrot.slane %v3060, 4
        %v3063 = vshll.u32 %v2880, 16
        %v3065 = vrot.slane %v3063, 5
        %v3066 = vsel %vm1016, %v3061, %v3065
        %v3067 = vshrl.u32 %v2880, 16
        %v3069 = vrot.slane %v3067, 4
        %v3070 = vor.u32 %v3069, %v3065
        %v3071 = vrot.slane %v3070, 4
        %v3073 = vshll.u32 %v2881, 16
        %v3075 = vrot.slane %v3073, 5
        %v3076 = vsel %vm1016, %v3071, %v3075
        %v3078 = vshrl.u32 %v2882, 16
        %v3080 = vrot.slane %v3078, 4
        %v3081 = vshll.u32 %v2882, 16
        %v3083 = vrot.slane %v3081, 5
        %v3084 = vor.u32 %v3080, %v3083
        %v3085 = vrot.slane %v3084, 4
        %v3087 = vshll.u32 %v2883, 16
        %v3089 = vrot.slane %v3087, 5
        %v3090 = vsel %vm1016, %v3085, %v3089
        %v3091 = vshrl.u32 %v2883, 16
        %v3093 = vrot.slane %v3091, 4
        %v3094 = vor.u32 %v3093, %v3089
        %v3095 = vrot.slane %v3094, 4
        %v3097 = vshll.u32 %v2884, 16
        %v3099 = vrot.slane %v3097, 5
        %v3100 = vsel %vm1016, %v3095, %v3099
        %v3102 = vshrl.u32 %v2885, 16
        %v3104 = vrot.slane %v3102, 4
        %v3105 = vshll.u32 %v2885, 16
        %v3107 = vrot.slane %v3105, 5
        %v3108 = vor.u32 %v3104, %v3107
        %v3109 = vrot.slane %v3108, 4
        %v3111 = vshll.u32 %v2886, 16
        %v3113 = vrot.slane %v3111, 5
        %v3114 = vsel %vm1016, %v3109, %v3113
        %v3115 = vshrl.u32 %v2886, 16
        %v3117 = vrot.slane %v3115, 4
        %v3118 = vor.u32 %v3117, %v3113
        %v3119 = vrot.slane %v3118, 4
        %v3121 = vshll.u32 %v2887, 16
        %v3123 = vrot.slane %v3121, 5
        %v3124 = vsel %vm1016, %v3119, %v3123
        %v3126 = vshrl.u32 %v2888, 16
        %v3128 = vrot.slane %v3126, 4
        %v3129 = vshll.u32 %v2888, 16
        %v3131 = vrot.slane %v3129, 5
        %v3132 = vor.u32 %v3128, %v3131
        %v3133 = vrot.slane %v3132, 4
        %v3135 = vshll.u32 %v2889, 16
        %v3137 = vrot.slane %v3135, 5
        %v3138 = vsel %vm1016, %v3133, %v3137
        %v3139 = vshrl.u32 %v2889, 16
        %v3141 = vrot.slane %v3139, 4
        %v3142 = vor.u32 %v3141, %v3137
        %v3143 = vrot.slane %v3142, 4
        %v3145 = vshll.u32 %v2890, 16
        %v3147 = vrot.slane %v3145, 5
        %v3148 = vsel %vm1016, %v3143, %v3147
        %v3150 = vshrl.u32 %v2891, 16
        %v3152 = vrot.slane %v3150, 4
        %v3153 = vshll.u32 %v2891, 16
        %v3155 = vrot.slane %v3153, 5
        %v3156 = vor.u32 %v3152, %v3155
        %v3157 = vrot.slane %v3156, 4
        %v3159 = vshll.u32 %v2892, 16
        %v3161 = vrot.slane %v3159, 5
        %v3162 = vsel %vm1016, %v3157, %v3161
        %v3163 = vshrl.u32 %v2892, 16
        %v3165 = vrot.slane %v3163, 4
        %v3166 = vor.u32 %v3165, %v3161
        %v3167 = vrot.slane %v3166, 4
        %v3169 = vshll.u32 %v2893, 16
        %v3171 = vrot.slane %v3169, 5
        %v3172 = vsel %vm1016, %v3167, %v3171
        %v3174 = vshrl.u32 %v2894, 16
        %v3176 = vrot.slane %v3174, 4
        %v3177 = vshll.u32 %v2894, 16
        %v3179 = vrot.slane %v3177, 5
        %v3180 = vor.u32 %v3176, %v3179
        %v3181 = vrot.slane %v3180, 4
        %v3183 = vshll.u32 %v2895, 16
        %v3185 = vrot.slane %v3183, 5
        %v3186 = vsel %vm1016, %v3181, %v3185
        %v3187 = vshrl.u32 %v2895, 16
        %v3189 = vrot.slane %v3187, 4
        %v3190 = vor.u32 %v3189, %v3185
        %v3191 = vrot.slane %v3190, 4
        %v3193 = vshll.u32 %v2896, 16
        %v3195 = vrot.slane %v3193, 5
        %v3196 = vsel %vm1016, %v3191, %v3195
        %v3198 = vshrl.u32 %v2897, 16
        %v3200 = vrot.slane %v3198, 4
        %v3201 = vshll.u32 %v2897, 16
        %v3203 = vrot.slane %v3201, 5
        %v3204 = vor.u32 %v3200, %v3203
        %v3205 = vrot.slane %v3204, 4
        %v3207 = vshll.u32 %v2898, 16
        %v3209 = vrot.slane %v3207, 5
        %v3210 = vsel %vm1016, %v3205, %v3209
        %v3211 = vshrl.u32 %v2898, 16
        %v3213 = vrot.slane %v3211, 4
        %v3214 = vor.u32 %v3213, %v3209
        %v3215 = vrot.slane %v3214, 4
        %v3217 = vshll.u32 %v2899, 16
        %v3219 = vrot.slane %v3217, 5
        %v3220 = vsel %vm1016, %v3215, %v3219
        %v3222 = vshrl.u32 %v2900, 16
        %v3224 = vrot.slane %v3222, 4
        %v3225 = vshll.u32 %v2900, 16
        %v3227 = vrot.slane %v3225, 5
        %v3228 = vor.u32 %v3224, %v3227
        %v3229 = vrot.slane %v3228, 4
        %v3231 = vshll.u32 %v2901, 16
        %v3233 = vrot.slane %v3231, 5
        %v3234 = vsel %vm1016, %v3229, %v3233
        %v3235 = vshrl.u32 %v2901, 16
        %v3237 = vrot.slane %v3235, 4
        %v3238 = vor.u32 %v3237, %v3233
        %v3239 = vrot.slane %v3238, 4
        %v3241 = vshll.u32 %v2902, 16
        %v3243 = vrot.slane %v3241, 5
        %v3244 = vsel %vm1016, %v3239, %v3243
        %v3246 = vshrl.u32 %v2903, 16
        %v3248 = vrot.slane %v3246, 4
        %v3249 = vshll.u32 %v2903, 16
        %v3251 = vrot.slane %v3249, 5
        %v3252 = vor.u32 %v3248, %v3251
        %v3253 = vrot.slane %v3252, 4
        %v3255 = vshll.u32 %v2904, 16
        %v3257 = vrot.slane %v3255, 5
        %v3258 = vsel %vm1016, %v3253, %v3257
        %v3259 = vshrl.u32 %v2904, 16
        %v3261 = vrot.slane %v3259, 4
        %v3262 = vor.u32 %v3261, %v3257
        %v3263 = vrot.slane %v3262, 4
        %v3265 = vshll.u32 %v2905, 16
        %v3267 = vrot.slane %v3265, 5
        %v3268 = vsel %vm1016, %v3263, %v3267
        %v3270 = vshrl.u32 %v2906, 16
        %v3272 = vrot.slane %v3270, 4
        %v3273 = vshll.u32 %v2906, 16
        %v3275 = vrot.slane %v3273, 5
        %v3276 = vor.u32 %v3272, %v3275
        %v3277 = vrot.slane %v3276, 4
        %v3279 = vshll.u32 %v2907, 16
        %v3281 = vrot.slane %v3279, 5
        %v3282 = vsel %vm1016, %v3277, %v3281
        %v3283 = vshrl.u32 %v2907, 16
        %v3285 = vrot.slane %v3283, 4
        %v3286 = vor.u32 %v3285, %v3281
        %v3287 = vrot.slane %v3286, 4
        %v3289 = vshll.u32 %v2908, 16
        %v3291 = vrot.slane %v3289, 5
        %v3292 = vsel %vm1016, %v3287, %v3291
        %v3293 = vunpack.c.l.b16 %v2922
        %v3294 = vunpack.c.l.b16 %v2932
        %v3295 = vunpack.c.l.b16 %v2946
        %v3296 = vunpack.c.l.b16 %v2956
        %v3297 = vunpack.c.l.b16 %v2970
        %v3298 = vunpack.c.l.b16 %v2980
        %v3299 = vunpack.c.l.b16 %v2994
        %v3300 = vunpack.c.l.b16 %v3004
        %v3301 = vunpack.c.l.b16 %v3018
        %v3302 = vunpack.c.l.b16 %v3028
        %v3303 = vunpack.c.l.b16 %v3042
        %v3304 = vunpack.c.l.b16 %v3052
        %v3305 = vunpack.c.l.b16 %v3066
        %v3306 = vunpack.c.l.b16 %v3076
        %v3307 = vunpack.c.l.b16 %v3090
        %v3308 = vunpack.c.l.b16 %v3100
        %v3309 = vunpack.c.l.b16 %v3114
        %v3310 = vunpack.c.l.b16 %v3124
        %v3311 = vunpack.c.l.b16 %v3138
        %v3312 = vunpack.c.l.b16 %v3148
        %v3313 = vunpack.c.l.b16 %v3162
        %v3314 = vunpack.c.l.b16 %v3172
        %v3315 = vunpack.c.l.b16 %v3186
        %v3316 = vunpack.c.l.b16 %v3196
        %v3317 = vunpack.c.l.b16 %v3210
        %v3318 = vunpack.c.l.b16 %v3220
        %v3319 = vunpack.c.l.b16 %v3234
        %v3320 = vunpack.c.l.b16 %v3244
        %v3321 = vunpack.c.l.b16 %v3258
        %v3322 = vunpack.c.l.b16 %v3268
        %v3323 = vunpack.c.l.b16 %v3282
        %v3324 = vunpack.c.l.b16 %v3292
        %v3325 = vpack.c.b16 %v3294, %v3293
        %v3326 = vpack.c.b16 %v3296, %v3295
        %v3327 = vpack.c.b16 %v3298, %v3297
        %v3328 = vpack.c.b16 %v3300, %v3299
        %v3329 = vpack.c.b16 %v3302, %v3301
        %v3330 = vpack.c.b16 %v3304, %v3303
        %v3331 = vpack.c.b16 %v3306, %v3305
        %v3332 = vpack.c.b16 %v3308, %v3307
        %v3333 = vpack.c.b16 %v3310, %v3309
        %v3334 = vpack.c.b16 %v3312, %v3311
        %v3335 = vpack.c.b16 %v3314, %v3313
        %v3336 = vpack.c.b16 %v3316, %v3315
        %v3337 = vpack.c.b16 %v3318, %v3317
        %v3338 = vpack.c.b16 %v3320, %v3319
        %v3339 = vpack.c.b16 %v3322, %v3321
        %v3340 = vpack.c.b16 %v3324, %v3323
        %3357 = vst [vmem:[#allocation4 + $0x38] sm:$0xff] %v3325
        %3358 = vst [vmem:[#allocation4 + $0x80] sm:$0xff] %v3326
        %3359 = vst [vmem:[#allocation4 + $0xc8] sm:$0xff] %v3327
        %3360 = vst [vmem:[#allocation4 + $0x110] sm:$0xff] %v3328
        %3361 = vst [vmem:[#allocation4 + $0x158] sm:$0xff] %v3329
        %3362 = vst [vmem:[#allocation4 + $0x1a0] sm:$0xff] %v3330
        %3363 = vst [vmem:[#allocation4 + $0x1e8] sm:$0xff] %v3331
        %3364 = vst [vmem:[#allocation4 + $0x230] sm:$0xff] %v3332
        %3365 = vst [vmem:[#allocation4 + $0x278] sm:$0xff] %v3333
        %3366 = vst [vmem:[#allocation4 + $0x2c0] sm:$0xff] %v3334
        %3367 = vst [vmem:[#allocation4 + $0x308] sm:$0xff] %v3335
        %3368 = vst [vmem:[#allocation4 + $0x350] sm:$0xff] %v3336
        %3369 = vst [vmem:[#allocation4 + $0x398] sm:$0xff] %v3337
        %3370 = vst [vmem:[#allocation4 + $0x3e0] sm:$0xff] %v3338
        %3371 = vst [vmem:[#allocation4 + $0x428] sm:$0xff] %v3339
        %3372 = vst [vmem:[#allocation4 + $0x470] sm:$0xff] %v3340
        %v3373 = vld [vmem:[%s2716] sm:$0xe]
        %v3374 = vld [vmem:[%s2716 + $0x4] sm:$0xf]
        %v3375 = vld [vmem:[%s2716 + $0x8] sm:$0x1]
        %v3376 = vld [vmem:[%s2716 + $0xc] sm:$0xe]
        %v3377 = vld [vmem:[%s2716 + $0x10] sm:$0xf]
        %v3378 = vld [vmem:[%s2716 + $0x14] sm:$0x1]
        %v3379 = vld [vmem:[%s2716 + $0x18] sm:$0xe]
        %v3380 = vld [vmem:[%s2716 + $0x1c] sm:$0xf]
        %v3381 = vld [vmem:[%s2716 + $0x20] sm:$0x1]
        %v3382 = vld [vmem:[%s2716 + $0x24] sm:$0xe]
        %v3383 = vld [vmem:[%s2716 + $0x28] sm:$0xf]
        %v3384 = vld [vmem:[%s2716 + $0x2c] sm:$0x1]
        %v3385 = vld [vmem:[%s2716 + $0x30] sm:$0xe]
        %v3386 = vld [vmem:[%s2716 + $0x34] sm:$0xf]
        %v3387 = vld [vmem:[%s2716 + $0x38] sm:$0x1]
        %v3388 = vld [vmem:[%s2716 + $0x3c] sm:$0xe]
        %v3389 = vld [vmem:[%s2716 + $0x40] sm:$0xf]
        %v3390 = vld [vmem:[%s2716 + $0x44] sm:$0x1]
        %v3391 = vld [vmem:[%s2716 + $0x48] sm:$0xe]
        %v3392 = vld [vmem:[%s2716 + $0x4c] sm:$0xf]
        %v3393 = vld [vmem:[%s2716 + $0x50] sm:$0x1]
        %v3394 = vld [vmem:[%s2716 + $0x54] sm:$0xe]
        %v3395 = vld [vmem:[%s2716 + $0x58] sm:$0xf]
        %v3396 = vld [vmem:[%s2716 + $0x5c] sm:$0x1]
        %v3397 = vld [vmem:[%s2716 + $0x60] sm:$0xe]
        %v3398 = vld [vmem:[%s2716 + $0x64] sm:$0xf]
        %v3399 = vld [vmem:[%s2716 + $0x68] sm:$0x1]
        %v3400 = vld [vmem:[%s2716 + $0x6c] sm:$0xe]
        %v3401 = vld [vmem:[%s2716 + $0x70] sm:$0xf]
        %v3402 = vld [vmem:[%s2716 + $0x74] sm:$0x1]
        %v3403 = vld [vmem:[%s2716 + $0x78] sm:$0xe]
        %v3404 = vld [vmem:[%s2716 + $0x7c] sm:$0xf]
        %v3405 = vld [vmem:[%s2716 + $0x80] sm:$0x1]
        %v3406 = vld [vmem:[%s2716 + $0x84] sm:$0xe]
        %v3407 = vld [vmem:[%s2716 + $0x88] sm:$0xf]
        %v3408 = vld [vmem:[%s2716 + $0x8c] sm:$0x1]
        %v3409 = vld [vmem:[%s2716 + $0x90] sm:$0xe]
        %v3410 = vld [vmem:[%s2716 + $0x94] sm:$0xf]
        %v3411 = vld [vmem:[%s2716 + $0x98] sm:$0x1]
        %v3412 = vld [vmem:[%s2716 + $0x9c] sm:$0xe]
        %v3413 = vld [vmem:[%s2716 + $0xa0] sm:$0xf]
        %v3414 = vld [vmem:[%s2716 + $0xa4] sm:$0x1]
        %v3415 = vld [vmem:[%s2716 + $0xa8] sm:$0xe]
        %v3416 = vld [vmem:[%s2716 + $0xac] sm:$0xf]
        %v3417 = vld [vmem:[%s2716 + $0xb0] sm:$0x1]
        %v3418 = vld [vmem:[%s2716 + $0xb4] sm:$0xe]
        %v3419 = vld [vmem:[%s2716 + $0xb8] sm:$0xf]
        %v3420 = vld [vmem:[%s2716 + $0xbc] sm:$0x1]
        %v3469 = vrot.slane %v3373, 5
        %v3470 = vrot.slane %v3469, 4
        %v3471 = vrot.slane %v3374, 5
        %v3472 = vsel %vm1579, %v3470, %v3471
        %v3473 = vrot.slane %v3471, 4
        %v3474 = vrot.slane %v3375, 5
        %v3475 = vsel %vm1579, %v3473, %v3474
        %v3476 = vrot.slane %v3376, 5
        %v3477 = vrot.slane %v3476, 4
        %v3478 = vrot.slane %v3377, 5
        %v3479 = vsel %vm1579, %v3477, %v3478
        %v3480 = vrot.slane %v3478, 4
        %v3481 = vrot.slane %v3378, 5
        %v3482 = vsel %vm1579, %v3480, %v3481
        %v3483 = vrot.slane %v3379, 5
        %v3484 = vrot.slane %v3483, 4
        %v3485 = vrot.slane %v3380, 5
        %v3486 = vsel %vm1579, %v3484, %v3485
        %v3487 = vrot.slane %v3485, 4
        %v3488 = vrot.slane %v3381, 5
        %v3489 = vsel %vm1579, %v3487, %v3488
        %v3490 = vrot.slane %v3382, 5
        %v3491 = vrot.slane %v3490, 4
        %v3492 = vrot.slane %v3383, 5
        %v3493 = vsel %vm1579, %v3491, %v3492
        %v3494 = vrot.slane %v3492, 4
        %v3495 = vrot.slane %v3384, 5
        %v3496 = vsel %vm1579, %v3494, %v3495
        %v3497 = vrot.slane %v3385, 5
        %v3498 = vrot.slane %v3497, 4
        %v3499 = vrot.slane %v3386, 5
        %v3500 = vsel %vm1579, %v3498, %v3499
        %v3501 = vrot.slane %v3499, 4
        %v3502 = vrot.slane %v3387, 5
        %v3503 = vsel %vm1579, %v3501, %v3502
        %v3504 = vrot.slane %v3388, 5
        %v3505 = vrot.slane %v3504, 4
        %v3506 = vrot.slane %v3389, 5
        %v3507 = vsel %vm1579, %v3505, %v3506
        %v3508 = vrot.slane %v3506, 4
        %v3509 = vrot.slane %v3390, 5
        %v3510 = vsel %vm1579, %v3508, %v3509
        %v3511 = vrot.slane %v3391, 5
        %v3512 = vrot.slane %v3511, 4
        %v3513 = vrot.slane %v3392, 5
        %v3514 = vsel %vm1579, %v3512, %v3513
        %v3515 = vrot.slane %v3513, 4
        %v3516 = vrot.slane %v3393, 5
        %v3517 = vsel %vm1579, %v3515, %v3516
        %v3518 = vrot.slane %v3394, 5
        %v3519 = vrot.slane %v3518, 4
        %v3520 = vrot.slane %v3395, 5
        %v3521 = vsel %vm1579, %v3519, %v3520
        %v3522 = vrot.slane %v3520, 4
        %v3523 = vrot.slane %v3396, 5
        %v3524 = vsel %vm1579, %v3522, %v3523
        %v3525 = vrot.slane %v3397, 5
        %v3526 = vrot.slane %v3525, 4
        %v3527 = vrot.slane %v3398, 5
        %v3528 = vsel %vm1579, %v3526, %v3527
        %v3529 = vrot.slane %v3527, 4
        %v3530 = vrot.slane %v3399, 5
        %v3531 = vsel %vm1579, %v3529, %v3530
        %v3532 = vrot.slane %v3400, 5
        %v3533 = vrot.slane %v3532, 4
        %v3534 = vrot.slane %v3401, 5
        %v3535 = vsel %vm1579, %v3533, %v3534
        %v3536 = vrot.slane %v3534, 4
        %v3537 = vrot.slane %v3402, 5
        %v3538 = vsel %vm1579, %v3536, %v3537
        %v3539 = vrot.slane %v3403, 5
        %v3540 = vrot.slane %v3539, 4
        %v3541 = vrot.slane %v3404, 5
        %v3542 = vsel %vm1579, %v3540, %v3541
        %v3543 = vrot.slane %v3541, 4
        %v3544 = vrot.slane %v3405, 5
        %v3545 = vsel %vm1579, %v3543, %v3544
        %v3546 = vrot.slane %v3406, 5
        %v3547 = vrot.slane %v3546, 4
        %v3548 = vrot.slane %v3407, 5
        %v3549 = vsel %vm1579, %v3547, %v3548
        %v3550 = vrot.slane %v3548, 4
        %v3551 = vrot.slane %v3408, 5
        %v3552 = vsel %vm1579, %v3550, %v3551
        %v3553 = vrot.slane %v3409, 5
        %v3554 = vrot.slane %v3553, 4
        %v3555 = vrot.slane %v3410, 5
        %v3556 = vsel %vm1579, %v3554, %v3555
        %v3557 = vrot.slane %v3555, 4
        %v3558 = vrot.slane %v3411, 5
        %v3559 = vsel %vm1579, %v3557, %v3558
        %v3560 = vrot.slane %v3412, 5
        %v3561 = vrot.slane %v3560, 4
        %v3562 = vrot.slane %v3413, 5
        %v3563 = vsel %vm1579, %v3561, %v3562
        %v3564 = vrot.slane %v3562, 4
        %v3565 = vrot.slane %v3414, 5
        %v3566 = vsel %vm1579, %v3564, %v3565
        %v3567 = vrot.slane %v3415, 5
        %v3568 = vrot.slane %v3567, 4
        %v3569 = vrot.slane %v3416, 5
        %v3570 = vsel %vm1579, %v3568, %v3569
        %v3571 = vrot.slane %v3569, 4
        %v3572 = vrot.slane %v3417, 5
        %v3573 = vsel %vm1579, %v3571, %v3572
        %v3574 = vrot.slane %v3418, 5
        %v3575 = vrot.slane %v3574, 4
        %v3576 = vrot.slane %v3419, 5
        %v3577 = vsel %vm1579, %v3575, %v3576
        %v3578 = vrot.slane %v3576, 4
        %v3579 = vrot.slane %v3420, 5
        %v3580 = vsel %vm1579, %v3578, %v3579
        %v3581 = vunpack.c.l.b16 %v3472
        %v3582 = vunpack.c.l.b16 %v3475
        %v3583 = vunpack.c.l.b16 %v3479
        %v3584 = vunpack.c.l.b16 %v3482
        %v3585 = vunpack.c.l.b16 %v3486
        %v3586 = vunpack.c.l.b16 %v3489
        %v3587 = vunpack.c.l.b16 %v3493
        %v3588 = vunpack.c.l.b16 %v3496
        %v3589 = vunpack.c.l.b16 %v3500
        %v3590 = vunpack.c.l.b16 %v3503
        %v3591 = vunpack.c.l.b16 %v3507
        %v3592 = vunpack.c.l.b16 %v3510
        %v3593 = vunpack.c.l.b16 %v3514
        %v3594 = vunpack.c.l.b16 %v3517
        %v3595 = vunpack.c.l.b16 %v3521
        %v3596 = vunpack.c.l.b16 %v3524
        %v3597 = vunpack.c.l.b16 %v3528
        %v3598 = vunpack.c.l.b16 %v3531
        %v3599 = vunpack.c.l.b16 %v3535
        %v3600 = vunpack.c.l.b16 %v3538
        %v3601 = vunpack.c.l.b16 %v3542
        %v3602 = vunpack.c.l.b16 %v3545
        %v3603 = vunpack.c.l.b16 %v3549
        %v3604 = vunpack.c.l.b16 %v3552
        %v3605 = vunpack.c.l.b16 %v3556
        %v3606 = vunpack.c.l.b16 %v3559
        %v3607 = vunpack.c.l.b16 %v3563
        %v3608 = vunpack.c.l.b16 %v3566
        %v3609 = vunpack.c.l.b16 %v3570
        %v3610 = vunpack.c.l.b16 %v3573
        %v3611 = vunpack.c.l.b16 %v3577
        %v3612 = vunpack.c.l.b16 %v3580
        %v3613 = vpack.c.b16 %v3582, %v3581
        %v3614 = vpack.c.b16 %v3584, %v3583
        %v3615 = vpack.c.b16 %v3586, %v3585
        %v3616 = vpack.c.b16 %v3588, %v3587
        %v3617 = vpack.c.b16 %v3590, %v3589
        %v3618 = vpack.c.b16 %v3592, %v3591
        %v3619 = vpack.c.b16 %v3594, %v3593
        %v3620 = vpack.c.b16 %v3596, %v3595
        %v3621 = vpack.c.b16 %v3598, %v3597
        %v3622 = vpack.c.b16 %v3600, %v3599
        %v3623 = vpack.c.b16 %v3602, %v3601
        %v3624 = vpack.c.b16 %v3604, %v3603
        %v3625 = vpack.c.b16 %v3606, %v3605
        %v3626 = vpack.c.b16 %v3608, %v3607
        %v3627 = vpack.c.b16 %v3610, %v3609
        %v3628 = vpack.c.b16 %v3612, %v3611
        %3645 = vst [vmem:[#allocation4 + $0x40] sm:$0xff] %v3613
        %3646 = vst [vmem:[#allocation4 + $0x88] sm:$0xff] %v3614
        %3647 = vst [vmem:[#allocation4 + $0xd0] sm:$0xff] %v3615
        %3648 = vst [vmem:[#allocation4 + $0x118] sm:$0xff] %v3616
        %3649 = vst [vmem:[#allocation4 + $0x160] sm:$0xff] %v3617
        %3650 = vst [vmem:[#allocation4 + $0x1a8] sm:$0xff] %v3618
        %3651 = vst [vmem:[#allocation4 + $0x1f0] sm:$0xff] %v3619
        %3652 = vst [vmem:[#allocation4 + $0x238] sm:$0xff] %v3620
        %3653 = vst [vmem:[#allocation4 + $0x280] sm:$0xff] %v3621
        %3654 = vst [vmem:[#allocation4 + $0x2c8] sm:$0xff] %v3622
        %3655 = vst [vmem:[#allocation4 + $0x310] sm:$0xff] %v3623
        %3656 = vst [vmem:[#allocation4 + $0x358] sm:$0xff] %v3624
        %3657 = vst [vmem:[#allocation4 + $0x3a0] sm:$0xff] %v3625
        %3658 = vst [vmem:[#allocation4 + $0x3e8] sm:$0xff] %v3626
        %3659 = vst [vmem:[#allocation4 + $0x430] sm:$0xff] %v3627
        %3660 = vst [vmem:[#allocation4 + $0x478] sm:$0xff] %v3628
        %v3661 = vld [vmem:[#allocation4] sm:$0xff]
        %v3662 = vld [vmem:[#allocation4 + $0x8] sm:$0xff]
        %v3663 = vld [vmem:[#allocation4 + $0x10] sm:$0xff]
        %v3664 = vld [vmem:[#allocation4 + $0x18] sm:$0xff]
        %v3665 = vld [vmem:[#allocation4 + $0x20] sm:$0xff]
        %v3666 = vld [vmem:[#allocation4 + $0x28] sm:$0xff]
        %v3667 = vld [vmem:[#allocation4 + $0x30] sm:$0xff]
        %v3668 = vld [vmem:[#allocation4 + $0x38] sm:$0xff]
        %v3669 = vld [vmem:[#allocation4 + $0x40] sm:$0xff]
        %v3670 = vld [vmem:[#allocation4 + $0x48] sm:$0xff]
        %v3671 = vld [vmem:[#allocation4 + $0x50] sm:$0xff]
        %v3672 = vld [vmem:[#allocation4 + $0x58] sm:$0xff]
        %v3673 = vld [vmem:[#allocation4 + $0x60] sm:$0xff]
        %v3674 = vld [vmem:[#allocation4 + $0x68] sm:$0xff]
        %v3675 = vld [vmem:[#allocation4 + $0x70] sm:$0xff]
        %v3676 = vld [vmem:[#allocation4 + $0x78] sm:$0xff]
        %v3677 = vld [vmem:[#allocation4 + $0x80] sm:$0xff]
        %v3678 = vld [vmem:[#allocation4 + $0x88] sm:$0xff]
        %v3679 = vld [vmem:[#allocation4 + $0x90] sm:$0xff]
        %v3680 = vld [vmem:[#allocation4 + $0x98] sm:$0xff]
        %v3681 = vld [vmem:[#allocation4 + $0xa0] sm:$0xff]
        %v3682 = vld [vmem:[#allocation4 + $0xa8] sm:$0xff]
        %v3683 = vld [vmem:[#allocation4 + $0xb0] sm:$0xff]
        %v3684 = vld [vmem:[#allocation4 + $0xb8] sm:$0xff]
        %v3685 = vld [vmem:[#allocation4 + $0xc0] sm:$0xff]
        %v3686 = vld [vmem:[#allocation4 + $0xc8] sm:$0xff]
        %v3687 = vld [vmem:[#allocation4 + $0xd0] sm:$0xff]
        %v3688 = vld [vmem:[#allocation4 + $0xd8] sm:$0xff]
        %v3689 = vld [vmem:[#allocation4 + $0xe0] sm:$0xff]
        %v3690 = vld [vmem:[#allocation4 + $0xe8] sm:$0xff]
        %v3691 = vld [vmem:[#allocation4 + $0xf0] sm:$0xff]
        %v3692 = vld [vmem:[#allocation4 + $0xf8] sm:$0xff]
        %v3693 = vld [vmem:[#allocation4 + $0x100] sm:$0xff]
        %v3694 = vld [vmem:[#allocation4 + $0x108] sm:$0xff]
        %v3695 = vld [vmem:[#allocation4 + $0x110] sm:$0xff]
        %v3696 = vld [vmem:[#allocation4 + $0x118] sm:$0xff]
        %v3697 = vld [vmem:[#allocation4 + $0x120] sm:$0xff]
        %v3698 = vld [vmem:[#allocation4 + $0x128] sm:$0xff]
        %v3699 = vld [vmem:[#allocation4 + $0x130] sm:$0xff]
        %v3700 = vld [vmem:[#allocation4 + $0x138] sm:$0xff]
        %v3701 = vld [vmem:[#allocation4 + $0x140] sm:$0xff]
        %v3702 = vld [vmem:[#allocation4 + $0x148] sm:$0xff]
        %v3703 = vld [vmem:[#allocation4 + $0x150] sm:$0xff]
        %v3704 = vld [vmem:[#allocation4 + $0x158] sm:$0xff]
        %v3705 = vld [vmem:[#allocation4 + $0x160] sm:$0xff]
        %v3706 = vld [vmem:[#allocation4 + $0x168] sm:$0xff]
        %v3707 = vld [vmem:[#allocation4 + $0x170] sm:$0xff]
        %v3708 = vld [vmem:[#allocation4 + $0x178] sm:$0xff]
        %v3709 = vld [vmem:[#allocation4 + $0x180] sm:$0xff]
        %v3710 = vld [vmem:[#allocation4 + $0x188] sm:$0xff]
        %v3711 = vld [vmem:[#allocation4 + $0x190] sm:$0xff]
        %v3712 = vld [vmem:[#allocation4 + $0x198] sm:$0xff]
        %v3713 = vld [vmem:[#allocation4 + $0x1a0] sm:$0xff]
        %v3714 = vld [vmem:[#allocation4 + $0x1a8] sm:$0xff]
        %v3715 = vld [vmem:[#allocation4 + $0x1b0] sm:$0xff]
        %v3716 = vld [vmem:[#allocation4 + $0x1b8] sm:$0xff]
        %v3717 = vld [vmem:[#allocation4 + $0x1c0] sm:$0xff]
        %v3718 = vld [vmem:[#allocation4 + $0x1c8] sm:$0xff]
        %v3719 = vld [vmem:[#allocation4 + $0x1d0] sm:$0xff]
        %v3720 = vld [vmem:[#allocation4 + $0x1d8] sm:$0xff]
        %v3721 = vld [vmem:[#allocation4 + $0x1e0] sm:$0xff]
        %v3722 = vld [vmem:[#allocation4 + $0x1e8] sm:$0xff]
        %v3723 = vld [vmem:[#allocation4 + $0x1f0] sm:$0xff]
        %v3724 = vld [vmem:[#allocation4 + $0x1f8] sm:$0xff]
        %v3725 = vld [vmem:[#allocation4 + $0x200] sm:$0xff]
        %v3726 = vld [vmem:[#allocation4 + $0x208] sm:$0xff]
        %v3727 = vld [vmem:[#allocation4 + $0x210] sm:$0xff]
        %v3728 = vld [vmem:[#allocation4 + $0x218] sm:$0xff]
        %v3729 = vld [vmem:[#allocation4 + $0x220] sm:$0xff]
        %v3730 = vld [vmem:[#allocation4 + $0x228] sm:$0xff]
        %v3731 = vld [vmem:[#allocation4 + $0x230] sm:$0xff]
        %v3732 = vld [vmem:[#allocation4 + $0x238] sm:$0xff]
        %v3733 = vld [vmem:[#allocation4 + $0x240] sm:$0xff]
        %v3734 = vld [vmem:[#allocation4 + $0x248] sm:$0xff]
        %v3735 = vld [vmem:[#allocation4 + $0x250] sm:$0xff]
        %v3736 = vld [vmem:[#allocation4 + $0x258] sm:$0xff]
        %v3737 = vld [vmem:[#allocation4 + $0x260] sm:$0xff]
        %v3738 = vld [vmem:[#allocation4 + $0x268] sm:$0xff]
        %v3739 = vld [vmem:[#allocation4 + $0x270] sm:$0xff]
        %v3740 = vld [vmem:[#allocation4 + $0x278] sm:$0xff]
        %v3741 = vld [vmem:[#allocation4 + $0x280] sm:$0xff]
        %v3742 = vld [vmem:[#allocation4 + $0x288] sm:$0xff]
        %v3743 = vld [vmem:[#allocation4 + $0x290] sm:$0xff]
        %v3744 = vld [vmem:[#allocation4 + $0x298] sm:$0xff]
        %v3745 = vld [vmem:[#allocation4 + $0x2a0] sm:$0xff]
        %v3746 = vld [vmem:[#allocation4 + $0x2a8] sm:$0xff]
        %v3747 = vld [vmem:[#allocation4 + $0x2b0] sm:$0xff]
        %v3748 = vld [vmem:[#allocation4 + $0x2b8] sm:$0xff]
        %v3749 = vld [vmem:[#allocation4 + $0x2c0] sm:$0xff]
        %v3750 = vld [vmem:[#allocation4 + $0x2c8] sm:$0xff]
        %v3751 = vld [vmem:[#allocation4 + $0x2d0] sm:$0xff]
        %v3752 = vld [vmem:[#allocation4 + $0x2d8] sm:$0xff]
        %v3753 = vld [vmem:[#allocation4 + $0x2e0] sm:$0xff]
        %v3754 = vld [vmem:[#allocation4 + $0x2e8] sm:$0xff]
        %v3755 = vld [vmem:[#allocation4 + $0x2f0] sm:$0xff]
        %v3756 = vld [vmem:[#allocation4 + $0x2f8] sm:$0xff]
        %v3757 = vld [vmem:[#allocation4 + $0x300] sm:$0xff]
        %v3758 = vld [vmem:[#allocation4 + $0x308] sm:$0xff]
        %v3759 = vld [vmem:[#allocation4 + $0x310] sm:$0xff]
        %v3760 = vld [vmem:[#allocation4 + $0x318] sm:$0xff]
        %v3761 = vld [vmem:[#allocation4 + $0x320] sm:$0xff]
        %v3762 = vld [vmem:[#allocation4 + $0x328] sm:$0xff]
        %v3763 = vld [vmem:[#allocation4 + $0x330] sm:$0xff]
        %v3764 = vld [vmem:[#allocation4 + $0x338] sm:$0xff]
        %v3765 = vld [vmem:[#allocation4 + $0x340] sm:$0xff]
        %v3766 = vld [vmem:[#allocation4 + $0x348] sm:$0xff]
        %v3767 = vld [vmem:[#allocation4 + $0x350] sm:$0xff]
        %v3768 = vld [vmem:[#allocation4 + $0x358] sm:$0xff]
        %v3769 = vld [vmem:[#allocation4 + $0x360] sm:$0xff]
        %v3770 = vld [vmem:[#allocation4 + $0x368] sm:$0xff]
        %v3771 = vld [vmem:[#allocation4 + $0x370] sm:$0xff]
        %v3772 = vld [vmem:[#allocation4 + $0x378] sm:$0xff]
        %v3773 = vld [vmem:[#allocation4 + $0x380] sm:$0xff]
        %v3774 = vld [vmem:[#allocation4 + $0x388] sm:$0xff]
        %v3775 = vld [vmem:[#allocation4 + $0x390] sm:$0xff]
        %v3776 = vld [vmem:[#allocation4 + $0x398] sm:$0xff]
        %v3777 = vld [vmem:[#allocation4 + $0x3a0] sm:$0xff]
        %v3778 = vld [vmem:[#allocation4 + $0x3a8] sm:$0xff]
        %v3779 = vld [vmem:[#allocation4 + $0x3b0] sm:$0xff]
        %v3780 = vld [vmem:[#allocation4 + $0x3b8] sm:$0xff]
        %v3781 = vld [vmem:[#allocation4 + $0x3c0] sm:$0xff]
        %v3782 = vld [vmem:[#allocation4 + $0x3c8] sm:$0xff]
        %v3783 = vld [vmem:[#allocation4 + $0x3d0] sm:$0xff]
        %v3784 = vld [vmem:[#allocation4 + $0x3d8] sm:$0xff]
        %v3785 = vld [vmem:[#allocation4 + $0x3e0] sm:$0xff]
        %v3786 = vld [vmem:[#allocation4 + $0x3e8] sm:$0xff]
        %v3787 = vld [vmem:[#allocation4 + $0x3f0] sm:$0xff]
        %v3788 = vld [vmem:[#allocation4 + $0x3f8] sm:$0xff]
        %v3789 = vld [vmem:[#allocation4 + $0x400] sm:$0xff]
        %v3790 = vld [vmem:[#allocation4 + $0x408] sm:$0xff]
        %v3791 = vld [vmem:[#allocation4 + $0x410] sm:$0xff]
        %v3792 = vld [vmem:[#allocation4 + $0x418] sm:$0xff]
        %v3793 = vld [vmem:[#allocation4 + $0x420] sm:$0xff]
        %v3794 = vld [vmem:[#allocation4 + $0x428] sm:$0xff]
        %v3795 = vld [vmem:[#allocation4 + $0x430] sm:$0xff]
        %v3796 = vld [vmem:[#allocation4 + $0x438] sm:$0xff]
        %v3797 = vld [vmem:[#allocation4 + $0x440] sm:$0xff]
        %v3798 = vld [vmem:[#allocation4 + $0x448] sm:$0xff]
        %v3799 = vld [vmem:[#allocation4 + $0x450] sm:$0xff]
        %v3800 = vld [vmem:[#allocation4 + $0x458] sm:$0xff]
        %v3801 = vld [vmem:[#allocation4 + $0x460] sm:$0xff]
        %v3802 = vld [vmem:[#allocation4 + $0x468] sm:$0xff]
        %v3803 = vld [vmem:[#allocation4 + $0x470] sm:$0xff]
        %v3804 = vld [vmem:[#allocation4 + $0x478] sm:$0xff]
        %v3805 = vld [vmem:[#allocation6] sm:$0xf]
        %v3806 = vld [vmem:[#allocation6 + $0x4] sm:$0xf]
        %v3807 = vld [vmem:[#allocation6 + $0x8] sm:$0xf]
        %v3808 = vld [vmem:[#allocation6 + $0xc] sm:$0xf]
        %v3809 = vld [vmem:[#allocation6 + $0x10] sm:$0xf]
        %v3810 = vld [vmem:[#allocation6 + $0x14] sm:$0xf]
        %v3811 = vld [vmem:[#allocation6 + $0x18] sm:$0xf]
        %v3812 = vld [vmem:[#allocation6 + $0x1c] sm:$0xf]
        %v3813 = vld [vmem:[#allocation6 + $0x20] sm:$0xf]
        %v3814 = vld [vmem:[#allocation6 + $0x24] sm:$0xf]
        %v3815 = vld [vmem:[#allocation6 + $0x28] sm:$0xf]
        %v3816 = vld [vmem:[#allocation6 + $0x2c] sm:$0xf]
        %v3817 = vld [vmem:[#allocation6 + $0x30] sm:$0xf]
        %v3818 = vld [vmem:[#allocation6 + $0x34] sm:$0xf]
        %v3819 = vld [vmem:[#allocation6 + $0x38] sm:$0xf]
        %v3820 = vld [vmem:[#allocation6 + $0x3c] sm:$0xf]
        %v3821 = vld [vmem:[#allocation6 + $0x40] sm:$0xf]
        %v3822 = vld [vmem:[#allocation6 + $0x44] sm:$0xf]
        %v3823 = vld [vmem:[#allocation6 + $0x48] sm:$0xf]
        %v3824 = vld [vmem:[#allocation6 + $0x4c] sm:$0xf]
        %v3825 = vld [vmem:[#allocation6 + $0x50] sm:$0xf]
        %v3826 = vld [vmem:[#allocation6 + $0x54] sm:$0xf]
        %v3827 = vld [vmem:[#allocation6 + $0x58] sm:$0xf]
        %v3828 = vld [vmem:[#allocation6 + $0x5c] sm:$0xf]
        %v3829 = vld [vmem:[#allocation6 + $0x60] sm:$0xf]
        %v3830 = vld [vmem:[#allocation6 + $0x64] sm:$0xf]
        %v3831 = vld [vmem:[#allocation6 + $0x68] sm:$0xf]
        %v3832 = vld [vmem:[#allocation6 + $0x6c] sm:$0xf]
        %v3833 = vld [vmem:[#allocation6 + $0x70] sm:$0xf]
        %v3834 = vld [vmem:[#allocation6 + $0x74] sm:$0xf]
        %v3835 = vld [vmem:[#allocation6 + $0x78] sm:$0xf]
        %v3836 = vld [vmem:[#allocation6 + $0x7c] sm:$0xf]
        %v3837 = vld [vmem:[#allocation6 + $0x80] sm:$0xf]
        %v3838 = vld [vmem:[#allocation6 + $0x84] sm:$0xf]
        %v3839 = vld [vmem:[#allocation6 + $0x88] sm:$0xf]
        %v3840 = vld [vmem:[#allocation6 + $0x8c] sm:$0xf]
        %v3841 = vld [vmem:[#allocation6 + $0x90] sm:$0xf]
        %v3842 = vld [vmem:[#allocation6 + $0x94] sm:$0xf]
        %v3843 = vld [vmem:[#allocation6 + $0x98] sm:$0xf]
        %v3844 = vld [vmem:[#allocation6 + $0x9c] sm:$0xf]
        %v3845 = vld [vmem:[#allocation6 + $0xa0] sm:$0xf]
        %v3846 = vld [vmem:[#allocation6 + $0xa4] sm:$0xf]
        %v3847 = vld [vmem:[#allocation6 + $0xa8] sm:$0xf]
        %v3848 = vld [vmem:[#allocation6 + $0xac] sm:$0xf]
        %v3849 = vld [vmem:[#allocation6 + $0xb0] sm:$0xf]
        %v3850 = vld [vmem:[#allocation6 + $0xb4] sm:$0xf]
        %v3851 = vld [vmem:[#allocation6 + $0xb8] sm:$0xf]
        %v3852 = vld [vmem:[#allocation6 + $0xbc] sm:$0xf]
        %v3853 = vld [vmem:[#allocation6 + $0xc0] sm:$0xf]
        %v3854 = vld [vmem:[#allocation6 + $0xc4] sm:$0xf]
        %v3855 = vld [vmem:[#allocation6 + $0xc8] sm:$0xf]
        %v3856 = vld [vmem:[#allocation6 + $0xcc] sm:$0xf]
        %v3857 = vld [vmem:[#allocation6 + $0xd0] sm:$0xf]
        %v3858 = vld [vmem:[#allocation6 + $0xd4] sm:$0xf]
        %v3859 = vld [vmem:[#allocation6 + $0xd8] sm:$0xf]
        %v3860 = vld [vmem:[#allocation6 + $0xdc] sm:$0xf]
        %v3861 = vld [vmem:[#allocation6 + $0xe0] sm:$0xf]
        %v3862 = vld [vmem:[#allocation6 + $0xe4] sm:$0xf]
        %v3863 = vld [vmem:[#allocation6 + $0xe8] sm:$0xf]
        %v3864 = vld [vmem:[#allocation6 + $0xec] sm:$0xf]
        %v3865 = vld [vmem:[#allocation6 + $0xf0] sm:$0xf]
        %v3866 = vld [vmem:[#allocation6 + $0xf4] sm:$0xf]
        %v3867 = vld [vmem:[#allocation6 + $0xf8] sm:$0xf]
        %v3868 = vld [vmem:[#allocation6 + $0xfc] sm:$0xf]
        %v3869 = vld [vmem:[#allocation6 + $0x100] sm:$0xf]
        %v3870 = vld [vmem:[#allocation6 + $0x104] sm:$0xf]
        %v3871 = vld [vmem:[#allocation6 + $0x108] sm:$0xf]
        %v3872 = vld [vmem:[#allocation6 + $0x10c] sm:$0xf]
        %v3873 = vld [vmem:[#allocation6 + $0x110] sm:$0xf]
        %v3874 = vld [vmem:[#allocation6 + $0x114] sm:$0xf]
        %v3875 = vld [vmem:[#allocation6 + $0x118] sm:$0xf]
        %v3876 = vld [vmem:[#allocation6 + $0x11c] sm:$0xf]
        %v3877 = vld [vmem:[#allocation6 + $0x120] sm:$0xf]
        %v3878 = vld [vmem:[#allocation6 + $0x124] sm:$0xf]
        %v3879 = vld [vmem:[#allocation6 + $0x128] sm:$0xf]
        %v3880 = vld [vmem:[#allocation6 + $0x12c] sm:$0xf]
        %v3881 = vld [vmem:[#allocation6 + $0x130] sm:$0xf]
        %v3882 = vld [vmem:[#allocation6 + $0x134] sm:$0xf]
        %v3883 = vld [vmem:[#allocation6 + $0x138] sm:$0xf]
        %v3884 = vld [vmem:[#allocation6 + $0x13c] sm:$0xf]
        %v3885 = vld [vmem:[#allocation6 + $0x140] sm:$0xf]
        %v3886 = vld [vmem:[#allocation6 + $0x144] sm:$0xf]
        %v3887 = vld [vmem:[#allocation6 + $0x148] sm:$0xf]
        %v3888 = vld [vmem:[#allocation6 + $0x14c] sm:$0xf]
        %v3889 = vld [vmem:[#allocation6 + $0x150] sm:$0xf]
        %v3890 = vld [vmem:[#allocation6 + $0x154] sm:$0xf]
        %v3891 = vld [vmem:[#allocation6 + $0x158] sm:$0xf]
        %v3892 = vld [vmem:[#allocation6 + $0x15c] sm:$0xf]
        %v3893 = vld [vmem:[#allocation6 + $0x160] sm:$0xf]
        %v3894 = vld [vmem:[#allocation6 + $0x164] sm:$0xf]
        %v3895 = vld [vmem:[#allocation6 + $0x168] sm:$0xf]
        %v3896 = vld [vmem:[#allocation6 + $0x16c] sm:$0xf]
        %v3897 = vld [vmem:[#allocation6 + $0x170] sm:$0xf]
        %v3898 = vld [vmem:[#allocation6 + $0x174] sm:$0xf]
        %v3899 = vld [vmem:[#allocation6 + $0x178] sm:$0xf]
        %v3900 = vld [vmem:[#allocation6 + $0x17c] sm:$0xf]
        %v3901 = vld [vmem:[#allocation6 + $0x180] sm:$0xf]
        %v3902 = vld [vmem:[#allocation6 + $0x184] sm:$0xf]
        %v3903 = vld [vmem:[#allocation6 + $0x188] sm:$0xf]
        %v3904 = vld [vmem:[#allocation6 + $0x18c] sm:$0xf]
        %v3905 = vld [vmem:[#allocation6 + $0x190] sm:$0xf]
        %v3906 = vld [vmem:[#allocation6 + $0x194] sm:$0xf]
        %v3907 = vld [vmem:[#allocation6 + $0x198] sm:$0xf]
        %v3908 = vld [vmem:[#allocation6 + $0x19c] sm:$0xf]
        %v3909 = vld [vmem:[#allocation6 + $0x1a0] sm:$0xf]
        %v3910 = vld [vmem:[#allocation6 + $0x1a4] sm:$0xf]
        %v3911 = vld [vmem:[#allocation6 + $0x1a8] sm:$0xf]
        %v3912 = vld [vmem:[#allocation6 + $0x1ac] sm:$0xf]
        %v3913 = vld [vmem:[#allocation6 + $0x1b0] sm:$0xf]
        %v3914 = vld [vmem:[#allocation6 + $0x1b4] sm:$0xf]
        %v3915 = vld [vmem:[#allocation6 + $0x1b8] sm:$0xf]
        %v3916 = vld [vmem:[#allocation6 + $0x1bc] sm:$0xf]
        %v3917 = vld [vmem:[#allocation6 + $0x1c0] sm:$0xf]
        %v3918 = vld [vmem:[#allocation6 + $0x1c4] sm:$0xf]
        %v3919 = vld [vmem:[#allocation6 + $0x1c8] sm:$0xf]
        %v3920 = vld [vmem:[#allocation6 + $0x1cc] sm:$0xf]
        %v3921 = vld [vmem:[#allocation6 + $0x1d0] sm:$0xf]
        %v3922 = vld [vmem:[#allocation6 + $0x1d4] sm:$0xf]
        %v3923 = vld [vmem:[#allocation6 + $0x1d8] sm:$0xf]
        %v3924 = vld [vmem:[#allocation6 + $0x1dc] sm:$0xf]
        %v3925 = vld [vmem:[#allocation6 + $0x1e0] sm:$0xf]
        %v3926 = vld [vmem:[#allocation6 + $0x1e4] sm:$0xf]
        %v3927 = vld [vmem:[#allocation6 + $0x1e8] sm:$0xf]
        %v3928 = vld [vmem:[#allocation6 + $0x1ec] sm:$0xf]
        %v3929 = vld [vmem:[#allocation6 + $0x1f0] sm:$0xf]
        %v3930 = vld [vmem:[#allocation6 + $0x1f4] sm:$0xf]
        %v3931 = vld [vmem:[#allocation6 + $0x1f8] sm:$0xf]
        %v3932 = vld [vmem:[#allocation6 + $0x1fc] sm:$0xf]
        %v3933 = vld [vmem:[#allocation6 + $0x200] sm:$0xf]
        %v3934 = vld [vmem:[#allocation6 + $0x204] sm:$0xf]
        %v3935 = vld [vmem:[#allocation6 + $0x208] sm:$0xf]
        %v3936 = vld [vmem:[#allocation6 + $0x20c] sm:$0xf]
        %v3937 = vld [vmem:[#allocation6 + $0x210] sm:$0xf]
        %v3938 = vld [vmem:[#allocation6 + $0x214] sm:$0xf]
        %v3939 = vld [vmem:[#allocation6 + $0x218] sm:$0xf]
        %v3940 = vld [vmem:[#allocation6 + $0x21c] sm:$0xf]
        %v3941 = vld [vmem:[#allocation6 + $0x220] sm:$0xf]
        %v3942 = vld [vmem:[#allocation6 + $0x224] sm:$0xf]
        %v3943 = vld [vmem:[#allocation6 + $0x228] sm:$0xf]
        %v3944 = vld [vmem:[#allocation6 + $0x22c] sm:$0xf]
        %v3945 = vld [vmem:[#allocation6 + $0x230] sm:$0xf]
        %v3946 = vld [vmem:[#allocation6 + $0x234] sm:$0xf]
        %v3947 = vld [vmem:[#allocation6 + $0x238] sm:$0xf]
        %v3948 = vld [vmem:[#allocation6 + $0x23c] sm:$0xf]
        %v4093 = vunpack.c.l.b16 %v3805
        %v4094 = vunpack.c.l.b16 %v3806
        %v4095 = vunpack.c.l.b16 %v3807
        %v4096 = vunpack.c.l.b16 %v3808
        %v4097 = vunpack.c.l.b16 %v3809
        %v4098 = vunpack.c.l.b16 %v3810
        %v4099 = vunpack.c.l.b16 %v3811
        %v4100 = vunpack.c.l.b16 %v3812
        %v4101 = vunpack.c.l.b16 %v3813
        %v4102 = vunpack.c.l.b16 %v3814
        %v4103 = vunpack.c.l.b16 %v3815
        %v4104 = vunpack.c.l.b16 %v3816
        %v4105 = vunpack.c.l.b16 %v3817
        %v4106 = vunpack.c.l.b16 %v3818
        %v4107 = vunpack.c.l.b16 %v3819
        %v4108 = vunpack.c.l.b16 %v3820
        %v4109 = vunpack.c.l.b16 %v3821
        %v4110 = vunpack.c.l.b16 %v3822
        %v4111 = vunpack.c.l.b16 %v3823
        %v4112 = vunpack.c.l.b16 %v3824
        %v4113 = vunpack.c.l.b16 %v3825
        %v4114 = vunpack.c.l.b16 %v3826
        %v4115 = vunpack.c.l.b16 %v3827
        %v4116 = vunpack.c.l.b16 %v3828
        %v4117 = vunpack.c.l.b16 %v3829
        %v4118 = vunpack.c.l.b16 %v3830
        %v4119 = vunpack.c.l.b16 %v3831
        %v4120 = vunpack.c.l.b16 %v3832
        %v4121 = vunpack.c.l.b16 %v3833
        %v4122 = vunpack.c.l.b16 %v3834
        %v4123 = vunpack.c.l.b16 %v3835
        %v4124 = vunpack.c.l.b16 %v3836
        %v4125 = vunpack.c.l.b16 %v3837
        %v4126 = vunpack.c.l.b16 %v3838
        %v4127 = vunpack.c.l.b16 %v3839
        %v4128 = vunpack.c.l.b16 %v3840
        %v4129 = vunpack.c.l.b16 %v3841
        %v4130 = vunpack.c.l.b16 %v3842
        %v4131 = vunpack.c.l.b16 %v3843
        %v4132 = vunpack.c.l.b16 %v3844
        %v4133 = vunpack.c.l.b16 %v3845
        %v4134 = vunpack.c.l.b16 %v3846
        %v4135 = vunpack.c.l.b16 %v3847
        %v4136 = vunpack.c.l.b16 %v3848
        %v4137 = vunpack.c.l.b16 %v3849
        %v4138 = vunpack.c.l.b16 %v3850
        %v4139 = vunpack.c.l.b16 %v3851
        %v4140 = vunpack.c.l.b16 %v3852
        %v4141 = vunpack.c.l.b16 %v3853
        %v4142 = vunpack.c.l.b16 %v3854
        %v4143 = vunpack.c.l.b16 %v3855
        %v4144 = vunpack.c.l.b16 %v3856
        %v4145 = vunpack.c.l.b16 %v3857
        %v4146 = vunpack.c.l.b16 %v3858
        %v4147 = vunpack.c.l.b16 %v3859
        %v4148 = vunpack.c.l.b16 %v3860
        %v4149 = vunpack.c.l.b16 %v3861
        %v4150 = vunpack.c.l.b16 %v3862
        %v4151 = vunpack.c.l.b16 %v3863
        %v4152 = vunpack.c.l.b16 %v3864
        %v4153 = vunpack.c.l.b16 %v3865
        %v4154 = vunpack.c.l.b16 %v3866
        %v4155 = vunpack.c.l.b16 %v3867
        %v4156 = vunpack.c.l.b16 %v3868
        %v4157 = vunpack.c.l.b16 %v3869
        %v4158 = vunpack.c.l.b16 %v3870
        %v4159 = vunpack.c.l.b16 %v3871
        %v4160 = vunpack.c.l.b16 %v3872
        %v4161 = vunpack.c.l.b16 %v3873
        %v4162 = vunpack.c.l.b16 %v3874
        %v4163 = vunpack.c.l.b16 %v3875
        %v4164 = vunpack.c.l.b16 %v3876
        %v4165 = vunpack.c.l.b16 %v3877
        %v4166 = vunpack.c.l.b16 %v3878
        %v4167 = vunpack.c.l.b16 %v3879
        %v4168 = vunpack.c.l.b16 %v3880
        %v4169 = vunpack.c.l.b16 %v3881
        %v4170 = vunpack.c.l.b16 %v3882
        %v4171 = vunpack.c.l.b16 %v3883
        %v4172 = vunpack.c.l.b16 %v3884
        %v4173 = vunpack.c.l.b16 %v3885
        %v4174 = vunpack.c.l.b16 %v3886
        %v4175 = vunpack.c.l.b16 %v3887
        %v4176 = vunpack.c.l.b16 %v3888
        %v4177 = vunpack.c.l.b16 %v3889
        %v4178 = vunpack.c.l.b16 %v3890
        %v4179 = vunpack.c.l.b16 %v3891
        %v4180 = vunpack.c.l.b16 %v3892
        %v4181 = vunpack.c.l.b16 %v3893
        %v4182 = vunpack.c.l.b16 %v3894
        %v4183 = vunpack.c.l.b16 %v3895
        %v4184 = vunpack.c.l.b16 %v3896
        %v4185 = vunpack.c.l.b16 %v3897
        %v4186 = vunpack.c.l.b16 %v3898
        %v4187 = vunpack.c.l.b16 %v3899
        %v4188 = vunpack.c.l.b16 %v3900
        %v4189 = vunpack.c.l.b16 %v3901
        %v4190 = vunpack.c.l.b16 %v3902
        %v4191 = vunpack.c.l.b16 %v3903
        %v4192 = vunpack.c.l.b16 %v3904
        %v4193 = vunpack.c.l.b16 %v3905
        %v4194 = vunpack.c.l.b16 %v3906
        %v4195 = vunpack.c.l.b16 %v3907
        %v4196 = vunpack.c.l.b16 %v3908
        %v4197 = vunpack.c.l.b16 %v3909
        %v4198 = vunpack.c.l.b16 %v3910
        %v4199 = vunpack.c.l.b16 %v3911
        %v4200 = vunpack.c.l.b16 %v3912
        %v4201 = vunpack.c.l.b16 %v3913
        %v4202 = vunpack.c.l.b16 %v3914
        %v4203 = vunpack.c.l.b16 %v3915
        %v4204 = vunpack.c.l.b16 %v3916
        %v4205 = vunpack.c.l.b16 %v3917
        %v4206 = vunpack.c.l.b16 %v3918
        %v4207 = vunpack.c.l.b16 %v3919
        %v4208 = vunpack.c.l.b16 %v3920
        %v4209 = vunpack.c.l.b16 %v3921
        %v4210 = vunpack.c.l.b16 %v3922
        %v4211 = vunpack.c.l.b16 %v3923
        %v4212 = vunpack.c.l.b16 %v3924
        %v4213 = vunpack.c.l.b16 %v3925
        %v4214 = vunpack.c.l.b16 %v3926
        %v4215 = vunpack.c.l.b16 %v3927
        %v4216 = vunpack.c.l.b16 %v3928
        %v4217 = vunpack.c.l.b16 %v3929
        %v4218 = vunpack.c.l.b16 %v3930
        %v4219 = vunpack.c.l.b16 %v3931
        %v4220 = vunpack.c.l.b16 %v3932
        %v4221 = vunpack.c.l.b16 %v3933
        %v4222 = vunpack.c.l.b16 %v3934
        %v4223 = vunpack.c.l.b16 %v3935
        %v4224 = vunpack.c.l.b16 %v3936
        %v4225 = vunpack.c.l.b16 %v3937
        %v4226 = vunpack.c.l.b16 %v3938
        %v4227 = vunpack.c.l.b16 %v3939
        %v4228 = vunpack.c.l.b16 %v3940
        %v4229 = vunpack.c.l.b16 %v3941
        %v4230 = vunpack.c.l.b16 %v3942
        %v4231 = vunpack.c.l.b16 %v3943
        %v4232 = vunpack.c.l.b16 %v3944
        %v4233 = vunpack.c.l.b16 %v3945
        %v4234 = vunpack.c.l.b16 %v3946
        %v4235 = vunpack.c.l.b16 %v3947
        %v4236 = vunpack.c.l.b16 %v3948
        %v4237 = vpack.c.b16 %v4094, %v4093
        %v4238 = vpack.c.b16 %v4096, %v4095
        %v4239 = vpack.c.b16 %v4098, %v4097
        %v4240 = vpack.c.b16 %v4100, %v4099
        %v4241 = vpack.c.b16 %v4102, %v4101
        %v4242 = vpack.c.b16 %v4104, %v4103
        %v4243 = vpack.c.b16 %v4106, %v4105
        %v4244 = vpack.c.b16 %v4108, %v4107
        %v4245 = vpack.c.b16 %v4110, %v4109
        %v4246 = vpack.c.b16 %v4112, %v4111
        %v4247 = vpack.c.b16 %v4114, %v4113
        %v4248 = vpack.c.b16 %v4116, %v4115
        %v4249 = vpack.c.b16 %v4118, %v4117
        %v4250 = vpack.c.b16 %v4120, %v4119
        %v4251 = vpack.c.b16 %v4122, %v4121
        %v4252 = vpack.c.b16 %v4124, %v4123
        %v4253 = vpack.c.b16 %v4126, %v4125
        %v4254 = vpack.c.b16 %v4128, %v4127
        %v4255 = vpack.c.b16 %v4130, %v4129
        %v4256 = vpack.c.b16 %v4132, %v4131
        %v4257 = vpack.c.b16 %v4134, %v4133
        %v4258 = vpack.c.b16 %v4136, %v4135
        %v4259 = vpack.c.b16 %v4138, %v4137
        %v4260 = vpack.c.b16 %v4140, %v4139
        %v4261 = vpack.c.b16 %v4142, %v4141
        %v4262 = vpack.c.b16 %v4144, %v4143
        %v4263 = vpack.c.b16 %v4146, %v4145
        %v4264 = vpack.c.b16 %v4148, %v4147
        %v4265 = vpack.c.b16 %v4150, %v4149
        %v4266 = vpack.c.b16 %v4152, %v4151
        %v4267 = vpack.c.b16 %v4154, %v4153
        %v4268 = vpack.c.b16 %v4156, %v4155
        %v4269 = vpack.c.b16 %v4158, %v4157
        %v4270 = vpack.c.b16 %v4160, %v4159
        %v4271 = vpack.c.b16 %v4162, %v4161
        %v4272 = vpack.c.b16 %v4164, %v4163
        %v4273 = vpack.c.b16 %v4166, %v4165
        %v4274 = vpack.c.b16 %v4168, %v4167
        %v4275 = vpack.c.b16 %v4170, %v4169
        %v4276 = vpack.c.b16 %v4172, %v4171
        %v4277 = vpack.c.b16 %v4174, %v4173
        %v4278 = vpack.c.b16 %v4176, %v4175
        %v4279 = vpack.c.b16 %v4178, %v4177
        %v4280 = vpack.c.b16 %v4180, %v4179
        %v4281 = vpack.c.b16 %v4182, %v4181
        %v4282 = vpack.c.b16 %v4184, %v4183
        %v4283 = vpack.c.b16 %v4186, %v4185
        %v4284 = vpack.c.b16 %v4188, %v4187
        %v4285 = vpack.c.b16 %v4190, %v4189
        %v4286 = vpack.c.b16 %v4192, %v4191
        %v4287 = vpack.c.b16 %v4194, %v4193
        %v4288 = vpack.c.b16 %v4196, %v4195
        %v4289 = vpack.c.b16 %v4198, %v4197
        %v4290 = vpack.c.b16 %v4200, %v4199
        %v4291 = vpack.c.b16 %v4202, %v4201
        %v4292 = vpack.c.b16 %v4204, %v4203
        %v4293 = vpack.c.b16 %v4206, %v4205
        %v4294 = vpack.c.b16 %v4208, %v4207
        %v4295 = vpack.c.b16 %v4210, %v4209
        %v4296 = vpack.c.b16 %v4212, %v4211
        %v4297 = vpack.c.b16 %v4214, %v4213
        %v4298 = vpack.c.b16 %v4216, %v4215
        %v4299 = vpack.c.b16 %v4218, %v4217
        %v4300 = vpack.c.b16 %v4220, %v4219
        %v4301 = vpack.c.b16 %v4222, %v4221
        %v4302 = vpack.c.b16 %v4224, %v4223
        %v4303 = vpack.c.b16 %v4226, %v4225
        %v4304 = vpack.c.b16 %v4228, %v4227
        %v4305 = vpack.c.b16 %v4230, %v4229
        %v4306 = vpack.c.b16 %v4232, %v4231
        %v4307 = vpack.c.b16 %v4234, %v4233
        %v4308 = vpack.c.b16 %v4236, %v4235
        %4381 = vmatprep.subr.bf16.mxu0 0
        %4382 = vmatpush1.bf16.msra.mxu0 %v4237
        %4383 = vmatprep.subr.bf16.mxu0 0
        %4384 = vmatpush1.bf16.msra.mxu0 %v4238
        %4385 = vmatprep.subr.bf16.mxu0 0
        %4386 = vmatpush1.bf16.msra.mxu0 %v4239
        %4387 = vmatprep.subr.bf16.mxu0 0
        %4388 = vmatpush1.bf16.msra.mxu0 %v4240
        %4389 = vmatprep.subr.bf16.mxu0 0
        %4390 = vmatpush1.bf16.msra.mxu0 %v4241
        %4391 = vmatprep.subr.bf16.mxu0 0
        %4392 = vmatpush1.bf16.msra.mxu0 %v4242
        %4393 = vmatprep.subr.bf16.mxu0 0
        %4394 = vmatpush1.bf16.msra.mxu0 %v4243
        %4395 = vmatprep.subr.bf16.mxu0 0
        %4396 = vmatpush1.bf16.msra.mxu0 %v4244
        %4397 = vmatprep.subr.bf16.mxu0 0
        %4398 = vmatpush1.bf16.msra.mxu0 %v4245
        %4399 = vmatprep.subr.bf16.mxu0 0
        %4400 = vmatpush1.bf16.msra.mxu0 %v4246
        %4401 = vmatprep.subr.bf16.mxu0 0
        %4402 = vmatpush1.bf16.msra.mxu0 %v4247
        %4403 = vmatprep.subr.bf16.mxu0 0
        %4404 = vmatpush1.bf16.msra.mxu0 %v4248
        %4405 = vmatprep.subr.bf16.mxu0 0
        %4406 = vmatpush1.bf16.msra.mxu0 %v4249
        %4407 = vmatprep.subr.bf16.mxu0 0
        %4408 = vmatpush1.bf16.msra.mxu0 %v4250
        %4409 = vmatprep.subr.bf16.mxu0 0
        %4410 = vmatpush1.bf16.msra.mxu0 %v4251
        %4411 = vmatprep.subr.bf16.mxu0 0
        %4412 = vmatpush1.bf16.msra.mxu0 %v4252
        %4413 = vmatprep.mubr.bf16.mxu0 %v3662
        %4414 = vmatmul.mubr.bf16.gmra.mrb[0].mxu0 %v3661
        %v4415 = vpop.f32.mrb[0].mxu0
        %v4416 = vadd.f32 0.0, %v4415
        %v4417 = vpop.f32.mrb[0].mxu0
        %v4418 = vpop.f32.mrb[0].mxu0
        %v4419 = vadd.f32 0.0, %v4418
        %v4420 = vpop.f32.mrb[0].mxu0
        %4421 = vmatprep.mubr.bf16.mxu0 %v3671
        %4422 = vmatmul.mubr.bf16.gmra.mrb[0].mxu0 %v3670
        %v4423 = vpop.f32.mrb[0].mxu0
        %v4424 = vadd.f32 0.0, %v4423
        %v4425 = vpop.f32.mrb[0].mxu0
        %v4426 = vpop.f32.mrb[0].mxu0
        %v4427 = vadd.f32 0.0, %v4426
        %v4428 = vpop.f32.mrb[0].mxu0
        %4429 = vmatprep.mubr.bf16.mxu0 %v3680
        %4430 = vmatmul.mubr.bf16.gmra.mrb[0].mxu0 %v3679
        %v4431 = vpop.f32.mrb[0].mxu0
        %v4432 = vadd.f32 0.0, %v4431
        %v4433 = vpop.f32.mrb[0].mxu0
        %v4434 = vpop.f32.mrb[0].mxu0
        %v4435 = vadd.f32 0.0, %v4434
        %v4436 = vpop.f32.mrb[0].mxu0
        %4437 = vmatprep.mubr.bf16.mxu0 %v3689
        %4438 = vmatmul.mubr.bf16.gmra.mrb[0].mxu0 %v3688
        %v4439 = vpop.f32.mrb[0].mxu0
        %v4440 = vadd.f32 0.0, %v4439
        %v4441 = vpop.f32.mrb[0].mxu0
        %v4442 = vpop.f32.mrb[0].mxu0
        %v4443 = vadd.f32 0.0, %v4442
        %v4444 = vpop.f32.mrb[0].mxu0
        %4445 = vmatprep.mubr.bf16.mxu0 %v3698
        %4446 = vmatmul.mubr.bf16.gmra.mrb[0].mxu0 %v3697
        %v4447 = vpop.f32.mrb[0].mxu0
        %v4448 = vadd.f32 0.0, %v4447
        %v4449 = vpop.f32.mrb[0].mxu0
        %v4450 = vpop.f32.mrb[0].mxu0
        %v4451 = vadd.f32 0.0, %v4450
        %v4452 = vpop.f32.mrb[0].mxu0
        %4453 = vmatprep.mubr.bf16.mxu0 %v3707
        %4454 = vmatmul.mubr.bf16.gmra.mrb[0].mxu0 %v3706
        %v4455 = vpop.f32.mrb[0].mxu0
        %v4456 = vadd.f32 0.0, %v4455
        %v4457 = vpop.f32.mrb[0].mxu0
        %v4458 = vpop.f32.mrb[0].mxu0
        %v4459 = vadd.f32 0.0, %v4458
        %v4460 = vpop.f32.mrb[0].mxu0
        %4461 = vmatprep.mubr.bf16.mxu0 %v3716
        %4462 = vmatmul.mubr.bf16.gmra.mrb[0].mxu0 %v3715
        %v4463 = vpop.f32.mrb[0].mxu0
        %v4464 = vadd.f32 0.0, %v4463
        %v4465 = vpop.f32.mrb[0].mxu0
        %v4466 = vpop.f32.mrb[0].mxu0
        %v4467 = vadd.f32 0.0, %v4466
        %v4468 = vpop.f32.mrb[0].mxu0
        %4469 = vmatprep.mubr.bf16.mxu0 %v3725
        %4470 = vmatmul.mubr.bf16.gmra.mrb[0].mxu0 %v3724
        %v4471 = vpop.f32.mrb[0].mxu0
        %v4472 = vadd.f32 0.0, %v4471
        %v4473 = vpop.f32.mrb[0].mxu0
        %v4474 = vpop.f32.mrb[0].mxu0
        %v4475 = vadd.f32 0.0, %v4474
        %v4476 = vpop.f32.mrb[0].mxu0
        %4477 = vmatprep.mubr.bf16.mxu0 %v3734
        %4478 = vmatmul.mubr.bf16.gmra.mrb[0].mxu0 %v3733
        %v4479 = vpop.f32.mrb[0].mxu0
        %v4480 = vadd.f32 0.0, %v4479
        %v4481 = vpop.f32.mrb[0].mxu0
        %v4482 = vpop.f32.mrb[0].mxu0
        %v4483 = vadd.f32 0.0, %v4482
        %v4484 = vpop.f32.mrb[0].mxu0
        %4485 = vmatprep.mubr.bf16.mxu0 %v3743
        %4486 = vmatmul.mubr.bf16.gmra.mrb[0].mxu0 %v3742
        %v4487 = vpop.f32.mrb[0].mxu0
        %v4488 = vadd.f32 0.0, %v4487
        %v4489 = vpop.f32.mrb[0].mxu0
        %v4490 = vpop.f32.mrb[0].mxu0
        %v4491 = vadd.f32 0.0, %v4490
        %v4492 = vpop.f32.mrb[0].mxu0
        %4493 = vmatprep.mubr.bf16.mxu0 %v3752
        %4494 = vmatmul.mubr.bf16.gmra.mrb[0].mxu0 %v3751
        %v4495 = vpop.f32.mrb[0].mxu0
        %v4496 = vadd.f32 0.0, %v4495
        %v4497 = vpop.f32.mrb[0].mxu0
        %v4498 = vpop.f32.mrb[0].mxu0
        %v4499 = vadd.f32 0.0, %v4498
        %v4500 = vpop.f32.mrb[0].mxu0
        %4501 = vmatprep.mubr.bf16.mxu0 %v3761
        %4502 = vmatmul.mubr.bf16.gmra.mrb[0].mxu0 %v3760
        %v4503 = vpop.f32.mrb[0].mxu0
        %v4504 = vadd.f32 0.0, %v4503
        %v4505 = vpop.f32.mrb[0].mxu0
        %v4506 = vpop.f32.mrb[0].mxu0
        %v4507 = vadd.f32 0.0, %v4506
        %v4508 = vpop.f32.mrb[0].mxu0
        %4509 = vmatprep.mubr.bf16.mxu0 %v3770
        %4510 = vmatmul.mubr.bf16.gmra.mrb[0].mxu0 %v3769
        %v4511 = vpop.f32.mrb[0].mxu0
        %v4512 = vadd.f32 0.0, %v4511
        %v4513 = vpop.f32.mrb[0].mxu0
        %v4514 = vpop.f32.mrb[0].mxu0
        %v4515 = vadd.f32 0.0, %v4514
        %v4516 = vpop.f32.mrb[0].mxu0
        %4517 = vmatprep.mubr.bf16.mxu0 %v3779
        %4518 = vmatmul.mubr.bf16.gmra.mrb[0].mxu0 %v3778
        %v4519 = vpop.f32.mrb[0].mxu0
        %v4520 = vadd.f32 0.0, %v4519
        %v4521 = vpop.f32.mrb[0].mxu0
        %v4522 = vpop.f32.mrb[0].mxu0
        %v4523 = vadd.f32 0.0, %v4522
        %v4524 = vpop.f32.mrb[0].mxu0
        %4525 = vmatprep.mubr.bf16.mxu0 %v3788
        %4526 = vmatmul.mubr.bf16.gmra.mrb[0].mxu0 %v3787
        %v4527 = vpop.f32.mrb[0].mxu0
        %v4528 = vadd.f32 0.0, %v4527
        %v4529 = vpop.f32.mrb[0].mxu0
        %v4530 = vpop.f32.mrb[0].mxu0
        %v4531 = vadd.f32 0.0, %v4530
        %v4532 = vpop.f32.mrb[0].mxu0
        %4533 = vmatprep.mubr.bf16.mxu0 %v3797
        %4534 = vmatmul.mubr.bf16.gmra.mrb[0].mxu0 %v3796
        %v4535 = vpop.f32.mrb[0].mxu0
        %v4536 = vadd.f32 0.0, %v4535
        %v4537 = vpop.f32.mrb[0].mxu0
        %v4538 = vpop.f32.mrb[0].mxu0
        %v4539 = vadd.f32 0.0, %v4538
        %v4540 = vpop.f32.mrb[0].mxu0
        %4541 = vdwg.mxu0
        %4542 = vmatprep.subr.bf16.mxu0 0
        %4543 = vmatpush1.bf16.msra.mxu0 %v4253
        %4544 = vmatprep.subr.bf16.mxu0 0
        %4545 = vmatpush1.bf16.msra.mxu0 %v4254
        %4546 = vmatprep.subr.bf16.mxu0 0
        %4547 = vmatpush1.bf16.msra.mxu0 %v4255
        %4548 = vmatprep.subr.bf16.mxu0 0
        %4549 = vmatpush1.bf16.msra.mxu0 %v4256
        %4550 = vmatprep.subr.bf16.mxu0 0
        %4551 = vmatpush1.bf16.msra.mxu0 %v4257
        %4552 = vmatprep.subr.bf16.mxu0 0
        %4553 = vmatpush1.bf16.msra.mxu0 %v4258
        %4554 = vmatprep.subr.bf16.mxu0 0
        %4555 = vmatpush1.bf16.msra.mxu0 %v4259
        %4556 = vmatprep.subr.bf16.mxu0 0
        %4557 = vmatpush1.bf16.msra.mxu0 %v4260
        %4558 = vmatprep.subr.bf16.mxu0 0
        %4559 = vmatpush1.bf16.msra.mxu0 %v4261
        %4560 = vmatprep.subr.bf16.mxu0 0
        %4561 = vmatpush1.bf16.msra.mxu0 %v4262
        %4562 = vmatprep.subr.bf16.mxu0 0
        %4563 = vmatpush1.bf16.msra.mxu0 %v4263
        %4564 = vmatprep.subr.bf16.mxu0 0
        %4565 = vmatpush1.bf16.msra.mxu0 %v4264
        %4566 = vmatprep.subr.bf16.mxu0 0
        %4567 = vmatpush1.bf16.msra.mxu0 %v4265
        %4568 = vmatprep.subr.bf16.mxu0 0
        %4569 = vmatpush1.bf16.msra.mxu0 %v4266
        %4570 = vmatprep.subr.bf16.mxu0 0
        %4571 = vmatpush1.bf16.msra.mxu0 %v4267
        %4572 = vmatprep.subr.bf16.mxu0 0
        %4573 = vmatpush1.bf16.msra.mxu0 %v4268
        %4574 = vmatprep.mubr.bf16.mxu0 %v3664
        %4575 = vmatmul.mubr.bf16.gmra.mrb[0].mxu0 %v3663
        %v4576 = vpop.f32.mrb[0].mxu0
        %v4577 = vadd.f32 %v4416, %v4576
        %v4578 = vpop.f32.mrb[0].mxu0
        %v4579 = vpop.f32.mrb[0].mxu0
        %v4580 = vadd.f32 %v4419, %v4579
        %v4581 = vpop.f32.mrb[0].mxu0
        %4582 = vmatprep.mubr.bf16.mxu0 %v3673
        %4583 = vmatmul.mubr.bf16.gmra.mrb[0].mxu0 %v3672
        %v4584 = vpop.f32.mrb[0].mxu0
        %v4585 = vadd.f32 %v4424, %v4584
        %v4586 = vpop.f32.mrb[0].mxu0
        %v4587 = vpop.f32.mrb[0].mxu0
        %v4588 = vadd.f32 %v4427, %v4587
        %v4589 = vpop.f32.mrb[0].mxu0
        %4590 = vmatprep.mubr.bf16.mxu0 %v3682
        %4591 = vmatmul.mubr.bf16.gmra.mrb[0].mxu0 %v3681
        %v4592 = vpop.f32.mrb[0].mxu0
        %v4593 = vadd.f32 %v4432, %v4592
        %v4594 = vpop.f32.mrb[0].mxu0
        %v4595 = vpop.f32.mrb[0].mxu0
        %v4596 = vadd.f32 %v4435, %v4595
        %v4597 = vpop.f32.mrb[0].mxu0
        %4598 = vmatprep.mubr.bf16.mxu0 %v3691
        %4599 = vmatmul.mubr.bf16.gmra.mrb[0].mxu0 %v3690
        %v4600 = vpop.f32.mrb[0].mxu0
        %v4601 = vadd.f32 %v4440, %v4600
        %v4602 = vpop.f32.mrb[0].mxu0
        %v4603 = vpop.f32.mrb[0].mxu0
        %v4604 = vadd.f32 %v4443, %v4603
        %v4605 = vpop.f32.mrb[0].mxu0
        %4606 = vmatprep.mubr.bf16.mxu0 %v3700
        %4607 = vmatmul.mubr.bf16.gmra.mrb[0].mxu0 %v3699
        %v4608 = vpop.f32.mrb[0].mxu0
        %v4609 = vadd.f32 %v4448, %v4608
        %v4610 = vpop.f32.mrb[0].mxu0
        %v4611 = vpop.f32.mrb[0].mxu0
        %v4612 = vadd.f32 %v4451, %v4611
        %v4613 = vpop.f32.mrb[0].mxu0
        %4614 = vmatprep.mubr.bf16.mxu0 %v3709
        %4615 = vmatmul.mubr.bf16.gmra.mrb[0].mxu0 %v3708
        %v4616 = vpop.f32.mrb[0].mxu0
        %v4617 = vadd.f32 %v4456, %v4616
        %v4618 = vpop.f32.mrb[0].mxu0
        %v4619 = vpop.f32.mrb[0].mxu0
        %v4620 = vadd.f32 %v4459, %v4619
        %v4621 = vpop.f32.mrb[0].mxu0
        %4622 = vmatprep.mubr.bf16.mxu0 %v3718
        %4623 = vmatmul.mubr.bf16.gmra.mrb[0].mxu0 %v3717
        %v4624 = vpop.f32.mrb[0].mxu0
        %v4625 = vadd.f32 %v4464, %v4624
        %v4626 = vpop.f32.mrb[0].mxu0
        %v4627 = vpop.f32.mrb[0].mxu0
        %v4628 = vadd.f32 %v4467, %v4627
        %v4629 = vpop.f32.mrb[0].mxu0
        %4630 = vmatprep.mubr.bf16.mxu0 %v3727
        %4631 = vmatmul.mubr.bf16.gmra.mrb[0].mxu0 %v3726
        %v4632 = vpop.f32.mrb[0].mxu0
        %v4633 = vadd.f32 %v4472, %v4632
        %v4634 = vpop.f32.mrb[0].mxu0
        %v4635 = vpop.f32.mrb[0].mxu0
        %v4636 = vadd.f32 %v4475, %v4635
        %v4637 = vpop.f32.mrb[0].mxu0
        %4638 = vmatprep.mubr.bf16.mxu0 %v3736
        %4639 = vmatmul.mubr.bf16.gmra.mrb[0].mxu0 %v3735
        %v4640 = vpop.f32.mrb[0].mxu0
        %v4641 = vadd.f32 %v4480, %v4640
        %v4642 = vpop.f32.mrb[0].mxu0
        %v4643 = vpop.f32.mrb[0].mxu0
        %v4644 = vadd.f32 %v4483, %v4643
        %v4645 = vpop.f32.mrb[0].mxu0
        %4646 = vmatprep.mubr.bf16.mxu0 %v3745
        %4647 = vmatmul.mubr.bf16.gmra.mrb[0].mxu0 %v3744
        %v4648 = vpop.f32.mrb[0].mxu0
        %v4649 = vadd.f32 %v4488, %v4648
        %v4650 = vpop.f32.mrb[0].mxu0
        %v4651 = vpop.f32.mrb[0].mxu0
        %v4652 = vadd.f32 %v4491, %v4651
        %v4653 = vpop.f32.mrb[0].mxu0
        %4654 = vmatprep.mubr.bf16.mxu0 %v3754
        %4655 = vmatmul.mubr.bf16.gmra.mrb[0].mxu0 %v3753
        %v4656 = vpop.f32.mrb[0].mxu0
        %v4657 = vadd.f32 %v4496, %v4656
        %v4658 = vpop.f32.mrb[0].mxu0
        %v4659 = vpop.f32.mrb[0].mxu0
        %v4660 = vadd.f32 %v4499, %v4659
        %v4661 = vpop.f32.mrb[0].mxu0
        %4662 = vmatprep.mubr.bf16.mxu0 %v3763
        %4663 = vmatmul.mubr.bf16.gmra.mrb[0].mxu0 %v3762
        %v4664 = vpop.f32.mrb[0].mxu0
        %v4665 = vadd.f32 %v4504, %v4664
        %v4666 = vpop.f32.mrb[0].mxu0
        %v4667 = vpop.f32.mrb[0].mxu0
        %v4668 = vadd.f32 %v4507, %v4667
        %v4669 = vpop.f32.mrb[0].mxu0
        %4670 = vmatprep.mubr.bf16.mxu0 %v3772
        %4671 = vmatmul.mubr.bf16.gmra.mrb[0].mxu0 %v3771
        %v4672 = vpop.f32.mrb[0].mxu0
        %v4673 = vadd.f32 %v4512, %v4672
        %v4674 = vpop.f32.mrb[0].mxu0
        %v4675 = vpop.f32.mrb[0].mxu0
        %v4676 = vadd.f32 %v4515, %v4675
        %v4677 = vpop.f32.mrb[0].mxu0
        %4678 = vmatprep.mubr.bf16.mxu0 %v3781
        %4679 = vmatmul.mubr.bf16.gmra.mrb[0].mxu0 %v3780
        %v4680 = vpop.f32.mrb[0].mxu0
        %v4681 = vadd.f32 %v4520, %v4680
        %v4682 = vpop.f32.mrb[0].mxu0
        %v4683 = vpop.f32.mrb[0].mxu0
        %v4684 = vadd.f32 %v4523, %v4683
        %v4685 = vpop.f32.mrb[0].mxu0
        %4686 = vmatprep.mubr.bf16.mxu0 %v3790
        %4687 = vmatmul.mubr.bf16.gmra.mrb[0].mxu0 %v3789
        %v4688 = vpop.f32.mrb[0].mxu0
        %v4689 = vadd.f32 %v4528, %v4688
        %v4690 = vpop.f32.mrb[0].mxu0
        %v4691 = vpop.f32.mrb[0].mxu0
        %v4692 = vadd.f32 %v4531, %v4691
        %v4693 = vpop.f32.mrb[0].mxu0
        %4694 = vmatprep.mubr.bf16.mxu0 %v3799
        %4695 = vmatmul.mubr.bf16.gmra.mrb[0].mxu0 %v3798
        %v4696 = vpop.f32.mrb[0].mxu0
        %v4697 = vadd.f32 %v4536, %v4696
        %v4698 = vpop.f32.mrb[0].mxu0
        %v4699 = vpop.f32.mrb[0].mxu0
        %v4700 = vadd.f32 %v4539, %v4699
        %v4701 = vpop.f32.mrb[0].mxu0
        %4702 = vdwg.mxu0
        %4703 = vmatprep.subr.bf16.mxu0 0
        %4704 = vmatpush1.bf16.msra.mxu0 %v4269
        %4705 = vmatprep.subr.bf16.mxu0 0
        %4706 = vmatpush1.bf16.msra.mxu0 %v4270
        %4707 = vmatprep.subr.bf16.mxu0 0
        %4708 = vmatpush1.bf16.msra.mxu0 %v4271
        %4709 = vmatprep.subr.bf16.mxu0 0
        %4710 = vmatpush1.bf16.msra.mxu0 %v4272
        %4711 = vmatprep.subr.bf16.mxu0 0
        %4712 = vmatpush1.bf16.msra.mxu0 %v4273
        %4713 = vmatprep.subr.bf16.mxu0 0
        %4714 = vmatpush1.bf16.msra.mxu0 %v4274
        %4715 = vmatprep.subr.bf16.mxu0 0
        %4716 = vmatpush1.bf16.msra.mxu0 %v4275
        %4717 = vmatprep.subr.bf16.mxu0 0
        %4718 = vmatpush1.bf16.msra.mxu0 %v4276
        %4719 = vmatprep.subr.bf16.mxu0 0
        %4720 = vmatpush1.bf16.msra.mxu0 %v4277
        %4721 = vmatprep.subr.bf16.mxu0 0
        %4722 = vmatpush1.bf16.msra.mxu0 %v4278
        %4723 = vmatprep.subr.bf16.mxu0 0
        %4724 = vmatpush1.bf16.msra.mxu0 %v4279
        %4725 = vmatprep.subr.bf16.mxu0 0
        %4726 = vmatpush1.bf16.msra.mxu0 %v4280
        %4727 = vmatprep.subr.bf16.mxu0 0
        %4728 = vmatpush1.bf16.msra.mxu0 %v4281
        %4729 = vmatprep.subr.bf16.mxu0 0
        %4730 = vmatpush1.bf16.msra.mxu0 %v4282
        %4731 = vmatprep.subr.bf16.mxu0 0
        %4732 = vmatpush1.bf16.msra.mxu0 %v4283
        %4733 = vmatprep.subr.bf16.mxu0 0
        %4734 = vmatpush1.bf16.msra.mxu0 %v4284
        %4735 = vmatprep.mubr.bf16.mxu0 %v3666
        %4736 = vmatmul.mubr.bf16.gmra.mrb[0].mxu0 %v3665
        %v4737 = vpop.f32.mrb[0].mxu0
        %v4738 = vadd.f32 %v4577, %v4737
        %v4739 = vpop.f32.mrb[0].mxu0
        %v4740 = vpop.f32.mrb[0].mxu0
        %v4741 = vadd.f32 %v4580, %v4740
        %v4742 = vpop.f32.mrb[0].mxu0
        %4743 = vmatprep.mubr.bf16.mxu0 %v3675
        %4744 = vmatmul.mubr.bf16.gmra.mrb[0].mxu0 %v3674
        %v4745 = vpop.f32.mrb[0].mxu0
        %v4746 = vadd.f32 %v4585, %v4745
        %v4747 = vpop.f32.mrb[0].mxu0
        %v4748 = vpop.f32.mrb[0].mxu0
        %v4749 = vadd.f32 %v4588, %v4748
        %v4750 = vpop.f32.mrb[0].mxu0
        %4751 = vmatprep.mubr.bf16.mxu0 %v3684
        %4752 = vmatmul.mubr.bf16.gmra.mrb[0].mxu0 %v3683
        %v4753 = vpop.f32.mrb[0].mxu0
        %v4754 = vadd.f32 %v4593, %v4753
        %v4755 = vpop.f32.mrb[0].mxu0
        %v4756 = vpop.f32.mrb[0].mxu0
        %v4757 = vadd.f32 %v4596, %v4756
        %v4758 = vpop.f32.mrb[0].mxu0
        %4759 = vmatprep.mubr.bf16.mxu0 %v3693
        %4760 = vmatmul.mubr.bf16.gmra.mrb[0].mxu0 %v3692
        %v4761 = vpop.f32.mrb[0].mxu0
        %v4762 = vadd.f32 %v4601, %v4761
        %v4763 = vpop.f32.mrb[0].mxu0
        %v4764 = vpop.f32.mrb[0].mxu0
        %v4765 = vadd.f32 %v4604, %v4764
        %v4766 = vpop.f32.mrb[0].mxu0
        %4767 = vmatprep.mubr.bf16.mxu0 %v3702
        %4768 = vmatmul.mubr.bf16.gmra.mrb[0].mxu0 %v3701
        %v4769 = vpop.f32.mrb[0].mxu0
        %v4770 = vadd.f32 %v4609, %v4769
        %v4771 = vpop.f32.mrb[0].mxu0
        %v4772 = vpop.f32.mrb[0].mxu0
        %v4773 = vadd.f32 %v4612, %v4772
        %v4774 = vpop.f32.mrb[0].mxu0
        %4775 = vmatprep.mubr.bf16.mxu0 %v3711
        %4776 = vmatmul.mubr.bf16.gmra.mrb[0].mxu0 %v3710
        %v4777 = vpop.f32.mrb[0].mxu0
        %v4778 = vadd.f32 %v4617, %v4777
        %v4779 = vpop.f32.mrb[0].mxu0
        %v4780 = vpop.f32.mrb[0].mxu0
        %v4781 = vadd.f32 %v4620, %v4780
        %v4782 = vpop.f32.mrb[0].mxu0
        %4783 = vmatprep.mubr.bf16.mxu0 %v3720
        %4784 = vmatmul.mubr.bf16.gmra.mrb[0].mxu0 %v3719
        %v4785 = vpop.f32.mrb[0].mxu0
        %v4786 = vadd.f32 %v4625, %v4785
        %v4787 = vpop.f32.mrb[0].mxu0
        %v4788 = vpop.f32.mrb[0].mxu0
        %v4789 = vadd.f32 %v4628, %v4788
        %v4790 = vpop.f32.mrb[0].mxu0
        %4791 = vmatprep.mubr.bf16.mxu0 %v3729
        %4792 = vmatmul.mubr.bf16.gmra.mrb[0].mxu0 %v3728
        %v4793 = vpop.f32.mrb[0].mxu0
        %v4794 = vadd.f32 %v4633, %v4793
        %v4795 = vpop.f32.mrb[0].mxu0
        %v4796 = vpop.f32.mrb[0].mxu0
        %v4797 = vadd.f32 %v4636, %v4796
        %v4798 = vpop.f32.mrb[0].mxu0
        %4799 = vmatprep.mubr.bf16.mxu0 %v3738
        %4800 = vmatmul.mubr.bf16.gmra.mrb[0].mxu0 %v3737
        %v4801 = vpop.f32.mrb[0].mxu0
        %v4802 = vadd.f32 %v4641, %v4801
        %v4803 = vpop.f32.mrb[0].mxu0
        %v4804 = vpop.f32.mrb[0].mxu0
        %v4805 = vadd.f32 %v4644, %v4804
        %v4806 = vpop.f32.mrb[0].mxu0
        %4807 = vmatprep.mubr.bf16.mxu0 %v3747
        %4808 = vmatmul.mubr.bf16.gmra.mrb[0].mxu0 %v3746
        %v4809 = vpop.f32.mrb[0].mxu0
        %v4810 = vadd.f32 %v4649, %v4809
        %v4811 = vpop.f32.mrb[0].mxu0
        %v4812 = vpop.f32.mrb[0].mxu0
        %v4813 = vadd.f32 %v4652, %v4812
        %v4814 = vpop.f32.mrb[0].mxu0
        %4815 = vmatprep.mubr.bf16.mxu0 %v3756
        %4816 = vmatmul.mubr.bf16.gmra.mrb[0].mxu0 %v3755
        %v4817 = vpop.f32.mrb[0].mxu0
        %v4818 = vadd.f32 %v4657, %v4817
        %v4819 = vpop.f32.mrb[0].mxu0
        %v4820 = vpop.f32.mrb[0].mxu0
        %v4821 = vadd.f32 %v4660, %v4820
        %v4822 = vpop.f32.mrb[0].mxu0
        %4823 = vmatprep.mubr.bf16.mxu0 %v3765
        %4824 = vmatmul.mubr.bf16.gmra.mrb[0].mxu0 %v3764
        %v4825 = vpop.f32.mrb[0].mxu0
        %v4826 = vadd.f32 %v4665, %v4825
        %v4827 = vpop.f32.mrb[0].mxu0
        %v4828 = vpop.f32.mrb[0].mxu0
        %v4829 = vadd.f32 %v4668, %v4828
        %v4830 = vpop.f32.mrb[0].mxu0
        %4831 = vmatprep.mubr.bf16.mxu0 %v3774
        %4832 = vmatmul.mubr.bf16.gmra.mrb[0].mxu0 %v3773
        %v4833 = vpop.f32.mrb[0].mxu0
        %v4834 = vadd.f32 %v4673, %v4833
        %v4835 = vpop.f32.mrb[0].mxu0
        %v4836 = vpop.f32.mrb[0].mxu0
        %v4837 = vadd.f32 %v4676, %v4836
        %v4838 = vpop.f32.mrb[0].mxu0
        %4839 = vmatprep.mubr.bf16.mxu0 %v3783
        %4840 = vmatmul.mubr.bf16.gmra.mrb[0].mxu0 %v3782
        %v4841 = vpop.f32.mrb[0].mxu0
        %v4842 = vadd.f32 %v4681, %v4841
        %v4843 = vpop.f32.mrb[0].mxu0
        %v4844 = vpop.f32.mrb[0].mxu0
        %v4845 = vadd.f32 %v4684, %v4844
        %v4846 = vpop.f32.mrb[0].mxu0
        %4847 = vmatprep.mubr.bf16.mxu0 %v3792
        %4848 = vmatmul.mubr.bf16.gmra.mrb[0].mxu0 %v3791
        %v4849 = vpop.f32.mrb[0].mxu0
        %v4850 = vadd.f32 %v4689, %v4849
        %v4851 = vpop.f32.mrb[0].mxu0
        %v4852 = vpop.f32.mrb[0].mxu0
        %v4853 = vadd.f32 %v4692, %v4852
        %v4854 = vpop.f32.mrb[0].mxu0
        %4855 = vmatprep.mubr.bf16.mxu0 %v3801
        %4856 = vmatmul.mubr.bf16.gmra.mrb[0].mxu0 %v3800
        %v4857 = vpop.f32.mrb[0].mxu0
        %v4858 = vadd.f32 %v4697, %v4857
        %v4859 = vpop.f32.mrb[0].mxu0
        %v4860 = vpop.f32.mrb[0].mxu0
        %v4861 = vadd.f32 %v4700, %v4860
        %v4862 = vpop.f32.mrb[0].mxu0
        %4863 = vdwg.mxu0
        %4864 = vmatprep.subr.bf16.mxu0 0
        %4865 = vmatpush1.bf16.msra.mxu0 %v4285
        %4866 = vmatprep.subr.bf16.mxu0 0
        %4867 = vmatpush1.bf16.msra.mxu0 %v4286
        %4868 = vmatprep.subr.bf16.mxu0 0
        %4869 = vmatpush1.bf16.msra.mxu0 %v4287
        %4870 = vmatprep.subr.bf16.mxu0 0
        %4871 = vmatpush1.bf16.msra.mxu0 %v4288
        %4872 = vmatprep.subr.bf16.mxu0 0
        %4873 = vmatpush1.bf16.msra.mxu0 %v4289
        %4874 = vmatprep.subr.bf16.mxu0 0
        %4875 = vmatpush1.bf16.msra.mxu0 %v4290
        %4876 = vmatprep.subr.bf16.mxu0 0
        %4877 = vmatpush1.bf16.msra.mxu0 %v4291
        %4878 = vmatprep.subr.bf16.mxu0 0
        %4879 = vmatpush1.bf16.msra.mxu0 %v4292
        %4880 = vmatprep.subr.bf16.mxu0 0
        %4881 = vmatpush1.bf16.msra.mxu0 %v4293
        %4882 = vmatprep.subr.bf16.mxu0 0
        %4883 = vmatpush1.bf16.msra.mxu0 %v4294
        %4884 = vmatprep.subr.bf16.mxu0 0
        %4885 = vmatpush1.bf16.msra.mxu0 %v4295
        %4886 = vmatprep.subr.bf16.mxu0 0
        %4887 = vmatpush1.bf16.msra.mxu0 %v4296
        %4888 = vmatprep.subr.bf16.mxu0 0
        %4889 = vmatpush1.bf16.msra.mxu0 %v4297
        %4890 = vmatprep.subr.bf16.mxu0 0
        %4891 = vmatpush1.bf16.msra.mxu0 %v4298
        %4892 = vmatprep.subr.bf16.mxu0 0
        %4893 = vmatpush1.bf16.msra.mxu0 %v4299
        %4894 = vmatprep.subr.bf16.mxu0 0
        %4895 = vmatpush1.bf16.msra.mxu0 %v4300
        %4896 = vmatprep.mubr.bf16.mxu0 %v3668
        %4897 = vmatmul.mubr.bf16.gmra.mrb[0].mxu0 %v3667
        %v4898 = vpop.f32.mrb[0].mxu0
        %v4899 = vadd.f32 %v4738, %v4898
        %v4900 = vpop.f32.mrb[0].mxu0
        %v4901 = vpop.f32.mrb[0].mxu0
        %v4902 = vadd.f32 %v4741, %v4901
        %v4903 = vpop.f32.mrb[0].mxu0
        %4904 = vmatprep.mubr.bf16.mxu0 %v3677
        %4905 = vmatmul.mubr.bf16.gmra.mrb[0].mxu0 %v3676
        %v4906 = vpop.f32.mrb[0].mxu0
        %v4907 = vadd.f32 %v4746, %v4906
        %v4908 = vpop.f32.mrb[0].mxu0
        %v4909 = vpop.f32.mrb[0].mxu0
        %v4910 = vadd.f32 %v4749, %v4909
        %v4911 = vpop.f32.mrb[0].mxu0
        %4912 = vmatprep.mubr.bf16.mxu0 %v3686
        %4913 = vmatmul.mubr.bf16.gmra.mrb[0].mxu0 %v3685
        %v4914 = vpop.f32.mrb[0].mxu0
        %v4915 = vadd.f32 %v4754, %v4914
        %v4916 = vpop.f32.mrb[0].mxu0
        %v4917 = vpop.f32.mrb[0].mxu0
        %v4918 = vadd.f32 %v4757, %v4917
        %v4919 = vpop.f32.mrb[0].mxu0
        %4920 = vmatprep.mubr.bf16.mxu0 %v3695
        %4921 = vmatmul.mubr.bf16.gmra.mrb[0].mxu0 %v3694
        %v4922 = vpop.f32.mrb[0].mxu0
        %v4923 = vadd.f32 %v4762, %v4922
        %v4924 = vpop.f32.mrb[0].mxu0
        %v4925 = vpop.f32.mrb[0].mxu0
        %v4926 = vadd.f32 %v4765, %v4925
        %v4927 = vpop.f32.mrb[0].mxu0
        %4928 = vmatprep.mubr.bf16.mxu0 %v3704
        %4929 = vmatmul.mubr.bf16.gmra.mrb[0].mxu0 %v3703
        %v4930 = vpop.f32.mrb[0].mxu0
        %v4931 = vadd.f32 %v4770, %v4930
        %v4932 = vpop.f32.mrb[0].mxu0
        %v4933 = vpop.f32.mrb[0].mxu0
        %v4934 = vadd.f32 %v4773, %v4933
        %v4935 = vpop.f32.mrb[0].mxu0
        %4936 = vmatprep.mubr.bf16.mxu0 %v3713
        %4937 = vmatmul.mubr.bf16.gmra.mrb[0].mxu0 %v3712
        %v4938 = vpop.f32.mrb[0].mxu0
        %v4939 = vadd.f32 %v4778, %v4938
        %v4940 = vpop.f32.mrb[0].mxu0
        %v4941 = vpop.f32.mrb[0].mxu0
        %v4942 = vadd.f32 %v4781, %v4941
        %v4943 = vpop.f32.mrb[0].mxu0
        %4944 = vmatprep.mubr.bf16.mxu0 %v3722
        %4945 = vmatmul.mubr.bf16.gmra.mrb[0].mxu0 %v3721
        %v4946 = vpop.f32.mrb[0].mxu0
        %v4947 = vadd.f32 %v4786, %v4946
        %v4948 = vpop.f32.mrb[0].mxu0
        %v4949 = vpop.f32.mrb[0].mxu0
        %v4950 = vadd.f32 %v4789, %v4949
        %v4951 = vpop.f32.mrb[0].mxu0
        %4952 = vmatprep.mubr.bf16.mxu0 %v3731
        %4953 = vmatmul.mubr.bf16.gmra.mrb[0].mxu0 %v3730
        %v4954 = vpop.f32.mrb[0].mxu0
        %v4955 = vadd.f32 %v4794, %v4954
        %v4956 = vpop.f32.mrb[0].mxu0
        %v4957 = vpop.f32.mrb[0].mxu0
        %v4958 = vadd.f32 %v4797, %v4957
        %v4959 = vpop.f32.mrb[0].mxu0
        %4960 = vmatprep.mubr.bf16.mxu0 %v3740
        %4961 = vmatmul.mubr.bf16.gmra.mrb[0].mxu0 %v3739
        %v4962 = vpop.f32.mrb[0].mxu0
        %v4963 = vadd.f32 %v4802, %v4962
        %v4964 = vpop.f32.mrb[0].mxu0
        %v4965 = vpop.f32.mrb[0].mxu0
        %v4966 = vadd.f32 %v4805, %v4965
        %v4967 = vpop.f32.mrb[0].mxu0
        %4968 = vmatprep.mubr.bf16.mxu0 %v3749
        %4969 = vmatmul.mubr.bf16.gmra.mrb[0].mxu0 %v3748
        %v4970 = vpop.f32.mrb[0].mxu0
        %v4971 = vadd.f32 %v4810, %v4970
        %v4972 = vpop.f32.mrb[0].mxu0
        %v4973 = vpop.f32.mrb[0].mxu0
        %v4974 = vadd.f32 %v4813, %v4973
        %v4975 = vpop.f32.mrb[0].mxu0
        %4976 = vmatprep.mubr.bf16.mxu0 %v3758
        %4977 = vmatmul.mubr.bf16.gmra.mrb[0].mxu0 %v3757
        %v4978 = vpop.f32.mrb[0].mxu0
        %v4979 = vadd.f32 %v4818, %v4978
        %v4980 = vpop.f32.mrb[0].mxu0
        %v4981 = vpop.f32.mrb[0].mxu0
        %v4982 = vadd.f32 %v4821, %v4981
        %v4983 = vpop.f32.mrb[0].mxu0
        %4984 = vmatprep.mubr.bf16.mxu0 %v3767
        %4985 = vmatmul.mubr.bf16.gmra.mrb[0].mxu0 %v3766
        %v4986 = vpop.f32.mrb[0].mxu0
        %v4987 = vadd.f32 %v4826, %v4986
        %v4988 = vpop.f32.mrb[0].mxu0
        %v4989 = vpop.f32.mrb[0].mxu0
        %v4990 = vadd.f32 %v4829, %v4989
        %v4991 = vpop.f32.mrb[0].mxu0
        %4992 = vmatprep.mubr.bf16.mxu0 %v3776
        %4993 = vmatmul.mubr.bf16.gmra.mrb[0].mxu0 %v3775
        %v4994 = vpop.f32.mrb[0].mxu0
        %v4995 = vadd.f32 %v4834, %v4994
        %v4996 = vpop.f32.mrb[0].mxu0
        %v4997 = vpop.f32.mrb[0].mxu0
        %v4998 = vadd.f32 %v4837, %v4997
        %v4999 = vpop.f32.mrb[0].mxu0
        %5000 = vmatprep.mubr.bf16.mxu0 %v3785
        %5001 = vmatmul.mubr.bf16.gmra.mrb[0].mxu0 %v3784
        %v5002 = vpop.f32.mrb[0].mxu0
        %v5003 = vadd.f32 %v4842, %v5002
        %v5004 = vpop.f32.mrb[0].mxu0
        %v5005 = vpop.f32.mrb[0].mxu0
        %v5006 = vadd.f32 %v4845, %v5005
        %v5007 = vpop.f32.mrb[0].mxu0
        %5008 = vmatprep.mubr.bf16.mxu0 %v3794
        %5009 = vmatmul.mubr.bf16.gmra.mrb[0].mxu0 %v3793
        %v5010 = vpop.f32.mrb[0].mxu0
        %v5011 = vadd.f32 %v4850, %v5010
        %v5012 = vpop.f32.mrb[0].mxu0
        %v5013 = vpop.f32.mrb[0].mxu0
        %v5014 = vadd.f32 %v4853, %v5013
        %v5015 = vpop.f32.mrb[0].mxu0
        %5016 = vmatprep.mubr.bf16.mxu0 %v3803
        %5017 = vmatmul.mubr.bf16.gmra.mrb[0].mxu0 %v3802
        %v5018 = vpop.f32.mrb[0].mxu0
        %v5019 = vadd.f32 %v4858, %v5018
        %v5020 = vpop.f32.mrb[0].mxu0
        %v5021 = vpop.f32.mrb[0].mxu0
        %v5022 = vadd.f32 %v4861, %v5021
        %v5023 = vpop.f32.mrb[0].mxu0
        %5024 = vdwg.mxu0
        %5025 = vmatprep.subr.bf16.mxu0 0
        %5026 = vmatpush1.bf16.msra.mxu0 %v4301
        %5027 = vmatprep.subr.bf16.mxu0 0
        %5028 = vmatpush1.bf16.msra.mxu0 %v4302
        %5029 = vmatprep.subr.bf16.mxu0 0
        %5030 = vmatpush1.bf16.msra.mxu0 %v4303
        %5031 = vmatprep.subr.bf16.mxu0 0
        %5032 = vmatpush1.bf16.msra.mxu0 %v4304
        %5033 = vmatprep.subr.bf16.mxu0 0
        %5034 = vmatpush1.bf16.msra.mxu0 %v4305
        %5035 = vmatprep.subr.bf16.mxu0 0
        %5036 = vmatpush1.bf16.msra.mxu0 %v4306
        %5037 = vmatprep.subr.bf16.mxu0 0
        %5038 = vmatpush1.bf16.msra.mxu0 %v4307
        %5039 = vmatprep.subr.bf16.mxu0 0
        %5040 = vmatpush1.bf16.msra.mxu0 %v4308
        %5041 = vmatprep.subr.bf16.mxu0 0
        %5042 = vmatpush1.bf16.msra.mxu0 0
        %5043 = vmatprep.subr.bf16.mxu0 0
        %5044 = vmatpush1.bf16.msra.mxu0 0
        %5045 = vmatprep.subr.bf16.mxu0 0
        %5046 = vmatpush1.bf16.msra.mxu0 0
        %5047 = vmatprep.subr.bf16.mxu0 0
        %5048 = vmatpush1.bf16.msra.mxu0 0
        %5049 = vmatprep.subr.bf16.mxu0 0
        %5050 = vmatpush1.bf16.msra.mxu0 0
        %5051 = vmatprep.subr.bf16.mxu0 0
        %5052 = vmatpush1.bf16.msra.mxu0 0
        %5053 = vmatprep.subr.bf16.mxu0 0
        %5054 = vmatpush1.bf16.msra.mxu0 0
        %5055 = vmatprep.subr.bf16.mxu0 0
        %5056 = vmatpush1.bf16.msra.mxu0 0
        %5057 = vmatprep.mubr.bf16.mxu0 0
        %5058 = vmatmul.mubr.bf16.gmra.mrb[0].mxu0 %v3669
        %v5059 = vpop.f32.mrb[0].mxu0
        %v5060 = vadd.f32 %v4899, %v5059
        %v5061 = vpop.f32.mrb[0].mxu0
        %v5062 = vpop.f32.mrb[0].mxu0
        %v5063 = vadd.f32 %v4902, %v5062
        %v5064 = vpop.f32.mrb[0].mxu0
        %5065 = vmatprep.mubr.bf16.mxu0 0
        %5066 = vmatmul.mubr.bf16.gmra.mrb[0].mxu0 %v3678
        %v5067 = vpop.f32.mrb[0].mxu0
        %v5068 = vadd.f32 %v4907, %v5067
        %v5069 = vpop.f32.mrb[0].mxu0
        %v5070 = vpop.f32.mrb[0].mxu0
        %v5071 = vadd.f32 %v4910, %v5070
        %v5072 = vpop.f32.mrb[0].mxu0
        %5073 = vmatprep.mubr.bf16.mxu0 0
        %5074 = vmatmul.mubr.bf16.gmra.mrb[0].mxu0 %v3687
        %v5075 = vpop.f32.mrb[0].mxu0
        %v5076 = vadd.f32 %v4915, %v5075
        %v5077 = vpop.f32.mrb[0].mxu0
        %v5078 = vpop.f32.mrb[0].mxu0
        %v5079 = vadd.f32 %v4918, %v5078
        %v5080 = vpop.f32.mrb[0].mxu0
        %5081 = vmatprep.mubr.bf16.mxu0 0
        %5082 = vmatmul.mubr.bf16.gmra.mrb[0].mxu0 %v3696
        %v5083 = vpop.f32.mrb[0].mxu0
        %v5084 = vadd.f32 %v4923, %v5083
        %v5085 = vpop.f32.mrb[0].mxu0
        %v5086 = vpop.f32.mrb[0].mxu0
        %v5087 = vadd.f32 %v4926, %v5086
        %v5088 = vpop.f32.mrb[0].mxu0
        %5089 = vmatprep.mubr.bf16.mxu0 0
        %5090 = vmatmul.mubr.bf16.gmra.mrb[0].mxu0 %v3705
        %v5091 = vpop.f32.mrb[0].mxu0
        %v5092 = vadd.f32 %v4931, %v5091
        %v5093 = vpop.f32.mrb[0].mxu0
        %v5094 = vpop.f32.mrb[0].mxu0
        %v5095 = vadd.f32 %v4934, %v5094
        %v5096 = vpop.f32.mrb[0].mxu0
        %5097 = vmatprep.mubr.bf16.mxu0 0
        %5098 = vmatmul.mubr.bf16.gmra.mrb[0].mxu0 %v3714
        %v5099 = vpop.f32.mrb[0].mxu0
        %v5100 = vadd.f32 %v4939, %v5099
        %v5101 = vpop.f32.mrb[0].mxu0
        %v5102 = vpop.f32.mrb[0].mxu0
        %v5103 = vadd.f32 %v4942, %v5102
        %v5104 = vpop.f32.mrb[0].mxu0
        %5105 = vmatprep.mubr.bf16.mxu0 0
        %5106 = vmatmul.mubr.bf16.gmra.mrb[0].mxu0 %v3723
        %v5107 = vpop.f32.mrb[0].mxu0
        %v5108 = vadd.f32 %v4947, %v5107
        %v5109 = vpop.f32.mrb[0].mxu0
        %v5110 = vpop.f32.mrb[0].mxu0
        %v5111 = vadd.f32 %v4950, %v5110
        %v5112 = vpop.f32.mrb[0].mxu0
        %5113 = vmatprep.mubr.bf16.mxu0 0
        %5114 = vmatmul.mubr.bf16.gmra.mrb[0].mxu0 %v3732
        %v5115 = vpop.f32.mrb[0].mxu0
        %v5116 = vadd.f32 %v4955, %v5115
        %v5117 = vpop.f32.mrb[0].mxu0
        %v5118 = vpop.f32.mrb[0].mxu0
        %v5119 = vadd.f32 %v4958, %v5118
        %v5120 = vpop.f32.mrb[0].mxu0
        %5121 = vmatprep.mubr.bf16.mxu0 0
        %5122 = vmatmul.mubr.bf16.gmra.mrb[0].mxu0 %v3741
        %v5123 = vpop.f32.mrb[0].mxu0
        %v5124 = vadd.f32 %v4963, %v5123
        %v5125 = vpop.f32.mrb[0].mxu0
        %v5126 = vpop.f32.mrb[0].mxu0
        %v5127 = vadd.f32 %v4966, %v5126
        %v5128 = vpop.f32.mrb[0].mxu0
        %5129 = vmatprep.mubr.bf16.mxu0 0
        %5130 = vmatmul.mubr.bf16.gmra.mrb[0].mxu0 %v3750
        %v5131 = vpop.f32.mrb[0].mxu0
        %v5132 = vadd.f32 %v4971, %v5131
        %v5133 = vpop.f32.mrb[0].mxu0
        %v5134 = vpop.f32.mrb[0].mxu0
        %v5135 = vadd.f32 %v4974, %v5134
        %v5136 = vpop.f32.mrb[0].mxu0
        %5137 = vmatprep.mubr.bf16.mxu0 0
        %5138 = vmatmul.mubr.bf16.gmra.mrb[0].mxu0 %v3759
        %v5139 = vpop.f32.mrb[0].mxu0
        %v5140 = vadd.f32 %v4979, %v5139
        %v5141 = vpop.f32.mrb[0].mxu0
        %v5142 = vpop.f32.mrb[0].mxu0
        %v5143 = vadd.f32 %v4982, %v5142
        %v5144 = vpop.f32.mrb[0].mxu0
        %5145 = vmatprep.mubr.bf16.mxu0 0
        %5146 = vmatmul.mubr.bf16.gmra.mrb[0].mxu0 %v3768
        %v5147 = vpop.f32.mrb[0].mxu0
        %v5148 = vadd.f32 %v4987, %v5147
        %v5149 = vpop.f32.mrb[0].mxu0
        %v5150 = vpop.f32.mrb[0].mxu0
        %v5151 = vadd.f32 %v4990, %v5150
        %v5152 = vpop.f32.mrb[0].mxu0
        %5153 = vmatprep.mubr.bf16.mxu0 0
        %5154 = vmatmul.mubr.bf16.gmra.mrb[0].mxu0 %v3777
        %v5155 = vpop.f32.mrb[0].mxu0
        %v5156 = vadd.f32 %v4995, %v5155
        %v5157 = vpop.f32.mrb[0].mxu0
        %v5158 = vpop.f32.mrb[0].mxu0
        %v5159 = vadd.f32 %v4998, %v5158
        %v5160 = vpop.f32.mrb[0].mxu0
        %5161 = vmatprep.mubr.bf16.mxu0 0
        %5162 = vmatmul.mubr.bf16.gmra.mrb[0].mxu0 %v3786
        %v5163 = vpop.f32.mrb[0].mxu0
        %v5164 = vadd.f32 %v5003, %v5163
        %v5165 = vpop.f32.mrb[0].mxu0
        %v5166 = vpop.f32.mrb[0].mxu0
        %v5167 = vadd.f32 %v5006, %v5166
        %v5168 = vpop.f32.mrb[0].mxu0
        %5169 = vmatprep.mubr.bf16.mxu0 0
        %5170 = vmatmul.mubr.bf16.gmra.mrb[0].mxu0 %v3795
        %v5171 = vpop.f32.mrb[0].mxu0
        %v5172 = vadd.f32 %v5011, %v5171
        %v5173 = vpop.f32.mrb[0].mxu0
        %v5174 = vpop.f32.mrb[0].mxu0
        %v5175 = vadd.f32 %v5014, %v5174
        %v5176 = vpop.f32.mrb[0].mxu0
        %5177 = vmatprep.mubr.bf16.mxu0 0
        %5178 = vmatmul.mubr.bf16.gmra.mrb[0].mxu0 %v3804
        %v5179 = vpop.f32.mrb[0].mxu0
        %v5180 = vadd.f32 %v5019, %v5179
        %v5181 = vpop.f32.mrb[0].mxu0
        %v5182 = vpop.f32.mrb[0].mxu0
        %v5183 = vadd.f32 %v5022, %v5182
        %v5184 = vpop.f32.mrb[0].mxu0
        %5185 = vdwg.mxu0
        %v5186 = vld [vmem:[%s3] sm:$0x1]
        %v5188 = vlaneseq
        %v5189 = vshrl.u32 %v5188, 7
        %v5190 = vsub.s32 0, %v5189
        %v5191 = vrot.slane %v5186, %v5190
        %v5193 = vmul.f32 %v5060, %v5191
        %v5194 = vmul.f32 %v5063, %v5191
        %v5195 = vmul.f32 %v5068, %v5191
        %v5196 = vmul.f32 %v5071, %v5191
        %v5197 = vmul.f32 %v5076, %v5191
        %v5198 = vmul.f32 %v5079, %v5191
        %v5199 = vmul.f32 %v5084, %v5191
        %v5200 = vmul.f32 %v5087, %v5191
        %v5201 = vmul.f32 %v5092, %v5191
        %v5202 = vmul.f32 %v5095, %v5191
        %v5203 = vmul.f32 %v5100, %v5191
        %v5204 = vmul.f32 %v5103, %v5191
        %v5205 = vmul.f32 %v5108, %v5191
        %v5206 = vmul.f32 %v5111, %v5191
        %v5207 = vmul.f32 %v5116, %v5191
        %v5208 = vmul.f32 %v5119, %v5191
        %v5209 = vmul.f32 %v5124, %v5191
        %v5210 = vmul.f32 %v5127, %v5191
        %v5211 = vmul.f32 %v5132, %v5191
        %v5212 = vmul.f32 %v5135, %v5191
        %v5213 = vmul.f32 %v5140, %v5191
        %v5214 = vmul.f32 %v5143, %v5191
        %v5215 = vmul.f32 %v5148, %v5191
        %v5216 = vmul.f32 %v5151, %v5191
        %v5217 = vmul.f32 %v5156, %v5191
        %v5218 = vmul.f32 %v5159, %v5191
        %v5219 = vmul.f32 %v5164, %v5191
        %v5220 = vmul.f32 %v5167, %v5191
        %v5221 = vmul.f32 %v5172, %v5191
        %v5222 = vmul.f32 %v5175, %v5191
        %v5223 = vmul.f32 %v5180, %v5191
        %v5224 = vmul.f32 %v5183, %v5191
        %v5225 = vld [vmem:[%s4] sm:$0x1]
        %v5227 = vlaneseq
        %v5228 = vshrl.u32 %v5227, 7
        %v5229 = vsub.s32 0, %v5228
        %v5230 = vrot.slane %v5225, %v5229
        %v5232 = vadd.f32 %v5193, %v5230
        %v5233 = vadd.f32 %v5194, %v5230
        %v5234 = vadd.f32 %v5195, %v5230
        %v5235 = vadd.f32 %v5196, %v5230
        %v5236 = vadd.f32 %v5197, %v5230
        %v5237 = vadd.f32 %v5198, %v5230
        %v5238 = vadd.f32 %v5199, %v5230
        %v5239 = vadd.f32 %v5200, %v5230
        %v5240 = vadd.f32 %v5201, %v5230
        %v5241 = vadd.f32 %v5202, %v5230
        %v5242 = vadd.f32 %v5203, %v5230
        %v5243 = vadd.f32 %v5204, %v5230
        %v5244 = vadd.f32 %v5205, %v5230
        %v5245 = vadd.f32 %v5206, %v5230
        %v5246 = vadd.f32 %v5207, %v5230
        %v5247 = vadd.f32 %v5208, %v5230
        %v5248 = vadd.f32 %v5209, %v5230
        %v5249 = vadd.f32 %v5210, %v5230
        %v5250 = vadd.f32 %v5211, %v5230
        %v5251 = vadd.f32 %v5212, %v5230
        %v5252 = vadd.f32 %v5213, %v5230
        %v5253 = vadd.f32 %v5214, %v5230
        %v5254 = vadd.f32 %v5215, %v5230
        %v5255 = vadd.f32 %v5216, %v5230
        %v5256 = vadd.f32 %v5217, %v5230
        %v5257 = vadd.f32 %v5218, %v5230
        %v5258 = vadd.f32 %v5219, %v5230
        %v5259 = vadd.f32 %v5220, %v5230
        %v5260 = vadd.f32 %v5221, %v5230
        %v5261 = vadd.f32 %v5222, %v5230
        %v5262 = vadd.f32 %v5223, %v5230
        %v5263 = vadd.f32 %v5224, %v5230
        %v5264 = vmax.f32 %v5232, 0.0
        %v5265 = vmax.f32 %v5233, 0.0
        %v5266 = vmax.f32 %v5234, 0.0
        %v5267 = vmax.f32 %v5235, 0.0
        %v5268 = vmax.f32 %v5236, 0.0
        %v5269 = vmax.f32 %v5237, 0.0
        %v5270 = vmax.f32 %v5238, 0.0
        %v5271 = vmax.f32 %v5239, 0.0
        %v5272 = vmax.f32 %v5240, 0.0
        %v5273 = vmax.f32 %v5241, 0.0
        %v5274 = vmax.f32 %v5242, 0.0
        %v5275 = vmax.f32 %v5243, 0.0
        %v5276 = vmax.f32 %v5244, 0.0
        %v5277 = vmax.f32 %v5245, 0.0
        %v5278 = vmax.f32 %v5246, 0.0
        %v5279 = vmax.f32 %v5247, 0.0
        %v5280 = vmax.f32 %v5248, 0.0
        %v5281 = vmax.f32 %v5249, 0.0
        %v5282 = vmax.f32 %v5250, 0.0
        %v5283 = vmax.f32 %v5251, 0.0
        %v5284 = vmax.f32 %v5252, 0.0
        %v5285 = vmax.f32 %v5253, 0.0
        %v5286 = vmax.f32 %v5254, 0.0
        %v5287 = vmax.f32 %v5255, 0.0
        %v5288 = vmax.f32 %v5256, 0.0
        %v5289 = vmax.f32 %v5257, 0.0
        %v5290 = vmax.f32 %v5258, 0.0
        %v5291 = vmax.f32 %v5259, 0.0
        %v5292 = vmax.f32 %v5260, 0.0
        %v5293 = vmax.f32 %v5261, 0.0
        %v5294 = vmax.f32 %v5262, 0.0
        %v5295 = vmax.f32 %v5263, 0.0
        %5296 = vst [vmem:[#allocation3] sm:$0xf] 0
        %5297 = vst [vmem:[#allocation3 + $0x4] sm:$0xf] 0
        %5298 = vst [vmem:[#allocation3 + $0x8] sm:$0x1] 0
        %5299 = vst [vmem:[#allocation3 + $0xc] sm:$0xf] 0
        %5300 = vst [vmem:[#allocation3 + $0x10] sm:$0xf] 0
        %5301 = vst [vmem:[#allocation3 + $0x14] sm:$0x1] 0
        %5302 = vst [vmem:[#allocation3 + $0x18] sm:$0xf] 0
        %5303 = vst [vmem:[#allocation3 + $0x1c] sm:$0xf] 0
        %5304 = vst [vmem:[#allocation3 + $0x20] sm:$0x1] 0
        %5305 = vst [vmem:[#allocation3 + $0x24] sm:$0xf] 0
        %5306 = vst [vmem:[#allocation3 + $0x28] sm:$0xf] 0
        %5307 = vst [vmem:[#allocation3 + $0x2c] sm:$0x1] 0
        %5308 = vst [vmem:[#allocation3 + $0x30] sm:$0xf] 0
        %5309 = vst [vmem:[#allocation3 + $0x34] sm:$0xf] 0
        %5310 = vst [vmem:[#allocation3 + $0x38] sm:$0x1] 0
        %5311 = vst [vmem:[#allocation3 + $0x3c] sm:$0xf] 0
        %5312 = vst [vmem:[#allocation3 + $0x40] sm:$0xf] 0
        %5313 = vst [vmem:[#allocation3 + $0x44] sm:$0x1] 0
        %5314 = vst [vmem:[#allocation3 + $0x48] sm:$0xf] 0
        %5315 = vst [vmem:[#allocation3 + $0x4c] sm:$0xf] 0
        %5316 = vst [vmem:[#allocation3 + $0x50] sm:$0x1] 0
        %5317 = vst [vmem:[#allocation3 + $0x54] sm:$0xf] 0
        %5318 = vst [vmem:[#allocation3 + $0x58] sm:$0xf] 0
        %5319 = vst [vmem:[#allocation3 + $0x5c] sm:$0x1] 0
        %5320 = vst [vmem:[#allocation3 + $0x60] sm:$0xf] 0
        %5321 = vst [vmem:[#allocation3 + $0x64] sm:$0xf] 0
        %5322 = vst [vmem:[#allocation3 + $0x68] sm:$0x1] 0
        %5323 = vst [vmem:[#allocation3 + $0x6c] sm:$0xf] 0
        %5324 = vst [vmem:[#allocation3 + $0x70] sm:$0xf] 0
        %5325 = vst [vmem:[#allocation3 + $0x74] sm:$0x1] 0
        %5326 = vst [vmem:[#allocation3 + $0x78] sm:$0xf] 0
        %5327 = vst [vmem:[#allocation3 + $0x7c] sm:$0xf] 0
        %5328 = vst [vmem:[#allocation3 + $0x80] sm:$0x1] 0
        %5329 = vst [vmem:[#allocation3 + $0x84] sm:$0xf] 0
        %5330 = vst [vmem:[#allocation3 + $0x88] sm:$0xf] 0
        %5331 = vst [vmem:[#allocation3 + $0x8c] sm:$0x1] 0
        %5332 = vst [vmem:[#allocation3 + $0x90] sm:$0xf] 0
        %5333 = vst [vmem:[#allocation3 + $0x94] sm:$0xf] 0
        %5334 = vst [vmem:[#allocation3 + $0x98] sm:$0x1] 0
        %5335 = vst [vmem:[#allocation3 + $0x9c] sm:$0xf] 0
        %5336 = vst [vmem:[#allocation3 + $0xa0] sm:$0xf] 0
        %5337 = vst [vmem:[#allocation3 + $0xa4] sm:$0x1] 0
        %5338 = vst [vmem:[#allocation3 + $0xa8] sm:$0xf] 0
        %5339 = vst [vmem:[#allocation3 + $0xac] sm:$0xf] 0
        %5340 = vst [vmem:[#allocation3 + $0xb0] sm:$0x1] 0
        %5341 = vst [vmem:[#allocation3 + $0xb4] sm:$0xf] 0
        %5342 = vst [vmem:[#allocation3 + $0xb8] sm:$0xf] 0
        %5343 = vst [vmem:[#allocation3 + $0xbc] sm:$0x1] 0
        %5344 = vst [vmem:[#allocation3 + $0xc0] sm:$0xf] 0
        %5345 = vst [vmem:[#allocation3 + $0xc4] sm:$0xf] 0
        %5346 = vst [vmem:[#allocation3 + $0xc8] sm:$0x1] 0
        %5347 = vst [vmem:[#allocation3 + $0xcc] sm:$0xf] 0
        %5348 = vst [vmem:[#allocation3 + $0xd0] sm:$0xf] 0
        %5349 = vst [vmem:[#allocation3 + $0xd4] sm:$0x1] 0
        %v5350 = vpack.c.bf16 %v5265, %v5264
        %v5351 = vpack.c.bf16 %v5267, %v5266
        %v5352 = vpack.c.bf16 %v5269, %v5268
        %v5353 = vpack.c.bf16 %v5271, %v5270
        %v5354 = vpack.c.bf16 %v5273, %v5272
        %v5355 = vpack.c.bf16 %v5275, %v5274
        %v5356 = vpack.c.bf16 %v5277, %v5276
        %v5357 = vpack.c.bf16 %v5279, %v5278
        %v5358 = vpack.c.bf16 %v5281, %v5280
        %v5359 = vpack.c.bf16 %v5283, %v5282
        %v5360 = vpack.c.bf16 %v5285, %v5284
        %v5361 = vpack.c.bf16 %v5287, %v5286
        %v5362 = vpack.c.bf16 %v5289, %v5288
        %v5363 = vpack.c.bf16 %v5291, %v5290
        %v5364 = vpack.c.bf16 %v5293, %v5292
        %v5365 = vpack.c.bf16 %v5295, %v5294
        %v5382 = vunpack.c.l.b16 %v5350
        %v5383 = vunpack.c.h.b16 %v5350
        %v5384 = vunpack.c.l.b16 %v5351
        %v5385 = vunpack.c.h.b16 %v5351
        %v5386 = vunpack.c.l.b16 %v5352
        %v5387 = vunpack.c.h.b16 %v5352
        %v5388 = vunpack.c.l.b16 %v5353
        %v5389 = vunpack.c.h.b16 %v5353
        %v5390 = vunpack.c.l.b16 %v5354
        %v5391 = vunpack.c.h.b16 %v5354
        %v5392 = vunpack.c.l.b16 %v5355
        %v5393 = vunpack.c.h.b16 %v5355
        %v5394 = vunpack.c.l.b16 %v5356
        %v5395 = vunpack.c.h.b16 %v5356
        %v5396 = vunpack.c.l.b16 %v5357
        %v5397 = vunpack.c.h.b16 %v5357
        %v5398 = vunpack.c.l.b16 %v5358
        %v5399 = vunpack.c.h.b16 %v5358
        %v5400 = vunpack.c.l.b16 %v5359
        %v5401 = vunpack.c.h.b16 %v5359
        %v5402 = vunpack.c.l.b16 %v5360
        %v5403 = vunpack.c.h.b16 %v5360
        %v5404 = vunpack.c.l.b16 %v5361
        %v5405 = vunpack.c.h.b16 %v5361
        %v5406 = vunpack.c.l.b16 %v5362
        %v5407 = vunpack.c.h.b16 %v5362
        %v5408 = vunpack.c.l.b16 %v5363
        %v5409 = vunpack.c.h.b16 %v5363
        %v5410 = vunpack.c.l.b16 %v5364
        %v5411 = vunpack.c.h.b16 %v5364
        %v5412 = vunpack.c.l.b16 %v5365
        %v5413 = vunpack.c.h.b16 %v5365
        %v5414 = vpack.c.b16 %v5382, %v5382
        %v5415 = vpack.c.b16 %v5383, %v5383
        %v5416 = vpack.c.b16 %v5384, %v5384
        %v5417 = vpack.c.b16 %v5385, %v5385
        %v5418 = vpack.c.b16 %v5386, %v5386
        %v5419 = vpack.c.b16 %v5387, %v5387
        %v5420 = vpack.c.b16 %v5388, %v5388
        %v5421 = vpack.c.b16 %v5389, %v5389
        %v5422 = vpack.c.b16 %v5390, %v5390
        %v5423 = vpack.c.b16 %v5391, %v5391
        %v5424 = vpack.c.b16 %v5392, %v5392
        %v5425 = vpack.c.b16 %v5393, %v5393
        %v5426 = vpack.c.b16 %v5394, %v5394
        %v5427 = vpack.c.b16 %v5395, %v5395
        %v5428 = vpack.c.b16 %v5396, %v5396
        %v5429 = vpack.c.b16 %v5397, %v5397
        %v5430 = vpack.c.b16 %v5398, %v5398
        %v5431 = vpack.c.b16 %v5399, %v5399
        %v5432 = vpack.c.b16 %v5400, %v5400
        %v5433 = vpack.c.b16 %v5401, %v5401
        %v5434 = vpack.c.b16 %v5402, %v5402
        %v5435 = vpack.c.b16 %v5403, %v5403
        %v5436 = vpack.c.b16 %v5404, %v5404
        %v5437 = vpack.c.b16 %v5405, %v5405
        %v5438 = vpack.c.b16 %v5406, %v5406
        %v5439 = vpack.c.b16 %v5407, %v5407
        %v5440 = vpack.c.b16 %v5408, %v5408
        %v5441 = vpack.c.b16 %v5409, %v5409
        %v5442 = vpack.c.b16 %v5410, %v5410
        %v5443 = vpack.c.b16 %v5411, %v5411
        %v5444 = vpack.c.b16 %v5412, %v5412
        %v5445 = vpack.c.b16 %v5413, %v5413
        %v5447 = vshrl.u32 %v5414, 16
        %v5449 = vrot.slane %v5447, 7
        %v5450 = vshll.u32 %v5414, 16
        %v5452 = vor.u32 %v5449, %v5450
        %v5453 = vrot.slane %v5449, 4
        %v5455 = vshrl.u32 %v5415, 16
        %v5457 = vrot.slane %v5455, 7
        %v5458 = vshll.u32 %v5415, 16
        %v5460 = vor.u32 %v5457, %v5458
        %v5461 = vsel %vm383, %v5453, %v5460
        %v5462 = vrot.slane %v5457, 4
        %v5464 = vshrl.u32 %v5416, 16
        %v5466 = vrot.slane %v5464, 7
        %v5467 = vshll.u32 %v5416, 16
        %v5469 = vor.u32 %v5466, %v5467
        %v5470 = vrot.slane %v5466, 4
        %v5472 = vshrl.u32 %v5417, 16
        %v5474 = vrot.slane %v5472, 7
        %v5475 = vshll.u32 %v5417, 16
        %v5477 = vor.u32 %v5474, %v5475
        %v5478 = vsel %vm383, %v5470, %v5477
        %v5479 = vrot.slane %v5474, 4
        %v5481 = vshrl.u32 %v5418, 16
        %v5483 = vrot.slane %v5481, 7
        %v5484 = vshll.u32 %v5418, 16
        %v5486 = vor.u32 %v5483, %v5484
        %v5487 = vrot.slane %v5483, 4
        %v5489 = vshrl.u32 %v5419, 16
        %v5491 = vrot.slane %v5489, 7
        %v5492 = vshll.u32 %v5419, 16
        %v5494 = vor.u32 %v5491, %v5492
        %v5495 = vsel %vm383, %v5487, %v5494
        %v5496 = vrot.slane %v5491, 4
        %v5498 = vshrl.u32 %v5420, 16
        %v5500 = vrot.slane %v5498, 7
        %v5501 = vshll.u32 %v5420, 16
        %v5503 = vor.u32 %v5500, %v5501
        %v5504 = vrot.slane %v5500, 4
        %v5506 = vshrl.u32 %v5421, 16
        %v5508 = vrot.slane %v5506, 7
        %v5509 = vshll.u32 %v5421, 16
        %v5511 = vor.u32 %v5508, %v5509
        %v5512 = vsel %vm383, %v5504, %v5511
        %v5513 = vrot.slane %v5508, 4
        %v5515 = vshrl.u32 %v5422, 16
        %v5517 = vrot.slane %v5515, 7
        %v5518 = vshll.u32 %v5422, 16
        %v5520 = vor.u32 %v5517, %v5518
        %v5521 = vrot.slane %v5517, 4
        %v5523 = vshrl.u32 %v5423, 16
        %v5525 = vrot.slane %v5523, 7
        %v5526 = vshll.u32 %v5423, 16
        %v5528 = vor.u32 %v5525, %v5526
        %v5529 = vsel %vm383, %v5521, %v5528
        %v5530 = vrot.slane %v5525, 4
        %v5532 = vshrl.u32 %v5424, 16
        %v5534 = vrot.slane %v5532, 7
        %v5535 = vshll.u32 %v5424, 16
        %v5537 = vor.u32 %v5534, %v5535
        %v5538 = vrot.slane %v5534, 4
        %v5540 = vshrl.u32 %v5425, 16
        %v5542 = vrot.slane %v5540, 7
        %v5543 = vshll.u32 %v5425, 16
        %v5545 = vor.u32 %v5542, %v5543
        %v5546 = vsel %vm383, %v5538, %v5545
        %v5547 = vrot.slane %v5542, 4
        %v5549 = vshrl.u32 %v5426, 16
        %v5551 = vrot.slane %v5549, 7
        %v5552 = vshll.u32 %v5426, 16
        %v5554 = vor.u32 %v5551, %v5552
        %v5555 = vrot.slane %v5551, 4
        %v5557 = vshrl.u32 %v5427, 16
        %v5559 = vrot.slane %v5557, 7
        %v5560 = vshll.u32 %v5427, 16
        %v5562 = vor.u32 %v5559, %v5560
        %v5563 = vsel %vm383, %v5555, %v5562
        %v5564 = vrot.slane %v5559, 4
        %v5566 = vshrl.u32 %v5428, 16
        %v5568 = vrot.slane %v5566, 7
        %v5569 = vshll.u32 %v5428, 16
        %v5571 = vor.u32 %v5568, %v5569
        %v5572 = vrot.slane %v5568, 4
        %v5574 = vshrl.u32 %v5429, 16
        %v5576 = vrot.slane %v5574, 7
        %v5577 = vshll.u32 %v5429, 16
        %v5579 = vor.u32 %v5576, %v5577
        %v5580 = vsel %vm383, %v5572, %v5579
        %v5581 = vrot.slane %v5576, 4
        %v5583 = vshrl.u32 %v5430, 16
        %v5585 = vrot.slane %v5583, 7
        %v5586 = vshll.u32 %v5430, 16
        %v5588 = vor.u32 %v5585, %v5586
        %v5589 = vrot.slane %v5585, 4
        %v5591 = vshrl.u32 %v5431, 16
        %v5593 = vrot.slane %v5591, 7
        %v5594 = vshll.u32 %v5431, 16
        %v5596 = vor.u32 %v5593, %v5594
        %v5597 = vsel %vm383, %v5589, %v5596
        %v5598 = vrot.slane %v5593, 4
        %v5600 = vshrl.u32 %v5432, 16
        %v5602 = vrot.slane %v5600, 7
        %v5603 = vshll.u32 %v5432, 16
        %v5605 = vor.u32 %v5602, %v5603
        %v5606 = vrot.slane %v5602, 4
        %v5608 = vshrl.u32 %v5433, 16
        %v5610 = vrot.slane %v5608, 7
        %v5611 = vshll.u32 %v5433, 16
        %v5613 = vor.u32 %v5610, %v5611
        %v5614 = vsel %vm383, %v5606, %v5613
        %v5615 = vrot.slane %v5610, 4
        %v5617 = vshrl.u32 %v5434, 16
        %v5619 = vrot.slane %v5617, 7
        %v5620 = vshll.u32 %v5434, 16
        %v5622 = vor.u32 %v5619, %v5620
        %v5623 = vrot.slane %v5619, 4
        %v5625 = vshrl.u32 %v5435, 16
        %v5627 = vrot.slane %v5625, 7
        %v5628 = vshll.u32 %v5435, 16
        %v5630 = vor.u32 %v5627, %v5628
        %v5631 = vsel %vm383, %v5623, %v5630
        %v5632 = vrot.slane %v5627, 4
        %v5634 = vshrl.u32 %v5436, 16
        %v5636 = vrot.slane %v5634, 7
        %v5637 = vshll.u32 %v5436, 16
        %v5639 = vor.u32 %v5636, %v5637
        %v5640 = vrot.slane %v5636, 4
        %v5642 = vshrl.u32 %v5437, 16
        %v5644 = vrot.slane %v5642, 7
        %v5645 = vshll.u32 %v5437, 16
        %v5647 = vor.u32 %v5644, %v5645
        %v5648 = vsel %vm383, %v5640, %v5647
        %v5649 = vrot.slane %v5644, 4
        %v5651 = vshrl.u32 %v5438, 16
        %v5653 = vrot.slane %v5651, 7
        %v5654 = vshll.u32 %v5438, 16
        %v5656 = vor.u32 %v5653, %v5654
        %v5657 = vrot.slane %v5653, 4
        %v5659 = vshrl.u32 %v5439, 16
        %v5661 = vrot.slane %v5659, 7
        %v5662 = vshll.u32 %v5439, 16
        %v5664 = vor.u32 %v5661, %v5662
        %v5665 = vsel %vm383, %v5657, %v5664
        %v5666 = vrot.slane %v5661, 4
        %v5668 = vshrl.u32 %v5440, 16
        %v5670 = vrot.slane %v5668, 7
        %v5671 = vshll.u32 %v5440, 16
        %v5673 = vor.u32 %v5670, %v5671
        %v5674 = vrot.slane %v5670, 4
        %v5676 = vshrl.u32 %v5441, 16
        %v5678 = vrot.slane %v5676, 7
        %v5679 = vshll.u32 %v5441, 16
        %v5681 = vor.u32 %v5678, %v5679
        %v5682 = vsel %vm383, %v5674, %v5681
        %v5683 = vrot.slane %v5678, 4
        %v5685 = vshrl.u32 %v5442, 16
        %v5687 = vrot.slane %v5685, 7
        %v5688 = vshll.u32 %v5442, 16
        %v5690 = vor.u32 %v5687, %v5688
        %v5691 = vrot.slane %v5687, 4
        %v5693 = vshrl.u32 %v5443, 16
        %v5695 = vrot.slane %v5693, 7
        %v5696 = vshll.u32 %v5443, 16
        %v5698 = vor.u32 %v5695, %v5696
        %v5699 = vsel %vm383, %v5691, %v5698
        %v5700 = vrot.slane %v5695, 4
        %v5702 = vshrl.u32 %v5444, 16
        %v5704 = vrot.slane %v5702, 7
        %v5705 = vshll.u32 %v5444, 16
        %v5707 = vor.u32 %v5704, %v5705
        %v5708 = vrot.slane %v5704, 4
        %v5710 = vshrl.u32 %v5445, 16
        %v5712 = vrot.slane %v5710, 7
        %v5713 = vshll.u32 %v5445, 16
        %v5715 = vor.u32 %v5712, %v5713
        %v5716 = vsel %vm383, %v5708, %v5715
        %v5717 = vrot.slane %v5712, 4
        %s5766 = scalar_lea.vmem [#allocation3], 12
        %v5767 = vld [vmem:[%s5766] sm:$0xf]
        %v5768 = vsel %vm707, %v5452, %v5767
        %5769 = vst [vmem:[%s5766] sm:$0xf] %v5768
        %5770 = vst [vmem:[%s5766 + $0x4] sm:$0xf] %v5461
        %v5771 = vld [vmem:[%s5766 + $0x8] sm:$0x1]
        %v5772 = vsel %vm713, %v5462, %v5771
        %5773 = vst [vmem:[%s5766 + $0x8] sm:$0x1] %v5772
        %v5774 = vld [vmem:[%s5766 + $0xc] sm:$0xf]
        %v5775 = vsel %vm707, %v5469, %v5774
        %5776 = vst [vmem:[%s5766 + $0xc] sm:$0xf] %v5775
        %5777 = vst [vmem:[%s5766 + $0x10] sm:$0xf] %v5478
        %v5778 = vld [vmem:[%s5766 + $0x14] sm:$0x1]
        %v5779 = vsel %vm713, %v5479, %v5778
        %5780 = vst [vmem:[%s5766 + $0x14] sm:$0x1] %v5779
        %v5781 = vld [vmem:[%s5766 + $0x18] sm:$0xf]
        %v5782 = vsel %vm707, %v5486, %v5781
        %5783 = vst [vmem:[%s5766 + $0x18] sm:$0xf] %v5782
        %5784 = vst [vmem:[%s5766 + $0x1c] sm:$0xf] %v5495
        %v5785 = vld [vmem:[%s5766 + $0x20] sm:$0x1]
        %v5786 = vsel %vm713, %v5496, %v5785
        %5787 = vst [vmem:[%s5766 + $0x20] sm:$0x1] %v5786
        %v5788 = vld [vmem:[%s5766 + $0x24] sm:$0xf]
        %v5789 = vsel %vm707, %v5503, %v5788
        %5790 = vst [vmem:[%s5766 + $0x24] sm:$0xf] %v5789
        %5791 = vst [vmem:[%s5766 + $0x28] sm:$0xf] %v5512
        %v5792 = vld [vmem:[%s5766 + $0x2c] sm:$0x1]
        %v5793 = vsel %vm713, %v5513, %v5792
        %5794 = vst [vmem:[%s5766 + $0x2c] sm:$0x1] %v5793
        %v5795 = vld [vmem:[%s5766 + $0x30] sm:$0xf]
        %v5796 = vsel %vm707, %v5520, %v5795
        %5797 = vst [vmem:[%s5766 + $0x30] sm:$0xf] %v5796
        %5798 = vst [vmem:[%s5766 + $0x34] sm:$0xf] %v5529
        %v5799 = vld [vmem:[%s5766 + $0x38] sm:$0x1]
        %v5800 = vsel %vm713, %v5530, %v5799
        %5801 = vst [vmem:[%s5766 + $0x38] sm:$0x1] %v5800
        %v5802 = vld [vmem:[%s5766 + $0x3c] sm:$0xf]
        %v5803 = vsel %vm707, %v5537, %v5802
        %5804 = vst [vmem:[%s5766 + $0x3c] sm:$0xf] %v5803
        %5805 = vst [vmem:[%s5766 + $0x40] sm:$0xf] %v5546
        %v5806 = vld [vmem:[%s5766 + $0x44] sm:$0x1]
        %v5807 = vsel %vm713, %v5547, %v5806
        %5808 = vst [vmem:[%s5766 + $0x44] sm:$0x1] %v5807
        %v5809 = vld [vmem:[%s5766 + $0x48] sm:$0xf]
        %v5810 = vsel %vm707, %v5554, %v5809
        %5811 = vst [vmem:[%s5766 + $0x48] sm:$0xf] %v5810
        %5812 = vst [vmem:[%s5766 + $0x4c] sm:$0xf] %v5563
        %v5813 = vld [vmem:[%s5766 + $0x50] sm:$0x1]
        %v5814 = vsel %vm713, %v5564, %v5813
        %5815 = vst [vmem:[%s5766 + $0x50] sm:$0x1] %v5814
        %v5816 = vld [vmem:[%s5766 + $0x54] sm:$0xf]
        %v5817 = vsel %vm707, %v5571, %v5816
        %5818 = vst [vmem:[%s5766 + $0x54] sm:$0xf] %v5817
        %5819 = vst [vmem:[%s5766 + $0x58] sm:$0xf] %v5580
        %v5820 = vld [vmem:[%s5766 + $0x5c] sm:$0x1]
        %v5821 = vsel %vm713, %v5581, %v5820
        %5822 = vst [vmem:[%s5766 + $0x5c] sm:$0x1] %v5821
        %v5823 = vld [vmem:[%s5766 + $0x60] sm:$0xf]
        %v5824 = vsel %vm707, %v5588, %v5823
        %5825 = vst [vmem:[%s5766 + $0x60] sm:$0xf] %v5824
        %5826 = vst [vmem:[%s5766 + $0x64] sm:$0xf] %v5597
        %v5827 = vld [vmem:[%s5766 + $0x68] sm:$0x1]
        %v5828 = vsel %vm713, %v5598, %v5827
        %5829 = vst [vmem:[%s5766 + $0x68] sm:$0x1] %v5828
        %v5830 = vld [vmem:[%s5766 + $0x6c] sm:$0xf]
        %v5831 = vsel %vm707, %v5605, %v5830
        %5832 = vst [vmem:[%s5766 + $0x6c] sm:$0xf] %v5831
        %5833 = vst [vmem:[%s5766 + $0x70] sm:$0xf] %v5614
        %v5834 = vld [vmem:[%s5766 + $0x74] sm:$0x1]
        %v5835 = vsel %vm713, %v5615, %v5834
        %5836 = vst [vmem:[%s5766 + $0x74] sm:$0x1] %v5835
        %v5837 = vld [vmem:[%s5766 + $0x78] sm:$0xf]
        %v5838 = vsel %vm707, %v5622, %v5837
        %5839 = vst [vmem:[%s5766 + $0x78] sm:$0xf] %v5838
        %5840 = vst [vmem:[%s5766 + $0x7c] sm:$0xf] %v5631
        %v5841 = vld [vmem:[%s5766 + $0x80] sm:$0x1]
        %v5842 = vsel %vm713, %v5632, %v5841
        %5843 = vst [vmem:[%s5766 + $0x80] sm:$0x1] %v5842
        %v5844 = vld [vmem:[%s5766 + $0x84] sm:$0xf]
        %v5845 = vsel %vm707, %v5639, %v5844
        %5846 = vst [vmem:[%s5766 + $0x84] sm:$0xf] %v5845
        %5847 = vst [vmem:[%s5766 + $0x88] sm:$0xf] %v5648
        %v5848 = vld [vmem:[%s5766 + $0x8c] sm:$0x1]
        %v5849 = vsel %vm713, %v5649, %v5848
        %5850 = vst [vmem:[%s5766 + $0x8c] sm:$0x1] %v5849
        %v5851 = vld [vmem:[%s5766 + $0x90] sm:$0xf]
        %v5852 = vsel %vm707, %v5656, %v5851
        %5853 = vst [vmem:[%s5766 + $0x90] sm:$0xf] %v5852
        %5854 = vst [vmem:[%s5766 + $0x94] sm:$0xf] %v5665
        %v5855 = vld [vmem:[%s5766 + $0x98] sm:$0x1]
        %v5856 = vsel %vm713, %v5666, %v5855
        %5857 = vst [vmem:[%s5766 + $0x98] sm:$0x1] %v5856
        %v5858 = vld [vmem:[%s5766 + $0x9c] sm:$0xf]
        %v5859 = vsel %vm707, %v5673, %v5858
        %5860 = vst [vmem:[%s5766 + $0x9c] sm:$0xf] %v5859
        %5861 = vst [vmem:[%s5766 + $0xa0] sm:$0xf] %v5682
        %v5862 = vld [vmem:[%s5766 + $0xa4] sm:$0x1]
        %v5863 = vsel %vm713, %v5683, %v5862
        %5864 = vst [vmem:[%s5766 + $0xa4] sm:$0x1] %v5863
        %v5865 = vld [vmem:[%s5766 + $0xa8] sm:$0xf]
        %v5866 = vsel %vm707, %v5690, %v5865
        %5867 = vst [vmem:[%s5766 + $0xa8] sm:$0xf] %v5866
        %5868 = vst [vmem:[%s5766 + $0xac] sm:$0xf] %v5699
        %v5869 = vld [vmem:[%s5766 + $0xb0] sm:$0x1]
        %v5870 = vsel %vm713, %v5700, %v5869
        %5871 = vst [vmem:[%s5766 + $0xb0] sm:$0x1] %v5870
        %v5872 = vld [vmem:[%s5766 + $0xb4] sm:$0xf]
        %v5873 = vsel %vm707, %v5707, %v5872
        %5874 = vst [vmem:[%s5766 + $0xb4] sm:$0xf] %v5873
        %5875 = vst [vmem:[%s5766 + $0xb8] sm:$0xf] %v5716
        %v5876 = vld [vmem:[%s5766 + $0xbc] sm:$0x1]
        %v5877 = vsel %vm713, %v5717, %v5876
        %5878 = vst [vmem:[%s5766 + $0xbc] sm:$0x1] %v5877
        %v5879 = vld [vmem:[#allocation3] sm:$0xf]
        %v5880 = vld [vmem:[#allocation3 + $0x4] sm:$0xf]
        %v5881 = vld [vmem:[#allocation3 + $0xc] sm:$0xf]
        %v5882 = vld [vmem:[#allocation3 + $0x10] sm:$0xf]
        %v5883 = vld [vmem:[#allocation3 + $0x18] sm:$0xf]
        %v5884 = vld [vmem:[#allocation3 + $0x1c] sm:$0xf]
        %v5885 = vld [vmem:[#allocation3 + $0x24] sm:$0xf]
        %v5886 = vld [vmem:[#allocation3 + $0x28] sm:$0xf]
        %v5887 = vld [vmem:[#allocation3 + $0x30] sm:$0xf]
        %v5888 = vld [vmem:[#allocation3 + $0x34] sm:$0xf]
        %v5889 = vld [vmem:[#allocation3 + $0x3c] sm:$0xf]
        %v5890 = vld [vmem:[#allocation3 + $0x40] sm:$0xf]
        %v5891 = vld [vmem:[#allocation3 + $0x48] sm:$0xf]
        %v5892 = vld [vmem:[#allocation3 + $0x4c] sm:$0xf]
        %v5893 = vld [vmem:[#allocation3 + $0x54] sm:$0xf]
        %v5894 = vld [vmem:[#allocation3 + $0x58] sm:$0xf]
        %v5895 = vld [vmem:[#allocation3 + $0x60] sm:$0xf]
        %v5896 = vld [vmem:[#allocation3 + $0x64] sm:$0xf]
        %v5897 = vld [vmem:[#allocation3 + $0x6c] sm:$0xf]
        %v5898 = vld [vmem:[#allocation3 + $0x70] sm:$0xf]
        %v5899 = vld [vmem:[#allocation3 + $0x78] sm:$0xf]
        %v5900 = vld [vmem:[#allocation3 + $0x7c] sm:$0xf]
        %v5901 = vld [vmem:[#allocation3 + $0x84] sm:$0xf]
        %v5902 = vld [vmem:[#allocation3 + $0x88] sm:$0xf]
        %v5903 = vld [vmem:[#allocation3 + $0x90] sm:$0xf]
        %v5904 = vld [vmem:[#allocation3 + $0x94] sm:$0xf]
        %v5905 = vld [vmem:[#allocation3 + $0x9c] sm:$0xf]
        %v5906 = vld [vmem:[#allocation3 + $0xa0] sm:$0xf]
        %v5907 = vld [vmem:[#allocation3 + $0xa8] sm:$0xf]
        %v5908 = vld [vmem:[#allocation3 + $0xac] sm:$0xf]
        %v5909 = vld [vmem:[#allocation3 + $0xb4] sm:$0xf]
        %v5910 = vld [vmem:[#allocation3 + $0xb8] sm:$0xf]
        %v5943 = vunpack.c.l.b16 %v5879
        %v5944 = vunpack.c.l.b16 %v5880
        %v5945 = vunpack.c.l.b16 %v5881
        %v5946 = vunpack.c.l.b16 %v5882
        %v5947 = vunpack.c.l.b16 %v5883
        %v5948 = vunpack.c.l.b16 %v5884
        %v5949 = vunpack.c.l.b16 %v5885
        %v5950 = vunpack.c.l.b16 %v5886
        %v5951 = vunpack.c.l.b16 %v5887
        %v5952 = vunpack.c.l.b16 %v5888
        %v5953 = vunpack.c.l.b16 %v5889
        %v5954 = vunpack.c.l.b16 %v5890
        %v5955 = vunpack.c.l.b16 %v5891
        %v5956 = vunpack.c.l.b16 %v5892
        %v5957 = vunpack.c.l.b16 %v5893
        %v5958 = vunpack.c.l.b16 %v5894
        %v5959 = vunpack.c.l.b16 %v5895
        %v5960 = vunpack.c.l.b16 %v5896
        %v5961 = vunpack.c.l.b16 %v5897
        %v5962 = vunpack.c.l.b16 %v5898
        %v5963 = vunpack.c.l.b16 %v5899
        %v5964 = vunpack.c.l.b16 %v5900
        %v5965 = vunpack.c.l.b16 %v5901
        %v5966 = vunpack.c.l.b16 %v5902
        %v5967 = vunpack.c.l.b16 %v5903
        %v5968 = vunpack.c.l.b16 %v5904
        %v5969 = vunpack.c.l.b16 %v5905
        %v5970 = vunpack.c.l.b16 %v5906
        %v5971 = vunpack.c.l.b16 %v5907
        %v5972 = vunpack.c.l.b16 %v5908
        %v5973 = vunpack.c.l.b16 %v5909
        %v5974 = vunpack.c.l.b16 %v5910
        %v5975 = vpack.c.b16 %v5944, %v5943
        %v5976 = vpack.c.b16 %v5946, %v5945
        %v5977 = vpack.c.b16 %v5948, %v5947
        %v5978 = vpack.c.b16 %v5950, %v5949
        %v5979 = vpack.c.b16 %v5952, %v5951
        %v5980 = vpack.c.b16 %v5954, %v5953
        %v5981 = vpack.c.b16 %v5956, %v5955
        %v5982 = vpack.c.b16 %v5958, %v5957
        %v5983 = vpack.c.b16 %v5960, %v5959
        %v5984 = vpack.c.b16 %v5962, %v5961
        %v5985 = vpack.c.b16 %v5964, %v5963
        %v5986 = vpack.c.b16 %v5966, %v5965
        %v5987 = vpack.c.b16 %v5968, %v5967
        %v5988 = vpack.c.b16 %v5970, %v5969
        %v5989 = vpack.c.b16 %v5972, %v5971
        %v5990 = vpack.c.b16 %v5974, %v5973
        %6007 = vst [vmem:[#allocation5] sm:$0xff] %v5975
        %6008 = vst [vmem:[#allocation5 + $0x48] sm:$0xff] %v5976
        %6009 = vst [vmem:[#allocation5 + $0x90] sm:$0xff] %v5977
        %6010 = vst [vmem:[#allocation5 + $0xd8] sm:$0xff] %v5978
        %6011 = vst [vmem:[#allocation5 + $0x120] sm:$0xff] %v5979
        %6012 = vst [vmem:[#allocation5 + $0x168] sm:$0xff] %v5980
        %6013 = vst [vmem:[#allocation5 + $0x1b0] sm:$0xff] %v5981
        %6014 = vst [vmem:[#allocation5 + $0x1f8] sm:$0xff] %v5982
        %6015 = vst [vmem:[#allocation5 + $0x240] sm:$0xff] %v5983
        %6016 = vst [vmem:[#allocation5 + $0x288] sm:$0xff] %v5984
        %6017 = vst [vmem:[#allocation5 + $0x2d0] sm:$0xff] %v5985
        %6018 = vst [vmem:[#allocation5 + $0x318] sm:$0xff] %v5986
        %6019 = vst [vmem:[#allocation5 + $0x360] sm:$0xff] %v5987
        %6020 = vst [vmem:[#allocation5 + $0x3a8] sm:$0xff] %v5988
        %6021 = vst [vmem:[#allocation5 + $0x3f0] sm:$0xff] %v5989
        %6022 = vst [vmem:[#allocation5 + $0x438] sm:$0xff] %v5990
        %v6023 = vld [vmem:[#allocation3] sm:$0xf]
        %v6024 = vld [vmem:[#allocation3 + $0x4] sm:$0xf]
        %v6025 = vld [vmem:[#allocation3 + $0x8] sm:$0x1]
        %v6026 = vld [vmem:[#allocation3 + $0xc] sm:$0xf]
        %v6027 = vld [vmem:[#allocation3 + $0x10] sm:$0xf]
        %v6028 = vld [vmem:[#allocation3 + $0x14] sm:$0x1]
        %v6029 = vld [vmem:[#allocation3 + $0x18] sm:$0xf]
        %v6030 = vld [vmem:[#allocation3 + $0x1c] sm:$0xf]
        %v6031 = vld [vmem:[#allocation3 + $0x20] sm:$0x1]
        %v6032 = vld [vmem:[#allocation3 + $0x24] sm:$0xf]
        %v6033 = vld [vmem:[#allocation3 + $0x28] sm:$0xf]
        %v6034 = vld [vmem:[#allocation3 + $0x2c] sm:$0x1]
        %v6035 = vld [vmem:[#allocation3 + $0x30] sm:$0xf]
        %v6036 = vld [vmem:[#allocation3 + $0x34] sm:$0xf]
        %v6037 = vld [vmem:[#allocation3 + $0x38] sm:$0x1]
        %v6038 = vld [vmem:[#allocation3 + $0x3c] sm:$0xf]
        %v6039 = vld [vmem:[#allocation3 + $0x40] sm:$0xf]
        %v6040 = vld [vmem:[#allocation3 + $0x44] sm:$0x1]
        %v6041 = vld [vmem:[#allocation3 + $0x48] sm:$0xf]
        %v6042 = vld [vmem:[#allocation3 + $0x4c] sm:$0xf]
        %v6043 = vld [vmem:[#allocation3 + $0x50] sm:$0x1]
        %v6044 = vld [vmem:[#allocation3 + $0x54] sm:$0xf]
        %v6045 = vld [vmem:[#allocation3 + $0x58] sm:$0xf]
        %v6046 = vld [vmem:[#allocation3 + $0x5c] sm:$0x1]
        %v6047 = vld [vmem:[#allocation3 + $0x60] sm:$0xf]
        %v6048 = vld [vmem:[#allocation3 + $0x64] sm:$0xf]
        %v6049 = vld [vmem:[#allocation3 + $0x68] sm:$0x1]
        %v6050 = vld [vmem:[#allocation3 + $0x6c] sm:$0xf]
        %v6051 = vld [vmem:[#allocation3 + $0x70] sm:$0xf]
        %v6052 = vld [vmem:[#allocation3 + $0x74] sm:$0x1]
        %v6053 = vld [vmem:[#allocation3 + $0x78] sm:$0xf]
        %v6054 = vld [vmem:[#allocation3 + $0x7c] sm:$0xf]
        %v6055 = vld [vmem:[#allocation3 + $0x80] sm:$0x1]
        %v6056 = vld [vmem:[#allocation3 + $0x84] sm:$0xf]
        %v6057 = vld [vmem:[#allocation3 + $0x88] sm:$0xf]
        %v6058 = vld [vmem:[#allocation3 + $0x8c] sm:$0x1]
        %v6059 = vld [vmem:[#allocation3 + $0x90] sm:$0xf]
        %v6060 = vld [vmem:[#allocation3 + $0x94] sm:$0xf]
        %v6061 = vld [vmem:[#allocation3 + $0x98] sm:$0x1]
        %v6062 = vld [vmem:[#allocation3 + $0x9c] sm:$0xf]
        %v6063 = vld [vmem:[#allocation3 + $0xa0] sm:$0xf]
        %v6064 = vld [vmem:[#allocation3 + $0xa4] sm:$0x1]
        %v6065 = vld [vmem:[#allocation3 + $0xa8] sm:$0xf]
        %v6066 = vld [vmem:[#allocation3 + $0xac] sm:$0xf]
        %v6067 = vld [vmem:[#allocation3 + $0xb0] sm:$0x1]
        %v6068 = vld [vmem:[#allocation3 + $0xb4] sm:$0xf]
        %v6069 = vld [vmem:[#allocation3 + $0xb8] sm:$0xf]
        %v6070 = vld [vmem:[#allocation3 + $0xbc] sm:$0x1]
        %v6072 = vshrl.u32 %v6023, 16
        %v6074 = vrot.slane %v6072, 4
        %v6075 = vshll.u32 %v6023, 16
        %v6077 = vrot.slane %v6075, 5
        %v6078 = vor.u32 %v6074, %v6077
        %v6079 = vrot.slane %v6078, 4
        %v6081 = vshll.u32 %v6024, 16
        %v6083 = vrot.slane %v6081, 5
        %v6084 = vsel %vm1016, %v6079, %v6083
        %v6085 = vshrl.u32 %v6024, 16
        %v6087 = vrot.slane %v6085, 4
        %v6088 = vor.u32 %v6087, %v6083
        %v6089 = vrot.slane %v6088, 4
        %v6091 = vshll.u32 %v6025, 16
        %v6093 = vrot.slane %v6091, 5
        %v6094 = vsel %vm1016, %v6089, %v6093
        %v6096 = vshrl.u32 %v6026, 16
        %v6098 = vrot.slane %v6096, 4
        %v6099 = vshll.u32 %v6026, 16
        %v6101 = vrot.slane %v6099, 5
        %v6102 = vor.u32 %v6098, %v6101
        %v6103 = vrot.slane %v6102, 4
        %v6105 = vshll.u32 %v6027, 16
        %v6107 = vrot.slane %v6105, 5
        %v6108 = vsel %vm1016, %v6103, %v6107
        %v6109 = vshrl.u32 %v6027, 16
        %v6111 = vrot.slane %v6109, 4
        %v6112 = vor.u32 %v6111, %v6107
        %v6113 = vrot.slane %v6112, 4
        %v6115 = vshll.u32 %v6028, 16
        %v6117 = vrot.slane %v6115, 5
        %v6118 = vsel %vm1016, %v6113, %v6117
        %v6120 = vshrl.u32 %v6029, 16
        %v6122 = vrot.slane %v6120, 4
        %v6123 = vshll.u32 %v6029, 16
        %v6125 = vrot.slane %v6123, 5
        %v6126 = vor.u32 %v6122, %v6125
        %v6127 = vrot.slane %v6126, 4
        %v6129 = vshll.u32 %v6030, 16
        %v6131 = vrot.slane %v6129, 5
        %v6132 = vsel %vm1016, %v6127, %v6131
        %v6133 = vshrl.u32 %v6030, 16
        %v6135 = vrot.slane %v6133, 4
        %v6136 = vor.u32 %v6135, %v6131
        %v6137 = vrot.slane %v6136, 4
        %v6139 = vshll.u32 %v6031, 16
        %v6141 = vrot.slane %v6139, 5
        %v6142 = vsel %vm1016, %v6137, %v6141
        %v6144 = vshrl.u32 %v6032, 16
        %v6146 = vrot.slane %v6144, 4
        %v6147 = vshll.u32 %v6032, 16
        %v6149 = vrot.slane %v6147, 5
        %v6150 = vor.u32 %v6146, %v6149
        %v6151 = vrot.slane %v6150, 4
        %v6153 = vshll.u32 %v6033, 16
        %v6155 = vrot.slane %v6153, 5
        %v6156 = vsel %vm1016, %v6151, %v6155
        %v6157 = vshrl.u32 %v6033, 16
        %v6159 = vrot.slane %v6157, 4
        %v6160 = vor.u32 %v6159, %v6155
        %v6161 = vrot.slane %v6160, 4
        %v6163 = vshll.u32 %v6034, 16
        %v6165 = vrot.slane %v6163, 5
        %v6166 = vsel %vm1016, %v6161, %v6165
        %v6168 = vshrl.u32 %v6035, 16
        %v6170 = vrot.slane %v6168, 4
        %v6171 = vshll.u32 %v6035, 16
        %v6173 = vrot.slane %v6171, 5
        %v6174 = vor.u32 %v6170, %v6173
        %v6175 = vrot.slane %v6174, 4
        %v6177 = vshll.u32 %v6036, 16
        %v6179 = vrot.slane %v6177, 5
        %v6180 = vsel %vm1016, %v6175, %v6179
        %v6181 = vshrl.u32 %v6036, 16
        %v6183 = vrot.slane %v6181, 4
        %v6184 = vor.u32 %v6183, %v6179
        %v6185 = vrot.slane %v6184, 4
        %v6187 = vshll.u32 %v6037, 16
        %v6189 = vrot.slane %v6187, 5
        %v6190 = vsel %vm1016, %v6185, %v6189
        %v6192 = vshrl.u32 %v6038, 16
        %v6194 = vrot.slane %v6192, 4
        %v6195 = vshll.u32 %v6038, 16
        %v6197 = vrot.slane %v6195, 5
        %v6198 = vor.u32 %v6194, %v6197
        %v6199 = vrot.slane %v6198, 4
        %v6201 = vshll.u32 %v6039, 16
        %v6203 = vrot.slane %v6201, 5
        %v6204 = vsel %vm1016, %v6199, %v6203
        %v6205 = vshrl.u32 %v6039, 16
        %v6207 = vrot.slane %v6205, 4
        %v6208 = vor.u32 %v6207, %v6203
        %v6209 = vrot.slane %v6208, 4
        %v6211 = vshll.u32 %v6040, 16
        %v6213 = vrot.slane %v6211, 5
        %v6214 = vsel %vm1016, %v6209, %v6213
        %v6216 = vshrl.u32 %v6041, 16
        %v6218 = vrot.slane %v6216, 4
        %v6219 = vshll.u32 %v6041, 16
        %v6221 = vrot.slane %v6219, 5
        %v6222 = vor.u32 %v6218, %v6221
        %v6223 = vrot.slane %v6222, 4
        %v6225 = vshll.u32 %v6042, 16
        %v6227 = vrot.slane %v6225, 5
        %v6228 = vsel %vm1016, %v6223, %v6227
        %v6229 = vshrl.u32 %v6042, 16
        %v6231 = vrot.slane %v6229, 4
        %v6232 = vor.u32 %v6231, %v6227
        %v6233 = vrot.slane %v6232, 4
        %v6235 = vshll.u32 %v6043, 16
        %v6237 = vrot.slane %v6235, 5
        %v6238 = vsel %vm1016, %v6233, %v6237
        %v6240 = vshrl.u32 %v6044, 16
        %v6242 = vrot.slane %v6240, 4
        %v6243 = vshll.u32 %v6044, 16
        %v6245 = vrot.slane %v6243, 5
        %v6246 = vor.u32 %v6242, %v6245
        %v6247 = vrot.slane %v6246, 4
        %v6249 = vshll.u32 %v6045, 16
        %v6251 = vrot.slane %v6249, 5
        %v6252 = vsel %vm1016, %v6247, %v6251
        %v6253 = vshrl.u32 %v6045, 16
        %v6255 = vrot.slane %v6253, 4
        %v6256 = vor.u32 %v6255, %v6251
        %v6257 = vrot.slane %v6256, 4
        %v6259 = vshll.u32 %v6046, 16
        %v6261 = vrot.slane %v6259, 5
        %v6262 = vsel %vm1016, %v6257, %v6261
        %v6264 = vshrl.u32 %v6047, 16
        %v6266 = vrot.slane %v6264, 4
        %v6267 = vshll.u32 %v6047, 16
        %v6269 = vrot.slane %v6267, 5
        %v6270 = vor.u32 %v6266, %v6269
        %v6271 = vrot.slane %v6270, 4
        %v6273 = vshll.u32 %v6048, 16
        %v6275 = vrot.slane %v6273, 5
        %v6276 = vsel %vm1016, %v6271, %v6275
        %v6277 = vshrl.u32 %v6048, 16
        %v6279 = vrot.slane %v6277, 4
        %v6280 = vor.u32 %v6279, %v6275
        %v6281 = vrot.slane %v6280, 4
        %v6283 = vshll.u32 %v6049, 16
        %v6285 = vrot.slane %v6283, 5
        %v6286 = vsel %vm1016, %v6281, %v6285
        %v6288 = vshrl.u32 %v6050, 16
        %v6290 = vrot.slane %v6288, 4
        %v6291 = vshll.u32 %v6050, 16
        %v6293 = vrot.slane %v6291, 5
        %v6294 = vor.u32 %v6290, %v6293
        %v6295 = vrot.slane %v6294, 4
        %v6297 = vshll.u32 %v6051, 16
        %v6299 = vrot.slane %v6297, 5
        %v6300 = vsel %vm1016, %v6295, %v6299
        %v6301 = vshrl.u32 %v6051, 16
        %v6303 = vrot.slane %v6301, 4
        %v6304 = vor.u32 %v6303, %v6299
        %v6305 = vrot.slane %v6304, 4
        %v6307 = vshll.u32 %v6052, 16
        %v6309 = vrot.slane %v6307, 5
        %v6310 = vsel %vm1016, %v6305, %v6309
        %v6312 = vshrl.u32 %v6053, 16
        %v6314 = vrot.slane %v6312, 4
        %v6315 = vshll.u32 %v6053, 16
        %v6317 = vrot.slane %v6315, 5
        %v6318 = vor.u32 %v6314, %v6317
        %v6319 = vrot.slane %v6318, 4
        %v6321 = vshll.u32 %v6054, 16
        %v6323 = vrot.slane %v6321, 5
        %v6324 = vsel %vm1016, %v6319, %v6323
        %v6325 = vshrl.u32 %v6054, 16
        %v6327 = vrot.slane %v6325, 4
        %v6328 = vor.u32 %v6327, %v6323
        %v6329 = vrot.slane %v6328, 4
        %v6331 = vshll.u32 %v6055, 16
        %v6333 = vrot.slane %v6331, 5
        %v6334 = vsel %vm1016, %v6329, %v6333
        %v6336 = vshrl.u32 %v6056, 16
        %v6338 = vrot.slane %v6336, 4
        %v6339 = vshll.u32 %v6056, 16
        %v6341 = vrot.slane %v6339, 5
        %v6342 = vor.u32 %v6338, %v6341
        %v6343 = vrot.slane %v6342, 4
        %v6345 = vshll.u32 %v6057, 16
        %v6347 = vrot.slane %v6345, 5
        %v6348 = vsel %vm1016, %v6343, %v6347
        %v6349 = vshrl.u32 %v6057, 16
        %v6351 = vrot.slane %v6349, 4
        %v6352 = vor.u32 %v6351, %v6347
        %v6353 = vrot.slane %v6352, 4
        %v6355 = vshll.u32 %v6058, 16
        %v6357 = vrot.slane %v6355, 5
        %v6358 = vsel %vm1016, %v6353, %v6357
        %v6360 = vshrl.u32 %v6059, 16
        %v6362 = vrot.slane %v6360, 4
        %v6363 = vshll.u32 %v6059, 16
        %v6365 = vrot.slane %v6363, 5
        %v6366 = vor.u32 %v6362, %v6365
        %v6367 = vrot.slane %v6366, 4
        %v6369 = vshll.u32 %v6060, 16
        %v6371 = vrot.slane %v6369, 5
        %v6372 = vsel %vm1016, %v6367, %v6371
        %v6373 = vshrl.u32 %v6060, 16
        %v6375 = vrot.slane %v6373, 4
        %v6376 = vor.u32 %v6375, %v6371
        %v6377 = vrot.slane %v6376, 4
        %v6379 = vshll.u32 %v6061, 16
        %v6381 = vrot.slane %v6379, 5
        %v6382 = vsel %vm1016, %v6377, %v6381
        %v6384 = vshrl.u32 %v6062, 16
        %v6386 = vrot.slane %v6384, 4
        %v6387 = vshll.u32 %v6062, 16
        %v6389 = vrot.slane %v6387, 5
        %v6390 = vor.u32 %v6386, %v6389
        %v6391 = vrot.slane %v6390, 4
        %v6393 = vshll.u32 %v6063, 16
        %v6395 = vrot.slane %v6393, 5
        %v6396 = vsel %vm1016, %v6391, %v6395
        %v6397 = vshrl.u32 %v6063, 16
        %v6399 = vrot.slane %v6397, 4
        %v6400 = vor.u32 %v6399, %v6395
        %v6401 = vrot.slane %v6400, 4
        %v6403 = vshll.u32 %v6064, 16
        %v6405 = vrot.slane %v6403, 5
        %v6406 = vsel %vm1016, %v6401, %v6405
        %v6408 = vshrl.u32 %v6065, 16
        %v6410 = vrot.slane %v6408, 4
        %v6411 = vshll.u32 %v6065, 16
        %v6413 = vrot.slane %v6411, 5
        %v6414 = vor.u32 %v6410, %v6413
        %v6415 = vrot.slane %v6414, 4
        %v6417 = vshll.u32 %v6066, 16
        %v6419 = vrot.slane %v6417, 5
        %v6420 = vsel %vm1016, %v6415, %v6419
        %v6421 = vshrl.u32 %v6066, 16
        %v6423 = vrot.slane %v6421, 4
        %v6424 = vor.u32 %v6423, %v6419
        %v6425 = vrot.slane %v6424, 4
        %v6427 = vshll.u32 %v6067, 16
        %v6429 = vrot.slane %v6427, 5
        %v6430 = vsel %vm1016, %v6425, %v6429
        %v6432 = vshrl.u32 %v6068, 16
        %v6434 = vrot.slane %v6432, 4
        %v6435 = vshll.u32 %v6068, 16
        %v6437 = vrot.slane %v6435, 5
        %v6438 = vor.u32 %v6434, %v6437
        %v6439 = vrot.slane %v6438, 4
        %v6441 = vshll.u32 %v6069, 16
        %v6443 = vrot.slane %v6441, 5
        %v6444 = vsel %vm1016, %v6439, %v6443
        %v6445 = vshrl.u32 %v6069, 16
        %v6447 = vrot.slane %v6445, 4
        %v6448 = vor.u32 %v6447, %v6443
        %v6449 = vrot.slane %v6448, 4
        %v6451 = vshll.u32 %v6070, 16
        %v6453 = vrot.slane %v6451, 5
        %v6454 = vsel %vm1016, %v6449, %v6453
        %v6455 = vunpack.c.l.b16 %v6084
        %v6456 = vunpack.c.l.b16 %v6094
        %v6457 = vunpack.c.l.b16 %v6108
        %v6458 = vunpack.c.l.b16 %v6118
        %v6459 = vunpack.c.l.b16 %v6132
        %v6460 = vunpack.c.l.b16 %v6142
        %v6461 = vunpack.c.l.b16 %v6156
        %v6462 = vunpack.c.l.b16 %v6166
        %v6463 = vunpack.c.l.b16 %v6180
        %v6464 = vunpack.c.l.b16 %v6190
        %v6465 = vunpack.c.l.b16 %v6204
        %v6466 = vunpack.c.l.b16 %v6214
        %v6467 = vunpack.c.l.b16 %v6228
        %v6468 = vunpack.c.l.b16 %v6238
        %v6469 = vunpack.c.l.b16 %v6252
        %v6470 = vunpack.c.l.b16 %v6262
        %v6471 = vunpack.c.l.b16 %v6276
        %v6472 = vunpack.c.l.b16 %v6286
        %v6473 = vunpack.c.l.b16 %v6300
        %v6474 = vunpack.c.l.b16 %v6310
        %v6475 = vunpack.c.l.b16 %v6324
        %v6476 = vunpack.c.l.b16 %v6334
        %v6477 = vunpack.c.l.b16 %v6348
        %v6478 = vunpack.c.l.b16 %v6358
        %v6479 = vunpack.c.l.b16 %v6372
        %v6480 = vunpack.c.l.b16 %v6382
        %v6481 = vunpack.c.l.b16 %v6396
        %v6482 = vunpack.c.l.b16 %v6406
        %v6483 = vunpack.c.l.b16 %v6420
        %v6484 = vunpack.c.l.b16 %v6430
        %v6485 = vunpack.c.l.b16 %v6444
        %v6486 = vunpack.c.l.b16 %v6454
        %v6487 = vpack.c.b16 %v6456, %v6455
        %v6488 = vpack.c.b16 %v6458, %v6457
        %v6489 = vpack.c.b16 %v6460, %v6459
        %v6490 = vpack.c.b16 %v6462, %v6461
        %v6491 = vpack.c.b16 %v6464, %v6463
        %v6492 = vpack.c.b16 %v6466, %v6465
        %v6493 = vpack.c.b16 %v6468, %v6467
        %v6494 = vpack.c.b16 %v6470, %v6469
        %v6495 = vpack.c.b16 %v6472, %v6471
        %v6496 = vpack.c.b16 %v6474, %v6473
        %v6497 = vpack.c.b16 %v6476, %v6475
        %v6498 = vpack.c.b16 %v6478, %v6477
        %v6499 = vpack.c.b16 %v6480, %v6479
        %v6500 = vpack.c.b16 %v6482, %v6481
        %v6501 = vpack.c.b16 %v6484, %v6483
        %v6502 = vpack.c.b16 %v6486, %v6485
        %6519 = vst [vmem:[#allocation5 + $0x8] sm:$0xff] %v6487
        %6520 = vst [vmem:[#allocation5 + $0x50] sm:$0xff] %v6488
        %6521 = vst [vmem:[#allocation5 + $0x98] sm:$0xff] %v6489
        %6522 = vst [vmem:[#allocation5 + $0xe0] sm:$0xff] %v6490
        %6523 = vst [vmem:[#allocation5 + $0x128] sm:$0xff] %v6491
        %6524 = vst [vmem:[#allocation5 + $0x170] sm:$0xff] %v6492
        %6525 = vst [vmem:[#allocation5 + $0x1b8] sm:$0xff] %v6493
        %6526 = vst [vmem:[#allocation5 + $0x200] sm:$0xff] %v6494
        %6527 = vst [vmem:[#allocation5 + $0x248] sm:$0xff] %v6495
        %6528 = vst [vmem:[#allocation5 + $0x290] sm:$0xff] %v6496
        %6529 = vst [vmem:[#allocation5 + $0x2d8] sm:$0xff] %v6497
        %6530 = vst [vmem:[#allocation5 + $0x320] sm:$0xff] %v6498
        %6531 = vst [vmem:[#allocation5 + $0x368] sm:$0xff] %v6499
        %6532 = vst [vmem:[#allocation5 + $0x3b0] sm:$0xff] %v6500
        %6533 = vst [vmem:[#allocation5 + $0x3f8] sm:$0xff] %v6501
        %6534 = vst [vmem:[#allocation5 + $0x440] sm:$0xff] %v6502
        %v6535 = vld [vmem:[#allocation3] sm:$0xe]
        %v6536 = vld [vmem:[#allocation3 + $0x4] sm:$0xf]
        %v6537 = vld [vmem:[#allocation3 + $0x8] sm:$0x1]
        %v6538 = vld [vmem:[#allocation3 + $0xc] sm:$0xe]
        %v6539 = vld [vmem:[#allocation3 + $0x10] sm:$0xf]
        %v6540 = vld [vmem:[#allocation3 + $0x14] sm:$0x1]
        %v6541 = vld [vmem:[#allocation3 + $0x18] sm:$0xe]
        %v6542 = vld [vmem:[#allocation3 + $0x1c] sm:$0xf]
        %v6543 = vld [vmem:[#allocation3 + $0x20] sm:$0x1]
        %v6544 = vld [vmem:[#allocation3 + $0x24] sm:$0xe]
        %v6545 = vld [vmem:[#allocation3 + $0x28] sm:$0xf]
        %v6546 = vld [vmem:[#allocation3 + $0x2c] sm:$0x1]
        %v6547 = vld [vmem:[#allocation3 + $0x30] sm:$0xe]
        %v6548 = vld [vmem:[#allocation3 + $0x34] sm:$0xf]
        %v6549 = vld [vmem:[#allocation3 + $0x38] sm:$0x1]
        %v6550 = vld [vmem:[#allocation3 + $0x3c] sm:$0xe]
        %v6551 = vld [vmem:[#allocation3 + $0x40] sm:$0xf]
        %v6552 = vld [vmem:[#allocation3 + $0x44] sm:$0x1]
        %v6553 = vld [vmem:[#allocation3 + $0x48] sm:$0xe]
        %v6554 = vld [vmem:[#allocation3 + $0x4c] sm:$0xf]
        %v6555 = vld [vmem:[#allocation3 + $0x50] sm:$0x1]
        %v6556 = vld [vmem:[#allocation3 + $0x54] sm:$0xe]
        %v6557 = vld [vmem:[#allocation3 + $0x58] sm:$0xf]
        %v6558 = vld [vmem:[#allocation3 + $0x5c] sm:$0x1]
        %v6559 = vld [vmem:[#allocation3 + $0x60] sm:$0xe]
        %v6560 = vld [vmem:[#allocation3 + $0x64] sm:$0xf]
        %v6561 = vld [vmem:[#allocation3 + $0x68] sm:$0x1]
        %v6562 = vld [vmem:[#allocation3 + $0x6c] sm:$0xe]
        %v6563 = vld [vmem:[#allocation3 + $0x70] sm:$0xf]
        %v6564 = vld [vmem:[#allocation3 + $0x74] sm:$0x1]
        %v6565 = vld [vmem:[#allocation3 + $0x78] sm:$0xe]
        %v6566 = vld [vmem:[#allocation3 + $0x7c] sm:$0xf]
        %v6567 = vld [vmem:[#allocation3 + $0x80] sm:$0x1]
        %v6568 = vld [vmem:[#allocation3 + $0x84] sm:$0xe]
        %v6569 = vld [vmem:[#allocation3 + $0x88] sm:$0xf]
        %v6570 = vld [vmem:[#allocation3 + $0x8c] sm:$0x1]
        %v6571 = vld [vmem:[#allocation3 + $0x90] sm:$0xe]
        %v6572 = vld [vmem:[#allocation3 + $0x94] sm:$0xf]
        %v6573 = vld [vmem:[#allocation3 + $0x98] sm:$0x1]
        %v6574 = vld [vmem:[#allocation3 + $0x9c] sm:$0xe]
        %v6575 = vld [vmem:[#allocation3 + $0xa0] sm:$0xf]
        %v6576 = vld [vmem:[#allocation3 + $0xa4] sm:$0x1]
        %v6577 = vld [vmem:[#allocation3 + $0xa8] sm:$0xe]
        %v6578 = vld [vmem:[#allocation3 + $0xac] sm:$0xf]
        %v6579 = vld [vmem:[#allocation3 + $0xb0] sm:$0x1]
        %v6580 = vld [vmem:[#allocation3 + $0xb4] sm:$0xe]
        %v6581 = vld [vmem:[#allocation3 + $0xb8] sm:$0xf]
        %v6582 = vld [vmem:[#allocation3 + $0xbc] sm:$0x1]
        %v6631 = vrot.slane %v6535, 5
        %v6632 = vrot.slane %v6631, 4
        %v6633 = vrot.slane %v6536, 5
        %v6634 = vsel %vm1579, %v6632, %v6633
        %v6635 = vrot.slane %v6633, 4
        %v6636 = vrot.slane %v6537, 5
        %v6637 = vsel %vm1579, %v6635, %v6636
        %v6638 = vrot.slane %v6538, 5
        %v6639 = vrot.slane %v6638, 4
        %v6640 = vrot.slane %v6539, 5
        %v6641 = vsel %vm1579, %v6639, %v6640
        %v6642 = vrot.slane %v6640, 4
        %v6643 = vrot.slane %v6540, 5
        %v6644 = vsel %vm1579, %v6642, %v6643
        %v6645 = vrot.slane %v6541, 5
        %v6646 = vrot.slane %v6645, 4
        %v6647 = vrot.slane %v6542, 5
        %v6648 = vsel %vm1579, %v6646, %v6647
        %v6649 = vrot.slane %v6647, 4
        %v6650 = vrot.slane %v6543, 5
        %v6651 = vsel %vm1579, %v6649, %v6650
        %v6652 = vrot.slane %v6544, 5
        %v6653 = vrot.slane %v6652, 4
        %v6654 = vrot.slane %v6545, 5
        %v6655 = vsel %vm1579, %v6653, %v6654
        %v6656 = vrot.slane %v6654, 4
        %v6657 = vrot.slane %v6546, 5
        %v6658 = vsel %vm1579, %v6656, %v6657
        %v6659 = vrot.slane %v6547, 5
        %v6660 = vrot.slane %v6659, 4
        %v6661 = vrot.slane %v6548, 5
        %v6662 = vsel %vm1579, %v6660, %v6661
        %v6663 = vrot.slane %v6661, 4
        %v6664 = vrot.slane %v6549, 5
        %v6665 = vsel %vm1579, %v6663, %v6664
        %v6666 = vrot.slane %v6550, 5
        %v6667 = vrot.slane %v6666, 4
        %v6668 = vrot.slane %v6551, 5
        %v6669 = vsel %vm1579, %v6667, %v6668
        %v6670 = vrot.slane %v6668, 4
        %v6671 = vrot.slane %v6552, 5
        %v6672 = vsel %vm1579, %v6670, %v6671
        %v6673 = vrot.slane %v6553, 5
        %v6674 = vrot.slane %v6673, 4
        %v6675 = vrot.slane %v6554, 5
        %v6676 = vsel %vm1579, %v6674, %v6675
        %v6677 = vrot.slane %v6675, 4
        %v6678 = vrot.slane %v6555, 5
        %v6679 = vsel %vm1579, %v6677, %v6678
        %v6680 = vrot.slane %v6556, 5
        %v6681 = vrot.slane %v6680, 4
        %v6682 = vrot.slane %v6557, 5
        %v6683 = vsel %vm1579, %v6681, %v6682
        %v6684 = vrot.slane %v6682, 4
        %v6685 = vrot.slane %v6558, 5
        %v6686 = vsel %vm1579, %v6684, %v6685
        %v6687 = vrot.slane %v6559, 5
        %v6688 = vrot.slane %v6687, 4
        %v6689 = vrot.slane %v6560, 5
        %v6690 = vsel %vm1579, %v6688, %v6689
        %v6691 = vrot.slane %v6689, 4
        %v6692 = vrot.slane %v6561, 5
        %v6693 = vsel %vm1579, %v6691, %v6692
        %v6694 = vrot.slane %v6562, 5
        %v6695 = vrot.slane %v6694, 4
        %v6696 = vrot.slane %v6563, 5
        %v6697 = vsel %vm1579, %v6695, %v6696
        %v6698 = vrot.slane %v6696, 4
        %v6699 = vrot.slane %v6564, 5
        %v6700 = vsel %vm1579, %v6698, %v6699
        %v6701 = vrot.slane %v6565, 5
        %v6702 = vrot.slane %v6701, 4
        %v6703 = vrot.slane %v6566, 5
        %v6704 = vsel %vm1579, %v6702, %v6703
        %v6705 = vrot.slane %v6703, 4
        %v6706 = vrot.slane %v6567, 5
        %v6707 = vsel %vm1579, %v6705, %v6706
        %v6708 = vrot.slane %v6568, 5
        %v6709 = vrot.slane %v6708, 4
        %v6710 = vrot.slane %v6569, 5
        %v6711 = vsel %vm1579, %v6709, %v6710
        %v6712 = vrot.slane %v6710, 4
        %v6713 = vrot.slane %v6570, 5
        %v6714 = vsel %vm1579, %v6712, %v6713
        %v6715 = vrot.slane %v6571, 5
        %v6716 = vrot.slane %v6715, 4
        %v6717 = vrot.slane %v6572, 5
        %v6718 = vsel %vm1579, %v6716, %v6717
        %v6719 = vrot.slane %v6717, 4
        %v6720 = vrot.slane %v6573, 5
        %v6721 = vsel %vm1579, %v6719, %v6720
        %v6722 = vrot.slane %v6574, 5
        %v6723 = vrot.slane %v6722, 4
        %v6724 = vrot.slane %v6575, 5
        %v6725 = vsel %vm1579, %v6723, %v6724
        %v6726 = vrot.slane %v6724, 4
        %v6727 = vrot.slane %v6576, 5
        %v6728 = vsel %vm1579, %v6726, %v6727
        %v6729 = vrot.slane %v6577, 5
        %v6730 = vrot.slane %v6729, 4
        %v6731 = vrot.slane %v6578, 5
        %v6732 = vsel %vm1579, %v6730, %v6731
        %v6733 = vrot.slane %v6731, 4
        %v6734 = vrot.slane %v6579, 5
        %v6735 = vsel %vm1579, %v6733, %v6734
        %v6736 = vrot.slane %v6580, 5
        %v6737 = vrot.slane %v6736, 4
        %v6738 = vrot.slane %v6581, 5
        %v6739 = vsel %vm1579, %v6737, %v6738
        %v6740 = vrot.slane %v6738, 4
        %v6741 = vrot.slane %v6582, 5
        %v6742 = vsel %vm1579, %v6740, %v6741
        %v6743 = vunpack.c.l.b16 %v6634
        %v6744 = vunpack.c.l.b16 %v6637
        %v6745 = vunpack.c.l.b16 %v6641
        %v6746 = vunpack.c.l.b16 %v6644
        %v6747 = vunpack.c.l.b16 %v6648
        %v6748 = vunpack.c.l.b16 %v6651
        %v6749 = vunpack.c.l.b16 %v6655
        %v6750 = vunpack.c.l.b16 %v6658
        %v6751 = vunpack.c.l.b16 %v6662
        %v6752 = vunpack.c.l.b16 %v6665
        %v6753 = vunpack.c.l.b16 %v6669
        %v6754 = vunpack.c.l.b16 %v6672
        %v6755 = vunpack.c.l.b16 %v6676
        %v6756 = vunpack.c.l.b16 %v6679
        %v6757 = vunpack.c.l.b16 %v6683
        %v6758 = vunpack.c.l.b16 %v6686
        %v6759 = vunpack.c.l.b16 %v6690
        %v6760 = vunpack.c.l.b16 %v6693
        %v6761 = vunpack.c.l.b16 %v6697
        %v6762 = vunpack.c.l.b16 %v6700
        %v6763 = vunpack.c.l.b16 %v6704
        %v6764 = vunpack.c.l.b16 %v6707
        %v6765 = vunpack.c.l.b16 %v6711
        %v6766 = vunpack.c.l.b16 %v6714
        %v6767 = vunpack.c.l.b16 %v6718
        %v6768 = vunpack.c.l.b16 %v6721
        %v6769 = vunpack.c.l.b16 %v6725
        %v6770 = vunpack.c.l.b16 %v6728
        %v6771 = vunpack.c.l.b16 %v6732
        %v6772 = vunpack.c.l.b16 %v6735
        %v6773 = vunpack.c.l.b16 %v6739
        %v6774 = vunpack.c.l.b16 %v6742
        %v6775 = vpack.c.b16 %v6744, %v6743
        %v6776 = vpack.c.b16 %v6746, %v6745
        %v6777 = vpack.c.b16 %v6748, %v6747
        %v6778 = vpack.c.b16 %v6750, %v6749
        %v6779 = vpack.c.b16 %v6752, %v6751
        %v6780 = vpack.c.b16 %v6754, %v6753
        %v6781 = vpack.c.b16 %v6756, %v6755
        %v6782 = vpack.c.b16 %v6758, %v6757
        %v6783 = vpack.c.b16 %v6760, %v6759
        %v6784 = vpack.c.b16 %v6762, %v6761
        %v6785 = vpack.c.b16 %v6764, %v6763
        %v6786 = vpack.c.b16 %v6766, %v6765
        %v6787 = vpack.c.b16 %v6768, %v6767
        %v6788 = vpack.c.b16 %v6770, %v6769
        %v6789 = vpack.c.b16 %v6772, %v6771
        %v6790 = vpack.c.b16 %v6774, %v6773
        %6807 = vst [vmem:[#allocation5 + $0x10] sm:$0xff] %v6775
        %6808 = vst [vmem:[#allocation5 + $0x58] sm:$0xff] %v6776
        %6809 = vst [vmem:[#allocation5 + $0xa0] sm:$0xff] %v6777
        %6810 = vst [vmem:[#allocation5 + $0xe8] sm:$0xff] %v6778
        %6811 = vst [vmem:[#allocation5 + $0x130] sm:$0xff] %v6779
        %6812 = vst [vmem:[#allocation5 + $0x178] sm:$0xff] %v6780
        %6813 = vst [vmem:[#allocation5 + $0x1c0] sm:$0xff] %v6781
        %6814 = vst [vmem:[#allocation5 + $0x208] sm:$0xff] %v6782
        %6815 = vst [vmem:[#allocation5 + $0x250] sm:$0xff] %v6783
        %6816 = vst [vmem:[#allocation5 + $0x298] sm:$0xff] %v6784
        %6817 = vst [vmem:[#allocation5 + $0x2e0] sm:$0xff] %v6785
        %6818 = vst [vmem:[#allocation5 + $0x328] sm:$0xff] %v6786
        %6819 = vst [vmem:[#allocation5 + $0x370] sm:$0xff] %v6787
        %6820 = vst [vmem:[#allocation5 + $0x3b8] sm:$0xff] %v6788
        %6821 = vst [vmem:[#allocation5 + $0x400] sm:$0xff] %v6789
        %6822 = vst [vmem:[#allocation5 + $0x448] sm:$0xff] %v6790
        %v6823 = vld [vmem:[%s5766] sm:$0xf]
        %v6824 = vld [vmem:[%s5766 + $0x4] sm:$0xf]
        %v6825 = vld [vmem:[%s5766 + $0xc] sm:$0xf]
        %v6826 = vld [vmem:[%s5766 + $0x10] sm:$0xf]
        %v6827 = vld [vmem:[%s5766 + $0x18] sm:$0xf]
        %v6828 = vld [vmem:[%s5766 + $0x1c] sm:$0xf]
        %v6829 = vld [vmem:[%s5766 + $0x24] sm:$0xf]
        %v6830 = vld [vmem:[%s5766 + $0x28] sm:$0xf]
        %v6831 = vld [vmem:[%s5766 + $0x30] sm:$0xf]
        %v6832 = vld [vmem:[%s5766 + $0x34] sm:$0xf]
        %v6833 = vld [vmem:[%s5766 + $0x3c] sm:$0xf]
        %v6834 = vld [vmem:[%s5766 + $0x40] sm:$0xf]
        %v6835 = vld [vmem:[%s5766 + $0x48] sm:$0xf]
        %v6836 = vld [vmem:[%s5766 + $0x4c] sm:$0xf]
        %v6837 = vld [vmem:[%s5766 + $0x54] sm:$0xf]
        %v6838 = vld [vmem:[%s5766 + $0x58] sm:$0xf]
        %v6839 = vld [vmem:[%s5766 + $0x60] sm:$0xf]
        %v6840 = vld [vmem:[%s5766 + $0x64] sm:$0xf]
        %v6841 = vld [vmem:[%s5766 + $0x6c] sm:$0xf]
        %v6842 = vld [vmem:[%s5766 + $0x70] sm:$0xf]
        %v6843 = vld [vmem:[%s5766 + $0x78] sm:$0xf]
        %v6844 = vld [vmem:[%s5766 + $0x7c] sm:$0xf]
        %v6845 = vld [vmem:[%s5766 + $0x84] sm:$0xf]
        %v6846 = vld [vmem:[%s5766 + $0x88] sm:$0xf]
        %v6847 = vld [vmem:[%s5766 + $0x90] sm:$0xf]
        %v6848 = vld [vmem:[%s5766 + $0x94] sm:$0xf]
        %v6849 = vld [vmem:[%s5766 + $0x9c] sm:$0xf]
        %v6850 = vld [vmem:[%s5766 + $0xa0] sm:$0xf]
        %v6851 = vld [vmem:[%s5766 + $0xa8] sm:$0xf]
        %v6852 = vld [vmem:[%s5766 + $0xac] sm:$0xf]
        %v6853 = vld [vmem:[%s5766 + $0xb4] sm:$0xf]
        %v6854 = vld [vmem:[%s5766 + $0xb8] sm:$0xf]
        %v6887 = vunpack.c.l.b16 %v6823
        %v6888 = vunpack.c.l.b16 %v6824
        %v6889 = vunpack.c.l.b16 %v6825
        %v6890 = vunpack.c.l.b16 %v6826
        %v6891 = vunpack.c.l.b16 %v6827
        %v6892 = vunpack.c.l.b16 %v6828
        %v6893 = vunpack.c.l.b16 %v6829
        %v6894 = vunpack.c.l.b16 %v6830
        %v6895 = vunpack.c.l.b16 %v6831
        %v6896 = vunpack.c.l.b16 %v6832
        %v6897 = vunpack.c.l.b16 %v6833
        %v6898 = vunpack.c.l.b16 %v6834
        %v6899 = vunpack.c.l.b16 %v6835
        %v6900 = vunpack.c.l.b16 %v6836
        %v6901 = vunpack.c.l.b16 %v6837
        %v6902 = vunpack.c.l.b16 %v6838
        %v6903 = vunpack.c.l.b16 %v6839
        %v6904 = vunpack.c.l.b16 %v6840
        %v6905 = vunpack.c.l.b16 %v6841
        %v6906 = vunpack.c.l.b16 %v6842
        %v6907 = vunpack.c.l.b16 %v6843
        %v6908 = vunpack.c.l.b16 %v6844
        %v6909 = vunpack.c.l.b16 %v6845
        %v6910 = vunpack.c.l.b16 %v6846
        %v6911 = vunpack.c.l.b16 %v6847
        %v6912 = vunpack.c.l.b16 %v6848
        %v6913 = vunpack.c.l.b16 %v6849
        %v6914 = vunpack.c.l.b16 %v6850
        %v6915 = vunpack.c.l.b16 %v6851
        %v6916 = vunpack.c.l.b16 %v6852
        %v6917 = vunpack.c.l.b16 %v6853
        %v6918 = vunpack.c.l.b16 %v6854
        %v6919 = vpack.c.b16 %v6888, %v6887
        %v6920 = vpack.c.b16 %v6890, %v6889
        %v6921 = vpack.c.b16 %v6892, %v6891
        %v6922 = vpack.c.b16 %v6894, %v6893
        %v6923 = vpack.c.b16 %v6896, %v6895
        %v6924 = vpack.c.b16 %v6898, %v6897
        %v6925 = vpack.c.b16 %v6900, %v6899
        %v6926 = vpack.c.b16 %v6902, %v6901
        %v6927 = vpack.c.b16 %v6904, %v6903
        %v6928 = vpack.c.b16 %v6906, %v6905
        %v6929 = vpack.c.b16 %v6908, %v6907
        %v6930 = vpack.c.b16 %v6910, %v6909
        %v6931 = vpack.c.b16 %v6912, %v6911
        %v6932 = vpack.c.b16 %v6914, %v6913
        %v6933 = vpack.c.b16 %v6916, %v6915
        %v6934 = vpack.c.b16 %v6918, %v6917
        %6951 = vst [vmem:[#allocation5 + $0x18] sm:$0xff] %v6919
        %6952 = vst [vmem:[#allocation5 + $0x60] sm:$0xff] %v6920
        %6953 = vst [vmem:[#allocation5 + $0xa8] sm:$0xff] %v6921
        %6954 = vst [vmem:[#allocation5 + $0xf0] sm:$0xff] %v6922
        %6955 = vst [vmem:[#allocation5 + $0x138] sm:$0xff] %v6923
        %6956 = vst [vmem:[#allocation5 + $0x180] sm:$0xff] %v6924
        %6957 = vst [vmem:[#allocation5 + $0x1c8] sm:$0xff] %v6925
        %6958 = vst [vmem:[#allocation5 + $0x210] sm:$0xff] %v6926
        %6959 = vst [vmem:[#allocation5 + $0x258] sm:$0xff] %v6927
        %6960 = vst [vmem:[#allocation5 + $0x2a0] sm:$0xff] %v6928
        %6961 = vst [vmem:[#allocation5 + $0x2e8] sm:$0xff] %v6929
        %6962 = vst [vmem:[#allocation5 + $0x330] sm:$0xff] %v6930
        %6963 = vst [vmem:[#allocation5 + $0x378] sm:$0xff] %v6931
        %6964 = vst [vmem:[#allocation5 + $0x3c0] sm:$0xff] %v6932
        %6965 = vst [vmem:[#allocation5 + $0x408] sm:$0xff] %v6933
        %6966 = vst [vmem:[#allocation5 + $0x450] sm:$0xff] %v6934
        %v6967 = vld [vmem:[%s5766] sm:$0xf]
        %v6968 = vld [vmem:[%s5766 + $0x4] sm:$0xf]
        %v6969 = vld [vmem:[%s5766 + $0x8] sm:$0x1]
        %v6970 = vld [vmem:[%s5766 + $0xc] sm:$0xf]
        %v6971 = vld [vmem:[%s5766 + $0x10] sm:$0xf]
        %v6972 = vld [vmem:[%s5766 + $0x14] sm:$0x1]
        %v6973 = vld [vmem:[%s5766 + $0x18] sm:$0xf]
        %v6974 = vld [vmem:[%s5766 + $0x1c] sm:$0xf]
        %v6975 = vld [vmem:[%s5766 + $0x20] sm:$0x1]
        %v6976 = vld [vmem:[%s5766 + $0x24] sm:$0xf]
        %v6977 = vld [vmem:[%s5766 + $0x28] sm:$0xf]
        %v6978 = vld [vmem:[%s5766 + $0x2c] sm:$0x1]
        %v6979 = vld [vmem:[%s5766 + $0x30] sm:$0xf]
        %v6980 = vld [vmem:[%s5766 + $0x34] sm:$0xf]
        %v6981 = vld [vmem:[%s5766 + $0x38] sm:$0x1]
        %v6982 = vld [vmem:[%s5766 + $0x3c] sm:$0xf]
        %v6983 = vld [vmem:[%s5766 + $0x40] sm:$0xf]
        %v6984 = vld [vmem:[%s5766 + $0x44] sm:$0x1]
        %v6985 = vld [vmem:[%s5766 + $0x48] sm:$0xf]
        %v6986 = vld [vmem:[%s5766 + $0x4c] sm:$0xf]
        %v6987 = vld [vmem:[%s5766 + $0x50] sm:$0x1]
        %v6988 = vld [vmem:[%s5766 + $0x54] sm:$0xf]
        %v6989 = vld [vmem:[%s5766 + $0x58] sm:$0xf]
        %v6990 = vld [vmem:[%s5766 + $0x5c] sm:$0x1]
        %v6991 = vld [vmem:[%s5766 + $0x60] sm:$0xf]
        %v6992 = vld [vmem:[%s5766 + $0x64] sm:$0xf]
        %v6993 = vld [vmem:[%s5766 + $0x68] sm:$0x1]
        %v6994 = vld [vmem:[%s5766 + $0x6c] sm:$0xf]
        %v6995 = vld [vmem:[%s5766 + $0x70] sm:$0xf]
        %v6996 = vld [vmem:[%s5766 + $0x74] sm:$0x1]
        %v6997 = vld [vmem:[%s5766 + $0x78] sm:$0xf]
        %v6998 = vld [vmem:[%s5766 + $0x7c] sm:$0xf]
        %v6999 = vld [vmem:[%s5766 + $0x80] sm:$0x1]
        %v7000 = vld [vmem:[%s5766 + $0x84] sm:$0xf]
        %v7001 = vld [vmem:[%s5766 + $0x88] sm:$0xf]
        %v7002 = vld [vmem:[%s5766 + $0x8c] sm:$0x1]
        %v7003 = vld [vmem:[%s5766 + $0x90] sm:$0xf]
        %v7004 = vld [vmem:[%s5766 + $0x94] sm:$0xf]
        %v7005 = vld [vmem:[%s5766 + $0x98] sm:$0x1]
        %v7006 = vld [vmem:[%s5766 + $0x9c] sm:$0xf]
        %v7007 = vld [vmem:[%s5766 + $0xa0] sm:$0xf]
        %v7008 = vld [vmem:[%s5766 + $0xa4] sm:$0x1]
        %v7009 = vld [vmem:[%s5766 + $0xa8] sm:$0xf]
        %v7010 = vld [vmem:[%s5766 + $0xac] sm:$0xf]
        %v7011 = vld [vmem:[%s5766 + $0xb0] sm:$0x1]
        %v7012 = vld [vmem:[%s5766 + $0xb4] sm:$0xf]
        %v7013 = vld [vmem:[%s5766 + $0xb8] sm:$0xf]
        %v7014 = vld [vmem:[%s5766 + $0xbc] sm:$0x1]
        %v7016 = vshrl.u32 %v6967, 16
        %v7018 = vrot.slane %v7016, 4
        %v7019 = vshll.u32 %v6967, 16
        %v7021 = vrot.slane %v7019, 5
        %v7022 = vor.u32 %v7018, %v7021
        %v7023 = vrot.slane %v7022, 4
        %v7025 = vshll.u32 %v6968, 16
        %v7027 = vrot.slane %v7025, 5
        %v7028 = vsel %vm1016, %v7023, %v7027
        %v7029 = vshrl.u32 %v6968, 16
        %v7031 = vrot.slane %v7029, 4
        %v7032 = vor.u32 %v7031, %v7027
        %v7033 = vrot.slane %v7032, 4
        %v7035 = vshll.u32 %v6969, 16
        %v7037 = vrot.slane %v7035, 5
        %v7038 = vsel %vm1016, %v7033, %v7037
        %v7040 = vshrl.u32 %v6970, 16
        %v7042 = vrot.slane %v7040, 4
        %v7043 = vshll.u32 %v6970, 16
        %v7045 = vrot.slane %v7043, 5
        %v7046 = vor.u32 %v7042, %v7045
        %v7047 = vrot.slane %v7046, 4
        %v7049 = vshll.u32 %v6971, 16
        %v7051 = vrot.slane %v7049, 5
        %v7052 = vsel %vm1016, %v7047, %v7051
        %v7053 = vshrl.u32 %v6971, 16
        %v7055 = vrot.slane %v7053, 4
        %v7056 = vor.u32 %v7055, %v7051
        %v7057 = vrot.slane %v7056, 4
        %v7059 = vshll.u32 %v6972, 16
        %v7061 = vrot.slane %v7059, 5
        %v7062 = vsel %vm1016, %v7057, %v7061
        %v7064 = vshrl.u32 %v6973, 16
        %v7066 = vrot.slane %v7064, 4
        %v7067 = vshll.u32 %v6973, 16
        %v7069 = vrot.slane %v7067, 5
        %v7070 = vor.u32 %v7066, %v7069
        %v7071 = vrot.slane %v7070, 4
        %v7073 = vshll.u32 %v6974, 16
        %v7075 = vrot.slane %v7073, 5
        %v7076 = vsel %vm1016, %v7071, %v7075
        %v7077 = vshrl.u32 %v6974, 16
        %v7079 = vrot.slane %v7077, 4
        %v7080 = vor.u32 %v7079, %v7075
        %v7081 = vrot.slane %v7080, 4
        %v7083 = vshll.u32 %v6975, 16
        %v7085 = vrot.slane %v7083, 5
        %v7086 = vsel %vm1016, %v7081, %v7085
        %v7088 = vshrl.u32 %v6976, 16
        %v7090 = vrot.slane %v7088, 4
        %v7091 = vshll.u32 %v6976, 16
        %v7093 = vrot.slane %v7091, 5
        %v7094 = vor.u32 %v7090, %v7093
        %v7095 = vrot.slane %v7094, 4
        %v7097 = vshll.u32 %v6977, 16
        %v7099 = vrot.slane %v7097, 5
        %v7100 = vsel %vm1016, %v7095, %v7099
        %v7101 = vshrl.u32 %v6977, 16
        %v7103 = vrot.slane %v7101, 4
        %v7104 = vor.u32 %v7103, %v7099
        %v7105 = vrot.slane %v7104, 4
        %v7107 = vshll.u32 %v6978, 16
        %v7109 = vrot.slane %v7107, 5
        %v7110 = vsel %vm1016, %v7105, %v7109
        %v7112 = vshrl.u32 %v6979, 16
        %v7114 = vrot.slane %v7112, 4
        %v7115 = vshll.u32 %v6979, 16
        %v7117 = vrot.slane %v7115, 5
        %v7118 = vor.u32 %v7114, %v7117
        %v7119 = vrot.slane %v7118, 4
        %v7121 = vshll.u32 %v6980, 16
        %v7123 = vrot.slane %v7121, 5
        %v7124 = vsel %vm1016, %v7119, %v7123
        %v7125 = vshrl.u32 %v6980, 16
        %v7127 = vrot.slane %v7125, 4
        %v7128 = vor.u32 %v7127, %v7123
        %v7129 = vrot.slane %v7128, 4
        %v7131 = vshll.u32 %v6981, 16
        %v7133 = vrot.slane %v7131, 5
        %v7134 = vsel %vm1016, %v7129, %v7133
        %v7136 = vshrl.u32 %v6982, 16
        %v7138 = vrot.slane %v7136, 4
        %v7139 = vshll.u32 %v6982, 16
        %v7141 = vrot.slane %v7139, 5
        %v7142 = vor.u32 %v7138, %v7141
        %v7143 = vrot.slane %v7142, 4
        %v7145 = vshll.u32 %v6983, 16
        %v7147 = vrot.slane %v7145, 5
        %v7148 = vsel %vm1016, %v7143, %v7147
        %v7149 = vshrl.u32 %v6983, 16
        %v7151 = vrot.slane %v7149, 4
        %v7152 = vor.u32 %v7151, %v7147
        %v7153 = vrot.slane %v7152, 4
        %v7155 = vshll.u32 %v6984, 16
        %v7157 = vrot.slane %v7155, 5
        %v7158 = vsel %vm1016, %v7153, %v7157
        %v7160 = vshrl.u32 %v6985, 16
        %v7162 = vrot.slane %v7160, 4
        %v7163 = vshll.u32 %v6985, 16
        %v7165 = vrot.slane %v7163, 5
        %v7166 = vor.u32 %v7162, %v7165
        %v7167 = vrot.slane %v7166, 4
        %v7169 = vshll.u32 %v6986, 16
        %v7171 = vrot.slane %v7169, 5
        %v7172 = vsel %vm1016, %v7167, %v7171
        %v7173 = vshrl.u32 %v6986, 16
        %v7175 = vrot.slane %v7173, 4
        %v7176 = vor.u32 %v7175, %v7171
        %v7177 = vrot.slane %v7176, 4
        %v7179 = vshll.u32 %v6987, 16
        %v7181 = vrot.slane %v7179, 5
        %v7182 = vsel %vm1016, %v7177, %v7181
        %v7184 = vshrl.u32 %v6988, 16
        %v7186 = vrot.slane %v7184, 4
        %v7187 = vshll.u32 %v6988, 16
        %v7189 = vrot.slane %v7187, 5
        %v7190 = vor.u32 %v7186, %v7189
        %v7191 = vrot.slane %v7190, 4
        %v7193 = vshll.u32 %v6989, 16
        %v7195 = vrot.slane %v7193, 5
        %v7196 = vsel %vm1016, %v7191, %v7195
        %v7197 = vshrl.u32 %v6989, 16
        %v7199 = vrot.slane %v7197, 4
        %v7200 = vor.u32 %v7199, %v7195
        %v7201 = vrot.slane %v7200, 4
        %v7203 = vshll.u32 %v6990, 16
        %v7205 = vrot.slane %v7203, 5
        %v7206 = vsel %vm1016, %v7201, %v7205
        %v7208 = vshrl.u32 %v6991, 16
        %v7210 = vrot.slane %v7208, 4
        %v7211 = vshll.u32 %v6991, 16
        %v7213 = vrot.slane %v7211, 5
        %v7214 = vor.u32 %v7210, %v7213
        %v7215 = vrot.slane %v7214, 4
        %v7217 = vshll.u32 %v6992, 16
        %v7219 = vrot.slane %v7217, 5
        %v7220 = vsel %vm1016, %v7215, %v7219
        %v7221 = vshrl.u32 %v6992, 16
        %v7223 = vrot.slane %v7221, 4
        %v7224 = vor.u32 %v7223, %v7219
        %v7225 = vrot.slane %v7224, 4
        %v7227 = vshll.u32 %v6993, 16
        %v7229 = vrot.slane %v7227, 5
        %v7230 = vsel %vm1016, %v7225, %v7229
        %v7232 = vshrl.u32 %v6994, 16
        %v7234 = vrot.slane %v7232, 4
        %v7235 = vshll.u32 %v6994, 16
        %v7237 = vrot.slane %v7235, 5
        %v7238 = vor.u32 %v7234, %v7237
        %v7239 = vrot.slane %v7238, 4
        %v7241 = vshll.u32 %v6995, 16
        %v7243 = vrot.slane %v7241, 5
        %v7244 = vsel %vm1016, %v7239, %v7243
        %v7245 = vshrl.u32 %v6995, 16
        %v7247 = vrot.slane %v7245, 4
        %v7248 = vor.u32 %v7247, %v7243
        %v7249 = vrot.slane %v7248, 4
        %v7251 = vshll.u32 %v6996, 16
        %v7253 = vrot.slane %v7251, 5
        %v7254 = vsel %vm1016, %v7249, %v7253
        %v7256 = vshrl.u32 %v6997, 16
        %v7258 = vrot.slane %v7256, 4
        %v7259 = vshll.u32 %v6997, 16
        %v7261 = vrot.slane %v7259, 5
        %v7262 = vor.u32 %v7258, %v7261
        %v7263 = vrot.slane %v7262, 4
        %v7265 = vshll.u32 %v6998, 16
        %v7267 = vrot.slane %v7265, 5
        %v7268 = vsel %vm1016, %v7263, %v7267
        %v7269 = vshrl.u32 %v6998, 16
        %v7271 = vrot.slane %v7269, 4
        %v7272 = vor.u32 %v7271, %v7267
        %v7273 = vrot.slane %v7272, 4
        %v7275 = vshll.u32 %v6999, 16
        %v7277 = vrot.slane %v7275, 5
        %v7278 = vsel %vm1016, %v7273, %v7277
        %v7280 = vshrl.u32 %v7000, 16
        %v7282 = vrot.slane %v7280, 4
        %v7283 = vshll.u32 %v7000, 16
        %v7285 = vrot.slane %v7283, 5
        %v7286 = vor.u32 %v7282, %v7285
        %v7287 = vrot.slane %v7286, 4
        %v7289 = vshll.u32 %v7001, 16
        %v7291 = vrot.slane %v7289, 5
        %v7292 = vsel %vm1016, %v7287, %v7291
        %v7293 = vshrl.u32 %v7001, 16
        %v7295 = vrot.slane %v7293, 4
        %v7296 = vor.u32 %v7295, %v7291
        %v7297 = vrot.slane %v7296, 4
        %v7299 = vshll.u32 %v7002, 16
        %v7301 = vrot.slane %v7299, 5
        %v7302 = vsel %vm1016, %v7297, %v7301
        %v7304 = vshrl.u32 %v7003, 16
        %v7306 = vrot.slane %v7304, 4
        %v7307 = vshll.u32 %v7003, 16
        %v7309 = vrot.slane %v7307, 5
        %v7310 = vor.u32 %v7306, %v7309
        %v7311 = vrot.slane %v7310, 4
        %v7313 = vshll.u32 %v7004, 16
        %v7315 = vrot.slane %v7313, 5
        %v7316 = vsel %vm1016, %v7311, %v7315
        %v7317 = vshrl.u32 %v7004, 16
        %v7319 = vrot.slane %v7317, 4
        %v7320 = vor.u32 %v7319, %v7315
        %v7321 = vrot.slane %v7320, 4
        %v7323 = vshll.u32 %v7005, 16
        %v7325 = vrot.slane %v7323, 5
        %v7326 = vsel %vm1016, %v7321, %v7325
        %v7328 = vshrl.u32 %v7006, 16
        %v7330 = vrot.slane %v7328, 4
        %v7331 = vshll.u32 %v7006, 16
        %v7333 = vrot.slane %v7331, 5
        %v7334 = vor.u32 %v7330, %v7333
        %v7335 = vrot.slane %v7334, 4
        %v7337 = vshll.u32 %v7007, 16
        %v7339 = vrot.slane %v7337, 5
        %v7340 = vsel %vm1016, %v7335, %v7339
        %v7341 = vshrl.u32 %v7007, 16
        %v7343 = vrot.slane %v7341, 4
        %v7344 = vor.u32 %v7343, %v7339
        %v7345 = vrot.slane %v7344, 4
        %v7347 = vshll.u32 %v7008, 16
        %v7349 = vrot.slane %v7347, 5
        %v7350 = vsel %vm1016, %v7345, %v7349
        %v7352 = vshrl.u32 %v7009, 16
        %v7354 = vrot.slane %v7352, 4
        %v7355 = vshll.u32 %v7009, 16
        %v7357 = vrot.slane %v7355, 5
        %v7358 = vor.u32 %v7354, %v7357
        %v7359 = vrot.slane %v7358, 4
        %v7361 = vshll.u32 %v7010, 16
        %v7363 = vrot.slane %v7361, 5
        %v7364 = vsel %vm1016, %v7359, %v7363
        %v7365 = vshrl.u32 %v7010, 16
        %v7367 = vrot.slane %v7365, 4
        %v7368 = vor.u32 %v7367, %v7363
        %v7369 = vrot.slane %v7368, 4
        %v7371 = vshll.u32 %v7011, 16
        %v7373 = vrot.slane %v7371, 5
        %v7374 = vsel %vm1016, %v7369, %v7373
        %v7376 = vshrl.u32 %v7012, 16
        %v7378 = vrot.slane %v7376, 4
        %v7379 = vshll.u32 %v7012, 16
        %v7381 = vrot.slane %v7379, 5
        %v7382 = vor.u32 %v7378, %v7381
        %v7383 = vrot.slane %v7382, 4
        %v7385 = vshll.u32 %v7013, 16
        %v7387 = vrot.slane %v7385, 5
        %v7388 = vsel %vm1016, %v7383, %v7387
        %v7389 = vshrl.u32 %v7013, 16
        %v7391 = vrot.slane %v7389, 4
        %v7392 = vor.u32 %v7391, %v7387
        %v7393 = vrot.slane %v7392, 4
        %v7395 = vshll.u32 %v7014, 16
        %v7397 = vrot.slane %v7395, 5
        %v7398 = vsel %vm1016, %v7393, %v7397
        %v7399 = vunpack.c.l.b16 %v7028
        %v7400 = vunpack.c.l.b16 %v7038
        %v7401 = vunpack.c.l.b16 %v7052
        %v7402 = vunpack.c.l.b16 %v7062
        %v7403 = vunpack.c.l.b16 %v7076
        %v7404 = vunpack.c.l.b16 %v7086
        %v7405 = vunpack.c.l.b16 %v7100
        %v7406 = vunpack.c.l.b16 %v7110
        %v7407 = vunpack.c.l.b16 %v7124
        %v7408 = vunpack.c.l.b16 %v7134
        %v7409 = vunpack.c.l.b16 %v7148
        %v7410 = vunpack.c.l.b16 %v7158
        %v7411 = vunpack.c.l.b16 %v7172
        %v7412 = vunpack.c.l.b16 %v7182
        %v7413 = vunpack.c.l.b16 %v7196
        %v7414 = vunpack.c.l.b16 %v7206
        %v7415 = vunpack.c.l.b16 %v7220
        %v7416 = vunpack.c.l.b16 %v7230
        %v7417 = vunpack.c.l.b16 %v7244
        %v7418 = vunpack.c.l.b16 %v7254
        %v7419 = vunpack.c.l.b16 %v7268
        %v7420 = vunpack.c.l.b16 %v7278
        %v7421 = vunpack.c.l.b16 %v7292
        %v7422 = vunpack.c.l.b16 %v7302
        %v7423 = vunpack.c.l.b16 %v7316
        %v7424 = vunpack.c.l.b16 %v7326
        %v7425 = vunpack.c.l.b16 %v7340
        %v7426 = vunpack.c.l.b16 %v7350
        %v7427 = vunpack.c.l.b16 %v7364
        %v7428 = vunpack.c.l.b16 %v7374
        %v7429 = vunpack.c.l.b16 %v7388
        %v7430 = vunpack.c.l.b16 %v7398
        %v7431 = vpack.c.b16 %v7400, %v7399
        %v7432 = vpack.c.b16 %v7402, %v7401
        %v7433 = vpack.c.b16 %v7404, %v7403
        %v7434 = vpack.c.b16 %v7406, %v7405
        %v7435 = vpack.c.b16 %v7408, %v7407
        %v7436 = vpack.c.b16 %v7410, %v7409
        %v7437 = vpack.c.b16 %v7412, %v7411
        %v7438 = vpack.c.b16 %v7414, %v7413
        %v7439 = vpack.c.b16 %v7416, %v7415
        %v7440 = vpack.c.b16 %v7418, %v7417
        %v7441 = vpack.c.b16 %v7420, %v7419
        %v7442 = vpack.c.b16 %v7422, %v7421
        %v7443 = vpack.c.b16 %v7424, %v7423
        %v7444 = vpack.c.b16 %v7426, %v7425
        %v7445 = vpack.c.b16 %v7428, %v7427
        %v7446 = vpack.c.b16 %v7430, %v7429
        %7463 = vst [vmem:[#allocation5 + $0x20] sm:$0xff] %v7431
        %7464 = vst [vmem:[#allocation5 + $0x68] sm:$0xff] %v7432
        %7465 = vst [vmem:[#allocation5 + $0xb0] sm:$0xff] %v7433
        %7466 = vst [vmem:[#allocation5 + $0xf8] sm:$0xff] %v7434
        %7467 = vst [vmem:[#allocation5 + $0x140] sm:$0xff] %v7435
        %7468 = vst [vmem:[#allocation5 + $0x188] sm:$0xff] %v7436
        %7469 = vst [vmem:[#allocation5 + $0x1d0] sm:$0xff] %v7437
        %7470 = vst [vmem:[#allocation5 + $0x218] sm:$0xff] %v7438
        %7471 = vst [vmem:[#allocation5 + $0x260] sm:$0xff] %v7439
        %7472 = vst [vmem:[#allocation5 + $0x2a8] sm:$0xff] %v7440
        %7473 = vst [vmem:[#allocation5 + $0x2f0] sm:$0xff] %v7441
        %7474 = vst [vmem:[#allocation5 + $0x338] sm:$0xff] %v7442
        %7475 = vst [vmem:[#allocation5 + $0x380] sm:$0xff] %v7443
        %7476 = vst [vmem:[#allocation5 + $0x3c8] sm:$0xff] %v7444
        %7477 = vst [vmem:[#allocation5 + $0x410] sm:$0xff] %v7445
        %7478 = vst [vmem:[#allocation5 + $0x458] sm:$0xff] %v7446
        %v7479 = vld [vmem:[%s5766] sm:$0xe]
        %v7480 = vld [vmem:[%s5766 + $0x4] sm:$0xf]
        %v7481 = vld [vmem:[%s5766 + $0x8] sm:$0x1]
        %v7482 = vld [vmem:[%s5766 + $0xc] sm:$0xe]
        %v7483 = vld [vmem:[%s5766 + $0x10] sm:$0xf]
        %v7484 = vld [vmem:[%s5766 + $0x14] sm:$0x1]
        %v7485 = vld [vmem:[%s5766 + $0x18] sm:$0xe]
        %v7486 = vld [vmem:[%s5766 + $0x1c] sm:$0xf]
        %v7487 = vld [vmem:[%s5766 + $0x20] sm:$0x1]
        %v7488 = vld [vmem:[%s5766 + $0x24] sm:$0xe]
        %v7489 = vld [vmem:[%s5766 + $0x28] sm:$0xf]
        %v7490 = vld [vmem:[%s5766 + $0x2c] sm:$0x1]
        %v7491 = vld [vmem:[%s5766 + $0x30] sm:$0xe]
        %v7492 = vld [vmem:[%s5766 + $0x34] sm:$0xf]
        %v7493 = vld [vmem:[%s5766 + $0x38] sm:$0x1]
        %v7494 = vld [vmem:[%s5766 + $0x3c] sm:$0xe]
        %v7495 = vld [vmem:[%s5766 + $0x40] sm:$0xf]
        %v7496 = vld [vmem:[%s5766 + $0x44] sm:$0x1]
        %v7497 = vld [vmem:[%s5766 + $0x48] sm:$0xe]
        %v7498 = vld [vmem:[%s5766 + $0x4c] sm:$0xf]
        %v7499 = vld [vmem:[%s5766 + $0x50] sm:$0x1]
        %v7500 = vld [vmem:[%s5766 + $0x54] sm:$0xe]
        %v7501 = vld [vmem:[%s5766 + $0x58] sm:$0xf]
        %v7502 = vld [vmem:[%s5766 + $0x5c] sm:$0x1]
        %v7503 = vld [vmem:[%s5766 + $0x60] sm:$0xe]
        %v7504 = vld [vmem:[%s5766 + $0x64] sm:$0xf]
        %v7505 = vld [vmem:[%s5766 + $0x68] sm:$0x1]
        %v7506 = vld [vmem:[%s5766 + $0x6c] sm:$0xe]
        %v7507 = vld [vmem:[%s5766 + $0x70] sm:$0xf]
        %v7508 = vld [vmem:[%s5766 + $0x74] sm:$0x1]
        %v7509 = vld [vmem:[%s5766 + $0x78] sm:$0xe]
        %v7510 = vld [vmem:[%s5766 + $0x7c] sm:$0xf]
        %v7511 = vld [vmem:[%s5766 + $0x80] sm:$0x1]
        %v7512 = vld [vmem:[%s5766 + $0x84] sm:$0xe]
        %v7513 = vld [vmem:[%s5766 + $0x88] sm:$0xf]
        %v7514 = vld [vmem:[%s5766 + $0x8c] sm:$0x1]
        %v7515 = vld [vmem:[%s5766 + $0x90] sm:$0xe]
        %v7516 = vld [vmem:[%s5766 + $0x94] sm:$0xf]
        %v7517 = vld [vmem:[%s5766 + $0x98] sm:$0x1]
        %v7518 = vld [vmem:[%s5766 + $0x9c] sm:$0xe]
        %v7519 = vld [vmem:[%s5766 + $0xa0] sm:$0xf]
        %v7520 = vld [vmem:[%s5766 + $0xa4] sm:$0x1]
        %v7521 = vld [vmem:[%s5766 + $0xa8] sm:$0xe]
        %v7522 = vld [vmem:[%s5766 + $0xac] sm:$0xf]
        %v7523 = vld [vmem:[%s5766 + $0xb0] sm:$0x1]
        %v7524 = vld [vmem:[%s5766 + $0xb4] sm:$0xe]
        %v7525 = vld [vmem:[%s5766 + $0xb8] sm:$0xf]
        %v7526 = vld [vmem:[%s5766 + $0xbc] sm:$0x1]
        %v7575 = vrot.slane %v7479, 5
        %v7576 = vrot.slane %v7575, 4
        %v7577 = vrot.slane %v7480, 5
        %v7578 = vsel %vm1579, %v7576, %v7577
        %v7579 = vrot.slane %v7577, 4
        %v7580 = vrot.slane %v7481, 5
        %v7581 = vsel %vm1579, %v7579, %v7580
        %v7582 = vrot.slane %v7482, 5
        %v7583 = vrot.slane %v7582, 4
        %v7584 = vrot.slane %v7483, 5
        %v7585 = vsel %vm1579, %v7583, %v7584
        %v7586 = vrot.slane %v7584, 4
        %v7587 = vrot.slane %v7484, 5
        %v7588 = vsel %vm1579, %v7586, %v7587
        %v7589 = vrot.slane %v7485, 5
        %v7590 = vrot.slane %v7589, 4
        %v7591 = vrot.slane %v7486, 5
        %v7592 = vsel %vm1579, %v7590, %v7591
        %v7593 = vrot.slane %v7591, 4
        %v7594 = vrot.slane %v7487, 5
        %v7595 = vsel %vm1579, %v7593, %v7594
        %v7596 = vrot.slane %v7488, 5
        %v7597 = vrot.slane %v7596, 4
        %v7598 = vrot.slane %v7489, 5
        %v7599 = vsel %vm1579, %v7597, %v7598
        %v7600 = vrot.slane %v7598, 4
        %v7601 = vrot.slane %v7490, 5
        %v7602 = vsel %vm1579, %v7600, %v7601
        %v7603 = vrot.slane %v7491, 5
        %v7604 = vrot.slane %v7603, 4
        %v7605 = vrot.slane %v7492, 5
        %v7606 = vsel %vm1579, %v7604, %v7605
        %v7607 = vrot.slane %v7605, 4
        %v7608 = vrot.slane %v7493, 5
        %v7609 = vsel %vm1579, %v7607, %v7608
        %v7610 = vrot.slane %v7494, 5
        %v7611 = vrot.slane %v7610, 4
        %v7612 = vrot.slane %v7495, 5
        %v7613 = vsel %vm1579, %v7611, %v7612
        %v7614 = vrot.slane %v7612, 4
        %v7615 = vrot.slane %v7496, 5
        %v7616 = vsel %vm1579, %v7614, %v7615
        %v7617 = vrot.slane %v7497, 5
        %v7618 = vrot.slane %v7617, 4
        %v7619 = vrot.slane %v7498, 5
        %v7620 = vsel %vm1579, %v7618, %v7619
        %v7621 = vrot.slane %v7619, 4
        %v7622 = vrot.slane %v7499, 5
        %v7623 = vsel %vm1579, %v7621, %v7622
        %v7624 = vrot.slane %v7500, 5
        %v7625 = vrot.slane %v7624, 4
        %v7626 = vrot.slane %v7501, 5
        %v7627 = vsel %vm1579, %v7625, %v7626
        %v7628 = vrot.slane %v7626, 4
        %v7629 = vrot.slane %v7502, 5
        %v7630 = vsel %vm1579, %v7628, %v7629
        %v7631 = vrot.slane %v7503, 5
        %v7632 = vrot.slane %v7631, 4
        %v7633 = vrot.slane %v7504, 5
        %v7634 = vsel %vm1579, %v7632, %v7633
        %v7635 = vrot.slane %v7633, 4
        %v7636 = vrot.slane %v7505, 5
        %v7637 = vsel %vm1579, %v7635, %v7636
        %v7638 = vrot.slane %v7506, 5
        %v7639 = vrot.slane %v7638, 4
        %v7640 = vrot.slane %v7507, 5
        %v7641 = vsel %vm1579, %v7639, %v7640
        %v7642 = vrot.slane %v7640, 4
        %v7643 = vrot.slane %v7508, 5
        %v7644 = vsel %vm1579, %v7642, %v7643
        %v7645 = vrot.slane %v7509, 5
        %v7646 = vrot.slane %v7645, 4
        %v7647 = vrot.slane %v7510, 5
        %v7648 = vsel %vm1579, %v7646, %v7647
        %v7649 = vrot.slane %v7647, 4
        %v7650 = vrot.slane %v7511, 5
        %v7651 = vsel %vm1579, %v7649, %v7650
        %v7652 = vrot.slane %v7512, 5
        %v7653 = vrot.slane %v7652, 4
        %v7654 = vrot.slane %v7513, 5
        %v7655 = vsel %vm1579, %v7653, %v7654
        %v7656 = vrot.slane %v7654, 4
        %v7657 = vrot.slane %v7514, 5
        %v7658 = vsel %vm1579, %v7656, %v7657
        %v7659 = vrot.slane %v7515, 5
        %v7660 = vrot.slane %v7659, 4
        %v7661 = vrot.slane %v7516, 5
        %v7662 = vsel %vm1579, %v7660, %v7661
        %v7663 = vrot.slane %v7661, 4
        %v7664 = vrot.slane %v7517, 5
        %v7665 = vsel %vm1579, %v7663, %v7664
        %v7666 = vrot.slane %v7518, 5
        %v7667 = vrot.slane %v7666, 4
        %v7668 = vrot.slane %v7519, 5
        %v7669 = vsel %vm1579, %v7667, %v7668
        %v7670 = vrot.slane %v7668, 4
        %v7671 = vrot.slane %v7520, 5
        %v7672 = vsel %vm1579, %v7670, %v7671
        %v7673 = vrot.slane %v7521, 5
        %v7674 = vrot.slane %v7673, 4
        %v7675 = vrot.slane %v7522, 5
        %v7676 = vsel %vm1579, %v7674, %v7675
        %v7677 = vrot.slane %v7675, 4
        %v7678 = vrot.slane %v7523, 5
        %v7679 = vsel %vm1579, %v7677, %v7678
        %v7680 = vrot.slane %v7524, 5
        %v7681 = vrot.slane %v7680, 4
        %v7682 = vrot.slane %v7525, 5
        %v7683 = vsel %vm1579, %v7681, %v7682
        %v7684 = vrot.slane %v7682, 4
        %v7685 = vrot.slane %v7526, 5
        %v7686 = vsel %vm1579, %v7684, %v7685
        %v7687 = vunpack.c.l.b16 %v7578
        %v7688 = vunpack.c.l.b16 %v7581
        %v7689 = vunpack.c.l.b16 %v7585
        %v7690 = vunpack.c.l.b16 %v7588
        %v7691 = vunpack.c.l.b16 %v7592
        %v7692 = vunpack.c.l.b16 %v7595
        %v7693 = vunpack.c.l.b16 %v7599
        %v7694 = vunpack.c.l.b16 %v7602
        %v7695 = vunpack.c.l.b16 %v7606
        %v7696 = vunpack.c.l.b16 %v7609
        %v7697 = vunpack.c.l.b16 %v7613
        %v7698 = vunpack.c.l.b16 %v7616
        %v7699 = vunpack.c.l.b16 %v7620
        %v7700 = vunpack.c.l.b16 %v7623
        %v7701 = vunpack.c.l.b16 %v7627
        %v7702 = vunpack.c.l.b16 %v7630
        %v7703 = vunpack.c.l.b16 %v7634
        %v7704 = vunpack.c.l.b16 %v7637
        %v7705 = vunpack.c.l.b16 %v7641
        %v7706 = vunpack.c.l.b16 %v7644
        %v7707 = vunpack.c.l.b16 %v7648
        %v7708 = vunpack.c.l.b16 %v7651
        %v7709 = vunpack.c.l.b16 %v7655
        %v7710 = vunpack.c.l.b16 %v7658
        %v7711 = vunpack.c.l.b16 %v7662
        %v7712 = vunpack.c.l.b16 %v7665
        %v7713 = vunpack.c.l.b16 %v7669
        %v7714 = vunpack.c.l.b16 %v7672
        %v7715 = vunpack.c.l.b16 %v7676
        %v7716 = vunpack.c.l.b16 %v7679
        %v7717 = vunpack.c.l.b16 %v7683
        %v7718 = vunpack.c.l.b16 %v7686
        %v7719 = vpack.c.b16 %v7688, %v7687
        %v7720 = vpack.c.b16 %v7690, %v7689
        %v7721 = vpack.c.b16 %v7692, %v7691
        %v7722 = vpack.c.b16 %v7694, %v7693
        %v7723 = vpack.c.b16 %v7696, %v7695
        %v7724 = vpack.c.b16 %v7698, %v7697
        %v7725 = vpack.c.b16 %v7700, %v7699
        %v7726 = vpack.c.b16 %v7702, %v7701
        %v7727 = vpack.c.b16 %v7704, %v7703
        %v7728 = vpack.c.b16 %v7706, %v7705
        %v7729 = vpack.c.b16 %v7708, %v7707
        %v7730 = vpack.c.b16 %v7710, %v7709
        %v7731 = vpack.c.b16 %v7712, %v7711
        %v7732 = vpack.c.b16 %v7714, %v7713
        %v7733 = vpack.c.b16 %v7716, %v7715
        %v7734 = vpack.c.b16 %v7718, %v7717
        %7751 = vst [vmem:[#allocation5 + $0x28] sm:$0xff] %v7719
        %7752 = vst [vmem:[#allocation5 + $0x70] sm:$0xff] %v7720
        %7753 = vst [vmem:[#allocation5 + $0xb8] sm:$0xff] %v7721
        %7754 = vst [vmem:[#allocation5 + $0x100] sm:$0xff] %v7722
        %7755 = vst [vmem:[#allocation5 + $0x148] sm:$0xff] %v7723
        %7756 = vst [vmem:[#allocation5 + $0x190] sm:$0xff] %v7724
        %7757 = vst [vmem:[#allocation5 + $0x1d8] sm:$0xff] %v7725
        %7758 = vst [vmem:[#allocation5 + $0x220] sm:$0xff] %v7726
        %7759 = vst [vmem:[#allocation5 + $0x268] sm:$0xff] %v7727
        %7760 = vst [vmem:[#allocation5 + $0x2b0] sm:$0xff] %v7728
        %7761 = vst [vmem:[#allocation5 + $0x2f8] sm:$0xff] %v7729
        %7762 = vst [vmem:[#allocation5 + $0x340] sm:$0xff] %v7730
        %7763 = vst [vmem:[#allocation5 + $0x388] sm:$0xff] %v7731
        %7764 = vst [vmem:[#allocation5 + $0x3d0] sm:$0xff] %v7732
        %7765 = vst [vmem:[#allocation5 + $0x418] sm:$0xff] %v7733
        %7766 = vst [vmem:[#allocation5 + $0x460] sm:$0xff] %v7734
        %s7767 = scalar_lea.vmem [#allocation3], 24
        %v7768 = vld [vmem:[%s7767] sm:$0xf]
        %v7769 = vld [vmem:[%s7767 + $0x4] sm:$0xf]
        %v7770 = vld [vmem:[%s7767 + $0xc] sm:$0xf]
        %v7771 = vld [vmem:[%s7767 + $0x10] sm:$0xf]
        %v7772 = vld [vmem:[%s7767 + $0x18] sm:$0xf]
        %v7773 = vld [vmem:[%s7767 + $0x1c] sm:$0xf]
        %v7774 = vld [vmem:[%s7767 + $0x24] sm:$0xf]
        %v7775 = vld [vmem:[%s7767 + $0x28] sm:$0xf]
        %v7776 = vld [vmem:[%s7767 + $0x30] sm:$0xf]
        %v7777 = vld [vmem:[%s7767 + $0x34] sm:$0xf]
        %v7778 = vld [vmem:[%s7767 + $0x3c] sm:$0xf]
        %v7779 = vld [vmem:[%s7767 + $0x40] sm:$0xf]
        %v7780 = vld [vmem:[%s7767 + $0x48] sm:$0xf]
        %v7781 = vld [vmem:[%s7767 + $0x4c] sm:$0xf]
        %v7782 = vld [vmem:[%s7767 + $0x54] sm:$0xf]
        %v7783 = vld [vmem:[%s7767 + $0x58] sm:$0xf]
        %v7784 = vld [vmem:[%s7767 + $0x60] sm:$0xf]
        %v7785 = vld [vmem:[%s7767 + $0x64] sm:$0xf]
        %v7786 = vld [vmem:[%s7767 + $0x6c] sm:$0xf]
        %v7787 = vld [vmem:[%s7767 + $0x70] sm:$0xf]
        %v7788 = vld [vmem:[%s7767 + $0x78] sm:$0xf]
        %v7789 = vld [vmem:[%s7767 + $0x7c] sm:$0xf]
        %v7790 = vld [vmem:[%s7767 + $0x84] sm:$0xf]
        %v7791 = vld [vmem:[%s7767 + $0x88] sm:$0xf]
        %v7792 = vld [vmem:[%s7767 + $0x90] sm:$0xf]
        %v7793 = vld [vmem:[%s7767 + $0x94] sm:$0xf]
        %v7794 = vld [vmem:[%s7767 + $0x9c] sm:$0xf]
        %v7795 = vld [vmem:[%s7767 + $0xa0] sm:$0xf]
        %v7796 = vld [vmem:[%s7767 + $0xa8] sm:$0xf]
        %v7797 = vld [vmem:[%s7767 + $0xac] sm:$0xf]
        %v7798 = vld [vmem:[%s7767 + $0xb4] sm:$0xf]
        %v7799 = vld [vmem:[%s7767 + $0xb8] sm:$0xf]
        %v7832 = vunpack.c.l.b16 %v7768
        %v7833 = vunpack.c.l.b16 %v7769
        %v7834 = vunpack.c.l.b16 %v7770
        %v7835 = vunpack.c.l.b16 %v7771
        %v7836 = vunpack.c.l.b16 %v7772
        %v7837 = vunpack.c.l.b16 %v7773
        %v7838 = vunpack.c.l.b16 %v7774
        %v7839 = vunpack.c.l.b16 %v7775
        %v7840 = vunpack.c.l.b16 %v7776
        %v7841 = vunpack.c.l.b16 %v7777
        %v7842 = vunpack.c.l.b16 %v7778
        %v7843 = vunpack.c.l.b16 %v7779
        %v7844 = vunpack.c.l.b16 %v7780
        %v7845 = vunpack.c.l.b16 %v7781
        %v7846 = vunpack.c.l.b16 %v7782
        %v7847 = vunpack.c.l.b16 %v7783
        %v7848 = vunpack.c.l.b16 %v7784
        %v7849 = vunpack.c.l.b16 %v7785
        %v7850 = vunpack.c.l.b16 %v7786
        %v7851 = vunpack.c.l.b16 %v7787
        %v7852 = vunpack.c.l.b16 %v7788
        %v7853 = vunpack.c.l.b16 %v7789
        %v7854 = vunpack.c.l.b16 %v7790
        %v7855 = vunpack.c.l.b16 %v7791
        %v7856 = vunpack.c.l.b16 %v7792
        %v7857 = vunpack.c.l.b16 %v7793
        %v7858 = vunpack.c.l.b16 %v7794
        %v7859 = vunpack.c.l.b16 %v7795
        %v7860 = vunpack.c.l.b16 %v7796
        %v7861 = vunpack.c.l.b16 %v7797
        %v7862 = vunpack.c.l.b16 %v7798
        %v7863 = vunpack.c.l.b16 %v7799
        %v7864 = vpack.c.b16 %v7833, %v7832
        %v7865 = vpack.c.b16 %v7835, %v7834
        %v7866 = vpack.c.b16 %v7837, %v7836
        %v7867 = vpack.c.b16 %v7839, %v7838
        %v7868 = vpack.c.b16 %v7841, %v7840
        %v7869 = vpack.c.b16 %v7843, %v7842
        %v7870 = vpack.c.b16 %v7845, %v7844
        %v7871 = vpack.c.b16 %v7847, %v7846
        %v7872 = vpack.c.b16 %v7849, %v7848
        %v7873 = vpack.c.b16 %v7851, %v7850
        %v7874 = vpack.c.b16 %v7853, %v7852
        %v7875 = vpack.c.b16 %v7855, %v7854
        %v7876 = vpack.c.b16 %v7857, %v7856
        %v7877 = vpack.c.b16 %v7859, %v7858
        %v7878 = vpack.c.b16 %v7861, %v7860
        %v7879 = vpack.c.b16 %v7863, %v7862
        %7896 = vst [vmem:[#allocation5 + $0x30] sm:$0xff] %v7864
        %7897 = vst [vmem:[#allocation5 + $0x78] sm:$0xff] %v7865
        %7898 = vst [vmem:[#allocation5 + $0xc0] sm:$0xff] %v7866
        %7899 = vst [vmem:[#allocation5 + $0x108] sm:$0xff] %v7867
        %7900 = vst [vmem:[#allocation5 + $0x150] sm:$0xff] %v7868
        %7901 = vst [vmem:[#allocation5 + $0x198] sm:$0xff] %v7869
        %7902 = vst [vmem:[#allocation5 + $0x1e0] sm:$0xff] %v7870
        %7903 = vst [vmem:[#allocation5 + $0x228] sm:$0xff] %v7871
        %7904 = vst [vmem:[#allocation5 + $0x270] sm:$0xff] %v7872
        %7905 = vst [vmem:[#allocation5 + $0x2b8] sm:$0xff] %v7873
        %7906 = vst [vmem:[#allocation5 + $0x300] sm:$0xff] %v7874
        %7907 = vst [vmem:[#allocation5 + $0x348] sm:$0xff] %v7875
        %7908 = vst [vmem:[#allocation5 + $0x390] sm:$0xff] %v7876
        %7909 = vst [vmem:[#allocation5 + $0x3d8] sm:$0xff] %v7877
        %7910 = vst [vmem:[#allocation5 + $0x420] sm:$0xff] %v7878
        %7911 = vst [vmem:[#allocation5 + $0x468] sm:$0xff] %v7879
        %v7912 = vld [vmem:[%s7767] sm:$0xf]
        %v7913 = vld [vmem:[%s7767 + $0x4] sm:$0xf]
        %v7914 = vld [vmem:[%s7767 + $0x8] sm:$0x1]
        %v7915 = vld [vmem:[%s7767 + $0xc] sm:$0xf]
        %v7916 = vld [vmem:[%s7767 + $0x10] sm:$0xf]
        %v7917 = vld [vmem:[%s7767 + $0x14] sm:$0x1]
        %v7918 = vld [vmem:[%s7767 + $0x18] sm:$0xf]
        %v7919 = vld [vmem:[%s7767 + $0x1c] sm:$0xf]
        %v7920 = vld [vmem:[%s7767 + $0x20] sm:$0x1]
        %v7921 = vld [vmem:[%s7767 + $0x24] sm:$0xf]
        %v7922 = vld [vmem:[%s7767 + $0x28] sm:$0xf]
        %v7923 = vld [vmem:[%s7767 + $0x2c] sm:$0x1]
        %v7924 = vld [vmem:[%s7767 + $0x30] sm:$0xf]
        %v7925 = vld [vmem:[%s7767 + $0x34] sm:$0xf]
        %v7926 = vld [vmem:[%s7767 + $0x38] sm:$0x1]
        %v7927 = vld [vmem:[%s7767 + $0x3c] sm:$0xf]
        %v7928 = vld [vmem:[%s7767 + $0x40] sm:$0xf]
        %v7929 = vld [vmem:[%s7767 + $0x44] sm:$0x1]
        %v7930 = vld [vmem:[%s7767 + $0x48] sm:$0xf]
        %v7931 = vld [vmem:[%s7767 + $0x4c] sm:$0xf]
        %v7932 = vld [vmem:[%s7767 + $0x50] sm:$0x1]
        %v7933 = vld [vmem:[%s7767 + $0x54] sm:$0xf]
        %v7934 = vld [vmem:[%s7767 + $0x58] sm:$0xf]
        %v7935 = vld [vmem:[%s7767 + $0x5c] sm:$0x1]
        %v7936 = vld [vmem:[%s7767 + $0x60] sm:$0xf]
        %v7937 = vld [vmem:[%s7767 + $0x64] sm:$0xf]
        %v7938 = vld [vmem:[%s7767 + $0x68] sm:$0x1]
        %v7939 = vld [vmem:[%s7767 + $0x6c] sm:$0xf]
        %v7940 = vld [vmem:[%s7767 + $0x70] sm:$0xf]
        %v7941 = vld [vmem:[%s7767 + $0x74] sm:$0x1]
        %v7942 = vld [vmem:[%s7767 + $0x78] sm:$0xf]
        %v7943 = vld [vmem:[%s7767 + $0x7c] sm:$0xf]
        %v7944 = vld [vmem:[%s7767 + $0x80] sm:$0x1]
        %v7945 = vld [vmem:[%s7767 + $0x84] sm:$0xf]
        %v7946 = vld [vmem:[%s7767 + $0x88] sm:$0xf]
        %v7947 = vld [vmem:[%s7767 + $0x8c] sm:$0x1]
        %v7948 = vld [vmem:[%s7767 + $0x90] sm:$0xf]
        %v7949 = vld [vmem:[%s7767 + $0x94] sm:$0xf]
        %v7950 = vld [vmem:[%s7767 + $0x98] sm:$0x1]
        %v7951 = vld [vmem:[%s7767 + $0x9c] sm:$0xf]
        %v7952 = vld [vmem:[%s7767 + $0xa0] sm:$0xf]
        %v7953 = vld [vmem:[%s7767 + $0xa4] sm:$0x1]
        %v7954 = vld [vmem:[%s7767 + $0xa8] sm:$0xf]
        %v7955 = vld [vmem:[%s7767 + $0xac] sm:$0xf]
        %v7956 = vld [vmem:[%s7767 + $0xb0] sm:$0x1]
        %v7957 = vld [vmem:[%s7767 + $0xb4] sm:$0xf]
        %v7958 = vld [vmem:[%s7767 + $0xb8] sm:$0xf]
        %v7959 = vld [vmem:[%s7767 + $0xbc] sm:$0x1]
        %v7961 = vshrl.u32 %v7912, 16
        %v7963 = vrot.slane %v7961, 4
        %v7964 = vshll.u32 %v7912, 16
        %v7966 = vrot.slane %v7964, 5
        %v7967 = vor.u32 %v7963, %v7966
        %v7968 = vrot.slane %v7967, 4
        %v7970 = vshll.u32 %v7913, 16
        %v7972 = vrot.slane %v7970, 5
        %v7973 = vsel %vm1016, %v7968, %v7972
        %v7974 = vshrl.u32 %v7913, 16
        %v7976 = vrot.slane %v7974, 4
        %v7977 = vor.u32 %v7976, %v7972
        %v7978 = vrot.slane %v7977, 4
        %v7980 = vshll.u32 %v7914, 16
        %v7982 = vrot.slane %v7980, 5
        %v7983 = vsel %vm1016, %v7978, %v7982
        %v7985 = vshrl.u32 %v7915, 16
        %v7987 = vrot.slane %v7985, 4
        %v7988 = vshll.u32 %v7915, 16
        %v7990 = vrot.slane %v7988, 5
        %v7991 = vor.u32 %v7987, %v7990
        %v7992 = vrot.slane %v7991, 4
        %v7994 = vshll.u32 %v7916, 16
        %v7996 = vrot.slane %v7994, 5
        %v7997 = vsel %vm1016, %v7992, %v7996
        %v7998 = vshrl.u32 %v7916, 16
        %v8000 = vrot.slane %v7998, 4
        %v8001 = vor.u32 %v8000, %v7996
        %v8002 = vrot.slane %v8001, 4
        %v8004 = vshll.u32 %v7917, 16
        %v8006 = vrot.slane %v8004, 5
        %v8007 = vsel %vm1016, %v8002, %v8006
        %v8009 = vshrl.u32 %v7918, 16
        %v8011 = vrot.slane %v8009, 4
        %v8012 = vshll.u32 %v7918, 16
        %v8014 = vrot.slane %v8012, 5
        %v8015 = vor.u32 %v8011, %v8014
        %v8016 = vrot.slane %v8015, 4
        %v8018 = vshll.u32 %v7919, 16
        %v8020 = vrot.slane %v8018, 5
        %v8021 = vsel %vm1016, %v8016, %v8020
        %v8022 = vshrl.u32 %v7919, 16
        %v8024 = vrot.slane %v8022, 4
        %v8025 = vor.u32 %v8024, %v8020
        %v8026 = vrot.slane %v8025, 4
        %v8028 = vshll.u32 %v7920, 16
        %v8030 = vrot.slane %v8028, 5
        %v8031 = vsel %vm1016, %v8026, %v8030
        %v8033 = vshrl.u32 %v7921, 16
        %v8035 = vrot.slane %v8033, 4
        %v8036 = vshll.u32 %v7921, 16
        %v8038 = vrot.slane %v8036, 5
        %v8039 = vor.u32 %v8035, %v8038
        %v8040 = vrot.slane %v8039, 4
        %v8042 = vshll.u32 %v7922, 16
        %v8044 = vrot.slane %v8042, 5
        %v8045 = vsel %vm1016, %v8040, %v8044
        %v8046 = vshrl.u32 %v7922, 16
        %v8048 = vrot.slane %v8046, 4
        %v8049 = vor.u32 %v8048, %v8044
        %v8050 = vrot.slane %v8049, 4
        %v8052 = vshll.u32 %v7923, 16
        %v8054 = vrot.slane %v8052, 5
        %v8055 = vsel %vm1016, %v8050, %v8054
        %v8057 = vshrl.u32 %v7924, 16
        %v8059 = vrot.slane %v8057, 4
        %v8060 = vshll.u32 %v7924, 16
        %v8062 = vrot.slane %v8060, 5
        %v8063 = vor.u32 %v8059, %v8062
        %v8064 = vrot.slane %v8063, 4
        %v8066 = vshll.u32 %v7925, 16
        %v8068 = vrot.slane %v8066, 5
        %v8069 = vsel %vm1016, %v8064, %v8068
        %v8070 = vshrl.u32 %v7925, 16
        %v8072 = vrot.slane %v8070, 4
        %v8073 = vor.u32 %v8072, %v8068
        %v8074 = vrot.slane %v8073, 4
        %v8076 = vshll.u32 %v7926, 16
        %v8078 = vrot.slane %v8076, 5
        %v8079 = vsel %vm1016, %v8074, %v8078
        %v8081 = vshrl.u32 %v7927, 16
        %v8083 = vrot.slane %v8081, 4
        %v8084 = vshll.u32 %v7927, 16
        %v8086 = vrot.slane %v8084, 5
        %v8087 = vor.u32 %v8083, %v8086
        %v8088 = vrot.slane %v8087, 4
        %v8090 = vshll.u32 %v7928, 16
        %v8092 = vrot.slane %v8090, 5
        %v8093 = vsel %vm1016, %v8088, %v8092
        %v8094 = vshrl.u32 %v7928, 16
        %v8096 = vrot.slane %v8094, 4
        %v8097 = vor.u32 %v8096, %v8092
        %v8098 = vrot.slane %v8097, 4
        %v8100 = vshll.u32 %v7929, 16
        %v8102 = vrot.slane %v8100, 5
        %v8103 = vsel %vm1016, %v8098, %v8102
        %v8105 = vshrl.u32 %v7930, 16
        %v8107 = vrot.slane %v8105, 4
        %v8108 = vshll.u32 %v7930, 16
        %v8110 = vrot.slane %v8108, 5
        %v8111 = vor.u32 %v8107, %v8110
        %v8112 = vrot.slane %v8111, 4
        %v8114 = vshll.u32 %v7931, 16
        %v8116 = vrot.slane %v8114, 5
        %v8117 = vsel %vm1016, %v8112, %v8116
        %v8118 = vshrl.u32 %v7931, 16
        %v8120 = vrot.slane %v8118, 4
        %v8121 = vor.u32 %v8120, %v8116
        %v8122 = vrot.slane %v8121, 4
        %v8124 = vshll.u32 %v7932, 16
        %v8126 = vrot.slane %v8124, 5
        %v8127 = vsel %vm1016, %v8122, %v8126
        %v8129 = vshrl.u32 %v7933, 16
        %v8131 = vrot.slane %v8129, 4
        %v8132 = vshll.u32 %v7933, 16
        %v8134 = vrot.slane %v8132, 5
        %v8135 = vor.u32 %v8131, %v8134
        %v8136 = vrot.slane %v8135, 4
        %v8138 = vshll.u32 %v7934, 16
        %v8140 = vrot.slane %v8138, 5
        %v8141 = vsel %vm1016, %v8136, %v8140
        %v8142 = vshrl.u32 %v7934, 16
        %v8144 = vrot.slane %v8142, 4
        %v8145 = vor.u32 %v8144, %v8140
        %v8146 = vrot.slane %v8145, 4
        %v8148 = vshll.u32 %v7935, 16
        %v8150 = vrot.slane %v8148, 5
        %v8151 = vsel %vm1016, %v8146, %v8150
        %v8153 = vshrl.u32 %v7936, 16
        %v8155 = vrot.slane %v8153, 4
        %v8156 = vshll.u32 %v7936, 16
        %v8158 = vrot.slane %v8156, 5
        %v8159 = vor.u32 %v8155, %v8158
        %v8160 = vrot.slane %v8159, 4
        %v8162 = vshll.u32 %v7937, 16
        %v8164 = vrot.slane %v8162, 5
        %v8165 = vsel %vm1016, %v8160, %v8164
        %v8166 = vshrl.u32 %v7937, 16
        %v8168 = vrot.slane %v8166, 4
        %v8169 = vor.u32 %v8168, %v8164
        %v8170 = vrot.slane %v8169, 4
        %v8172 = vshll.u32 %v7938, 16
        %v8174 = vrot.slane %v8172, 5
        %v8175 = vsel %vm1016, %v8170, %v8174
        %v8177 = vshrl.u32 %v7939, 16
        %v8179 = vrot.slane %v8177, 4
        %v8180 = vshll.u32 %v7939, 16
        %v8182 = vrot.slane %v8180, 5
        %v8183 = vor.u32 %v8179, %v8182
        %v8184 = vrot.slane %v8183, 4
        %v8186 = vshll.u32 %v7940, 16
        %v8188 = vrot.slane %v8186, 5
        %v8189 = vsel %vm1016, %v8184, %v8188
        %v8190 = vshrl.u32 %v7940, 16
        %v8192 = vrot.slane %v8190, 4
        %v8193 = vor.u32 %v8192, %v8188
        %v8194 = vrot.slane %v8193, 4
        %v8196 = vshll.u32 %v7941, 16
        %v8198 = vrot.slane %v8196, 5
        %v8199 = vsel %vm1016, %v8194, %v8198
        %v8201 = vshrl.u32 %v7942, 16
        %v8203 = vrot.slane %v8201, 4
        %v8204 = vshll.u32 %v7942, 16
        %v8206 = vrot.slane %v8204, 5
        %v8207 = vor.u32 %v8203, %v8206
        %v8208 = vrot.slane %v8207, 4
        %v8210 = vshll.u32 %v7943, 16
        %v8212 = vrot.slane %v8210, 5
        %v8213 = vsel %vm1016, %v8208, %v8212
        %v8214 = vshrl.u32 %v7943, 16
        %v8216 = vrot.slane %v8214, 4
        %v8217 = vor.u32 %v8216, %v8212
        %v8218 = vrot.slane %v8217, 4
        %v8220 = vshll.u32 %v7944, 16
        %v8222 = vrot.slane %v8220, 5
        %v8223 = vsel %vm1016, %v8218, %v8222
        %v8225 = vshrl.u32 %v7945, 16
        %v8227 = vrot.slane %v8225, 4
        %v8228 = vshll.u32 %v7945, 16
        %v8230 = vrot.slane %v8228, 5
        %v8231 = vor.u32 %v8227, %v8230
        %v8232 = vrot.slane %v8231, 4
        %v8234 = vshll.u32 %v7946, 16
        %v8236 = vrot.slane %v8234, 5
        %v8237 = vsel %vm1016, %v8232, %v8236
        %v8238 = vshrl.u32 %v7946, 16
        %v8240 = vrot.slane %v8238, 4
        %v8241 = vor.u32 %v8240, %v8236
        %v8242 = vrot.slane %v8241, 4
        %v8244 = vshll.u32 %v7947, 16
        %v8246 = vrot.slane %v8244, 5
        %v8247 = vsel %vm1016, %v8242, %v8246
        %v8249 = vshrl.u32 %v7948, 16
        %v8251 = vrot.slane %v8249, 4
        %v8252 = vshll.u32 %v7948, 16
        %v8254 = vrot.slane %v8252, 5
        %v8255 = vor.u32 %v8251, %v8254
        %v8256 = vrot.slane %v8255, 4
        %v8258 = vshll.u32 %v7949, 16
        %v8260 = vrot.slane %v8258, 5
        %v8261 = vsel %vm1016, %v8256, %v8260
        %v8262 = vshrl.u32 %v7949, 16
        %v8264 = vrot.slane %v8262, 4
        %v8265 = vor.u32 %v8264, %v8260
        %v8266 = vrot.slane %v8265, 4
        %v8268 = vshll.u32 %v7950, 16
        %v8270 = vrot.slane %v8268, 5
        %v8271 = vsel %vm1016, %v8266, %v8270
        %v8273 = vshrl.u32 %v7951, 16
        %v8275 = vrot.slane %v8273, 4
        %v8276 = vshll.u32 %v7951, 16
        %v8278 = vrot.slane %v8276, 5
        %v8279 = vor.u32 %v8275, %v8278
        %v8280 = vrot.slane %v8279, 4
        %v8282 = vshll.u32 %v7952, 16
        %v8284 = vrot.slane %v8282, 5
        %v8285 = vsel %vm1016, %v8280, %v8284
        %v8286 = vshrl.u32 %v7952, 16
        %v8288 = vrot.slane %v8286, 4
        %v8289 = vor.u32 %v8288, %v8284
        %v8290 = vrot.slane %v8289, 4
        %v8292 = vshll.u32 %v7953, 16
        %v8294 = vrot.slane %v8292, 5
        %v8295 = vsel %vm1016, %v8290, %v8294
        %v8297 = vshrl.u32 %v7954, 16
        %v8299 = vrot.slane %v8297, 4
        %v8300 = vshll.u32 %v7954, 16
        %v8302 = vrot.slane %v8300, 5
        %v8303 = vor.u32 %v8299, %v8302
        %v8304 = vrot.slane %v8303, 4
        %v8306 = vshll.u32 %v7955, 16
        %v8308 = vrot.slane %v8306, 5
        %v8309 = vsel %vm1016, %v8304, %v8308
        %v8310 = vshrl.u32 %v7955, 16
        %v8312 = vrot.slane %v8310, 4
        %v8313 = vor.u32 %v8312, %v8308
        %v8314 = vrot.slane %v8313, 4
        %v8316 = vshll.u32 %v7956, 16
        %v8318 = vrot.slane %v8316, 5
        %v8319 = vsel %vm1016, %v8314, %v8318
        %v8321 = vshrl.u32 %v7957, 16
        %v8323 = vrot.slane %v8321, 4
        %v8324 = vshll.u32 %v7957, 16
        %v8326 = vrot.slane %v8324, 5
        %v8327 = vor.u32 %v8323, %v8326
        %v8328 = vrot.slane %v8327, 4
        %v8330 = vshll.u32 %v7958, 16
        %v8332 = vrot.slane %v8330, 5
        %v8333 = vsel %vm1016, %v8328, %v8332
        %v8334 = vshrl.u32 %v7958, 16
        %v8336 = vrot.slane %v8334, 4
        %v8337 = vor.u32 %v8336, %v8332
        %v8338 = vrot.slane %v8337, 4
        %v8340 = vshll.u32 %v7959, 16
        %v8342 = vrot.slane %v8340, 5
        %v8343 = vsel %vm1016, %v8338, %v8342
        %v8344 = vunpack.c.l.b16 %v7973
        %v8345 = vunpack.c.l.b16 %v7983
        %v8346 = vunpack.c.l.b16 %v7997
        %v8347 = vunpack.c.l.b16 %v8007
        %v8348 = vunpack.c.l.b16 %v8021
        %v8349 = vunpack.c.l.b16 %v8031
        %v8350 = vunpack.c.l.b16 %v8045
        %v8351 = vunpack.c.l.b16 %v8055
        %v8352 = vunpack.c.l.b16 %v8069
        %v8353 = vunpack.c.l.b16 %v8079
        %v8354 = vunpack.c.l.b16 %v8093
        %v8355 = vunpack.c.l.b16 %v8103
        %v8356 = vunpack.c.l.b16 %v8117
        %v8357 = vunpack.c.l.b16 %v8127
        %v8358 = vunpack.c.l.b16 %v8141
        %v8359 = vunpack.c.l.b16 %v8151
        %v8360 = vunpack.c.l.b16 %v8165
        %v8361 = vunpack.c.l.b16 %v8175
        %v8362 = vunpack.c.l.b16 %v8189
        %v8363 = vunpack.c.l.b16 %v8199
        %v8364 = vunpack.c.l.b16 %v8213
        %v8365 = vunpack.c.l.b16 %v8223
        %v8366 = vunpack.c.l.b16 %v8237
        %v8367 = vunpack.c.l.b16 %v8247
        %v8368 = vunpack.c.l.b16 %v8261
        %v8369 = vunpack.c.l.b16 %v8271
        %v8370 = vunpack.c.l.b16 %v8285
        %v8371 = vunpack.c.l.b16 %v8295
        %v8372 = vunpack.c.l.b16 %v8309
        %v8373 = vunpack.c.l.b16 %v8319
        %v8374 = vunpack.c.l.b16 %v8333
        %v8375 = vunpack.c.l.b16 %v8343
        %v8376 = vpack.c.b16 %v8345, %v8344
        %v8377 = vpack.c.b16 %v8347, %v8346
        %v8378 = vpack.c.b16 %v8349, %v8348
        %v8379 = vpack.c.b16 %v8351, %v8350
        %v8380 = vpack.c.b16 %v8353, %v8352
        %v8381 = vpack.c.b16 %v8355, %v8354
        %v8382 = vpack.c.b16 %v8357, %v8356
        %v8383 = vpack.c.b16 %v8359, %v8358
        %v8384 = vpack.c.b16 %v8361, %v8360
        %v8385 = vpack.c.b16 %v8363, %v8362
        %v8386 = vpack.c.b16 %v8365, %v8364
        %v8387 = vpack.c.b16 %v8367, %v8366
        %v8388 = vpack.c.b16 %v8369, %v8368
        %v8389 = vpack.c.b16 %v8371, %v8370
        %v8390 = vpack.c.b16 %v8373, %v8372
        %v8391 = vpack.c.b16 %v8375, %v8374
        %8408 = vst [vmem:[#allocation5 + $0x38] sm:$0xff] %v8376
        %8409 = vst [vmem:[#allocation5 + $0x80] sm:$0xff] %v8377
        %8410 = vst [vmem:[#allocation5 + $0xc8] sm:$0xff] %v8378
        %8411 = vst [vmem:[#allocation5 + $0x110] sm:$0xff] %v8379
        %8412 = vst [vmem:[#allocation5 + $0x158] sm:$0xff] %v8380
        %8413 = vst [vmem:[#allocation5 + $0x1a0] sm:$0xff] %v8381
        %8414 = vst [vmem:[#allocation5 + $0x1e8] sm:$0xff] %v8382
        %8415 = vst [vmem:[#allocation5 + $0x230] sm:$0xff] %v8383
        %8416 = vst [vmem:[#allocation5 + $0x278] sm:$0xff] %v8384
        %8417 = vst [vmem:[#allocation5 + $0x2c0] sm:$0xff] %v8385
        %8418 = vst [vmem:[#allocation5 + $0x308] sm:$0xff] %v8386
        %8419 = vst [vmem:[#allocation5 + $0x350] sm:$0xff] %v8387
        %8420 = vst [vmem:[#allocation5 + $0x398] sm:$0xff] %v8388
        %8421 = vst [vmem:[#allocation5 + $0x3e0] sm:$0xff] %v8389
        %8422 = vst [vmem:[#allocation5 + $0x428] sm:$0xff] %v8390
        %8423 = vst [vmem:[#allocation5 + $0x470] sm:$0xff] %v8391
        %v8424 = vld [vmem:[%s7767] sm:$0xe]
        %v8425 = vld [vmem:[%s7767 + $0x4] sm:$0xf]
        %v8426 = vld [vmem:[%s7767 + $0x8] sm:$0x1]
        %v8427 = vld [vmem:[%s7767 + $0xc] sm:$0xe]
        %v8428 = vld [vmem:[%s7767 + $0x10] sm:$0xf]
        %v8429 = vld [vmem:[%s7767 + $0x14] sm:$0x1]
        %v8430 = vld [vmem:[%s7767 + $0x18] sm:$0xe]
        %v8431 = vld [vmem:[%s7767 + $0x1c] sm:$0xf]
        %v8432 = vld [vmem:[%s7767 + $0x20] sm:$0x1]
        %v8433 = vld [vmem:[%s7767 + $0x24] sm:$0xe]
        %v8434 = vld [vmem:[%s7767 + $0x28] sm:$0xf]
        %v8435 = vld [vmem:[%s7767 + $0x2c] sm:$0x1]
        %v8436 = vld [vmem:[%s7767 + $0x30] sm:$0xe]
        %v8437 = vld [vmem:[%s7767 + $0x34] sm:$0xf]
        %v8438 = vld [vmem:[%s7767 + $0x38] sm:$0x1]
        %v8439 = vld [vmem:[%s7767 + $0x3c] sm:$0xe]
        %v8440 = vld [vmem:[%s7767 + $0x40] sm:$0xf]
        %v8441 = vld [vmem:[%s7767 + $0x44] sm:$0x1]
        %v8442 = vld [vmem:[%s7767 + $0x48] sm:$0xe]
        %v8443 = vld [vmem:[%s7767 + $0x4c] sm:$0xf]
        %v8444 = vld [vmem:[%s7767 + $0x50] sm:$0x1]
        %v8445 = vld [vmem:[%s7767 + $0x54] sm:$0xe]
        %v8446 = vld [vmem:[%s7767 + $0x58] sm:$0xf]
        %v8447 = vld [vmem:[%s7767 + $0x5c] sm:$0x1]
        %v8448 = vld [vmem:[%s7767 + $0x60] sm:$0xe]
        %v8449 = vld [vmem:[%s7767 + $0x64] sm:$0xf]
        %v8450 = vld [vmem:[%s7767 + $0x68] sm:$0x1]
        %v8451 = vld [vmem:[%s7767 + $0x6c] sm:$0xe]
        %v8452 = vld [vmem:[%s7767 + $0x70] sm:$0xf]
        %v8453 = vld [vmem:[%s7767 + $0x74] sm:$0x1]
        %v8454 = vld [vmem:[%s7767 + $0x78] sm:$0xe]
        %v8455 = vld [vmem:[%s7767 + $0x7c] sm:$0xf]
        %v8456 = vld [vmem:[%s7767 + $0x80] sm:$0x1]
        %v8457 = vld [vmem:[%s7767 + $0x84] sm:$0xe]
        %v8458 = vld [vmem:[%s7767 + $0x88] sm:$0xf]
        %v8459 = vld [vmem:[%s7767 + $0x8c] sm:$0x1]
        %v8460 = vld [vmem:[%s7767 + $0x90] sm:$0xe]
        %v8461 = vld [vmem:[%s7767 + $0x94] sm:$0xf]
        %v8462 = vld [vmem:[%s7767 + $0x98] sm:$0x1]
        %v8463 = vld [vmem:[%s7767 + $0x9c] sm:$0xe]
        %v8464 = vld [vmem:[%s7767 + $0xa0] sm:$0xf]
        %v8465 = vld [vmem:[%s7767 + $0xa4] sm:$0x1]
        %v8466 = vld [vmem:[%s7767 + $0xa8] sm:$0xe]
        %v8467 = vld [vmem:[%s7767 + $0xac] sm:$0xf]
        %v8468 = vld [vmem:[%s7767 + $0xb0] sm:$0x1]
        %v8469 = vld [vmem:[%s7767 + $0xb4] sm:$0xe]
        %v8470 = vld [vmem:[%s7767 + $0xb8] sm:$0xf]
        %v8471 = vld [vmem:[%s7767 + $0xbc] sm:$0x1]
        %v8520 = vrot.slane %v8424, 5
        %v8521 = vrot.slane %v8520, 4
        %v8522 = vrot.slane %v8425, 5
        %v8523 = vsel %vm1579, %v8521, %v8522
        %v8524 = vrot.slane %v8522, 4
        %v8525 = vrot.slane %v8426, 5
        %v8526 = vsel %vm1579, %v8524, %v8525
        %v8527 = vrot.slane %v8427, 5
        %v8528 = vrot.slane %v8527, 4
        %v8529 = vrot.slane %v8428, 5
        %v8530 = vsel %vm1579, %v8528, %v8529
        %v8531 = vrot.slane %v8529, 4
        %v8532 = vrot.slane %v8429, 5
        %v8533 = vsel %vm1579, %v8531, %v8532
        %v8534 = vrot.slane %v8430, 5
        %v8535 = vrot.slane %v8534, 4
        %v8536 = vrot.slane %v8431, 5
        %v8537 = vsel %vm1579, %v8535, %v8536
        %v8538 = vrot.slane %v8536, 4
        %v8539 = vrot.slane %v8432, 5
        %v8540 = vsel %vm1579, %v8538, %v8539
        %v8541 = vrot.slane %v8433, 5
        %v8542 = vrot.slane %v8541, 4
        %v8543 = vrot.slane %v8434, 5
        %v8544 = vsel %vm1579, %v8542, %v8543
        %v8545 = vrot.slane %v8543, 4
        %v8546 = vrot.slane %v8435, 5
        %v8547 = vsel %vm1579, %v8545, %v8546
        %v8548 = vrot.slane %v8436, 5
        %v8549 = vrot.slane %v8548, 4
        %v8550 = vrot.slane %v8437, 5
        %v8551 = vsel %vm1579, %v8549, %v8550
        %v8552 = vrot.slane %v8550, 4
        %v8553 = vrot.slane %v8438, 5
        %v8554 = vsel %vm1579, %v8552, %v8553
        %v8555 = vrot.slane %v8439, 5
        %v8556 = vrot.slane %v8555, 4
        %v8557 = vrot.slane %v8440, 5
        %v8558 = vsel %vm1579, %v8556, %v8557
        %v8559 = vrot.slane %v8557, 4
        %v8560 = vrot.slane %v8441, 5
        %v8561 = vsel %vm1579, %v8559, %v8560
        %v8562 = vrot.slane %v8442, 5
        %v8563 = vrot.slane %v8562, 4
        %v8564 = vrot.slane %v8443, 5
        %v8565 = vsel %vm1579, %v8563, %v8564
        %v8566 = vrot.slane %v8564, 4
        %v8567 = vrot.slane %v8444, 5
        %v8568 = vsel %vm1579, %v8566, %v8567
        %v8569 = vrot.slane %v8445, 5
        %v8570 = vrot.slane %v8569, 4
        %v8571 = vrot.slane %v8446, 5
        %v8572 = vsel %vm1579, %v8570, %v8571
        %v8573 = vrot.slane %v8571, 4
        %v8574 = vrot.slane %v8447, 5
        %v8575 = vsel %vm1579, %v8573, %v8574
        %v8576 = vrot.slane %v8448, 5
        %v8577 = vrot.slane %v8576, 4
        %v8578 = vrot.slane %v8449, 5
        %v8579 = vsel %vm1579, %v8577, %v8578
        %v8580 = vrot.slane %v8578, 4
        %v8581 = vrot.slane %v8450, 5
        %v8582 = vsel %vm1579, %v8580, %v8581
        %v8583 = vrot.slane %v8451, 5
        %v8584 = vrot.slane %v8583, 4
        %v8585 = vrot.slane %v8452, 5
        %v8586 = vsel %vm1579, %v8584, %v8585
        %v8587 = vrot.slane %v8585, 4
        %v8588 = vrot.slane %v8453, 5
        %v8589 = vsel %vm1579, %v8587, %v8588
        %v8590 = vrot.slane %v8454, 5
        %v8591 = vrot.slane %v8590, 4
        %v8592 = vrot.slane %v8455, 5
        %v8593 = vsel %vm1579, %v8591, %v8592
        %v8594 = vrot.slane %v8592, 4
        %v8595 = vrot.slane %v8456, 5
        %v8596 = vsel %vm1579, %v8594, %v8595
        %v8597 = vrot.slane %v8457, 5
        %v8598 = vrot.slane %v8597, 4
        %v8599 = vrot.slane %v8458, 5
        %v8600 = vsel %vm1579, %v8598, %v8599
        %v8601 = vrot.slane %v8599, 4
        %v8602 = vrot.slane %v8459, 5
        %v8603 = vsel %vm1579, %v8601, %v8602
        %v8604 = vrot.slane %v8460, 5
        %v8605 = vrot.slane %v8604, 4
        %v8606 = vrot.slane %v8461, 5
        %v8607 = vsel %vm1579, %v8605, %v8606
        %v8608 = vrot.slane %v8606, 4
        %v8609 = vrot.slane %v8462, 5
        %v8610 = vsel %vm1579, %v8608, %v8609
        %v8611 = vrot.slane %v8463, 5
        %v8612 = vrot.slane %v8611, 4
        %v8613 = vrot.slane %v8464, 5
        %v8614 = vsel %vm1579, %v8612, %v8613
        %v8615 = vrot.slane %v8613, 4
        %v8616 = vrot.slane %v8465, 5
        %v8617 = vsel %vm1579, %v8615, %v8616
        %v8618 = vrot.slane %v8466, 5
        %v8619 = vrot.slane %v8618, 4
        %v8620 = vrot.slane %v8467, 5
        %v8621 = vsel %vm1579, %v8619, %v8620
        %v8622 = vrot.slane %v8620, 4
        %v8623 = vrot.slane %v8468, 5
        %v8624 = vsel %vm1579, %v8622, %v8623
        %v8625 = vrot.slane %v8469, 5
        %v8626 = vrot.slane %v8625, 4
        %v8627 = vrot.slane %v8470, 5
        %v8628 = vsel %vm1579, %v8626, %v8627
        %v8629 = vrot.slane %v8627, 4
        %v8630 = vrot.slane %v8471, 5
        %v8631 = vsel %vm1579, %v8629, %v8630
        %v8632 = vunpack.c.l.b16 %v8523
        %v8633 = vunpack.c.l.b16 %v8526
        %v8634 = vunpack.c.l.b16 %v8530
        %v8635 = vunpack.c.l.b16 %v8533
        %v8636 = vunpack.c.l.b16 %v8537
        %v8637 = vunpack.c.l.b16 %v8540
        %v8638 = vunpack.c.l.b16 %v8544
        %v8639 = vunpack.c.l.b16 %v8547
        %v8640 = vunpack.c.l.b16 %v8551
        %v8641 = vunpack.c.l.b16 %v8554
        %v8642 = vunpack.c.l.b16 %v8558
        %v8643 = vunpack.c.l.b16 %v8561
        %v8644 = vunpack.c.l.b16 %v8565
        %v8645 = vunpack.c.l.b16 %v8568
        %v8646 = vunpack.c.l.b16 %v8572
        %v8647 = vunpack.c.l.b16 %v8575
        %v8648 = vunpack.c.l.b16 %v8579
        %v8649 = vunpack.c.l.b16 %v8582
        %v8650 = vunpack.c.l.b16 %v8586
        %v8651 = vunpack.c.l.b16 %v8589
        %v8652 = vunpack.c.l.b16 %v8593
        %v8653 = vunpack.c.l.b16 %v8596
        %v8654 = vunpack.c.l.b16 %v8600
        %v8655 = vunpack.c.l.b16 %v8603
        %v8656 = vunpack.c.l.b16 %v8607
        %v8657 = vunpack.c.l.b16 %v8610
        %v8658 = vunpack.c.l.b16 %v8614
        %v8659 = vunpack.c.l.b16 %v8617
        %v8660 = vunpack.c.l.b16 %v8621
        %v8661 = vunpack.c.l.b16 %v8624
        %v8662 = vunpack.c.l.b16 %v8628
        %v8663 = vunpack.c.l.b16 %v8631
        %v8664 = vpack.c.b16 %v8633, %v8632
        %v8665 = vpack.c.b16 %v8635, %v8634
        %v8666 = vpack.c.b16 %v8637, %v8636
        %v8667 = vpack.c.b16 %v8639, %v8638
        %v8668 = vpack.c.b16 %v8641, %v8640
        %v8669 = vpack.c.b16 %v8643, %v8642
        %v8670 = vpack.c.b16 %v8645, %v8644
        %v8671 = vpack.c.b16 %v8647, %v8646
        %v8672 = vpack.c.b16 %v8649, %v8648
        %v8673 = vpack.c.b16 %v8651, %v8650
        %v8674 = vpack.c.b16 %v8653, %v8652
        %v8675 = vpack.c.b16 %v8655, %v8654
        %v8676 = vpack.c.b16 %v8657, %v8656
        %v8677 = vpack.c.b16 %v8659, %v8658
        %v8678 = vpack.c.b16 %v8661, %v8660
        %v8679 = vpack.c.b16 %v8663, %v8662
        %8696 = vst [vmem:[#allocation5 + $0x40] sm:$0xff] %v8664
        %8697 = vst [vmem:[#allocation5 + $0x88] sm:$0xff] %v8665
        %8698 = vst [vmem:[#allocation5 + $0xd0] sm:$0xff] %v8666
        %8699 = vst [vmem:[#allocation5 + $0x118] sm:$0xff] %v8667
        %8700 = vst [vmem:[#allocation5 + $0x160] sm:$0xff] %v8668
        %8701 = vst [vmem:[#allocation5 + $0x1a8] sm:$0xff] %v8669
        %8702 = vst [vmem:[#allocation5 + $0x1f0] sm:$0xff] %v8670
        %8703 = vst [vmem:[#allocation5 + $0x238] sm:$0xff] %v8671
        %8704 = vst [vmem:[#allocation5 + $0x280] sm:$0xff] %v8672
        %8705 = vst [vmem:[#allocation5 + $0x2c8] sm:$0xff] %v8673
        %8706 = vst [vmem:[#allocation5 + $0x310] sm:$0xff] %v8674
        %8707 = vst [vmem:[#allocation5 + $0x358] sm:$0xff] %v8675
        %8708 = vst [vmem:[#allocation5 + $0x3a0] sm:$0xff] %v8676
        %8709 = vst [vmem:[#allocation5 + $0x3e8] sm:$0xff] %v8677
        %8710 = vst [vmem:[#allocation5 + $0x430] sm:$0xff] %v8678
        %8711 = vst [vmem:[#allocation5 + $0x478] sm:$0xff] %v8679
        %v8712 = vld [vmem:[#allocation5] sm:$0xff]
        %v8713 = vld [vmem:[#allocation5 + $0x8] sm:$0xff]
        %v8714 = vld [vmem:[#allocation5 + $0x10] sm:$0xff]
        %v8715 = vld [vmem:[#allocation5 + $0x18] sm:$0xff]
        %v8716 = vld [vmem:[#allocation5 + $0x20] sm:$0xff]
        %v8717 = vld [vmem:[#allocation5 + $0x28] sm:$0xff]
        %v8718 = vld [vmem:[#allocation5 + $0x30] sm:$0xff]
        %v8719 = vld [vmem:[#allocation5 + $0x38] sm:$0xff]
        %v8720 = vld [vmem:[#allocation5 + $0x40] sm:$0xff]
        %v8721 = vld [vmem:[#allocation5 + $0x48] sm:$0xff]
        %v8722 = vld [vmem:[#allocation5 + $0x50] sm:$0xff]
        %v8723 = vld [vmem:[#allocation5 + $0x58] sm:$0xff]
        %v8724 = vld [vmem:[#allocation5 + $0x60] sm:$0xff]
        %v8725 = vld [vmem:[#allocation5 + $0x68] sm:$0xff]
        %v8726 = vld [vmem:[#allocation5 + $0x70] sm:$0xff]
        %v8727 = vld [vmem:[#allocation5 + $0x78] sm:$0xff]
        %v8728 = vld [vmem:[#allocation5 + $0x80] sm:$0xff]
        %v8729 = vld [vmem:[#allocation5 + $0x88] sm:$0xff]
        %v8730 = vld [vmem:[#allocation5 + $0x90] sm:$0xff]
        %v8731 = vld [vmem:[#allocation5 + $0x98] sm:$0xff]
        %v8732 = vld [vmem:[#allocation5 + $0xa0] sm:$0xff]
        %v8733 = vld [vmem:[#allocation5 + $0xa8] sm:$0xff]
        %v8734 = vld [vmem:[#allocation5 + $0xb0] sm:$0xff]
        %v8735 = vld [vmem:[#allocation5 + $0xb8] sm:$0xff]
        %v8736 = vld [vmem:[#allocation5 + $0xc0] sm:$0xff]
        %v8737 = vld [vmem:[#allocation5 + $0xc8] sm:$0xff]
        %v8738 = vld [vmem:[#allocation5 + $0xd0] sm:$0xff]
        %v8739 = vld [vmem:[#allocation5 + $0xd8] sm:$0xff]
        %v8740 = vld [vmem:[#allocation5 + $0xe0] sm:$0xff]
        %v8741 = vld [vmem:[#allocation5 + $0xe8] sm:$0xff]
        %v8742 = vld [vmem:[#allocation5 + $0xf0] sm:$0xff]
        %v8743 = vld [vmem:[#allocation5 + $0xf8] sm:$0xff]
        %v8744 = vld [vmem:[#allocation5 + $0x100] sm:$0xff]
        %v8745 = vld [vmem:[#allocation5 + $0x108] sm:$0xff]
        %v8746 = vld [vmem:[#allocation5 + $0x110] sm:$0xff]
        %v8747 = vld [vmem:[#allocation5 + $0x118] sm:$0xff]
        %v8748 = vld [vmem:[#allocation5 + $0x120] sm:$0xff]
        %v8749 = vld [vmem:[#allocation5 + $0x128] sm:$0xff]
        %v8750 = vld [vmem:[#allocation5 + $0x130] sm:$0xff]
        %v8751 = vld [vmem:[#allocation5 + $0x138] sm:$0xff]
        %v8752 = vld [vmem:[#allocation5 + $0x140] sm:$0xff]
        %v8753 = vld [vmem:[#allocation5 + $0x148] sm:$0xff]
        %v8754 = vld [vmem:[#allocation5 + $0x150] sm:$0xff]
        %v8755 = vld [vmem:[#allocation5 + $0x158] sm:$0xff]
        %v8756 = vld [vmem:[#allocation5 + $0x160] sm:$0xff]
        %v8757 = vld [vmem:[#allocation5 + $0x168] sm:$0xff]
        %v8758 = vld [vmem:[#allocation5 + $0x170] sm:$0xff]
        %v8759 = vld [vmem:[#allocation5 + $0x178] sm:$0xff]
        %v8760 = vld [vmem:[#allocation5 + $0x180] sm:$0xff]
        %v8761 = vld [vmem:[#allocation5 + $0x188] sm:$0xff]
        %v8762 = vld [vmem:[#allocation5 + $0x190] sm:$0xff]
        %v8763 = vld [vmem:[#allocation5 + $0x198] sm:$0xff]
        %v8764 = vld [vmem:[#allocation5 + $0x1a0] sm:$0xff]
        %v8765 = vld [vmem:[#allocation5 + $0x1a8] sm:$0xff]
        %v8766 = vld [vmem:[#allocation5 + $0x1b0] sm:$0xff]
        %v8767 = vld [vmem:[#allocation5 + $0x1b8] sm:$0xff]
        %v8768 = vld [vmem:[#allocation5 + $0x1c0] sm:$0xff]
        %v8769 = vld [vmem:[#allocation5 + $0x1c8] sm:$0xff]
        %v8770 = vld [vmem:[#allocation5 + $0x1d0] sm:$0xff]
        %v8771 = vld [vmem:[#allocation5 + $0x1d8] sm:$0xff]
        %v8772 = vld [vmem:[#allocation5 + $0x1e0] sm:$0xff]
        %v8773 = vld [vmem:[#allocation5 + $0x1e8] sm:$0xff]
        %v8774 = vld [vmem:[#allocation5 + $0x1f0] sm:$0xff]
        %v8775 = vld [vmem:[#allocation5 + $0x1f8] sm:$0xff]
        %v8776 = vld [vmem:[#allocation5 + $0x200] sm:$0xff]
        %v8777 = vld [vmem:[#allocation5 + $0x208] sm:$0xff]
        %v8778 = vld [vmem:[#allocation5 + $0x210] sm:$0xff]
        %v8779 = vld [vmem:[#allocation5 + $0x218] sm:$0xff]
        %v8780 = vld [vmem:[#allocation5 + $0x220] sm:$0xff]
        %v8781 = vld [vmem:[#allocation5 + $0x228] sm:$0xff]
        %v8782 = vld [vmem:[#allocation5 + $0x230] sm:$0xff]
        %v8783 = vld [vmem:[#allocation5 + $0x238] sm:$0xff]
        %v8784 = vld [vmem:[#allocation5 + $0x240] sm:$0xff]
        %v8785 = vld [vmem:[#allocation5 + $0x248] sm:$0xff]
        %v8786 = vld [vmem:[#allocation5 + $0x250] sm:$0xff]
        %v8787 = vld [vmem:[#allocation5 + $0x258] sm:$0xff]
        %v8788 = vld [vmem:[#allocation5 + $0x260] sm:$0xff]
        %v8789 = vld [vmem:[#allocation5 + $0x268] sm:$0xff]
        %v8790 = vld [vmem:[#allocation5 + $0x270] sm:$0xff]
        %v8791 = vld [vmem:[#allocation5 + $0x278] sm:$0xff]
        %v8792 = vld [vmem:[#allocation5 + $0x280] sm:$0xff]
        %v8793 = vld [vmem:[#allocation5 + $0x288] sm:$0xff]
        %v8794 = vld [vmem:[#allocation5 + $0x290] sm:$0xff]
        %v8795 = vld [vmem:[#allocation5 + $0x298] sm:$0xff]
        %v8796 = vld [vmem:[#allocation5 + $0x2a0] sm:$0xff]
        %v8797 = vld [vmem:[#allocation5 + $0x2a8] sm:$0xff]
        %v8798 = vld [vmem:[#allocation5 + $0x2b0] sm:$0xff]
        %v8799 = vld [vmem:[#allocation5 + $0x2b8] sm:$0xff]
        %v8800 = vld [vmem:[#allocation5 + $0x2c0] sm:$0xff]
        %v8801 = vld [vmem:[#allocation5 + $0x2c8] sm:$0xff]
        %v8802 = vld [vmem:[#allocation5 + $0x2d0] sm:$0xff]
        %v8803 = vld [vmem:[#allocation5 + $0x2d8] sm:$0xff]
        %v8804 = vld [vmem:[#allocation5 + $0x2e0] sm:$0xff]
        %v8805 = vld [vmem:[#allocation5 + $0x2e8] sm:$0xff]
        %v8806 = vld [vmem:[#allocation5 + $0x2f0] sm:$0xff]
        %v8807 = vld [vmem:[#allocation5 + $0x2f8] sm:$0xff]
        %v8808 = vld [vmem:[#allocation5 + $0x300] sm:$0xff]
        %v8809 = vld [vmem:[#allocation5 + $0x308] sm:$0xff]
        %v8810 = vld [vmem:[#allocation5 + $0x310] sm:$0xff]
        %v8811 = vld [vmem:[#allocation5 + $0x318] sm:$0xff]
        %v8812 = vld [vmem:[#allocation5 + $0x320] sm:$0xff]
        %v8813 = vld [vmem:[#allocation5 + $0x328] sm:$0xff]
        %v8814 = vld [vmem:[#allocation5 + $0x330] sm:$0xff]
        %v8815 = vld [vmem:[#allocation5 + $0x338] sm:$0xff]
        %v8816 = vld [vmem:[#allocation5 + $0x340] sm:$0xff]
        %v8817 = vld [vmem:[#allocation5 + $0x348] sm:$0xff]
        %v8818 = vld [vmem:[#allocation5 + $0x350] sm:$0xff]
        %v8819 = vld [vmem:[#allocation5 + $0x358] sm:$0xff]
        %v8820 = vld [vmem:[#allocation5 + $0x360] sm:$0xff]
        %v8821 = vld [vmem:[#allocation5 + $0x368] sm:$0xff]
        %v8822 = vld [vmem:[#allocation5 + $0x370] sm:$0xff]
        %v8823 = vld [vmem:[#allocation5 + $0x378] sm:$0xff]
        %v8824 = vld [vmem:[#allocation5 + $0x380] sm:$0xff]
        %v8825 = vld [vmem:[#allocation5 + $0x388] sm:$0xff]
        %v8826 = vld [vmem:[#allocation5 + $0x390] sm:$0xff]
        %v8827 = vld [vmem:[#allocation5 + $0x398] sm:$0xff]
        %v8828 = vld [vmem:[#allocation5 + $0x3a0] sm:$0xff]
        %v8829 = vld [vmem:[#allocation5 + $0x3a8] sm:$0xff]
        %v8830 = vld [vmem:[#allocation5 + $0x3b0] sm:$0xff]
        %v8831 = vld [vmem:[#allocation5 + $0x3b8] sm:$0xff]
        %v8832 = vld [vmem:[#allocation5 + $0x3c0] sm:$0xff]
        %v8833 = vld [vmem:[#allocation5 + $0x3c8] sm:$0xff]
        %v8834 = vld [vmem:[#allocation5 + $0x3d0] sm:$0xff]
        %v8835 = vld [vmem:[#allocation5 + $0x3d8] sm:$0xff]
        %v8836 = vld [vmem:[#allocation5 + $0x3e0] sm:$0xff]
        %v8837 = vld [vmem:[#allocation5 + $0x3e8] sm:$0xff]
        %v8838 = vld [vmem:[#allocation5 + $0x3f0] sm:$0xff]
        %v8839 = vld [vmem:[#allocation5 + $0x3f8] sm:$0xff]
        %v8840 = vld [vmem:[#allocation5 + $0x400] sm:$0xff]
        %v8841 = vld [vmem:[#allocation5 + $0x408] sm:$0xff]
        %v8842 = vld [vmem:[#allocation5 + $0x410] sm:$0xff]
        %v8843 = vld [vmem:[#allocation5 + $0x418] sm:$0xff]
        %v8844 = vld [vmem:[#allocation5 + $0x420] sm:$0xff]
        %v8845 = vld [vmem:[#allocation5 + $0x428] sm:$0xff]
        %v8846 = vld [vmem:[#allocation5 + $0x430] sm:$0xff]
        %v8847 = vld [vmem:[#allocation5 + $0x438] sm:$0xff]
        %v8848 = vld [vmem:[#allocation5 + $0x440] sm:$0xff]
        %v8849 = vld [vmem:[#allocation5 + $0x448] sm:$0xff]
        %v8850 = vld [vmem:[#allocation5 + $0x450] sm:$0xff]
        %v8851 = vld [vmem:[#allocation5 + $0x458] sm:$0xff]
        %v8852 = vld [vmem:[#allocation5 + $0x460] sm:$0xff]
        %v8853 = vld [vmem:[#allocation5 + $0x468] sm:$0xff]
        %v8854 = vld [vmem:[#allocation5 + $0x470] sm:$0xff]
        %v8855 = vld [vmem:[#allocation5 + $0x478] sm:$0xff]
        %v8856 = vld [vmem:[%s2] sm:$0xf]
        %v8857 = vld [vmem:[%s2 + $0x4] sm:$0xf]
        %v8858 = vld [vmem:[%s2 + $0x8] sm:$0xf]
        %v8859 = vld [vmem:[%s2 + $0xc] sm:$0xf]
        %v8860 = vld [vmem:[%s2 + $0x10] sm:$0xf]
        %v8861 = vld [vmem:[%s2 + $0x14] sm:$0xf]
        %v8862 = vld [vmem:[%s2 + $0x18] sm:$0xf]
        %v8863 = vld [vmem:[%s2 + $0x1c] sm:$0xf]
        %v8864 = vld [vmem:[%s2 + $0x20] sm:$0xf]
        %v8865 = vld [vmem:[%s2 + $0x24] sm:$0xf]
        %v8866 = vld [vmem:[%s2 + $0x28] sm:$0xf]
        %v8867 = vld [vmem:[%s2 + $0x2c] sm:$0xf]
        %v8868 = vld [vmem:[%s2 + $0x30] sm:$0xf]
        %v8869 = vld [vmem:[%s2 + $0x34] sm:$0xf]
        %v8870 = vld [vmem:[%s2 + $0x38] sm:$0xf]
        %v8871 = vld [vmem:[%s2 + $0x3c] sm:$0xf]
        %v8872 = vld [vmem:[%s2 + $0x40] sm:$0xf]
        %v8873 = vld [vmem:[%s2 + $0x44] sm:$0xf]
        %v8874 = vld [vmem:[%s2 + $0x48] sm:$0xf]
        %v8875 = vld [vmem:[%s2 + $0x4c] sm:$0xf]
        %v8876 = vld [vmem:[%s2 + $0x50] sm:$0xf]
        %v8877 = vld [vmem:[%s2 + $0x54] sm:$0xf]
        %v8878 = vld [vmem:[%s2 + $0x58] sm:$0xf]
        %v8879 = vld [vmem:[%s2 + $0x5c] sm:$0xf]
        %v8880 = vld [vmem:[%s2 + $0x60] sm:$0xf]
        %v8881 = vld [vmem:[%s2 + $0x64] sm:$0xf]
        %v8882 = vld [vmem:[%s2 + $0x68] sm:$0xf]
        %v8883 = vld [vmem:[%s2 + $0x6c] sm:$0xf]
        %v8884 = vld [vmem:[%s2 + $0x70] sm:$0xf]
        %v8885 = vld [vmem:[%s2 + $0x74] sm:$0xf]
        %v8886 = vld [vmem:[%s2 + $0x78] sm:$0xf]
        %v8887 = vld [vmem:[%s2 + $0x7c] sm:$0xf]
        %v8888 = vld [vmem:[%s2 + $0x80] sm:$0xf]
        %v8889 = vld [vmem:[%s2 + $0x84] sm:$0xf]
        %v8890 = vld [vmem:[%s2 + $0x88] sm:$0xf]
        %v8891 = vld [vmem:[%s2 + $0x8c] sm:$0xf]
        %v8892 = vld [vmem:[%s2 + $0x90] sm:$0xf]
        %v8893 = vld [vmem:[%s2 + $0x94] sm:$0xf]
        %v8894 = vld [vmem:[%s2 + $0x98] sm:$0xf]
        %v8895 = vld [vmem:[%s2 + $0x9c] sm:$0xf]
        %v8896 = vld [vmem:[%s2 + $0xa0] sm:$0xf]
        %v8897 = vld [vmem:[%s2 + $0xa4] sm:$0xf]
        %v8898 = vld [vmem:[%s2 + $0xa8] sm:$0xf]
        %v8899 = vld [vmem:[%s2 + $0xac] sm:$0xf]
        %v8900 = vld [vmem:[%s2 + $0xb0] sm:$0xf]
        %v8901 = vld [vmem:[%s2 + $0xb4] sm:$0xf]
        %v8902 = vld [vmem:[%s2 + $0xb8] sm:$0xf]
        %v8903 = vld [vmem:[%s2 + $0xbc] sm:$0xf]
        %v8904 = vld [vmem:[%s2 + $0xc0] sm:$0xf]
        %v8905 = vld [vmem:[%s2 + $0xc4] sm:$0xf]
        %v8906 = vld [vmem:[%s2 + $0xc8] sm:$0xf]
        %v8907 = vld [vmem:[%s2 + $0xcc] sm:$0xf]
        %v8908 = vld [vmem:[%s2 + $0xd0] sm:$0xf]
        %v8909 = vld [vmem:[%s2 + $0xd4] sm:$0xf]
        %v8910 = vld [vmem:[%s2 + $0xd8] sm:$0xf]
        %v8911 = vld [vmem:[%s2 + $0xdc] sm:$0xf]
        %v8912 = vld [vmem:[%s2 + $0xe0] sm:$0xf]
        %v8913 = vld [vmem:[%s2 + $0xe4] sm:$0xf]
        %v8914 = vld [vmem:[%s2 + $0xe8] sm:$0xf]
        %v8915 = vld [vmem:[%s2 + $0xec] sm:$0xf]
        %v8916 = vld [vmem:[%s2 + $0xf0] sm:$0xf]
        %v8917 = vld [vmem:[%s2 + $0xf4] sm:$0xf]
        %v8918 = vld [vmem:[%s2 + $0xf8] sm:$0xf]
        %v8919 = vld [vmem:[%s2 + $0xfc] sm:$0xf]
        %v8920 = vld [vmem:[%s2 + $0x100] sm:$0xf]
        %v8921 = vld [vmem:[%s2 + $0x104] sm:$0xf]
        %v8922 = vld [vmem:[%s2 + $0x108] sm:$0xf]
        %v8923 = vld [vmem:[%s2 + $0x10c] sm:$0xf]
        %v8924 = vld [vmem:[%s2 + $0x110] sm:$0xf]
        %v8925 = vld [vmem:[%s2 + $0x114] sm:$0xf]
        %v8926 = vld [vmem:[%s2 + $0x118] sm:$0xf]
        %v8927 = vld [vmem:[%s2 + $0x11c] sm:$0xf]
        %v8928 = vld [vmem:[%s2 + $0x120] sm:$0xf]
        %v8929 = vld [vmem:[%s2 + $0x124] sm:$0xf]
        %v8930 = vld [vmem:[%s2 + $0x128] sm:$0xf]
        %v8931 = vld [vmem:[%s2 + $0x12c] sm:$0xf]
        %v8932 = vld [vmem:[%s2 + $0x130] sm:$0xf]
        %v8933 = vld [vmem:[%s2 + $0x134] sm:$0xf]
        %v8934 = vld [vmem:[%s2 + $0x138] sm:$0xf]
        %v8935 = vld [vmem:[%s2 + $0x13c] sm:$0xf]
        %v8936 = vld [vmem:[%s2 + $0x140] sm:$0xf]
        %v8937 = vld [vmem:[%s2 + $0x144] sm:$0xf]
        %v8938 = vld [vmem:[%s2 + $0x148] sm:$0xf]
        %v8939 = vld [vmem:[%s2 + $0x14c] sm:$0xf]
        %v8940 = vld [vmem:[%s2 + $0x150] sm:$0xf]
        %v8941 = vld [vmem:[%s2 + $0x154] sm:$0xf]
        %v8942 = vld [vmem:[%s2 + $0x158] sm:$0xf]
        %v8943 = vld [vmem:[%s2 + $0x15c] sm:$0xf]
        %v8944 = vld [vmem:[%s2 + $0x160] sm:$0xf]
        %v8945 = vld [vmem:[%s2 + $0x164] sm:$0xf]
        %v8946 = vld [vmem:[%s2 + $0x168] sm:$0xf]
        %v8947 = vld [vmem:[%s2 + $0x16c] sm:$0xf]
        %v8948 = vld [vmem:[%s2 + $0x170] sm:$0xf]
        %v8949 = vld [vmem:[%s2 + $0x174] sm:$0xf]
        %v8950 = vld [vmem:[%s2 + $0x178] sm:$0xf]
        %v8951 = vld [vmem:[%s2 + $0x17c] sm:$0xf]
        %v8952 = vld [vmem:[%s2 + $0x180] sm:$0xf]
        %v8953 = vld [vmem:[%s2 + $0x184] sm:$0xf]
        %v8954 = vld [vmem:[%s2 + $0x188] sm:$0xf]
        %v8955 = vld [vmem:[%s2 + $0x18c] sm:$0xf]
        %v8956 = vld [vmem:[%s2 + $0x190] sm:$0xf]
        %v8957 = vld [vmem:[%s2 + $0x194] sm:$0xf]
        %v8958 = vld [vmem:[%s2 + $0x198] sm:$0xf]
        %v8959 = vld [vmem:[%s2 + $0x19c] sm:$0xf]
        %v8960 = vld [vmem:[%s2 + $0x1a0] sm:$0xf]
        %v8961 = vld [vmem:[%s2 + $0x1a4] sm:$0xf]
        %v8962 = vld [vmem:[%s2 + $0x1a8] sm:$0xf]
        %v8963 = vld [vmem:[%s2 + $0x1ac] sm:$0xf]
        %v8964 = vld [vmem:[%s2 + $0x1b0] sm:$0xf]
        %v8965 = vld [vmem:[%s2 + $0x1b4] sm:$0xf]
        %v8966 = vld [vmem:[%s2 + $0x1b8] sm:$0xf]
        %v8967 = vld [vmem:[%s2 + $0x1bc] sm:$0xf]
        %v8968 = vld [vmem:[%s2 + $0x1c0] sm:$0xf]
        %v8969 = vld [vmem:[%s2 + $0x1c4] sm:$0xf]
        %v8970 = vld [vmem:[%s2 + $0x1c8] sm:$0xf]
        %v8971 = vld [vmem:[%s2 + $0x1cc] sm:$0xf]
        %v8972 = vld [vmem:[%s2 + $0x1d0] sm:$0xf]
        %v8973 = vld [vmem:[%s2 + $0x1d4] sm:$0xf]
        %v8974 = vld [vmem:[%s2 + $0x1d8] sm:$0xf]
        %v8975 = vld [vmem:[%s2 + $0x1dc] sm:$0xf]
        %v8976 = vld [vmem:[%s2 + $0x1e0] sm:$0xf]
        %v8977 = vld [vmem:[%s2 + $0x1e4] sm:$0xf]
        %v8978 = vld [vmem:[%s2 + $0x1e8] sm:$0xf]
        %v8979 = vld [vmem:[%s2 + $0x1ec] sm:$0xf]
        %v8980 = vld [vmem:[%s2 + $0x1f0] sm:$0xf]
        %v8981 = vld [vmem:[%s2 + $0x1f4] sm:$0xf]
        %v8982 = vld [vmem:[%s2 + $0x1f8] sm:$0xf]
        %v8983 = vld [vmem:[%s2 + $0x1fc] sm:$0xf]
        %v8984 = vld [vmem:[%s2 + $0x200] sm:$0xf]
        %v8985 = vld [vmem:[%s2 + $0x204] sm:$0xf]
        %v8986 = vld [vmem:[%s2 + $0x208] sm:$0xf]
        %v8987 = vld [vmem:[%s2 + $0x20c] sm:$0xf]
        %v8988 = vld [vmem:[%s2 + $0x210] sm:$0xf]
        %v8989 = vld [vmem:[%s2 + $0x214] sm:$0xf]
        %v8990 = vld [vmem:[%s2 + $0x218] sm:$0xf]
        %v8991 = vld [vmem:[%s2 + $0x21c] sm:$0xf]
        %v8992 = vld [vmem:[%s2 + $0x220] sm:$0xf]
        %v8993 = vld [vmem:[%s2 + $0x224] sm:$0xf]
        %v8994 = vld [vmem:[%s2 + $0x228] sm:$0xf]
        %v8995 = vld [vmem:[%s2 + $0x22c] sm:$0xf]
        %v8996 = vld [vmem:[%s2 + $0x230] sm:$0xf]
        %v8997 = vld [vmem:[%s2 + $0x234] sm:$0xf]
        %v8998 = vld [vmem:[%s2 + $0x238] sm:$0xf]
        %v8999 = vld [vmem:[%s2 + $0x23c] sm:$0xf]
        %v9144 = vunpack.c.l.b16 %v8856
        %v9145 = vunpack.c.l.b16 %v8857
        %v9146 = vunpack.c.l.b16 %v8858
        %v9147 = vunpack.c.l.b16 %v8859
        %v9148 = vunpack.c.l.b16 %v8860
        %v9149 = vunpack.c.l.b16 %v8861
        %v9150 = vunpack.c.l.b16 %v8862
        %v9151 = vunpack.c.l.b16 %v8863
        %v9152 = vunpack.c.l.b16 %v8864
        %v9153 = vunpack.c.l.b16 %v8865
        %v9154 = vunpack.c.l.b16 %v8866
        %v9155 = vunpack.c.l.b16 %v8867
        %v9156 = vunpack.c.l.b16 %v8868
        %v9157 = vunpack.c.l.b16 %v8869
        %v9158 = vunpack.c.l.b16 %v8870
        %v9159 = vunpack.c.l.b16 %v8871
        %v9160 = vunpack.c.l.b16 %v8872
        %v9161 = vunpack.c.l.b16 %v8873
        %v9162 = vunpack.c.l.b16 %v8874
        %v9163 = vunpack.c.l.b16 %v8875
        %v9164 = vunpack.c.l.b16 %v8876
        %v9165 = vunpack.c.l.b16 %v8877
        %v9166 = vunpack.c.l.b16 %v8878
        %v9167 = vunpack.c.l.b16 %v8879
        %v9168 = vunpack.c.l.b16 %v8880
        %v9169 = vunpack.c.l.b16 %v8881
        %v9170 = vunpack.c.l.b16 %v8882
        %v9171 = vunpack.c.l.b16 %v8883
        %v9172 = vunpack.c.l.b16 %v8884
        %v9173 = vunpack.c.l.b16 %v8885
        %v9174 = vunpack.c.l.b16 %v8886
        %v9175 = vunpack.c.l.b16 %v8887
        %v9176 = vunpack.c.l.b16 %v8888
        %v9177 = vunpack.c.l.b16 %v8889
        %v9178 = vunpack.c.l.b16 %v8890
        %v9179 = vunpack.c.l.b16 %v8891
        %v9180 = vunpack.c.l.b16 %v8892
        %v9181 = vunpack.c.l.b16 %v8893
        %v9182 = vunpack.c.l.b16 %v8894
        %v9183 = vunpack.c.l.b16 %v8895
        %v9184 = vunpack.c.l.b16 %v8896
        %v9185 = vunpack.c.l.b16 %v8897
        %v9186 = vunpack.c.l.b16 %v8898
        %v9187 = vunpack.c.l.b16 %v8899
        %v9188 = vunpack.c.l.b16 %v8900
        %v9189 = vunpack.c.l.b16 %v8901
        %v9190 = vunpack.c.l.b16 %v8902
        %v9191 = vunpack.c.l.b16 %v8903
        %v9192 = vunpack.c.l.b16 %v8904
        %v9193 = vunpack.c.l.b16 %v8905
        %v9194 = vunpack.c.l.b16 %v8906
        %v9195 = vunpack.c.l.b16 %v8907
        %v9196 = vunpack.c.l.b16 %v8908
        %v9197 = vunpack.c.l.b16 %v8909
        %v9198 = vunpack.c.l.b16 %v8910
        %v9199 = vunpack.c.l.b16 %v8911
        %v9200 = vunpack.c.l.b16 %v8912
        %v9201 = vunpack.c.l.b16 %v8913
        %v9202 = vunpack.c.l.b16 %v8914
        %v9203 = vunpack.c.l.b16 %v8915
        %v9204 = vunpack.c.l.b16 %v8916
        %v9205 = vunpack.c.l.b16 %v8917
        %v9206 = vunpack.c.l.b16 %v8918
        %v9207 = vunpack.c.l.b16 %v8919
        %v9208 = vunpack.c.l.b16 %v8920
        %v9209 = vunpack.c.l.b16 %v8921
        %v9210 = vunpack.c.l.b16 %v8922
        %v9211 = vunpack.c.l.b16 %v8923
        %v9212 = vunpack.c.l.b16 %v8924
        %v9213 = vunpack.c.l.b16 %v8925
        %v9214 = vunpack.c.l.b16 %v8926
        %v9215 = vunpack.c.l.b16 %v8927
        %v9216 = vunpack.c.l.b16 %v8928
        %v9217 = vunpack.c.l.b16 %v8929
        %v9218 = vunpack.c.l.b16 %v8930
        %v9219 = vunpack.c.l.b16 %v8931
        %v9220 = vunpack.c.l.b16 %v8932
        %v9221 = vunpack.c.l.b16 %v8933
        %v9222 = vunpack.c.l.b16 %v8934
        %v9223 = vunpack.c.l.b16 %v8935
        %v9224 = vunpack.c.l.b16 %v8936
        %v9225 = vunpack.c.l.b16 %v8937
        %v9226 = vunpack.c.l.b16 %v8938
        %v9227 = vunpack.c.l.b16 %v8939
        %v9228 = vunpack.c.l.b16 %v8940
        %v9229 = vunpack.c.l.b16 %v8941
        %v9230 = vunpack.c.l.b16 %v8942
        %v9231 = vunpack.c.l.b16 %v8943
        %v9232 = vunpack.c.l.b16 %v8944
        %v9233 = vunpack.c.l.b16 %v8945
        %v9234 = vunpack.c.l.b16 %v8946
        %v9235 = vunpack.c.l.b16 %v8947
        %v9236 = vunpack.c.l.b16 %v8948
        %v9237 = vunpack.c.l.b16 %v8949
        %v9238 = vunpack.c.l.b16 %v8950
        %v9239 = vunpack.c.l.b16 %v8951
        %v9240 = vunpack.c.l.b16 %v8952
        %v9241 = vunpack.c.l.b16 %v8953
        %v9242 = vunpack.c.l.b16 %v8954
        %v9243 = vunpack.c.l.b16 %v8955
        %v9244 = vunpack.c.l.b16 %v8956
        %v9245 = vunpack.c.l.b16 %v8957
        %v9246 = vunpack.c.l.b16 %v8958
        %v9247 = vunpack.c.l.b16 %v8959
        %v9248 = vunpack.c.l.b16 %v8960
        %v9249 = vunpack.c.l.b16 %v8961
        %v9250 = vunpack.c.l.b16 %v8962
        %v9251 = vunpack.c.l.b16 %v8963
        %v9252 = vunpack.c.l.b16 %v8964
        %v9253 = vunpack.c.l.b16 %v8965
        %v9254 = vunpack.c.l.b16 %v8966
        %v9255 = vunpack.c.l.b16 %v8967
        %v9256 = vunpack.c.l.b16 %v8968
        %v9257 = vunpack.c.l.b16 %v8969
        %v9258 = vunpack.c.l.b16 %v8970
        %v9259 = vunpack.c.l.b16 %v8971
        %v9260 = vunpack.c.l.b16 %v8972
        %v9261 = vunpack.c.l.b16 %v8973
        %v9262 = vunpack.c.l.b16 %v8974
        %v9263 = vunpack.c.l.b16 %v8975
        %v9264 = vunpack.c.l.b16 %v8976
        %v9265 = vunpack.c.l.b16 %v8977
        %v9266 = vunpack.c.l.b16 %v8978
        %v9267 = vunpack.c.l.b16 %v8979
        %v9268 = vunpack.c.l.b16 %v8980
        %v9269 = vunpack.c.l.b16 %v8981
        %v9270 = vunpack.c.l.b16 %v8982
        %v9271 = vunpack.c.l.b16 %v8983
        %v9272 = vunpack.c.l.b16 %v8984
        %v9273 = vunpack.c.l.b16 %v8985
        %v9274 = vunpack.c.l.b16 %v8986
        %v9275 = vunpack.c.l.b16 %v8987
        %v9276 = vunpack.c.l.b16 %v8988
        %v9277 = vunpack.c.l.b16 %v8989
        %v9278 = vunpack.c.l.b16 %v8990
        %v9279 = vunpack.c.l.b16 %v8991
        %v9280 = vunpack.c.l.b16 %v8992
        %v9281 = vunpack.c.l.b16 %v8993
        %v9282 = vunpack.c.l.b16 %v8994
        %v9283 = vunpack.c.l.b16 %v8995
        %v9284 = vunpack.c.l.b16 %v8996
        %v9285 = vunpack.c.l.b16 %v8997
        %v9286 = vunpack.c.l.b16 %v8998
        %v9287 = vunpack.c.l.b16 %v8999
        %v9288 = vpack.c.b16 %v9145, %v9144
        %v9289 = vpack.c.b16 %v9147, %v9146
        %v9290 = vpack.c.b16 %v9149, %v9148
        %v9291 = vpack.c.b16 %v9151, %v9150
        %v9292 = vpack.c.b16 %v9153, %v9152
        %v9293 = vpack.c.b16 %v9155, %v9154
        %v9294 = vpack.c.b16 %v9157, %v9156
        %v9295 = vpack.c.b16 %v9159, %v9158
        %v9296 = vpack.c.b16 %v9161, %v9160
        %v9297 = vpack.c.b16 %v9163, %v9162
        %v9298 = vpack.c.b16 %v9165, %v9164
        %v9299 = vpack.c.b16 %v9167, %v9166
        %v9300 = vpack.c.b16 %v9169, %v9168
        %v9301 = vpack.c.b16 %v9171, %v9170
        %v9302 = vpack.c.b16 %v9173, %v9172
        %v9303 = vpack.c.b16 %v9175, %v9174
        %v9304 = vpack.c.b16 %v9177, %v9176
        %v9305 = vpack.c.b16 %v9179, %v9178
        %v9306 = vpack.c.b16 %v9181, %v9180
        %v9307 = vpack.c.b16 %v9183, %v9182
        %v9308 = vpack.c.b16 %v9185, %v9184
        %v9309 = vpack.c.b16 %v9187, %v9186
        %v9310 = vpack.c.b16 %v9189, %v9188
        %v9311 = vpack.c.b16 %v9191, %v9190
        %v9312 = vpack.c.b16 %v9193, %v9192
        %v9313 = vpack.c.b16 %v9195, %v9194
        %v9314 = vpack.c.b16 %v9197, %v9196
        %v9315 = vpack.c.b16 %v9199, %v9198
        %v9316 = vpack.c.b16 %v9201, %v9200
        %v9317 = vpack.c.b16 %v9203, %v9202
        %v9318 = vpack.c.b16 %v9205, %v9204
        %v9319 = vpack.c.b16 %v9207, %v9206
        %v9320 = vpack.c.b16 %v9209, %v9208
        %v9321 = vpack.c.b16 %v9211, %v9210
        %v9322 = vpack.c.b16 %v9213, %v9212
        %v9323 = vpack.c.b16 %v9215, %v9214
        %v9324 = vpack.c.b16 %v9217, %v9216
        %v9325 = vpack.c.b16 %v9219, %v9218
        %v9326 = vpack.c.b16 %v9221, %v9220
        %v9327 = vpack.c.b16 %v9223, %v9222
        %v9328 = vpack.c.b16 %v9225, %v9224
        %v9329 = vpack.c.b16 %v9227, %v9226
        %v9330 = vpack.c.b16 %v9229, %v9228
        %v9331 = vpack.c.b16 %v9231, %v9230
        %v9332 = vpack.c.b16 %v9233, %v9232
        %v9333 = vpack.c.b16 %v9235, %v9234
        %v9334 = vpack.c.b16 %v9237, %v9236
        %v9335 = vpack.c.b16 %v9239, %v9238
        %v9336 = vpack.c.b16 %v9241, %v9240
        %v9337 = vpack.c.b16 %v9243, %v9242
        %v9338 = vpack.c.b16 %v9245, %v9244
        %v9339 = vpack.c.b16 %v9247, %v9246
        %v9340 = vpack.c.b16 %v9249, %v9248
        %v9341 = vpack.c.b16 %v9251, %v9250
        %v9342 = vpack.c.b16 %v9253, %v9252
        %v9343 = vpack.c.b16 %v9255, %v9254
        %v9344 = vpack.c.b16 %v9257, %v9256
        %v9345 = vpack.c.b16 %v9259, %v9258
        %v9346 = vpack.c.b16 %v9261, %v9260
        %v9347 = vpack.c.b16 %v9263, %v9262
        %v9348 = vpack.c.b16 %v9265, %v9264
        %v9349 = vpack.c.b16 %v9267, %v9266
        %v9350 = vpack.c.b16 %v9269, %v9268
        %v9351 = vpack.c.b16 %v9271, %v9270
        %v9352 = vpack.c.b16 %v9273, %v9272
        %v9353 = vpack.c.b16 %v9275, %v9274
        %v9354 = vpack.c.b16 %v9277, %v9276
        %v9355 = vpack.c.b16 %v9279, %v9278
        %v9356 = vpack.c.b16 %v9281, %v9280
        %v9357 = vpack.c.b16 %v9283, %v9282
        %v9358 = vpack.c.b16 %v9285, %v9284
        %v9359 = vpack.c.b16 %v9287, %v9286
        %9432 = vmatprep.subr.bf16.mxu0 0
        %9433 = vmatpush1.bf16.msra.mxu0 %v9288
        %9434 = vmatprep.subr.bf16.mxu0 0
        %9435 = vmatpush1.bf16.msra.mxu0 %v9289
        %9436 = vmatprep.subr.bf16.mxu0 0
        %9437 = vmatpush1.bf16.msra.mxu0 %v9290
        %9438 = vmatprep.subr.bf16.mxu0 0
        %9439 = vmatpush1.bf16.msra.mxu0 %v9291
        %9440 = vmatprep.subr.bf16.mxu0 0
        %9441 = vmatpush1.bf16.msra.mxu0 %v9292
        %9442 = vmatprep.subr.bf16.mxu0 0
        %9443 = vmatpush1.bf16.msra.mxu0 %v9293
        %9444 = vmatprep.subr.bf16.mxu0 0
        %9445 = vmatpush1.bf16.msra.mxu0 %v9294
        %9446 = vmatprep.subr.bf16.mxu0 0
        %9447 = vmatpush1.bf16.msra.mxu0 %v9295
        %9448 = vmatprep.subr.bf16.mxu0 0
        %9449 = vmatpush1.bf16.msra.mxu0 %v9296
        %9450 = vmatprep.subr.bf16.mxu0 0
        %9451 = vmatpush1.bf16.msra.mxu0 %v9297
        %9452 = vmatprep.subr.bf16.mxu0 0
        %9453 = vmatpush1.bf16.msra.mxu0 %v9298
        %9454 = vmatprep.subr.bf16.mxu0 0
        %9455 = vmatpush1.bf16.msra.mxu0 %v9299
        %9456 = vmatprep.subr.bf16.mxu0 0
        %9457 = vmatpush1.bf16.msra.mxu0 %v9300
        %9458 = vmatprep.subr.bf16.mxu0 0
        %9459 = vmatpush1.bf16.msra.mxu0 %v9301
        %9460 = vmatprep.subr.bf16.mxu0 0
        %9461 = vmatpush1.bf16.msra.mxu0 %v9302
        %9462 = vmatprep.subr.bf16.mxu0 0
        %9463 = vmatpush1.bf16.msra.mxu0 %v9303
        %9464 = vmatprep.mubr.bf16.mxu0 %v8713
        %9465 = vmatmul.mubr.bf16.gmra.mrb[0].mxu0 %v8712
        %v9466 = vpop.f32.mrb[0].mxu0
        %v9467 = vadd.f32 0.0, %v9466
        %v9468 = vpop.f32.mrb[0].mxu0
        %v9469 = vpop.f32.mrb[0].mxu0
        %v9470 = vadd.f32 0.0, %v9469
        %v9471 = vpop.f32.mrb[0].mxu0
        %9472 = vmatprep.mubr.bf16.mxu0 %v8722
        %9473 = vmatmul.mubr.bf16.gmra.mrb[0].mxu0 %v8721
        %v9474 = vpop.f32.mrb[0].mxu0
        %v9475 = vadd.f32 0.0, %v9474
        %v9476 = vpop.f32.mrb[0].mxu0
        %v9477 = vpop.f32.mrb[0].mxu0
        %v9478 = vadd.f32 0.0, %v9477
        %v9479 = vpop.f32.mrb[0].mxu0
        %9480 = vmatprep.mubr.bf16.mxu0 %v8731
        %9481 = vmatmul.mubr.bf16.gmra.mrb[0].mxu0 %v8730
        %v9482 = vpop.f32.mrb[0].mxu0
        %v9483 = vadd.f32 0.0, %v9482
        %v9484 = vpop.f32.mrb[0].mxu0
        %v9485 = vpop.f32.mrb[0].mxu0
        %v9486 = vadd.f32 0.0, %v9485
        %v9487 = vpop.f32.mrb[0].mxu0
        %9488 = vmatprep.mubr.bf16.mxu0 %v8740
        %9489 = vmatmul.mubr.bf16.gmra.mrb[0].mxu0 %v8739
        %v9490 = vpop.f32.mrb[0].mxu0
        %v9491 = vadd.f32 0.0, %v9490
        %v9492 = vpop.f32.mrb[0].mxu0
        %v9493 = vpop.f32.mrb[0].mxu0
        %v9494 = vadd.f32 0.0, %v9493
        %v9495 = vpop.f32.mrb[0].mxu0
        %9496 = vmatprep.mubr.bf16.mxu0 %v8749
        %9497 = vmatmul.mubr.bf16.gmra.mrb[0].mxu0 %v8748
        %v9498 = vpop.f32.mrb[0].mxu0
        %v9499 = vadd.f32 0.0, %v9498
        %v9500 = vpop.f32.mrb[0].mxu0
        %v9501 = vpop.f32.mrb[0].mxu0
        %v9502 = vadd.f32 0.0, %v9501
        %v9503 = vpop.f32.mrb[0].mxu0
        %9504 = vmatprep.mubr.bf16.mxu0 %v8758
        %9505 = vmatmul.mubr.bf16.gmra.mrb[0].mxu0 %v8757
        %v9506 = vpop.f32.mrb[0].mxu0
        %v9507 = vadd.f32 0.0, %v9506
        %v9508 = vpop.f32.mrb[0].mxu0
        %v9509 = vpop.f32.mrb[0].mxu0
        %v9510 = vadd.f32 0.0, %v9509
        %v9511 = vpop.f32.mrb[0].mxu0
        %9512 = vmatprep.mubr.bf16.mxu0 %v8767
        %9513 = vmatmul.mubr.bf16.gmra.mrb[0].mxu0 %v8766
        %v9514 = vpop.f32.mrb[0].mxu0
        %v9515 = vadd.f32 0.0, %v9514
        %v9516 = vpop.f32.mrb[0].mxu0
        %v9517 = vpop.f32.mrb[0].mxu0
        %v9518 = vadd.f32 0.0, %v9517
        %v9519 = vpop.f32.mrb[0].mxu0
        %9520 = vmatprep.mubr.bf16.mxu0 %v8776
        %9521 = vmatmul.mubr.bf16.gmra.mrb[0].mxu0 %v8775
        %v9522 = vpop.f32.mrb[0].mxu0
        %v9523 = vadd.f32 0.0, %v9522
        %v9524 = vpop.f32.mrb[0].mxu0
        %v9525 = vpop.f32.mrb[0].mxu0
        %v9526 = vadd.f32 0.0, %v9525
        %v9527 = vpop.f32.mrb[0].mxu0
        %9528 = vmatprep.mubr.bf16.mxu0 %v8785
        %9529 = vmatmul.mubr.bf16.gmra.mrb[0].mxu0 %v8784
        %v9530 = vpop.f32.mrb[0].mxu0
        %v9531 = vadd.f32 0.0, %v9530
        %v9532 = vpop.f32.mrb[0].mxu0
        %v9533 = vpop.f32.mrb[0].mxu0
        %v9534 = vadd.f32 0.0, %v9533
        %v9535 = vpop.f32.mrb[0].mxu0
        %9536 = vmatprep.mubr.bf16.mxu0 %v8794
        %9537 = vmatmul.mubr.bf16.gmra.mrb[0].mxu0 %v8793
        %v9538 = vpop.f32.mrb[0].mxu0
        %v9539 = vadd.f32 0.0, %v9538
        %v9540 = vpop.f32.mrb[0].mxu0
        %v9541 = vpop.f32.mrb[0].mxu0
        %v9542 = vadd.f32 0.0, %v9541
        %v9543 = vpop.f32.mrb[0].mxu0
        %9544 = vmatprep.mubr.bf16.mxu0 %v8803
        %9545 = vmatmul.mubr.bf16.gmra.mrb[0].mxu0 %v8802
        %v9546 = vpop.f32.mrb[0].mxu0
        %v9547 = vadd.f32 0.0, %v9546
        %v9548 = vpop.f32.mrb[0].mxu0
        %v9549 = vpop.f32.mrb[0].mxu0
        %v9550 = vadd.f32 0.0, %v9549
        %v9551 = vpop.f32.mrb[0].mxu0
        %9552 = vmatprep.mubr.bf16.mxu0 %v8812
        %9553 = vmatmul.mubr.bf16.gmra.mrb[0].mxu0 %v8811
        %v9554 = vpop.f32.mrb[0].mxu0
        %v9555 = vadd.f32 0.0, %v9554
        %v9556 = vpop.f32.mrb[0].mxu0
        %v9557 = vpop.f32.mrb[0].mxu0
        %v9558 = vadd.f32 0.0, %v9557
        %v9559 = vpop.f32.mrb[0].mxu0
        %9560 = vmatprep.mubr.bf16.mxu0 %v8821
        %9561 = vmatmul.mubr.bf16.gmra.mrb[0].mxu0 %v8820
        %v9562 = vpop.f32.mrb[0].mxu0
        %v9563 = vadd.f32 0.0, %v9562
        %v9564 = vpop.f32.mrb[0].mxu0
        %v9565 = vpop.f32.mrb[0].mxu0
        %v9566 = vadd.f32 0.0, %v9565
        %v9567 = vpop.f32.mrb[0].mxu0
        %9568 = vmatprep.mubr.bf16.mxu0 %v8830
        %9569 = vmatmul.mubr.bf16.gmra.mrb[0].mxu0 %v8829
        %v9570 = vpop.f32.mrb[0].mxu0
        %v9571 = vadd.f32 0.0, %v9570
        %v9572 = vpop.f32.mrb[0].mxu0
        %v9573 = vpop.f32.mrb[0].mxu0
        %v9574 = vadd.f32 0.0, %v9573
        %v9575 = vpop.f32.mrb[0].mxu0
        %9576 = vmatprep.mubr.bf16.mxu0 %v8839
        %9577 = vmatmul.mubr.bf16.gmra.mrb[0].mxu0 %v8838
        %v9578 = vpop.f32.mrb[0].mxu0
        %v9579 = vadd.f32 0.0, %v9578
        %v9580 = vpop.f32.mrb[0].mxu0
        %v9581 = vpop.f32.mrb[0].mxu0
        %v9582 = vadd.f32 0.0, %v9581
        %v9583 = vpop.f32.mrb[0].mxu0
        %9584 = vmatprep.mubr.bf16.mxu0 %v8848
        %9585 = vmatmul.mubr.bf16.gmra.mrb[0].mxu0 %v8847
        %v9586 = vpop.f32.mrb[0].mxu0
        %v9587 = vadd.f32 0.0, %v9586
        %v9588 = vpop.f32.mrb[0].mxu0
        %v9589 = vpop.f32.mrb[0].mxu0
        %v9590 = vadd.f32 0.0, %v9589
        %v9591 = vpop.f32.mrb[0].mxu0
        %9592 = vdwg.mxu0
        %9593 = vmatprep.subr.bf16.mxu0 0
        %9594 = vmatpush1.bf16.msra.mxu0 %v9304
        %9595 = vmatprep.subr.bf16.mxu0 0
        %9596 = vmatpush1.bf16.msra.mxu0 %v9305
        %9597 = vmatprep.subr.bf16.mxu0 0
        %9598 = vmatpush1.bf16.msra.mxu0 %v9306
        %9599 = vmatprep.subr.bf16.mxu0 0
        %9600 = vmatpush1.bf16.msra.mxu0 %v9307
        %9601 = vmatprep.subr.bf16.mxu0 0
        %9602 = vmatpush1.bf16.msra.mxu0 %v9308
        %9603 = vmatprep.subr.bf16.mxu0 0
        %9604 = vmatpush1.bf16.msra.mxu0 %v9309
        %9605 = vmatprep.subr.bf16.mxu0 0
        %9606 = vmatpush1.bf16.msra.mxu0 %v9310
        %9607 = vmatprep.subr.bf16.mxu0 0
        %9608 = vmatpush1.bf16.msra.mxu0 %v9311
        %9609 = vmatprep.subr.bf16.mxu0 0
        %9610 = vmatpush1.bf16.msra.mxu0 %v9312
        %9611 = vmatprep.subr.bf16.mxu0 0
        %9612 = vmatpush1.bf16.msra.mxu0 %v9313
        %9613 = vmatprep.subr.bf16.mxu0 0
        %9614 = vmatpush1.bf16.msra.mxu0 %v9314
        %9615 = vmatprep.subr.bf16.mxu0 0
        %9616 = vmatpush1.bf16.msra.mxu0 %v9315
        %9617 = vmatprep.subr.bf16.mxu0 0
        %9618 = vmatpush1.bf16.msra.mxu0 %v9316
        %9619 = vmatprep.subr.bf16.mxu0 0
        %9620 = vmatpush1.bf16.msra.mxu0 %v9317
        %9621 = vmatprep.subr.bf16.mxu0 0
        %9622 = vmatpush1.bf16.msra.mxu0 %v9318
        %9623 = vmatprep.subr.bf16.mxu0 0
        %9624 = vmatpush1.bf16.msra.mxu0 %v9319
        %9625 = vmatprep.mubr.bf16.mxu0 %v8715
        %9626 = vmatmul.mubr.bf16.gmra.mrb[0].mxu0 %v8714
        %v9627 = vpop.f32.mrb[0].mxu0
        %v9628 = vadd.f32 %v9467, %v9627
        %v9629 = vpop.f32.mrb[0].mxu0
        %v9630 = vpop.f32.mrb[0].mxu0
        %v9631 = vadd.f32 %v9470, %v9630
        %v9632 = vpop.f32.mrb[0].mxu0
        %9633 = vmatprep.mubr.bf16.mxu0 %v8724
        %9634 = vmatmul.mubr.bf16.gmra.mrb[0].mxu0 %v8723
        %v9635 = vpop.f32.mrb[0].mxu0
        %v9636 = vadd.f32 %v9475, %v9635
        %v9637 = vpop.f32.mrb[0].mxu0
        %v9638 = vpop.f32.mrb[0].mxu0
        %v9639 = vadd.f32 %v9478, %v9638
        %v9640 = vpop.f32.mrb[0].mxu0
        %9641 = vmatprep.mubr.bf16.mxu0 %v8733
        %9642 = vmatmul.mubr.bf16.gmra.mrb[0].mxu0 %v8732
        %v9643 = vpop.f32.mrb[0].mxu0
        %v9644 = vadd.f32 %v9483, %v9643
        %v9645 = vpop.f32.mrb[0].mxu0
        %v9646 = vpop.f32.mrb[0].mxu0
        %v9647 = vadd.f32 %v9486, %v9646
        %v9648 = vpop.f32.mrb[0].mxu0
        %9649 = vmatprep.mubr.bf16.mxu0 %v8742
        %9650 = vmatmul.mubr.bf16.gmra.mrb[0].mxu0 %v8741
        %v9651 = vpop.f32.mrb[0].mxu0
        %v9652 = vadd.f32 %v9491, %v9651
        %v9653 = vpop.f32.mrb[0].mxu0
        %v9654 = vpop.f32.mrb[0].mxu0
        %v9655 = vadd.f32 %v9494, %v9654
        %v9656 = vpop.f32.mrb[0].mxu0
        %9657 = vmatprep.mubr.bf16.mxu0 %v8751
        %9658 = vmatmul.mubr.bf16.gmra.mrb[0].mxu0 %v8750
        %v9659 = vpop.f32.mrb[0].mxu0
        %v9660 = vadd.f32 %v9499, %v9659
        %v9661 = vpop.f32.mrb[0].mxu0
        %v9662 = vpop.f32.mrb[0].mxu0
        %v9663 = vadd.f32 %v9502, %v9662
        %v9664 = vpop.f32.mrb[0].mxu0
        %9665 = vmatprep.mubr.bf16.mxu0 %v8760
        %9666 = vmatmul.mubr.bf16.gmra.mrb[0].mxu0 %v8759
        %v9667 = vpop.f32.mrb[0].mxu0
        %v9668 = vadd.f32 %v9507, %v9667
        %v9669 = vpop.f32.mrb[0].mxu0
        %v9670 = vpop.f32.mrb[0].mxu0
        %v9671 = vadd.f32 %v9510, %v9670
        %v9672 = vpop.f32.mrb[0].mxu0
        %9673 = vmatprep.mubr.bf16.mxu0 %v8769
        %9674 = vmatmul.mubr.bf16.gmra.mrb[0].mxu0 %v8768
        %v9675 = vpop.f32.mrb[0].mxu0
        %v9676 = vadd.f32 %v9515, %v9675
        %v9677 = vpop.f32.mrb[0].mxu0
        %v9678 = vpop.f32.mrb[0].mxu0
        %v9679 = vadd.f32 %v9518, %v9678
        %v9680 = vpop.f32.mrb[0].mxu0
        %9681 = vmatprep.mubr.bf16.mxu0 %v8778
        %9682 = vmatmul.mubr.bf16.gmra.mrb[0].mxu0 %v8777
        %v9683 = vpop.f32.mrb[0].mxu0
        %v9684 = vadd.f32 %v9523, %v9683
        %v9685 = vpop.f32.mrb[0].mxu0
        %v9686 = vpop.f32.mrb[0].mxu0
        %v9687 = vadd.f32 %v9526, %v9686
        %v9688 = vpop.f32.mrb[0].mxu0
        %9689 = vmatprep.mubr.bf16.mxu0 %v8787
        %9690 = vmatmul.mubr.bf16.gmra.mrb[0].mxu0 %v8786
        %v9691 = vpop.f32.mrb[0].mxu0
        %v9692 = vadd.f32 %v9531, %v9691
        %v9693 = vpop.f32.mrb[0].mxu0
        %v9694 = vpop.f32.mrb[0].mxu0
        %v9695 = vadd.f32 %v9534, %v9694
        %v9696 = vpop.f32.mrb[0].mxu0
        %9697 = vmatprep.mubr.bf16.mxu0 %v8796
        %9698 = vmatmul.mubr.bf16.gmra.mrb[0].mxu0 %v8795
        %v9699 = vpop.f32.mrb[0].mxu0
        %v9700 = vadd.f32 %v9539, %v9699
        %v9701 = vpop.f32.mrb[0].mxu0
        %v9702 = vpop.f32.mrb[0].mxu0
        %v9703 = vadd.f32 %v9542, %v9702
        %v9704 = vpop.f32.mrb[0].mxu0
        %9705 = vmatprep.mubr.bf16.mxu0 %v8805
        %9706 = vmatmul.mubr.bf16.gmra.mrb[0].mxu0 %v8804
        %v9707 = vpop.f32.mrb[0].mxu0
        %v9708 = vadd.f32 %v9547, %v9707
        %v9709 = vpop.f32.mrb[0].mxu0
        %v9710 = vpop.f32.mrb[0].mxu0
        %v9711 = vadd.f32 %v9550, %v9710
        %v9712 = vpop.f32.mrb[0].mxu0
        %9713 = vmatprep.mubr.bf16.mxu0 %v8814
        %9714 = vmatmul.mubr.bf16.gmra.mrb[0].mxu0 %v8813
        %v9715 = vpop.f32.mrb[0].mxu0
        %v9716 = vadd.f32 %v9555, %v9715
        %v9717 = vpop.f32.mrb[0].mxu0
        %v9718 = vpop.f32.mrb[0].mxu0
        %v9719 = vadd.f32 %v9558, %v9718
        %v9720 = vpop.f32.mrb[0].mxu0
        %9721 = vmatprep.mubr.bf16.mxu0 %v8823
        %9722 = vmatmul.mubr.bf16.gmra.mrb[0].mxu0 %v8822
        %v9723 = vpop.f32.mrb[0].mxu0
        %v9724 = vadd.f32 %v9563, %v9723
        %v9725 = vpop.f32.mrb[0].mxu0
        %v9726 = vpop.f32.mrb[0].mxu0
        %v9727 = vadd.f32 %v9566, %v9726
        %v9728 = vpop.f32.mrb[0].mxu0
        %9729 = vmatprep.mubr.bf16.mxu0 %v8832
        %9730 = vmatmul.mubr.bf16.gmra.mrb[0].mxu0 %v8831
        %v9731 = vpop.f32.mrb[0].mxu0
        %v9732 = vadd.f32 %v9571, %v9731
        %v9733 = vpop.f32.mrb[0].mxu0
        %v9734 = vpop.f32.mrb[0].mxu0
        %v9735 = vadd.f32 %v9574, %v9734
        %v9736 = vpop.f32.mrb[0].mxu0
        %9737 = vmatprep.mubr.bf16.mxu0 %v8841
        %9738 = vmatmul.mubr.bf16.gmra.mrb[0].mxu0 %v8840
        %v9739 = vpop.f32.mrb[0].mxu0
        %v9740 = vadd.f32 %v9579, %v9739
        %v9741 = vpop.f32.mrb[0].mxu0
        %v9742 = vpop.f32.mrb[0].mxu0
        %v9743 = vadd.f32 %v9582, %v9742
        %v9744 = vpop.f32.mrb[0].mxu0
        %9745 = vmatprep.mubr.bf16.mxu0 %v8850
        %9746 = vmatmul.mubr.bf16.gmra.mrb[0].mxu0 %v8849
        %v9747 = vpop.f32.mrb[0].mxu0
        %v9748 = vadd.f32 %v9587, %v9747
        %v9749 = vpop.f32.mrb[0].mxu0
        %v9750 = vpop.f32.mrb[0].mxu0
        %v9751 = vadd.f32 %v9590, %v9750
        %v9752 = vpop.f32.mrb[0].mxu0
        %9753 = vdwg.mxu0
        %9754 = vmatprep.subr.bf16.mxu0 0
        %9755 = vmatpush1.bf16.msra.mxu0 %v9320
        %9756 = vmatprep.subr.bf16.mxu0 0
        %9757 = vmatpush1.bf16.msra.mxu0 %v9321
        %9758 = vmatprep.subr.bf16.mxu0 0
        %9759 = vmatpush1.bf16.msra.mxu0 %v9322
        %9760 = vmatprep.subr.bf16.mxu0 0
        %9761 = vmatpush1.bf16.msra.mxu0 %v9323
        %9762 = vmatprep.subr.bf16.mxu0 0
        %9763 = vmatpush1.bf16.msra.mxu0 %v9324
        %9764 = vmatprep.subr.bf16.mxu0 0
        %9765 = vmatpush1.bf16.msra.mxu0 %v9325
        %9766 = vmatprep.subr.bf16.mxu0 0
        %9767 = vmatpush1.bf16.msra.mxu0 %v9326
        %9768 = vmatprep.subr.bf16.mxu0 0
        %9769 = vmatpush1.bf16.msra.mxu0 %v9327
        %9770 = vmatprep.subr.bf16.mxu0 0
        %9771 = vmatpush1.bf16.msra.mxu0 %v9328
        %9772 = vmatprep.subr.bf16.mxu0 0
        %9773 = vmatpush1.bf16.msra.mxu0 %v9329
        %9774 = vmatprep.subr.bf16.mxu0 0
        %9775 = vmatpush1.bf16.msra.mxu0 %v9330
        %9776 = vmatprep.subr.bf16.mxu0 0
        %9777 = vmatpush1.bf16.msra.mxu0 %v9331
        %9778 = vmatprep.subr.bf16.mxu0 0
        %9779 = vmatpush1.bf16.msra.mxu0 %v9332
        %9780 = vmatprep.subr.bf16.mxu0 0
        %9781 = vmatpush1.bf16.msra.mxu0 %v9333
        %9782 = vmatprep.subr.bf16.mxu0 0
        %9783 = vmatpush1.bf16.msra.mxu0 %v9334
        %9784 = vmatprep.subr.bf16.mxu0 0
        %9785 = vmatpush1.bf16.msra.mxu0 %v9335
        %9786 = vmatprep.mubr.bf16.mxu0 %v8717
        %9787 = vmatmul.mubr.bf16.gmra.mrb[0].mxu0 %v8716
        %v9788 = vpop.f32.mrb[0].mxu0
        %v9789 = vadd.f32 %v9628, %v9788
        %v9790 = vpop.f32.mrb[0].mxu0
        %v9791 = vpop.f32.mrb[0].mxu0
        %v9792 = vadd.f32 %v9631, %v9791
        %v9793 = vpop.f32.mrb[0].mxu0
        %9794 = vmatprep.mubr.bf16.mxu0 %v8726
        %9795 = vmatmul.mubr.bf16.gmra.mrb[0].mxu0 %v8725
        %v9796 = vpop.f32.mrb[0].mxu0
        %v9797 = vadd.f32 %v9636, %v9796
        %v9798 = vpop.f32.mrb[0].mxu0
        %v9799 = vpop.f32.mrb[0].mxu0
        %v9800 = vadd.f32 %v9639, %v9799
        %v9801 = vpop.f32.mrb[0].mxu0
        %9802 = vmatprep.mubr.bf16.mxu0 %v8735
        %9803 = vmatmul.mubr.bf16.gmra.mrb[0].mxu0 %v8734
        %v9804 = vpop.f32.mrb[0].mxu0
        %v9805 = vadd.f32 %v9644, %v9804
        %v9806 = vpop.f32.mrb[0].mxu0
        %v9807 = vpop.f32.mrb[0].mxu0
        %v9808 = vadd.f32 %v9647, %v9807
        %v9809 = vpop.f32.mrb[0].mxu0
        %9810 = vmatprep.mubr.bf16.mxu0 %v8744
        %9811 = vmatmul.mubr.bf16.gmra.mrb[0].mxu0 %v8743
        %v9812 = vpop.f32.mrb[0].mxu0
        %v9813 = vadd.f32 %v9652, %v9812
        %v9814 = vpop.f32.mrb[0].mxu0
        %v9815 = vpop.f32.mrb[0].mxu0
        %v9816 = vadd.f32 %v9655, %v9815
        %v9817 = vpop.f32.mrb[0].mxu0
        %9818 = vmatprep.mubr.bf16.mxu0 %v8753
        %9819 = vmatmul.mubr.bf16.gmra.mrb[0].mxu0 %v8752
        %v9820 = vpop.f32.mrb[0].mxu0
        %v9821 = vadd.f32 %v9660, %v9820
        %v9822 = vpop.f32.mrb[0].mxu0
        %v9823 = vpop.f32.mrb[0].mxu0
        %v9824 = vadd.f32 %v9663, %v9823
        %v9825 = vpop.f32.mrb[0].mxu0
        %9826 = vmatprep.mubr.bf16.mxu0 %v8762
        %9827 = vmatmul.mubr.bf16.gmra.mrb[0].mxu0 %v8761
        %v9828 = vpop.f32.mrb[0].mxu0
        %v9829 = vadd.f32 %v9668, %v9828
        %v9830 = vpop.f32.mrb[0].mxu0
        %v9831 = vpop.f32.mrb[0].mxu0
        %v9832 = vadd.f32 %v9671, %v9831
        %v9833 = vpop.f32.mrb[0].mxu0
        %9834 = vmatprep.mubr.bf16.mxu0 %v8771
        %9835 = vmatmul.mubr.bf16.gmra.mrb[0].mxu0 %v8770
        %v9836 = vpop.f32.mrb[0].mxu0
        %v9837 = vadd.f32 %v9676, %v9836
        %v9838 = vpop.f32.mrb[0].mxu0
        %v9839 = vpop.f32.mrb[0].mxu0
        %v9840 = vadd.f32 %v9679, %v9839
        %v9841 = vpop.f32.mrb[0].mxu0
        %9842 = vmatprep.mubr.bf16.mxu0 %v8780
        %9843 = vmatmul.mubr.bf16.gmra.mrb[0].mxu0 %v8779
        %v9844 = vpop.f32.mrb[0].mxu0
        %v9845 = vadd.f32 %v9684, %v9844
        %v9846 = vpop.f32.mrb[0].mxu0
        %v9847 = vpop.f32.mrb[0].mxu0
        %v9848 = vadd.f32 %v9687, %v9847
        %v9849 = vpop.f32.mrb[0].mxu0
        %9850 = vmatprep.mubr.bf16.mxu0 %v8789
        %9851 = vmatmul.mubr.bf16.gmra.mrb[0].mxu0 %v8788
        %v9852 = vpop.f32.mrb[0].mxu0
        %v9853 = vadd.f32 %v9692, %v9852
        %v9854 = vpop.f32.mrb[0].mxu0
        %v9855 = vpop.f32.mrb[0].mxu0
        %v9856 = vadd.f32 %v9695, %v9855
        %v9857 = vpop.f32.mrb[0].mxu0
        %9858 = vmatprep.mubr.bf16.mxu0 %v8798
        %9859 = vmatmul.mubr.bf16.gmra.mrb[0].mxu0 %v8797
        %v9860 = vpop.f32.mrb[0].mxu0
        %v9861 = vadd.f32 %v9700, %v9860
        %v9862 = vpop.f32.mrb[0].mxu0
        %v9863 = vpop.f32.mrb[0].mxu0
        %v9864 = vadd.f32 %v9703, %v9863
        %v9865 = vpop.f32.mrb[0].mxu0
        %9866 = vmatprep.mubr.bf16.mxu0 %v8807
        %9867 = vmatmul.mubr.bf16.gmra.mrb[0].mxu0 %v8806
        %v9868 = vpop.f32.mrb[0].mxu0
        %v9869 = vadd.f32 %v9708, %v9868
        %v9870 = vpop.f32.mrb[0].mxu0
        %v9871 = vpop.f32.mrb[0].mxu0
        %v9872 = vadd.f32 %v9711, %v9871
        %v9873 = vpop.f32.mrb[0].mxu0
        %9874 = vmatprep.mubr.bf16.mxu0 %v8816
        %9875 = vmatmul.mubr.bf16.gmra.mrb[0].mxu0 %v8815
        %v9876 = vpop.f32.mrb[0].mxu0
        %v9877 = vadd.f32 %v9716, %v9876
        %v9878 = vpop.f32.mrb[0].mxu0
        %v9879 = vpop.f32.mrb[0].mxu0
        %v9880 = vadd.f32 %v9719, %v9879
        %v9881 = vpop.f32.mrb[0].mxu0
        %9882 = vmatprep.mubr.bf16.mxu0 %v8825
        %9883 = vmatmul.mubr.bf16.gmra.mrb[0].mxu0 %v8824
        %v9884 = vpop.f32.mrb[0].mxu0
        %v9885 = vadd.f32 %v9724, %v9884
        %v9886 = vpop.f32.mrb[0].mxu0
        %v9887 = vpop.f32.mrb[0].mxu0
        %v9888 = vadd.f32 %v9727, %v9887
        %v9889 = vpop.f32.mrb[0].mxu0
        %9890 = vmatprep.mubr.bf16.mxu0 %v8834
        %9891 = vmatmul.mubr.bf16.gmra.mrb[0].mxu0 %v8833
        %v9892 = vpop.f32.mrb[0].mxu0
        %v9893 = vadd.f32 %v9732, %v9892
        %v9894 = vpop.f32.mrb[0].mxu0
        %v9895 = vpop.f32.mrb[0].mxu0
        %v9896 = vadd.f32 %v9735, %v9895
        %v9897 = vpop.f32.mrb[0].mxu0
        %9898 = vmatprep.mubr.bf16.mxu0 %v8843
        %9899 = vmatmul.mubr.bf16.gmra.mrb[0].mxu0 %v8842
        %v9900 = vpop.f32.mrb[0].mxu0
        %v9901 = vadd.f32 %v9740, %v9900
        %v9902 = vpop.f32.mrb[0].mxu0
        %v9903 = vpop.f32.mrb[0].mxu0
        %v9904 = vadd.f32 %v9743, %v9903
        %v9905 = vpop.f32.mrb[0].mxu0
        %9906 = vmatprep.mubr.bf16.mxu0 %v8852
        %9907 = vmatmul.mubr.bf16.gmra.mrb[0].mxu0 %v8851
        %v9908 = vpop.f32.mrb[0].mxu0
        %v9909 = vadd.f32 %v9748, %v9908
        %v9910 = vpop.f32.mrb[0].mxu0
        %v9911 = vpop.f32.mrb[0].mxu0
        %v9912 = vadd.f32 %v9751, %v9911
        %v9913 = vpop.f32.mrb[0].mxu0
        %9914 = vdwg.mxu0
        %9915 = vmatprep.subr.bf16.mxu0 0
        %9916 = vmatpush1.bf16.msra.mxu0 %v9336
        %9917 = vmatprep.subr.bf16.mxu0 0
        %9918 = vmatpush1.bf16.msra.mxu0 %v9337
        %9919 = vmatprep.subr.bf16.mxu0 0
        %9920 = vmatpush1.bf16.msra.mxu0 %v9338
        %9921 = vmatprep.subr.bf16.mxu0 0
        %9922 = vmatpush1.bf16.msra.mxu0 %v9339
        %9923 = vmatprep.subr.bf16.mxu0 0
        %9924 = vmatpush1.bf16.msra.mxu0 %v9340
        %9925 = vmatprep.subr.bf16.mxu0 0
        %9926 = vmatpush1.bf16.msra.mxu0 %v9341
        %9927 = vmatprep.subr.bf16.mxu0 0
        %9928 = vmatpush1.bf16.msra.mxu0 %v9342
        %9929 = vmatprep.subr.bf16.mxu0 0
        %9930 = vmatpush1.bf16.msra.mxu0 %v9343
        %9931 = vmatprep.subr.bf16.mxu0 0
        %9932 = vmatpush1.bf16.msra.mxu0 %v9344
        %9933 = vmatprep.subr.bf16.mxu0 0
        %9934 = vmatpush1.bf16.msra.mxu0 %v9345
        %9935 = vmatprep.subr.bf16.mxu0 0
        %9936 = vmatpush1.bf16.msra.mxu0 %v9346
        %9937 = vmatprep.subr.bf16.mxu0 0
        %9938 = vmatpush1.bf16.msra.mxu0 %v9347
        %9939 = vmatprep.subr.bf16.mxu0 0
        %9940 = vmatpush1.bf16.msra.mxu0 %v9348
        %9941 = vmatprep.subr.bf16.mxu0 0
        %9942 = vmatpush1.bf16.msra.mxu0 %v9349
        %9943 = vmatprep.subr.bf16.mxu0 0
        %9944 = vmatpush1.bf16.msra.mxu0 %v9350
        %9945 = vmatprep.subr.bf16.mxu0 0
        %9946 = vmatpush1.bf16.msra.mxu0 %v9351
        %9947 = vmatprep.mubr.bf16.mxu0 %v8719
        %9948 = vmatmul.mubr.bf16.gmra.mrb[0].mxu0 %v8718
        %v9949 = vpop.f32.mrb[0].mxu0
        %v9950 = vadd.f32 %v9789, %v9949
        %v9951 = vpop.f32.mrb[0].mxu0
        %v9952 = vpop.f32.mrb[0].mxu0
        %v9953 = vadd.f32 %v9792, %v9952
        %v9954 = vpop.f32.mrb[0].mxu0
        %9955 = vmatprep.mubr.bf16.mxu0 %v8728
        %9956 = vmatmul.mubr.bf16.gmra.mrb[0].mxu0 %v8727
        %v9957 = vpop.f32.mrb[0].mxu0
        %v9958 = vadd.f32 %v9797, %v9957
        %v9959 = vpop.f32.mrb[0].mxu0
        %v9960 = vpop.f32.mrb[0].mxu0
        %v9961 = vadd.f32 %v9800, %v9960
        %v9962 = vpop.f32.mrb[0].mxu0
        %9963 = vmatprep.mubr.bf16.mxu0 %v8737
        %9964 = vmatmul.mubr.bf16.gmra.mrb[0].mxu0 %v8736
        %v9965 = vpop.f32.mrb[0].mxu0
        %v9966 = vadd.f32 %v9805, %v9965
        %v9967 = vpop.f32.mrb[0].mxu0
        %v9968 = vpop.f32.mrb[0].mxu0
        %v9969 = vadd.f32 %v9808, %v9968
        %v9970 = vpop.f32.mrb[0].mxu0
        %9971 = vmatprep.mubr.bf16.mxu0 %v8746
        %9972 = vmatmul.mubr.bf16.gmra.mrb[0].mxu0 %v8745
        %v9973 = vpop.f32.mrb[0].mxu0
        %v9974 = vadd.f32 %v9813, %v9973
        %v9975 = vpop.f32.mrb[0].mxu0
        %v9976 = vpop.f32.mrb[0].mxu0
        %v9977 = vadd.f32 %v9816, %v9976
        %v9978 = vpop.f32.mrb[0].mxu0
        %9979 = vmatprep.mubr.bf16.mxu0 %v8755
        %9980 = vmatmul.mubr.bf16.gmra.mrb[0].mxu0 %v8754
        %v9981 = vpop.f32.mrb[0].mxu0
        %v9982 = vadd.f32 %v9821, %v9981
        %v9983 = vpop.f32.mrb[0].mxu0
        %v9984 = vpop.f32.mrb[0].mxu0
        %v9985 = vadd.f32 %v9824, %v9984
        %v9986 = vpop.f32.mrb[0].mxu0
        %9987 = vmatprep.mubr.bf16.mxu0 %v8764
        %9988 = vmatmul.mubr.bf16.gmra.mrb[0].mxu0 %v8763
        %v9989 = vpop.f32.mrb[0].mxu0
        %v9990 = vadd.f32 %v9829, %v9989
        %v9991 = vpop.f32.mrb[0].mxu0
        %v9992 = vpop.f32.mrb[0].mxu0
        %v9993 = vadd.f32 %v9832, %v9992
        %v9994 = vpop.f32.mrb[0].mxu0
        %9995 = vmatprep.mubr.bf16.mxu0 %v8773
        %9996 = vmatmul.mubr.bf16.gmra.mrb[0].mxu0 %v8772
        %v9997 = vpop.f32.mrb[0].mxu0
        %v9998 = vadd.f32 %v9837, %v9997
        %v9999 = vpop.f32.mrb[0].mxu0
        %v10000 = vpop.f32.mrb[0].mxu0
        %v10001 = vadd.f32 %v9840, %v10000
        %v10002 = vpop.f32.mrb[0].mxu0
        %10003 = vmatprep.mubr.bf16.mxu0 %v8782
        %10004 = vmatmul.mubr.bf16.gmra.mrb[0].mxu0 %v8781
        %v10005 = vpop.f32.mrb[0].mxu0
        %v10006 = vadd.f32 %v9845, %v10005
        %v10007 = vpop.f32.mrb[0].mxu0
        %v10008 = vpop.f32.mrb[0].mxu0
        %v10009 = vadd.f32 %v9848, %v10008
        %v10010 = vpop.f32.mrb[0].mxu0
        %10011 = vmatprep.mubr.bf16.mxu0 %v8791
        %10012 = vmatmul.mubr.bf16.gmra.mrb[0].mxu0 %v8790
        %v10013 = vpop.f32.mrb[0].mxu0
        %v10014 = vadd.f32 %v9853, %v10013
        %v10015 = vpop.f32.mrb[0].mxu0
        %v10016 = vpop.f32.mrb[0].mxu0
        %v10017 = vadd.f32 %v9856, %v10016
        %v10018 = vpop.f32.mrb[0].mxu0
        %10019 = vmatprep.mubr.bf16.mxu0 %v8800
        %10020 = vmatmul.mubr.bf16.gmra.mrb[0].mxu0 %v8799
        %v10021 = vpop.f32.mrb[0].mxu0
        %v10022 = vadd.f32 %v9861, %v10021
        %v10023 = vpop.f32.mrb[0].mxu0
        %v10024 = vpop.f32.mrb[0].mxu0
        %v10025 = vadd.f32 %v9864, %v10024
        %v10026 = vpop.f32.mrb[0].mxu0
        %10027 = vmatprep.mubr.bf16.mxu0 %v8809
        %10028 = vmatmul.mubr.bf16.gmra.mrb[0].mxu0 %v8808
        %v10029 = vpop.f32.mrb[0].mxu0
        %v10030 = vadd.f32 %v9869, %v10029
        %v10031 = vpop.f32.mrb[0].mxu0
        %v10032 = vpop.f32.mrb[0].mxu0
        %v10033 = vadd.f32 %v9872, %v10032
        %v10034 = vpop.f32.mrb[0].mxu0
        %10035 = vmatprep.mubr.bf16.mxu0 %v8818
        %10036 = vmatmul.mubr.bf16.gmra.mrb[0].mxu0 %v8817
        %v10037 = vpop.f32.mrb[0].mxu0
        %v10038 = vadd.f32 %v9877, %v10037
        %v10039 = vpop.f32.mrb[0].mxu0
        %v10040 = vpop.f32.mrb[0].mxu0
        %v10041 = vadd.f32 %v9880, %v10040
        %v10042 = vpop.f32.mrb[0].mxu0
        %10043 = vmatprep.mubr.bf16.mxu0 %v8827
        %10044 = vmatmul.mubr.bf16.gmra.mrb[0].mxu0 %v8826
        %v10045 = vpop.f32.mrb[0].mxu0
        %v10046 = vadd.f32 %v9885, %v10045
        %v10047 = vpop.f32.mrb[0].mxu0
        %v10048 = vpop.f32.mrb[0].mxu0
        %v10049 = vadd.f32 %v9888, %v10048
        %v10050 = vpop.f32.mrb[0].mxu0
        %10051 = vmatprep.mubr.bf16.mxu0 %v8836
        %10052 = vmatmul.mubr.bf16.gmra.mrb[0].mxu0 %v8835
        %v10053 = vpop.f32.mrb[0].mxu0
        %v10054 = vadd.f32 %v9893, %v10053
        %v10055 = vpop.f32.mrb[0].mxu0
        %v10056 = vpop.f32.mrb[0].mxu0
        %v10057 = vadd.f32 %v9896, %v10056
        %v10058 = vpop.f32.mrb[0].mxu0
        %10059 = vmatprep.mubr.bf16.mxu0 %v8845
        %10060 = vmatmul.mubr.bf16.gmra.mrb[0].mxu0 %v8844
        %v10061 = vpop.f32.mrb[0].mxu0
        %v10062 = vadd.f32 %v9901, %v10061
        %v10063 = vpop.f32.mrb[0].mxu0
        %v10064 = vpop.f32.mrb[0].mxu0
        %v10065 = vadd.f32 %v9904, %v10064
        %v10066 = vpop.f32.mrb[0].mxu0
        %10067 = vmatprep.mubr.bf16.mxu0 %v8854
        %10068 = vmatmul.mubr.bf16.gmra.mrb[0].mxu0 %v8853
        %v10069 = vpop.f32.mrb[0].mxu0
        %v10070 = vadd.f32 %v9909, %v10069
        %v10071 = vpop.f32.mrb[0].mxu0
        %v10072 = vpop.f32.mrb[0].mxu0
        %v10073 = vadd.f32 %v9912, %v10072
        %v10074 = vpop.f32.mrb[0].mxu0
        %10075 = vdwg.mxu0
        %10076 = vmatprep.subr.bf16.mxu0 0
        %10077 = vmatpush1.bf16.msra.mxu0 %v9352
        %10078 = vmatprep.subr.bf16.mxu0 0
        %10079 = vmatpush1.bf16.msra.mxu0 %v9353
        %10080 = vmatprep.subr.bf16.mxu0 0
        %10081 = vmatpush1.bf16.msra.mxu0 %v9354
        %10082 = vmatprep.subr.bf16.mxu0 0
        %10083 = vmatpush1.bf16.msra.mxu0 %v9355
        %10084 = vmatprep.subr.bf16.mxu0 0
        %10085 = vmatpush1.bf16.msra.mxu0 %v9356
        %10086 = vmatprep.subr.bf16.mxu0 0
        %10087 = vmatpush1.bf16.msra.mxu0 %v9357
        %10088 = vmatprep.subr.bf16.mxu0 0
        %10089 = vmatpush1.bf16.msra.mxu0 %v9358
        %10090 = vmatprep.subr.bf16.mxu0 0
        %10091 = vmatpush1.bf16.msra.mxu0 %v9359
        %10092 = vmatprep.subr.bf16.mxu0 0
        %10093 = vmatpush1.bf16.msra.mxu0 0
        %10094 = vmatprep.subr.bf16.mxu0 0
        %10095 = vmatpush1.bf16.msra.mxu0 0
        %10096 = vmatprep.subr.bf16.mxu0 0
        %10097 = vmatpush1.bf16.msra.mxu0 0
        %10098 = vmatprep.subr.bf16.mxu0 0
        %10099 = vmatpush1.bf16.msra.mxu0 0
        %10100 = vmatprep.subr.bf16.mxu0 0
        %10101 = vmatpush1.bf16.msra.mxu0 0
        %10102 = vmatprep.subr.bf16.mxu0 0
        %10103 = vmatpush1.bf16.msra.mxu0 0
        %10104 = vmatprep.subr.bf16.mxu0 0
        %10105 = vmatpush1.bf16.msra.mxu0 0
        %10106 = vmatprep.subr.bf16.mxu0 0
        %10107 = vmatpush1.bf16.msra.mxu0 0
        %10108 = vmatprep.mubr.bf16.mxu0 0
        %10109 = vmatmul.mubr.bf16.gmra.mrb[0].mxu0 %v8720
        %v10110 = vpop.f32.mrb[0].mxu0
        %v10111 = vadd.f32 %v9950, %v10110
        %v10112 = vpop.f32.mrb[0].mxu0
        %v10113 = vpop.f32.mrb[0].mxu0
        %v10114 = vadd.f32 %v9953, %v10113
        %v10115 = vpop.f32.mrb[0].mxu0
        %10116 = vmatprep.mubr.bf16.mxu0 0
        %10117 = vmatmul.mubr.bf16.gmra.mrb[0].mxu0 %v8729
        %v10118 = vpop.f32.mrb[0].mxu0
        %v10119 = vadd.f32 %v9958, %v10118
        %v10120 = vpop.f32.mrb[0].mxu0
        %v10121 = vpop.f32.mrb[0].mxu0
        %v10122 = vadd.f32 %v9961, %v10121
        %v10123 = vpop.f32.mrb[0].mxu0
        %10124 = vmatprep.mubr.bf16.mxu0 0
        %10125 = vmatmul.mubr.bf16.gmra.mrb[0].mxu0 %v8738
        %v10126 = vpop.f32.mrb[0].mxu0
        %v10127 = vadd.f32 %v9966, %v10126
        %v10128 = vpop.f32.mrb[0].mxu0
        %v10129 = vpop.f32.mrb[0].mxu0
        %v10130 = vadd.f32 %v9969, %v10129
        %v10131 = vpop.f32.mrb[0].mxu0
        %10132 = vmatprep.mubr.bf16.mxu0 0
        %10133 = vmatmul.mubr.bf16.gmra.mrb[0].mxu0 %v8747
        %v10134 = vpop.f32.mrb[0].mxu0
        %v10135 = vadd.f32 %v9974, %v10134
        %v10136 = vpop.f32.mrb[0].mxu0
        %v10137 = vpop.f32.mrb[0].mxu0
        %v10138 = vadd.f32 %v9977, %v10137
        %v10139 = vpop.f32.mrb[0].mxu0
        %10140 = vmatprep.mubr.bf16.mxu0 0
        %10141 = vmatmul.mubr.bf16.gmra.mrb[0].mxu0 %v8756
        %v10142 = vpop.f32.mrb[0].mxu0
        %v10143 = vadd.f32 %v9982, %v10142
        %v10144 = vpop.f32.mrb[0].mxu0
        %v10145 = vpop.f32.mrb[0].mxu0
        %v10146 = vadd.f32 %v9985, %v10145
        %v10147 = vpop.f32.mrb[0].mxu0
        %10148 = vmatprep.mubr.bf16.mxu0 0
        %10149 = vmatmul.mubr.bf16.gmra.mrb[0].mxu0 %v8765
        %v10150 = vpop.f32.mrb[0].mxu0
        %v10151 = vadd.f32 %v9990, %v10150
        %v10152 = vpop.f32.mrb[0].mxu0
        %v10153 = vpop.f32.mrb[0].mxu0
        %v10154 = vadd.f32 %v9993, %v10153
        %v10155 = vpop.f32.mrb[0].mxu0
        %10156 = vmatprep.mubr.bf16.mxu0 0
        %10157 = vmatmul.mubr.bf16.gmra.mrb[0].mxu0 %v8774
        %v10158 = vpop.f32.mrb[0].mxu0
        %v10159 = vadd.f32 %v9998, %v10158
        %v10160 = vpop.f32.mrb[0].mxu0
        %v10161 = vpop.f32.mrb[0].mxu0
        %v10162 = vadd.f32 %v10001, %v10161
        %v10163 = vpop.f32.mrb[0].mxu0
        %10164 = vmatprep.mubr.bf16.mxu0 0
        %10165 = vmatmul.mubr.bf16.gmra.mrb[0].mxu0 %v8783
        %v10166 = vpop.f32.mrb[0].mxu0
        %v10167 = vadd.f32 %v10006, %v10166
        %v10168 = vpop.f32.mrb[0].mxu0
        %v10169 = vpop.f32.mrb[0].mxu0
        %v10170 = vadd.f32 %v10009, %v10169
        %v10171 = vpop.f32.mrb[0].mxu0
        %10172 = vmatprep.mubr.bf16.mxu0 0
        %10173 = vmatmul.mubr.bf16.gmra.mrb[0].mxu0 %v8792
        %v10174 = vpop.f32.mrb[0].mxu0
        %v10175 = vadd.f32 %v10014, %v10174
        %v10176 = vpop.f32.mrb[0].mxu0
        %v10177 = vpop.f32.mrb[0].mxu0
        %v10178 = vadd.f32 %v10017, %v10177
        %v10179 = vpop.f32.mrb[0].mxu0
        %10180 = vmatprep.mubr.bf16.mxu0 0
        %10181 = vmatmul.mubr.bf16.gmra.mrb[0].mxu0 %v8801
        %v10182 = vpop.f32.mrb[0].mxu0
        %v10183 = vadd.f32 %v10022, %v10182
        %v10184 = vpop.f32.mrb[0].mxu0
        %v10185 = vpop.f32.mrb[0].mxu0
        %v10186 = vadd.f32 %v10025, %v10185
        %v10187 = vpop.f32.mrb[0].mxu0
        %10188 = vmatprep.mubr.bf16.mxu0 0
        %10189 = vmatmul.mubr.bf16.gmra.mrb[0].mxu0 %v8810
        %v10190 = vpop.f32.mrb[0].mxu0
        %v10191 = vadd.f32 %v10030, %v10190
        %v10192 = vpop.f32.mrb[0].mxu0
        %v10193 = vpop.f32.mrb[0].mxu0
        %v10194 = vadd.f32 %v10033, %v10193
        %v10195 = vpop.f32.mrb[0].mxu0
        %10196 = vmatprep.mubr.bf16.mxu0 0
        %10197 = vmatmul.mubr.bf16.gmra.mrb[0].mxu0 %v8819
        %v10198 = vpop.f32.mrb[0].mxu0
        %v10199 = vadd.f32 %v10038, %v10198
        %v10200 = vpop.f32.mrb[0].mxu0
        %v10201 = vpop.f32.mrb[0].mxu0
        %v10202 = vadd.f32 %v10041, %v10201
        %v10203 = vpop.f32.mrb[0].mxu0
        %10204 = vmatprep.mubr.bf16.mxu0 0
        %10205 = vmatmul.mubr.bf16.gmra.mrb[0].mxu0 %v8828
        %v10206 = vpop.f32.mrb[0].mxu0
        %v10207 = vadd.f32 %v10046, %v10206
        %v10208 = vpop.f32.mrb[0].mxu0
        %v10209 = vpop.f32.mrb[0].mxu0
        %v10210 = vadd.f32 %v10049, %v10209
        %v10211 = vpop.f32.mrb[0].mxu0
        %10212 = vmatprep.mubr.bf16.mxu0 0
        %10213 = vmatmul.mubr.bf16.gmra.mrb[0].mxu0 %v8837
        %v10214 = vpop.f32.mrb[0].mxu0
        %v10215 = vadd.f32 %v10054, %v10214
        %v10216 = vpop.f32.mrb[0].mxu0
        %v10217 = vpop.f32.mrb[0].mxu0
        %v10218 = vadd.f32 %v10057, %v10217
        %v10219 = vpop.f32.mrb[0].mxu0
        %10220 = vmatprep.mubr.bf16.mxu0 0
        %10221 = vmatmul.mubr.bf16.gmra.mrb[0].mxu0 %v8846
        %v10222 = vpop.f32.mrb[0].mxu0
        %v10223 = vadd.f32 %v10062, %v10222
        %v10224 = vpop.f32.mrb[0].mxu0
        %v10225 = vpop.f32.mrb[0].mxu0
        %v10226 = vadd.f32 %v10065, %v10225
        %v10227 = vpop.f32.mrb[0].mxu0
        %10228 = vmatprep.mubr.bf16.mxu0 0
        %10229 = vmatmul.mubr.bf16.gmra.mrb[0].mxu0 %v8855
        %v10230 = vpop.f32.mrb[0].mxu0
        %v10231 = vadd.f32 %v10070, %v10230
        %v10232 = vpop.f32.mrb[0].mxu0
        %v10233 = vpop.f32.mrb[0].mxu0
        %v10234 = vadd.f32 %v10073, %v10233
        %v10235 = vpop.f32.mrb[0].mxu0
        %10236 = vdwg.mxu0
        %v10237 = vld [vmem:[%s5] sm:$0x1]
        %v10239 = vlaneseq
        %v10240 = vshrl.u32 %v10239, 7
        %v10241 = vsub.s32 0, %v10240
        %v10242 = vrot.slane %v10237, %v10241
        %v10244 = vmul.f32 %v10111, %v10242
        %v10245 = vmul.f32 %v10114, %v10242
        %v10246 = vmul.f32 %v10119, %v10242
        %v10247 = vmul.f32 %v10122, %v10242
        %v10248 = vmul.f32 %v10127, %v10242
        %v10249 = vmul.f32 %v10130, %v10242
        %v10250 = vmul.f32 %v10135, %v10242
        %v10251 = vmul.f32 %v10138, %v10242
        %v10252 = vmul.f32 %v10143, %v10242
        %v10253 = vmul.f32 %v10146, %v10242
        %v10254 = vmul.f32 %v10151, %v10242
        %v10255 = vmul.f32 %v10154, %v10242
        %v10256 = vmul.f32 %v10159, %v10242
        %v10257 = vmul.f32 %v10162, %v10242
        %v10258 = vmul.f32 %v10167, %v10242
        %v10259 = vmul.f32 %v10170, %v10242
        %v10260 = vmul.f32 %v10175, %v10242
        %v10261 = vmul.f32 %v10178, %v10242
        %v10262 = vmul.f32 %v10183, %v10242
        %v10263 = vmul.f32 %v10186, %v10242
        %v10264 = vmul.f32 %v10191, %v10242
        %v10265 = vmul.f32 %v10194, %v10242
        %v10266 = vmul.f32 %v10199, %v10242
        %v10267 = vmul.f32 %v10202, %v10242
        %v10268 = vmul.f32 %v10207, %v10242
        %v10269 = vmul.f32 %v10210, %v10242
        %v10270 = vmul.f32 %v10215, %v10242
        %v10271 = vmul.f32 %v10218, %v10242
        %v10272 = vmul.f32 %v10223, %v10242
        %v10273 = vmul.f32 %v10226, %v10242
        %v10274 = vmul.f32 %v10231, %v10242
        %v10275 = vmul.f32 %v10234, %v10242
        %v10276 = vld [vmem:[%s6] sm:$0x1]
        %v10278 = vlaneseq
        %v10279 = vshrl.u32 %v10278, 7
        %v10280 = vsub.s32 0, %v10279
        %v10281 = vrot.slane %v10276, %v10280
        %v10283 = vadd.f32 %v10244, %v10281
        %v10284 = vadd.f32 %v10245, %v10281
        %v10285 = vadd.f32 %v10246, %v10281
        %v10286 = vadd.f32 %v10247, %v10281
        %v10287 = vadd.f32 %v10248, %v10281
        %v10288 = vadd.f32 %v10249, %v10281
        %v10289 = vadd.f32 %v10250, %v10281
        %v10290 = vadd.f32 %v10251, %v10281
        %v10291 = vadd.f32 %v10252, %v10281
        %v10292 = vadd.f32 %v10253, %v10281
        %v10293 = vadd.f32 %v10254, %v10281
        %v10294 = vadd.f32 %v10255, %v10281
        %v10295 = vadd.f32 %v10256, %v10281
        %v10296 = vadd.f32 %v10257, %v10281
        %v10297 = vadd.f32 %v10258, %v10281
        %v10298 = vadd.f32 %v10259, %v10281
        %v10299 = vadd.f32 %v10260, %v10281
        %v10300 = vadd.f32 %v10261, %v10281
        %v10301 = vadd.f32 %v10262, %v10281
        %v10302 = vadd.f32 %v10263, %v10281
        %v10303 = vadd.f32 %v10264, %v10281
        %v10304 = vadd.f32 %v10265, %v10281
        %v10305 = vadd.f32 %v10266, %v10281
        %v10306 = vadd.f32 %v10267, %v10281
        %v10307 = vadd.f32 %v10268, %v10281
        %v10308 = vadd.f32 %v10269, %v10281
        %v10309 = vadd.f32 %v10270, %v10281
        %v10310 = vadd.f32 %v10271, %v10281
        %v10311 = vadd.f32 %v10272, %v10281
        %v10312 = vadd.f32 %v10273, %v10281
        %v10313 = vadd.f32 %v10274, %v10281
        %v10314 = vadd.f32 %v10275, %v10281
        %v10315 = vmax.f32 %v10283, 0.0
        %v10316 = vmax.f32 %v10284, 0.0
        %v10317 = vmax.f32 %v10285, 0.0
        %v10318 = vmax.f32 %v10286, 0.0
        %v10319 = vmax.f32 %v10287, 0.0
        %v10320 = vmax.f32 %v10288, 0.0
        %v10321 = vmax.f32 %v10289, 0.0
        %v10322 = vmax.f32 %v10290, 0.0
        %v10323 = vmax.f32 %v10291, 0.0
        %v10324 = vmax.f32 %v10292, 0.0
        %v10325 = vmax.f32 %v10293, 0.0
        %v10326 = vmax.f32 %v10294, 0.0
        %v10327 = vmax.f32 %v10295, 0.0
        %v10328 = vmax.f32 %v10296, 0.0
        %v10329 = vmax.f32 %v10297, 0.0
        %v10330 = vmax.f32 %v10298, 0.0
        %v10331 = vmax.f32 %v10299, 0.0
        %v10332 = vmax.f32 %v10300, 0.0
        %v10333 = vmax.f32 %v10301, 0.0
        %v10334 = vmax.f32 %v10302, 0.0
        %v10335 = vmax.f32 %v10303, 0.0
        %v10336 = vmax.f32 %v10304, 0.0
        %v10337 = vmax.f32 %v10305, 0.0
        %v10338 = vmax.f32 %v10306, 0.0
        %v10339 = vmax.f32 %v10307, 0.0
        %v10340 = vmax.f32 %v10308, 0.0
        %v10341 = vmax.f32 %v10309, 0.0
        %v10342 = vmax.f32 %v10310, 0.0
        %v10343 = vmax.f32 %v10311, 0.0
        %v10344 = vmax.f32 %v10312, 0.0
        %v10345 = vmax.f32 %v10313, 0.0
        %v10346 = vmax.f32 %v10314, 0.0
        %10347 = vst [vmem:[%s293] sm:$0xff] %v10315
        %10348 = vst [vmem:[%s293 + $0x8] sm:$0xff] %v10316
        %10349 = vst [vmem:[%s293 + $0x10] sm:$0xff] %v10317
        %10350 = vst [vmem:[%s293 + $0x18] sm:$0xff] %v10318
        %10351 = vst [vmem:[%s293 + $0x20] sm:$0xff] %v10319
        %10352 = vst [vmem:[%s293 + $0x28] sm:$0xff] %v10320
        %10353 = vst [vmem:[%s293 + $0x30] sm:$0xff] %v10321
        %10354 = vst [vmem:[%s293 + $0x38] sm:$0xff] %v10322
        %10355 = vst [vmem:[%s293 + $0x40] sm:$0xff] %v10323
        %10356 = vst [vmem:[%s293 + $0x48] sm:$0xff] %v10324
        %10357 = vst [vmem:[%s293 + $0x50] sm:$0xff] %v10325
        %10358 = vst [vmem:[%s293 + $0x58] sm:$0xff] %v10326
        %10359 = vst [vmem:[%s293 + $0x60] sm:$0xff] %v10327
        %10360 = vst [vmem:[%s293 + $0x68] sm:$0xff] %v10328
        %10361 = vst [vmem:[%s293 + $0x70] sm:$0xff] %v10329
        %10362 = vst [vmem:[%s293 + $0x78] sm:$0xff] %v10330
        %10363 = vst [vmem:[%s293 + $0x80] sm:$0xff] %v10331
        %10364 = vst [vmem:[%s293 + $0x88] sm:$0xff] %v10332
        %10365 = vst [vmem:[%s293 + $0x90] sm:$0xff] %v10333
        %10366 = vst [vmem:[%s293 + $0x98] sm:$0xff] %v10334
        %10367 = vst [vmem:[%s293 + $0xa0] sm:$0xff] %v10335
        %10368 = vst [vmem:[%s293 + $0xa8] sm:$0xff] %v10336
        %10369 = vst [vmem:[%s293 + $0xb0] sm:$0xff] %v10337
        %10370 = vst [vmem:[%s293 + $0xb8] sm:$0xff] %v10338
        %10371 = vst [vmem:[%s293 + $0xc0] sm:$0xff] %v10339
        %10372 = vst [vmem:[%s293 + $0xc8] sm:$0xff] %v10340
        %10373 = vst [vmem:[%s293 + $0xd0] sm:$0xff] %v10341
        %10374 = vst [vmem:[%s293 + $0xd8] sm:$0xff] %v10342
        %10375 = vst [vmem:[%s293 + $0xe0] sm:$0xff] %v10343
        %10376 = vst [vmem:[%s293 + $0xe8] sm:$0xff] %v10344
        %10377 = vst [vmem:[%s293 + $0xf0] sm:$0xff] %v10345
        %10378 = vst [vmem:[%s293 + $0xf8] sm:$0xff] %v10346
        %p10379 = scmp.lt.s32.totalorder %s19, 1
        %s10380 = scalar_select %p10379, %s19, 1
        %s10381 = smul.addr %s10380, 32
        %s10382 = smul.addr %s10381, 8
        %s10383 = scalar_lea.vmem %s7, %s10382
        // Predicated region
        $region53: #{double_conv.1} parent=47 // pred_check
          %p10384 = pneg %p189
        $region54: #{double_conv.1} parent=47 // pred_check_branch
          %10386 = sbr.rel (%p10384) target = $region56
        $region55: #{double_conv.1} parent=47 // pred_region
          _
        $region56: #{double_conv.1} parent=47 // pred_fallthru
          _
      $region48: #{double_conv.1} parent=5 // pred_fallthru
        _
      %p10387 = scmp.le.s32.totalorder 2, %s14
      // Predicated region
      $region57: #{double_conv.1} parent=5 // pred_check
        %p10388 = pneg %p10387
      $region58: #{double_conv.1} parent=5 // pred_check_branch
        %10390 = sbr.rel (%p10388) target = $region60
      $region59: #{double_conv.1} parent=5 // pred_region
        %s10391 = ssub.s32 %s14, 2
        // Predicated region
        $region61: #{double_conv.1} parent=59 // pred_check
          %p10392 = pneg %p195
        $region62: #{double_conv.1} parent=59 // pred_check_branch
          %10394 = sbr.rel (%p10392) target = $region64
        $region63: #{double_conv.1} parent=59 // pred_region
          %p10395 = scmp.lt.s32.totalorder %s20, 1
          %s10396 = scalar_select %p10395, %s20, 1
          %s10397 = smul.addr %s10396, 32
          %s10398 = smul.addr %s10397, 8
          %s10399 = scalar_lea.vmem %s7, %s10398
        $region64: #{double_conv.1} parent=59 // pred_fallthru
          _
      $region60: #{double_conv.1} parent=5 // pred_fallthru
        _
    $region6: #{double_conv.1} parent=1 // loop_footer
      %s18 = sadd.s32 1, %s14
    $region7: #{double_conv.1} parent=1 // loop_footer_branch
      %13 = sbr.rel target = $region3
    $region8: #{double_conv.1} parent=1 // loop_exit
      _
    %10400 = vsyncpa [#allocation7], 1
    %s10401 = scalar_lea.sflag [#allocation7], 1
    %10402 = vsyncpa %s10401, 1

</llo_original>
